<compile_context>
chip_gen: v5e
topology: v5e:2x2
jax: 0.10.0
libtpu: 0.0.40
codegen_flags: <defaults>
</compile_context>

<pallas_src>
import functools

import jax
import jax.numpy as jnp
from jax.experimental import pallas as pl
from jax.experimental.pallas import tpu as pltpu

_LANE = 128
_BN_EPS = 1e-5
_TILE_M = 512                     # pixel-axis GEMM tile cap
_VMEM_LIMIT = 48 * 1024 * 1024    # < v7x 64 MiB physical, > v5e/v6e default scoped limits


def _round_up(v, m):
    return (v + m - 1) // m * m


def _pad_ch(c):
    return _round_up(c, _LANE)


def _pick_tile(m, cap=_TILE_M):
    """Pixel-tile size: multiple of 16, <= cap, and >= 2 grid steps when m allows (v7x megacore)."""
    t = min(cap, _round_up(m, 16))
    if m >= 32:
        t = min(t, _round_up((m + 1) // 2, 16))
    return max(t, 16)


def _cparams(*semantics):
    return pltpu.CompilerParams(dimension_semantics=semantics,
                                vmem_limit_bytes=_VMEM_LIMIT)


# ------------------------------------------------------------------------------- Pallas kernels

def _matmul_bn_kernel(x_ref, w_ref, s_ref, b_ref, o_ref, *, act):
    # conv-as-GEMM hot path: bf16 (tm,K)@(K,N) on the MXU, f32 acc, fused BN (+ SiLU).
    y = jnp.dot(x_ref[...], w_ref[...], preferred_element_type=jnp.float32)
    y = y * s_ref[...] + b_ref[...]
    if act:
        y = y * jax.nn.sigmoid(y)
    o_ref[...] = y.astype(o_ref.dtype)


def _matmul_bn_res_kernel(x_ref, w_ref, s_ref, b_ref, res_ref, o_ref, *, act):
    # same as above, with the residual skip-connection add fused (f32).
    y = jnp.dot(x_ref[...], w_ref[...], preferred_element_type=jnp.float32)
    y = y * s_ref[...] + b_ref[...]
    if act:
        y = y * jax.nn.sigmoid(y)
    o_ref[...] = (y + res_ref[...].astype(jnp.float32)).astype(o_ref.dtype)


def _conv3_row_kernel(x0_ref, x1_ref, x2_ref, w_ref, s_ref, b_ref, o_ref, *, C, tap_slices):
    # Dense 3x3 + BN + SiLU, one output image row per grid step.  x{0,1,2} are the 3 dy-shifted
    # padded input rows (delivered via row-offset index maps); each dx tap is a static slice.
    # TODO(synk): merge taps along K to fill the 256-deep MXU on v6e/v7x (K=128 half-fills it).
    Wo, Cout = o_ref.shape[2], o_ref.shape[3]
    xs = (x0_ref, x1_ref, x2_ref)
    acc = jnp.zeros((Wo, Cout), jnp.float32)
    for dy in range(3):
        row = xs[dy][0, 0]                                      # (row_w, ck) bf16, loaded once
        for dx, (roff, half) in enumerate(tap_slices):
            xt = row[roff:roff + Wo, half * C:(half + 1) * C]
            acc = acc + jnp.dot(xt, w_ref[dy * 3 + dx],
                                preferred_element_type=jnp.float32)
    y = acc * s_ref[...] + b_ref[...]
    y = y * jax.nn.sigmoid(y)                                   # SiLU (ConvBnAct)
    o_ref[0, 0] = y.astype(o_ref.dtype)


def _dw3_row_kernel(x0_ref, x1_ref, x2_ref, w_ref, b_ref, o_ref, *, C, tap_slices):
    # Depthwise 3x3 + BN + SiLU: 9 taps weighted on the VPU, f32 accumulation.
    # TODO(synk): bf16 multiply-accumulate would halve VPU/load work on v6e/v7x (v5e needs f32).
    Wo = o_ref.shape[2]
    xs = (x0_ref, x1_ref, x2_ref)
    acc = jnp.zeros((Wo, C), jnp.float32)
    for dy in range(3):
        row = xs[dy][0, 0].astype(jnp.float32)
        for dx, (roff, half) in enumerate(tap_slices):
            xt = row[roff:roff + Wo, half * C:(half + 1) * C]
            acc = acc + xt * w_ref[dy * 3 + dx]
    y = acc + b_ref[...]
    y = y * jax.nn.sigmoid(y)
    o_ref[0, 0] = y.astype(o_ref.dtype)


def _gap_kernel(x_ref, o_ref, *, inv_hw):
    # global average pool as a grid reduction over spatial tiles (f32 accumulator in the output).
    @pl.when(pl.program_id(0) == 0)
    def _():
        o_ref[...] = jnp.zeros_like(o_ref)

    o_ref[...] += jnp.sum(x_ref[...].astype(jnp.float32), axis=1)

    @pl.when(pl.program_id(0) == pl.num_programs(0) - 1)
    def _():
        o_ref[...] = o_ref[...] * inv_hw


# ------------------------------------------------------------------------------- wrappers

def matmul_bn(x2d, wmat, scale, bias, *, act, residual=None, out_dtype=jnp.bfloat16):
    """Pixel-tiled GEMM + BN (+SiLU) (+residual). Weights/scale/bias stay VMEM-resident."""
    M, K = x2d.shape
    Nc = wmat.shape[1]
    tm = _pick_tile(M)
    Mp = _round_up(M, tm)
    if Mp != M:
        x2d = jnp.pad(x2d, ((0, Mp - M), (0, 0)))
        if residual is not None:
            residual = jnp.pad(residual, ((0, Mp - M), (0, 0)))
    scale2, bias2 = scale.reshape(1, Nc), bias.reshape(1, Nc)

    x_spec = pl.BlockSpec((tm, K), lambda i: (i, 0))
    w_spec = pl.BlockSpec((K, Nc), lambda i: (0, 0))       # grid-constant -> resident
    v_spec = pl.BlockSpec((1, Nc), lambda i: (0, 0))
    o_spec = pl.BlockSpec((tm, Nc), lambda i: (i, 0))

    if residual is None:
        kernel = functools.partial(_matmul_bn_kernel, act=act)
        operands = (x2d, wmat, scale2, bias2)
        in_specs = [x_spec, w_spec, v_spec, v_spec]
    else:
        kernel = functools.partial(_matmul_bn_res_kernel, act=act)
        operands = (x2d, wmat, scale2, bias2, residual)
        in_specs = [x_spec, w_spec, v_spec, v_spec, o_spec]

    out = pl.pallas_call(
        kernel,
        out_shape=jax.ShapeDtypeStruct((Mp, Nc), out_dtype),
        grid=(Mp // tm,),
        in_specs=in_specs,
        out_specs=o_spec,
        compiler_params=_cparams("parallel"),
    )(*operands)
    return out[:M] if Mp != M else out


def _row_geometry(x, stride):
    """Pad spatially by 1 and expose the 3x3 taps of one output row as static slices.

    Returns (x_in, x_block, xmap(dy), tap_slices, Ho, Wo) where tap_slices[dx] = (row_off, lane_half).
    stride 1 keeps the natural layout; stride 2 pairs even/odd input columns along the lane axis so
    the strided column taps become contiguous 128-aligned slices (no strided loads).
    """
    N, H, W, C = x.shape
    xp = jnp.pad(x, ((0, 0), (1, 1), (1, 1), (0, 0)))
    Hp = H + 2
    if stride == 1:
        Ho, Wo = H, W
        x_in, row_w, ck = xp, W + 2, C
        tap_slices = ((0, 0), (1, 0), (2, 0))

        def xmap(dy):
            return lambda n, h, dy=dy: (n, h + dy, 0, 0)
    else:
        Ho, Wo = (H - 1) // 2 + 1, (W - 1) // 2 + 1
        wp_e = _round_up(W + 2, 2)
        if wp_e != W + 2:
            xp = jnp.pad(xp, ((0, 0), (0, 0), (0, wp_e - (W + 2)), (0, 0)))
        x_in = xp.reshape(N, Hp, wp_e // 2, 2 * C)          # free row-major reshape
        row_w, ck = wp_e // 2, 2 * C
        tap_slices = ((0, 0), (0, 1), (1, 0))

        def xmap(dy):
            return lambda n, h, dy=dy: (n, 2 * h + dy, 0, 0)
    return x_in, (1, 1, row_w, ck), xmap, tap_slices, Ho, Wo


def conv3x3_bn_silu(x, p, stride, *, out_dtype=jnp.bfloat16):
    """Dense 3x3 conv (pad=1) + BN + SiLU, per-output-row tiling (stride 1 or 2)."""
    N, H, W, C = x.shape
    w9, scale, bias = p["w"], p["scale"], p["bias"]
    Cout = w9.shape[-1]
    x_in, blk, xmap, taps, Ho, Wo = _row_geometry(x, stride)
    kernel = functools.partial(_conv3_row_kernel, C=C, tap_slices=taps)
    return pl.pallas_call(
        kernel,
        out_shape=jax.ShapeDtypeStruct((N, Ho, Wo, Cout), out_dtype),
        grid=(N, Ho),
        in_specs=[pl.BlockSpec(blk, xmap(0)),
                  pl.BlockSpec(blk, xmap(1)),
                  pl.BlockSpec(blk, xmap(2)),
                  pl.BlockSpec((9, C, Cout), lambda n, h: (0, 0, 0)),   # resident weights
                  pl.BlockSpec((1, Cout), lambda n, h: (0, 0)),
                  pl.BlockSpec((1, Cout), lambda n, h: (0, 0))],
        out_specs=pl.BlockSpec((1, 1, Wo, Cout), lambda n, h: (n, h, 0, 0)),
        compiler_params=_cparams("parallel", "parallel"),
    )(x_in, x_in, x_in, w9, scale.reshape(1, Cout), bias.reshape(1, Cout))


def dwconv3x3_bn_silu(x, p, stride, *, out_dtype=jnp.bfloat16):
    """Depthwise 3x3 conv (groups=C, pad=1) + BN + SiLU, per-output-row tiling (stride 1 or 2)."""
    N, H, W, C = x.shape
    w9, bias = p["w9"], p["bias"]
    x_in, blk, xmap, taps, Ho, Wo = _row_geometry(x, stride)
    kernel = functools.partial(_dw3_row_kernel, C=C, tap_slices=taps)
    return pl.pallas_call(
        kernel,
        out_shape=jax.ShapeDtypeStruct((N, Ho, Wo, C), out_dtype),
        grid=(N, Ho),
        in_specs=[pl.BlockSpec(blk, xmap(0)),
                  pl.BlockSpec(blk, xmap(1)),
                  pl.BlockSpec(blk, xmap(2)),
                  pl.BlockSpec((9, 1, C), lambda n, h: (0, 0, 0)),      # resident, BN scale folded
                  pl.BlockSpec((1, C), lambda n, h: (0, 0))],
        out_specs=pl.BlockSpec((1, 1, Wo, C), lambda n, h: (n, h, 0, 0)),
        compiler_params=_cparams("parallel", "parallel"),
    )(x_in, x_in, x_in, w9, bias.reshape(1, C))


def conv1x1_bn(x, p, *, act, residual=None, out_dtype=jnp.bfloat16):
    """1x1 conv (+BN, optional SiLU, optional residual) as a tiled Pallas GEMM."""
    N, H, W, C = x.shape
    Cout = p["w"].shape[1]
    x2 = x.reshape(N * H * W, C)
    res2 = None if residual is None else residual.reshape(N * H * W, Cout)
    y = matmul_bn(x2, p["w"], p["scale"], p["bias"], act=act, residual=res2, out_dtype=out_dtype)
    return y.reshape(N, H, W, Cout)


def _extract_taps(x, stride):
    N, H, W, C = x.shape
    xp = jnp.pad(x, ((0, 0), (1, 1), (1, 1), (0, 0)))
    Ho = (H + 2 - 3) // stride + 1
    Wo = (W + 2 - 3) // stride + 1
    taps = []
    for dy in range(3):
        for dx in range(3):
            taps.append(xp[:, dy:dy + stride * (Ho - 1) + 1:stride,
                           dx:dx + stride * (Wo - 1) + 1:stride, :])
    return taps, Ho, Wo


def stem_forward(x, p, *, out_dtype=jnp.bfloat16):
    """Stride-2 stem: im2col on raw (un-padded) input channels, K = 9*Cin padded to 128 once."""
    N, H, W, Cin = x.shape
    taps, Ho, Wo = _extract_taps(x, 2)
    patches = jnp.stack(taps, axis=3).reshape(N * Ho * Wo, 9 * Cin)
    Kp = p["w"].shape[0]
    patches = jnp.pad(patches, ((0, 0), (0, Kp - 9 * Cin))).astype(jnp.bfloat16)
    y = matmul_bn(patches, p["w"], p["scale"], p["bias"], act=True, out_dtype=out_dtype)
    return y.reshape(N, Ho, Wo, -1)


def global_avg_pool(x):
    """AdaptiveAvgPool2d(1) + Flatten as a grid reduction over spatial tiles (f32 accumulator)."""
    N, H, W, C = x.shape
    HW = H * W
    ts = _pick_tile(HW)
    HWp = _round_up(HW, ts)
    x3 = x.reshape(N, HW, C)
    if HWp != HW:
        x3 = jnp.pad(x3, ((0, 0), (0, HWp - HW), (0, 0)))
    kernel = functools.partial(_gap_kernel, inv_hw=1.0 / float(HW))
    return pl.pallas_call(
        kernel,
        out_shape=jax.ShapeDtypeStruct((N, C), jnp.float32),
        grid=(HWp // ts,),
        in_specs=[pl.BlockSpec((N, ts, C), lambda i: (0, i, 0))],
        out_specs=pl.BlockSpec((N, C), lambda i: (0, 0)),
        compiler_params=_cparams("arbitrary"),
    )(x3)


# ------------------------------------------------------------------------------- parameters

def _make_bn(key, c, cp):
    # Eval-mode BN folded into per-channel scale/bias (padded lanes: scale 1, bias 0 -> stay 0).
    k1, k2 = jax.random.split(key)
    gamma = 1.0 + 0.1 * jax.random.normal(k1, (c,), jnp.float32)
    beta = 0.1 * jax.random.normal(k2, (c,), jnp.float32)
    running_mean = jnp.zeros((c,), jnp.float32)
    running_var = jnp.ones((c,), jnp.float32)
    scale = gamma / jnp.sqrt(running_var + _BN_EPS)
    bias = beta - running_mean * scale
    scale_p = jnp.ones((cp,), jnp.float32).at[:c].set(scale)
    bias_p = jnp.zeros((cp,), jnp.float32).at[:c].set(bias)
    return scale_p, bias_p


def make_stem(key, cin, cout):
    coutp = _pad_ch(cout)
    K = 9 * cin
    Kp = _round_up(K, _LANE)
    kw, kb = jax.random.split(key)
    w = jax.random.normal(kw, (3, 3, cin, cout), jnp.float32) / jnp.sqrt(K)
    wp = jnp.zeros((Kp, coutp), jnp.float32).at[:K, :cout].set(w.reshape(K, cout))
    scale, bias = _make_bn(kb, cout, coutp)
    return dict(w=wp.astype(jnp.bfloat16), scale=scale, bias=bias)


def make_conv3(key, cin, cout):
    cinp, coutp = _pad_ch(cin), _pad_ch(cout)
    kw, kb = jax.random.split(key)
    w = jax.random.normal(kw, (3, 3, cin, cout), jnp.float32) / jnp.sqrt(9 * cin)
    wp = jnp.zeros((9, cinp, coutp), jnp.float32).at[:, :cin, :cout].set(w.reshape(9, cin, cout))
    scale, bias = _make_bn(kb, cout, coutp)
    return dict(w=wp.astype(jnp.bfloat16), scale=scale, bias=bias)


def make_conv1(key, cin, cout):
    cinp, coutp = _pad_ch(cin), _pad_ch(cout)
    kw, kb = jax.random.split(key)
    w = jax.random.normal(kw, (cin, cout), jnp.float32) / jnp.sqrt(cin)
    wp = jnp.zeros((cinp, coutp), jnp.float32).at[:cin, :cout].set(w)
    scale, bias = _make_bn(kb, cout, coutp)
    return dict(w=wp.astype(jnp.bfloat16), scale=scale, bias=bias)


def make_dw(key, c):
    cp = _pad_ch(c)
    kw, kb = jax.random.split(key)
    w = jax.random.normal(kw, (3, 3, c), jnp.float32) / 3.0
    wp = jnp.zeros((9, 1, cp), jnp.float32).at[:, 0, :c].set(w.reshape(9, c))
    scale, bias = _make_bn(kb, c, cp)
    return dict(w9=wp * scale.reshape(1, 1, cp), bias=bias)    # BN scale folded into the taps


def build_params(key, model_config, in_channels):
    """Mirrors EfficientNetV2Lite.__init__ structure (channels padded to 128 lanes)."""
    params = []
    key, sub = jax.random.split(key)
    params.append(("stem", make_stem(sub, in_channels, model_config[0]["out_channels"])))
    for stage_idx, cfg in enumerate(model_config):
        for i in range(cfg["num_layers"]):
            stride = cfg["stride"] if i == 0 else 1
            in_ch = (cfg["out_channels"] if i > 0
                     else model_config[stage_idx - 1]["out_channels"] if stage_idx > 0
                     else model_config[0]["out_channels"])
            out_ch = cfg["out_channels"]
            exp_ch = int(in_ch * cfg["expansion_ratio"])
            key, k1, k2, k3 = jax.random.split(key, 4)
            has_skip = (stride == 1) and (in_ch == out_ch)
            if cfg["block_type"] == "fused":
                blk = dict(type="fused", stride=stride, has_skip=has_skip,
                           conv1=make_conv3(k1, in_ch, exp_ch),
                           conv2=make_conv1(k2, exp_ch, out_ch))
            else:
                blk = dict(type="mb", stride=stride, has_skip=has_skip,
                           expand=(make_conv1(k1, in_ch, exp_ch)
                                   if cfg["expansion_ratio"] != 1 else None),
                           dw=make_dw(k2, exp_ch),
                           project=make_conv1(k3, exp_ch, out_ch))
            params.append(("block", blk))
    final_channels = model_config[-1]["out_channels"]
    key, sub = jax.random.split(key)
    params.append(("final", make_conv1(sub, final_channels, final_channels * 2)))
    return params


# ------------------------------------------------------------------------------- forward

def efficientnetv2_lite_forward(x_nchw, params, out_dim):
    x = jnp.transpose(x_nchw, (0, 2, 3, 1)).astype(jnp.float32)   # NHWC, raw channels
    # TODO(synk): MBConv expand/dw/project are still separate pallas_calls; fusing them would keep
    # the expanded activation in VMEM instead of round-tripping it to HBM twice per block.
    for kind, p in params:
        if kind == "stem":
            x = stem_forward(x, p)
        elif kind == "final":
            x = conv1x1_bn(x, p, act=True)
        else:
            blk = p
            identity = x
            if blk["type"] == "fused":
                x = conv3x3_bn_silu(x, blk["conv1"], blk["stride"])
                x = conv1x1_bn(x, blk["conv2"], act=False,
                               residual=identity if blk["has_skip"] else None)
            else:
                if blk["expand"] is not None:
                    x = conv1x1_bn(x, blk["expand"], act=True)
                x = dwconv3x3_bn_silu(x, blk["dw"], blk["stride"])
                x = conv1x1_bn(x, blk["project"], act=False,
                               residual=identity if blk["has_skip"] else None)
    pooled = global_avg_pool(x)          # (N, Cpad) f32
    return pooled[:, :out_dim]           # drop lane padding -> (N, out_dim)


# ------------------------------------------------------------------------------- main

if __name__ == "__main__":
    # Small synthetic EfficientNetV2-Lite config exercising every code path:
    # fused s1 (+skip), fused s2, mbconv s2 (expand / dw-s2 / project), mbconv s1 (+skip, dw-s1).
    model_config = [
        dict(block_type="fused", out_channels=8, expansion_ratio=2, stride=1, num_layers=1),
        dict(block_type="fused", out_channels=16, expansion_ratio=2, stride=2, num_layers=1),
        dict(block_type="mbconv", out_channels=16, expansion_ratio=4, stride=2, num_layers=2),
    ]
    in_channels = 5

    key = jax.random.PRNGKey(0)
    key_x, key_p = jax.random.split(key)
    x = jax.random.normal(key_x, (2, in_channels, 16, 16), jnp.float32)   # NCHW, like PyTorch

    params = build_params(key_p, model_config, in_channels)
    out_dim = model_config[-1]["out_channels"] * 2

    fwd = jax.jit(lambda inp: efficientnetv2_lite_forward(inp, params, out_dim))
    out = jax.block_until_ready(fwd(x))

    assert out.shape == (2, out_dim), out.shape
    assert bool(jnp.all(jnp.isfinite(out)))
    print("KERNEL_OK")
</pallas_src>

<mosaic_0001>
module attributes {stable_mosaic.version = 11 : i64} {
  func.func @_matmul_bn_kernel(%arg0: i32, %arg1: memref<64x128xbf16, #tpu.memory_space<vmem>>, %arg2: memref<128x128xbf16, #tpu.memory_space<vmem>>, %arg3: memref<1x128xf32, #tpu.memory_space<vmem>>, %arg4: memref<1x128xf32, #tpu.memory_space<vmem>>, %arg5: memref<64x128xbf16, #tpu.memory_space<vmem>>) attributes {dimension_semantics = [#tpu.dimension_semantics<parallel>], iteration_bounds = array<i64: 2>, scalar_prefetch = 0 : i64, scratch_operands = 0 : i64, tpu.core_type = #tpu.core_type<tc>, window_params = [{transform_indices = @transform_0, window_bounds = array<i64: 64, 128>}, {pipeline_mode = #tpu.pipeline_mode<synchronous>, transform_indices = @transform_1, window_bounds = array<i64: 128, 128>}, {pipeline_mode = #tpu.pipeline_mode<synchronous>, transform_indices = @transform_2, window_bounds = array<i64: 1, 128>}, {pipeline_mode = #tpu.pipeline_mode<synchronous>, transform_indices = @transform_3, window_bounds = array<i64: 1, 128>}, {transform_indices = @transform_4, window_bounds = array<i64: 64, 128>}]} {
    %c0 = arith.constant 0 : index
    %c0_0 = arith.constant 0 : index
    %0 = vector.load %arg1[%c0, %c0_0] : memref<64x128xbf16, #tpu.memory_space<vmem>>, vector<64x128xbf16>
    %c0_1 = arith.constant 0 : index
    %c0_2 = arith.constant 0 : index
    %1 = vector.load %arg2[%c0_1, %c0_2] : memref<128x128xbf16, #tpu.memory_space<vmem>>, vector<128x128xbf16>
    %cst = arith.constant dense<0.000000e+00> : vector<64x128xf32>
    %2 = tpu.matmul %0, %1, %cst {dimension_numbers = #tpu.dot_dimension_numbers<[1], [0], [0], [1], [0, 0, 1, 1], [], []>} : vector<64x128xbf16>, vector<128x128xbf16>, vector<64x128xf32> -> vector<64x128xf32>
    %c0_3 = arith.constant 0 : index
    %c0_4 = arith.constant 0 : index
    %3 = vector.load %arg3[%c0_3, %c0_4] : memref<1x128xf32, #tpu.memory_space<vmem>>, vector<1x128xf32>
    %4 = vector.broadcast %3 : vector<1x128xf32> to vector<64x128xf32>
    %5 = arith.mulf %2, %4 : vector<64x128xf32>
    %c0_5 = arith.constant 0 : index
    %c0_6 = arith.constant 0 : index
    %6 = vector.load %arg4[%c0_5, %c0_6] : memref<1x128xf32, #tpu.memory_space<vmem>>, vector<1x128xf32>
    %7 = vector.broadcast %6 : vector<1x128xf32> to vector<64x128xf32>
    %8 = arith.addf %5, %7 : vector<64x128xf32>
    %9 = arith.negf %8 : vector<64x128xf32>
    %10 = math.exp %9 : vector<64x128xf32>
    %cst_7 = arith.constant 1.000000e+00 : f32
    %11 = vector.broadcast %cst_7 : f32 to vector<64x128xf32>
    %12 = arith.addf %11, %10 : vector<64x128xf32>
    %13 = arith.divf %11, %12 : vector<64x128xf32>
    %14 = arith.mulf %8, %13 : vector<64x128xf32>
    %15 = arith.truncf %14 : vector<64x128xf32> to vector<64x128xbf16>
    %c0_8 = arith.constant 0 : index
    %c0_9 = arith.constant 0 : index
    %16 = vector.load %arg5[%c0_8, %c0_9] : memref<64x128xbf16, #tpu.memory_space<vmem>>, vector<64x128xbf16>
    tpu.vector_store %arg5[%c0_8, %c0_9], %15 {strides = array<i32>} : memref<64x128xbf16, #tpu.memory_space<vmem>>, vector<64x128xbf16>,
    return
  }
  func.func @transform_0(%arg0: i32) -> (i32, i32) {
    %c0_i32 = arith.constant 0 : i32
    %c0_i32_0 = arith.constant 0 : i32
    return %arg0, %c0_i32 : i32, i32
  }
  func.func @transform_1(%arg0: i32) -> (i32, i32) {
    %c0_i32 = arith.constant 0 : i32
    %c0_i32_0 = arith.constant 0 : i32
    %c0_i32_1 = arith.constant 0 : i32
    return %c0_i32, %c0_i32_0 : i32, i32
  }
  func.func @transform_2(%arg0: i32) -> (i32, i32) {
    %c0_i32 = arith.constant 0 : i32
    %c0_i32_0 = arith.constant 0 : i32
    %c0_i32_1 = arith.constant 0 : i32
    return %c0_i32, %c0_i32_0 : i32, i32
  }
  func.func @transform_3(%arg0: i32) -> (i32, i32) {
    %c0_i32 = arith.constant 0 : i32
    %c0_i32_0 = arith.constant 0 : i32
    %c0_i32_1 = arith.constant 0 : i32
    return %c0_i32, %c0_i32_0 : i32, i32
  }
  func.func @transform_4(%arg0: i32) -> (i32, i32) {
    %c0_i32 = arith.constant 0 : i32
    %c0_i32_0 = arith.constant 0 : i32
    return %arg0, %c0_i32 : i32, i32
  }
}

module attributes {stable_mosaic.version = 11 : i64} {
  func.func @_conv3_row_kernel(%arg0: i32, %arg1: i32, %arg2: memref<1x1x10x128xbf16, #tpu.memory_space<vmem>>, %arg3: memref<1x1x10x128xbf16, #tpu.memory_space<vmem>>, %arg4: memref<1x1x10x128xbf16, #tpu.memory_space<vmem>>, %arg5: memref<9x128x128xbf16, #tpu.memory_space<vmem>>, %arg6: memref<1x128xf32, #tpu.memory_space<vmem>>, %arg7: memref<1x128xf32, #tpu.memory_space<vmem>>, %arg8: memref<1x1x8x128xbf16, #tpu.memory_space<vmem>>) attributes {dimension_semantics = [#tpu.dimension_semantics<parallel>, #tpu.dimension_semantics<parallel>], iteration_bounds = array<i64: 2, 8>, scalar_prefetch = 0 : i64, scratch_operands = 0 : i64, tpu.core_type = #tpu.core_type<tc>, window_params = [{transform_indices = @transform_0, window_bounds = array<i64: 1, 1, 10, 128>}, {transform_indices = @transform_1, window_bounds = array<i64: 1, 1, 10, 128>}, {transform_indices = @transform_2, window_bounds = array<i64: 1, 1, 10, 128>}, {pipeline_mode = #tpu.pipeline_mode<synchronous>, transform_indices = @transform_3, window_bounds = array<i64: 9, 128, 128>}, {pipeline_mode = #tpu.pipeline_mode<synchronous>, transform_indices = @transform_4, window_bounds = array<i64: 1, 128>}, {pipeline_mode = #tpu.pipeline_mode<synchronous>, transform_indices = @transform_5, window_bounds = array<i64: 1, 128>}, {transform_indices = @transform_6, window_bounds = array<i64: 1, 1, 8, 128>}]} {
    %cst = arith.constant 0.000000e+00 : f32
    %0 = vector.broadcast %cst : f32 to vector<8x128xf32>
    %c0 = arith.constant 0 : index
    %c0_0 = arith.constant 0 : index
    %c0_1 = arith.constant 0 : index
    %c0_2 = arith.constant 0 : index
    %1 = vector.load %arg2[%c0, %c0_0, %c0_1, %c0_2] : memref<1x1x10x128xbf16, #tpu.memory_space<vmem>>, vector<1x1x10x128xbf16>
    %2 = vector.shape_cast %1 : vector<1x1x10x128xbf16> to vector<10x128xbf16>
    %3 = vector.extract_strided_slice %2 {offsets = [0, 0], sizes = [8, 128], strides = [1, 1]} : vector<10x128xbf16> to vector<8x128xbf16>
    %c0_3 = arith.constant 0 : index
    %c0_4 = arith.constant 0 : index
    %c0_5 = arith.constant 0 : index
    %4 = vector.load %arg5[%c0_3, %c0_4, %c0_5] : memref<9x128x128xbf16, #tpu.memory_space<vmem>>, vector<1x128x128xbf16>
    %5 = vector.shape_cast %4 : vector<1x128x128xbf16> to vector<128x128xbf16>
    %cst_6 = arith.constant dense<0.000000e+00> : vector<8x128xf32>
    %6 = tpu.matmul %3, %5, %cst_6 {dimension_numbers = #tpu.dot_dimension_numbers<[1], [0], [0], [1], [0, 0, 1, 1], [], []>} : vector<8x128xbf16>, vector<128x128xbf16>, vector<8x128xf32> -> vector<8x128xf32>
    %7 = arith.addf %0, %6 : vector<8x128xf32>
    %8 = vector.extract_strided_slice %2 {offsets = [1, 0], sizes = [8, 128], strides = [1, 1]} : vector<10x128xbf16> to vector<8x128xbf16>
    %c1 = arith.constant 1 : index
    %c0_7 = arith.constant 0 : index
    %c0_8 = arith.constant 0 : index
    %9 = vector.load %arg5[%c1, %c0_7, %c0_8] : memref<9x128x128xbf16, #tpu.memory_space<vmem>>, vector<1x128x128xbf16>
    %10 = vector.shape_cast %9 : vector<1x128x128xbf16> to vector<128x128xbf16>
    %cst_9 = arith.constant dense<0.000000e+00> : vector<8x128xf32>
    %11 = tpu.matmul %8, %10, %cst_9 {dimension_numbers = #tpu.dot_dimension_numbers<[1], [0], [0], [1], [0, 0, 1, 1], [], []>} : vector<8x128xbf16>, vector<128x128xbf16>, vector<8x128xf32> -> vector<8x128xf32>
    %12 = arith.addf %7, %11 : vector<8x128xf32>
    %13 = vector.extract_strided_slice %2 {offsets = [2, 0], sizes = [8, 128], strides = [1, 1]} : vector<10x128xbf16> to vector<8x128xbf16>
    %c2 = arith.constant 2 : index
    %c0_10 = arith.constant 0 : index
    %c0_11 = arith.constant 0 : index
    %14 = vector.load %arg5[%c2, %c0_10, %c0_11] : memref<9x128x128xbf16, #tpu.memory_space<vmem>>, vector<1x128x128xbf16>
    %15 = vector.shape_cast %14 : vector<1x128x128xbf16> to vector<128x128xbf16>
    %cst_12 = arith.constant dense<0.000000e+00> : vector<8x128xf32>
    %16 = tpu.matmul %13, %15, %cst_12 {dimension_numbers = #tpu.dot_dimension_numbers<[1], [0], [0], [1], [0, 0, 1, 1], [], []>} : vector<8x128xbf16>, vector<128x128xbf16>, vector<8x128xf32> -> vector<8x128xf32>
    %17 = arith.addf %12, %16 : vector<8x128xf32>
    %c0_13 = arith.constant 0 : index
    %c0_14 = arith.constant 0 : index
    %c0_15 = arith.constant 0 : index
    %c0_16 = arith.constant 0 : index
    %18 = vector.load %arg3[%c0_13, %c0_14, %c0_15, %c0_16] : memref<1x1x10x128xbf16, #tpu.memory_space<vmem>>, vector<1x1x10x128xbf16>
    %19 = vector.shape_cast %18 : vector<1x1x10x128xbf16> to vector<10x128xbf16>
    %20 = vector.extract_strided_slice %19 {offsets = [0, 0], sizes = [8, 128], strides = [1, 1]} : vector<10x128xbf16> to vector<8x128xbf16>
    %c3 = arith.constant 3 : index
    %c0_17 = arith.constant 0 : index
    %c0_18 = arith.constant 0 : index
    %21 = vector.load %arg5[%c3, %c0_17, %c0_18] : memref<9x128x128xbf16, #tpu.memory_space<vmem>>, vector<1x128x128xbf16>
    %22 = vector.shape_cast %21 : vector<1x128x128xbf16> to vector<128x128xbf16>
    %cst_19 = arith.constant dense<0.000000e+00> : vector<8x128xf32>
    %23 = tpu.matmul %20, %22, %cst_19 {dimension_numbers = #tpu.dot_dimension_numbers<[1], [0], [0], [1], [0, 0, 1, 1], [], []>} : vector<8x128xbf16>, vector<128x128xbf16>, vector<8x128xf32> -> vector<8x128xf32>
    %24 = arith.addf %17, %23 : vector<8x128xf32>
    %25 = vector.extract_strided_slice %19 {offsets = [1, 0], sizes = [8, 128], strides = [1, 1]} : vector<10x128xbf16> to vector<8x128xbf16>
    %c4 = arith.constant 4 : index
    %c0_20 = arith.constant 0 : index
    %c0_21 = arith.constant 0 : index
    %26 = vector.load %arg5[%c4, %c0_20, %c0_21] : memref<9x128x128xbf16, #tpu.memory_space<vmem>>, vector<1x128x128xbf16>
    %27 = vector.shape_cast %26 : vector<1x128x128xbf16> to vector<128x128xbf16>
    %cst_22 = arith.constant dense<0.000000e+00> : vector<8x128xf32>
    %28 = tpu.matmul %25, %27, %cst_22 {dimension_numbers = #tpu.dot_dimension_numbers<[1], [0], [0], [1], [0, 0, 1, 1], [], []>} : vector<8x128xbf16>, vector<128x128xbf16>, vector<8x128xf32> -> vector<8x128xf32>
    %29 = arith.addf %24, %28 : vector<8x128xf32>
    %30 = vector.extract_strided_slice %19 {offsets = [2, 0], sizes = [8, 128], strides = [1, 1]} : vector<10x128xbf16> to vector<8x128xbf16>
    %c5 = arith.constant 5 : index
    %c0_23 = arith.constant 0 : index
    %c0_24 = arith.constant 0 : index
    %31 = vector.load %arg5[%c5, %c0_23, %c0_24] : memref<9x128x128xbf16, #tpu.memory_space<vmem>>, vector<1x128x128xbf16>
    %32 = vector.shape_cast %31 : vector<1x128x128xbf16> to vector<128x128xbf16>
    %cst_25 = arith.constant dense<0.000000e+00> : vector<8x128xf32>
    %33 = tpu.matmul %30, %32, %cst_25 {dimension_numbers = #tpu.dot_dimension_numbers<[1], [0], [0], [1], [0, 0, 1, 1], [], []>} : vector<8x128xbf16>, vector<128x128xbf16>, vector<8x128xf32> -> vector<8x128xf32>
    %34 = arith.addf %29, %33 : vector<8x128xf32>
    %c0_26 = arith.constant 0 : index
    %c0_27 = arith.constant 0 : index
    %c0_28 = arith.constant 0 : index
    %c0_29 = arith.constant 0 : index
    %35 = vector.load %arg4[%c0_26, %c0_27, %c0_28, %c0_29] : memref<1x1x10x128xbf16, #tpu.memory_space<vmem>>, vector<1x1x10x128xbf16>
    %36 = vector.shape_cast %35 : vector<1x1x10x128xbf16> to vector<10x128xbf16>
    %37 = vector.extract_strided_slice %36 {offsets = [0, 0], sizes = [8, 128], strides = [1, 1]} : vector<10x128xbf16> to vector<8x128xbf16>
    %c6 = arith.constant 6 : index
    %c0_30 = arith.constant 0 : index
    %c0_31 = arith.constant 0 : index
    %38 = vector.load %arg5[%c6, %c0_30, %c0_31] : memref<9x128x128xbf16, #tpu.memory_space<vmem>>, vector<1x128x128xbf16>
    %39 = vector.shape_cast %38 : vector<1x128x128xbf16> to vector<128x128xbf16>
    %cst_32 = arith.constant dense<0.000000e+00> : vector<8x128xf32>
    %40 = tpu.matmul %37, %39, %cst_32 {dimension_numbers = #tpu.dot_dimension_numbers<[1], [0], [0], [1], [0, 0, 1, 1], [], []>} : vector<8x128xbf16>, vector<128x128xbf16>, vector<8x128xf32> -> vector<8x128xf32>
    %41 = arith.addf %34, %40 : vector<8x128xf32>
    %42 = vector.extract_strided_slice %36 {offsets = [1, 0], sizes = [8, 128], strides = [1, 1]} : vector<10x128xbf16> to vector<8x128xbf16>
    %c7 = arith.constant 7 : index
    %c0_33 = arith.constant 0 : index
    %c0_34 = arith.constant 0 : index
    %43 = vector.load %arg5[%c7, %c0_33, %c0_34] : memref<9x128x128xbf16, #tpu.memory_space<vmem>>, vector<1x128x128xbf16>
    %44 = vector.shape_cast %43 : vector<1x128x128xbf16> to vector<128x128xbf16>
    %cst_35 = arith.constant dense<0.000000e+00> : vector<8x128xf32>
    %45 = tpu.matmul %42, %44, %cst_35 {dimension_numbers = #tpu.dot_dimension_numbers<[1], [0], [0], [1], [0, 0, 1, 1], [], []>} : vector<8x128xbf16>, vector<128x128xbf16>, vector<8x128xf32> -> vector<8x128xf32>
    %46 = arith.addf %41, %45 : vector<8x128xf32>
    %47 = vector.extract_strided_slice %36 {offsets = [2, 0], sizes = [8, 128], strides = [1, 1]} : vector<10x128xbf16> to vector<8x128xbf16>
    %c8 = arith.constant 8 : index
    %c0_36 = arith.constant 0 : index
    %c0_37 = arith.constant 0 : index
    %48 = vector.load %arg5[%c8, %c0_36, %c0_37] : memref<9x128x128xbf16, #tpu.memory_space<vmem>>, vector<1x128x128xbf16>
    %49 = vector.shape_cast %48 : vector<1x128x128xbf16> to vector<128x128xbf16>
    %cst_38 = arith.constant dense<0.000000e+00> : vector<8x128xf32>
    %50 = tpu.matmul %47, %49, %cst_38 {dimension_numbers = #tpu.dot_dimension_numbers<[1], [0], [0], [1], [0, 0, 1, 1], [], []>} : vector<8x128xbf16>, vector<128x128xbf16>, vector<8x128xf32> -> vector<8x128xf32>
    %51 = arith.addf %46, %50 : vector<8x128xf32>
    %c0_39 = arith.constant 0 : index
    %c0_40 = arith.constant 0 : index
    %52 = vector.load %arg6[%c0_39, %c0_40] : memref<1x128xf32, #tpu.memory_space<vmem>>, vector<1x128xf32>
    %53 = vector.broadcast %52 : vector<1x128xf32> to vector<8x128xf32>
    %54 = arith.mulf %51, %53 : vector<8x128xf32>
    %c0_41 = arith.constant 0 : index
    %c0_42 = arith.constant 0 : index
    %55 = vector.load %arg7[%c0_41, %c0_42] : memref<1x128xf32, #tpu.memory_space<vmem>>, vector<1x128xf32>
    %56 = vector.broadcast %55 : vector<1x128xf32> to vector<8x128xf32>
    %57 = arith.addf %54, %56 : vector<8x128xf32>
    %58 = arith.negf %57 : vector<8x128xf32>
    %59 = math.exp %58 : vector<8x128xf32>
    %cst_43 = arith.constant 1.000000e+00 : f32
    %60 = vector.broadcast %cst_43 : f32 to vector<8x128xf32>
    %61 = arith.addf %60, %59 : vector<8x128xf32>
    %62 = arith.divf %60, %61 : vector<8x128xf32>
    %63 = arith.mulf %57, %62 : vector<8x128xf32>
    %64 = arith.truncf %63 : vector<8x128xf32> to vector<8x128xbf16>
    %c0_44 = arith.constant 0 : index
    %c0_45 = arith.constant 0 : index
    %c0_46 = arith.constant 0 : index
    %c0_47 = arith.constant 0 : index
    %65 = vector.load %arg8[%c0_44, %c0_45, %c0_46, %c0_47] : memref<1x1x8x128xbf16, #tpu.memory_space<vmem>>, vector<1x1x8x128xbf16>
    %66 = vector.shape_cast %65 : vector<1x1x8x128xbf16> to vector<8x128xbf16>
    %67 = vector.shape_cast %64 : vector<8x128xbf16> to vector<1x1x8x128xbf16>
    tpu.vector_store %arg8[%c0_44, %c0_45, %c0_46, %c0_47], %67 {strides = array<i32>} : memref<1x1x8x128xbf16, #tpu.memory_space<vmem>>, vector<1x1x8x128xbf16>,
    return
  }
  func.func @transform_0(%arg0: i32, %arg1: i32) -> (i32, i32, i32, i32) {
    %c0_i32 = arith.constant 0 : i32
    %0 = arith.addi %arg1, %c0_i32 : i32
    %c0_i32_0 = arith.constant 0 : i32
    %c0_i32_1 = arith.constant 0 : i32
    %c0_i32_2 = arith.constant 0 : i32
    return %arg0, %0, %c0_i32_0, %c0_i32_1 : i32, i32, i32, i32
  }
  func.func @transform_1(%arg0: i32, %arg1: i32) -> (i32, i32, i32, i32) {
    %c1_i32 = arith.constant 1 : i32
    %0 = arith.addi %arg1, %c1_i32 : i32
    %c0_i32 = arith.constant 0 : i32
    %c0_i32_0 = arith.constant 0 : i32
    %c0_i32_1 = arith.constant 0 : i32
    return %arg0, %0, %c0_i32, %c0_i32_0 : i32, i32, i32, i32
  }
  func.func @transform_2(%arg0: i32, %arg1: i32) -> (i32, i32, i32, i32) {
    %c2_i32 = arith.constant 2 : i32
    %0 = arith.addi %arg1, %c2_i32 : i32
    %c0_i32 = arith.constant 0 : i32
    %c0_i32_0 = arith.constant 0 : i32
    %c0_i32_1 = arith.constant 0 : i32
    return %arg0, %0, %c0_i32, %c0_i32_0 : i32, i32, i32, i32
  }
  func.func @transform_3(%arg0: i32, %arg1: i32) -> (i32, i32, i32) {
    %c0_i32 = arith.constant 0 : i32
    %c0_i32_0 = arith.constant 0 : i32
    %c0_i32_1 = arith.constant 0 : i32
    %c0_i32_2 = arith.constant 0 : i32
    return %c0_i32, %c0_i32_0, %c0_i32_1 : i32, i32, i32
  }
  func.func @transform_4(%arg0: i32, %arg1: i32) -> (i32, i32) {
    %c0_i32 = arith.constant 0 : i32
    %c0_i32_0 = arith.constant 0 : i32
    %c0_i32_1 = arith.constant 0 : i32
    return %c0_i32, %c0_i32_0 : i32, i32
  }
  func.func @transform_5(%arg0: i32, %arg1: i32) -> (i32, i32) {
    %c0_i32 = arith.constant 0 : i32
    %c0_i32_0 = arith.constant 0 : i32
    %c0_i32_1 = arith.constant 0 : i32
    return %c0_i32, %c0_i32_0 : i32, i32
  }
  func.func @transform_6(%arg0: i32, %arg1: i32) -> (i32, i32, i32, i32) {
    %c0_i32 = arith.constant 0 : i32
    %c0_i32_0 = arith.constant 0 : i32
    %c0_i32_1 = arith.constant 0 : i32
    return %arg0, %arg1, %c0_i32, %c0_i32_0 : i32, i32, i32, i32
  }
}

module attributes {stable_mosaic.version = 11 : i64} {
  func.func @_matmul_bn_res_kernel(%arg0: i32, %arg1: memref<64x128xbf16, #tpu.memory_space<vmem>>, %arg2: memref<128x128xbf16, #tpu.memory_space<vmem>>, %arg3: memref<1x128xf32, #tpu.memory_space<vmem>>, %arg4: memref<1x128xf32, #tpu.memory_space<vmem>>, %arg5: memref<64x128xbf16, #tpu.memory_space<vmem>>, %arg6: memref<64x128xbf16, #tpu.memory_space<vmem>>) attributes {dimension_semantics = [#tpu.dimension_semantics<parallel>], iteration_bounds = array<i64: 2>, scalar_prefetch = 0 : i64, scratch_operands = 0 : i64, tpu.core_type = #tpu.core_type<tc>, window_params = [{transform_indices = @transform_0, window_bounds = array<i64: 64, 128>}, {pipeline_mode = #tpu.pipeline_mode<synchronous>, transform_indices = @transform_1, window_bounds = array<i64: 128, 128>}, {pipeline_mode = #tpu.pipeline_mode<synchronous>, transform_indices = @transform_2, window_bounds = array<i64: 1, 128>}, {pipeline_mode = #tpu.pipeline_mode<synchronous>, transform_indices = @transform_3, window_bounds = array<i64: 1, 128>}, {transform_indices = @transform_4, window_bounds = array<i64: 64, 128>}, {transform_indices = @transform_5, window_bounds = array<i64: 64, 128>}]} {
    %c0 = arith.constant 0 : index
    %c0_0 = arith.constant 0 : index
    %0 = vector.load %arg1[%c0, %c0_0] : memref<64x128xbf16, #tpu.memory_space<vmem>>, vector<64x128xbf16>
    %c0_1 = arith.constant 0 : index
    %c0_2 = arith.constant 0 : index
    %1 = vector.load %arg2[%c0_1, %c0_2] : memref<128x128xbf16, #tpu.memory_space<vmem>>, vector<128x128xbf16>
    %cst = arith.constant dense<0.000000e+00> : vector<64x128xf32>
    %2 = tpu.matmul %0, %1, %cst {dimension_numbers = #tpu.dot_dimension_numbers<[1], [0], [0], [1], [0, 0, 1, 1], [], []>} : vector<64x128xbf16>, vector<128x128xbf16>, vector<64x128xf32> -> vector<64x128xf32>
    %c0_3 = arith.constant 0 : index
    %c0_4 = arith.constant 0 : index
    %3 = vector.load %arg3[%c0_3, %c0_4] : memref<1x128xf32, #tpu.memory_space<vmem>>, vector<1x128xf32>
    %4 = vector.broadcast %3 : vector<1x128xf32> to vector<64x128xf32>
    %5 = arith.mulf %2, %4 : vector<64x128xf32>
    %c0_5 = arith.constant 0 : index
    %c0_6 = arith.constant 0 : index
    %6 = vector.load %arg4[%c0_5, %c0_6] : memref<1x128xf32, #tpu.memory_space<vmem>>, vector<1x128xf32>
    %7 = vector.broadcast %6 : vector<1x128xf32> to vector<64x128xf32>
    %8 = arith.addf %5, %7 : vector<64x128xf32>
    %c0_7 = arith.constant 0 : index
    %c0_8 = arith.constant 0 : index
    %9 = vector.load %arg5[%c0_7, %c0_8] : memref<64x128xbf16, #tpu.memory_space<vmem>>, vector<64x128xbf16>
    %10 = arith.extf %9 : vector<64x128xbf16> to vector<64x128xf32>
    %11 = arith.addf %8, %10 : vector<64x128xf32>
    %12 = arith.truncf %11 : vector<64x128xf32> to vector<64x128xbf16>
    %c0_9 = arith.constant 0 : index
    %c0_10 = arith.constant 0 : index
    %13 = vector.load %arg6[%c0_9, %c0_10] : memref<64x128xbf16, #tpu.memory_space<vmem>>, vector<64x128xbf16>
    tpu.vector_store %arg6[%c0_9, %c0_10], %12 {strides = array<i32>} : memref<64x128xbf16, #tpu.memory_space<vmem>>, vector<64x128xbf16>,
    return
  }
  func.func @transform_0(%arg0: i32) -> (i32, i32) {
    %c0_i32 = arith.constant 0 : i32
    %c0_i32_0 = arith.constant 0 : i32
    return %arg0, %c0_i32 : i32, i32
  }
  func.func @transform_1(%arg0: i32) -> (i32, i32) {
    %c0_i32 = arith.constant 0 : i32
    %c0_i32_0 = arith.constant 0 : i32
    %c0_i32_1 = arith.constant 0 : i32
    return %c0_i32, %c0_i32_0 : i32, i32
  }
  func.func @transform_2(%arg0: i32) -> (i32, i32) {
    %c0_i32 = arith.constant 0 : i32
    %c0_i32_0 = arith.constant 0 : i32
    %c0_i32_1 = arith.constant 0 : i32
    return %c0_i32, %c0_i32_0 : i32, i32
  }
  func.func @transform_3(%arg0: i32) -> (i32, i32) {
    %c0_i32 = arith.constant 0 : i32
    %c0_i32_0 = arith.constant 0 : i32
    %c0_i32_1 = arith.constant 0 : i32
    return %c0_i32, %c0_i32_0 : i32, i32
  }
  func.func @transform_4(%arg0: i32) -> (i32, i32) {
    %c0_i32 = arith.constant 0 : i32
    %c0_i32_0 = arith.constant 0 : i32
    return %arg0, %c0_i32 : i32, i32
  }
  func.func @transform_5(%arg0: i32) -> (i32, i32) {
    %c0_i32 = arith.constant 0 : i32
    %c0_i32_0 = arith.constant 0 : i32
    return %arg0, %c0_i32 : i32, i32
  }
}

module attributes {stable_mosaic.version = 11 : i64} {
  func.func @_conv3_row_kernel(%arg0: i32, %arg1: i32, %arg2: memref<1x1x5x256xbf16, #tpu.memory_space<vmem>>, %arg3: memref<1x1x5x256xbf16, #tpu.memory_space<vmem>>, %arg4: memref<1x1x5x256xbf16, #tpu.memory_space<vmem>>, %arg5: memref<9x128x128xbf16, #tpu.memory_space<vmem>>, %arg6: memref<1x128xf32, #tpu.memory_space<vmem>>, %arg7: memref<1x128xf32, #tpu.memory_space<vmem>>, %arg8: memref<1x1x4x128xbf16, #tpu.memory_space<vmem>>) attributes {dimension_semantics = [#tpu.dimension_semantics<parallel>, #tpu.dimension_semantics<parallel>], iteration_bounds = array<i64: 2, 4>, scalar_prefetch = 0 : i64, scratch_operands = 0 : i64, tpu.core_type = #tpu.core_type<tc>, window_params = [{transform_indices = @transform_0, window_bounds = array<i64: 1, 1, 5, 256>}, {transform_indices = @transform_1, window_bounds = array<i64: 1, 1, 5, 256>}, {transform_indices = @transform_2, window_bounds = array<i64: 1, 1, 5, 256>}, {pipeline_mode = #tpu.pipeline_mode<synchronous>, transform_indices = @transform_3, window_bounds = array<i64: 9, 128, 128>}, {pipeline_mode = #tpu.pipeline_mode<synchronous>, transform_indices = @transform_4, window_bounds = array<i64: 1, 128>}, {pipeline_mode = #tpu.pipeline_mode<synchronous>, transform_indices = @transform_5, window_bounds = array<i64: 1, 128>}, {transform_indices = @transform_6, window_bounds = array<i64: 1, 1, 4, 128>}]} {
    %cst = arith.constant 0.000000e+00 : f32
    %0 = vector.broadcast %cst : f32 to vector<4x128xf32>
    %c0 = arith.constant 0 : index
    %c0_0 = arith.constant 0 : index
    %c0_1 = arith.constant 0 : index
    %c0_2 = arith.constant 0 : index
    %1 = vector.load %arg2[%c0, %c0_0, %c0_1, %c0_2] : memref<1x1x5x256xbf16, #tpu.memory_space<vmem>>, vector<1x1x5x256xbf16>
    %2 = vector.shape_cast %1 : vector<1x1x5x256xbf16> to vector<5x256xbf16>
    %3 = vector.extract_strided_slice %2 {offsets = [0, 0], sizes = [4, 128], strides = [1, 1]} : vector<5x256xbf16> to vector<4x128xbf16>
    %c0_3 = arith.constant 0 : index
    %c0_4 = arith.constant 0 : index
    %c0_5 = arith.constant 0 : index
    %4 = vector.load %arg5[%c0_3, %c0_4, %c0_5] : memref<9x128x128xbf16, #tpu.memory_space<vmem>>, vector<1x128x128xbf16>
    %5 = vector.shape_cast %4 : vector<1x128x128xbf16> to vector<128x128xbf16>
    %cst_6 = arith.constant dense<0.000000e+00> : vector<4x128xf32>
    %6 = tpu.matmul %3, %5, %cst_6 {dimension_numbers = #tpu.dot_dimension_numbers<[1], [0], [0], [1], [0, 0, 1, 1], [], []>} : vector<4x128xbf16>, vector<128x128xbf16>, vector<4x128xf32> -> vector<4x128xf32>
    %7 = arith.addf %0, %6 : vector<4x128xf32>
    %8 = vector.extract_strided_slice %2 {offsets = [0, 128], sizes = [4, 128], strides = [1, 1]} : vector<5x256xbf16> to vector<4x128xbf16>
    %c1 = arith.constant 1 : index
    %c0_7 = arith.constant 0 : index
    %c0_8 = arith.constant 0 : index
    %9 = vector.load %arg5[%c1, %c0_7, %c0_8] : memref<9x128x128xbf16, #tpu.memory_space<vmem>>, vector<1x128x128xbf16>
    %10 = vector.shape_cast %9 : vector<1x128x128xbf16> to vector<128x128xbf16>
    %cst_9 = arith.constant dense<0.000000e+00> : vector<4x128xf32>
    %11 = tpu.matmul %8, %10, %cst_9 {dimension_numbers = #tpu.dot_dimension_numbers<[1], [0], [0], [1], [0, 0, 1, 1], [], []>} : vector<4x128xbf16>, vector<128x128xbf16>, vector<4x128xf32> -> vector<4x128xf32>
    %12 = arith.addf %7, %11 : vector<4x128xf32>
    %13 = vector.extract_strided_slice %2 {offsets = [1, 0], sizes = [4, 128], strides = [1, 1]} : vector<5x256xbf16> to vector<4x128xbf16>
    %c2 = arith.constant 2 : index
    %c0_10 = arith.constant 0 : index
    %c0_11 = arith.constant 0 : index
    %14 = vector.load %arg5[%c2, %c0_10, %c0_11] : memref<9x128x128xbf16, #tpu.memory_space<vmem>>, vector<1x128x128xbf16>
    %15 = vector.shape_cast %14 : vector<1x128x128xbf16> to vector<128x128xbf16>
    %cst_12 = arith.constant dense<0.000000e+00> : vector<4x128xf32>
    %16 = tpu.matmul %13, %15, %cst_12 {dimension_numbers = #tpu.dot_dimension_numbers<[1], [0], [0], [1], [0, 0, 1, 1], [], []>} : vector<4x128xbf16>, vector<128x128xbf16>, vector<4x128xf32> -> vector<4x128xf32>
    %17 = arith.addf %12, %16 : vector<4x128xf32>
    %c0_13 = arith.constant 0 : index
    %c0_14 = arith.constant 0 : index
    %c0_15 = arith.constant 0 : index
    %c0_16 = arith.constant 0 : index
    %18 = vector.load %arg3[%c0_13, %c0_14, %c0_15, %c0_16] : memref<1x1x5x256xbf16, #tpu.memory_space<vmem>>, vector<1x1x5x256xbf16>
    %19 = vector.shape_cast %18 : vector<1x1x5x256xbf16> to vector<5x256xbf16>
    %20 = vector.extract_strided_slice %19 {offsets = [0, 0], sizes = [4, 128], strides = [1, 1]} : vector<5x256xbf16> to vector<4x128xbf16>
    %c3 = arith.constant 3 : index
    %c0_17 = arith.constant 0 : index
    %c0_18 = arith.constant 0 : index
    %21 = vector.load %arg5[%c3, %c0_17, %c0_18] : memref<9x128x128xbf16, #tpu.memory_space<vmem>>, vector<1x128x128xbf16>
    %22 = vector.shape_cast %21 : vector<1x128x128xbf16> to vector<128x128xbf16>
    %cst_19 = arith.constant dense<0.000000e+00> : vector<4x128xf32>
    %23 = tpu.matmul %20, %22, %cst_19 {dimension_numbers = #tpu.dot_dimension_numbers<[1], [0], [0], [1], [0, 0, 1, 1], [], []>} : vector<4x128xbf16>, vector<128x128xbf16>, vector<4x128xf32> -> vector<4x128xf32>
    %24 = arith.addf %17, %23 : vector<4x128xf32>
    %25 = vector.extract_strided_slice %19 {offsets = [0, 128], sizes = [4, 128], strides = [1, 1]} : vector<5x256xbf16> to vector<4x128xbf16>
    %c4 = arith.constant 4 : index
    %c0_20 = arith.constant 0 : index
    %c0_21 = arith.constant 0 : index
    %26 = vector.load %arg5[%c4, %c0_20, %c0_21] : memref<9x128x128xbf16, #tpu.memory_space<vmem>>, vector<1x128x128xbf16>
    %27 = vector.shape_cast %26 : vector<1x128x128xbf16> to vector<128x128xbf16>
    %cst_22 = arith.constant dense<0.000000e+00> : vector<4x128xf32>
    %28 = tpu.matmul %25, %27, %cst_22 {dimension_numbers = #tpu.dot_dimension_numbers<[1], [0], [0], [1], [0, 0, 1, 1], [], []>} : vector<4x128xbf16>, vector<128x128xbf16>, vector<4x128xf32> -> vector<4x128xf32>
    %29 = arith.addf %24, %28 : vector<4x128xf32>
    %30 = vector.extract_strided_slice %19 {offsets = [1, 0], sizes = [4, 128], strides = [1, 1]} : vector<5x256xbf16> to vector<4x128xbf16>
    %c5 = arith.constant 5 : index
    %c0_23 = arith.constant 0 : index
    %c0_24 = arith.constant 0 : index
    %31 = vector.load %arg5[%c5, %c0_23, %c0_24] : memref<9x128x128xbf16, #tpu.memory_space<vmem>>, vector<1x128x128xbf16>
    %32 = vector.shape_cast %31 : vector<1x128x128xbf16> to vector<128x128xbf16>
    %cst_25 = arith.constant dense<0.000000e+00> : vector<4x128xf32>
    %33 = tpu.matmul %30, %32, %cst_25 {dimension_numbers = #tpu.dot_dimension_numbers<[1], [0], [0], [1], [0, 0, 1, 1], [], []>} : vector<4x128xbf16>, vector<128x128xbf16>, vector<4x128xf32> -> vector<4x128xf32>
    %34 = arith.addf %29, %33 : vector<4x128xf32>
    %c0_26 = arith.constant 0 : index
    %c0_27 = arith.constant 0 : index
    %c0_28 = arith.constant 0 : index
    %c0_29 = arith.constant 0 : index
    %35 = vector.load %arg4[%c0_26, %c0_27, %c0_28, %c0_29] : memref<1x1x5x256xbf16, #tpu.memory_space<vmem>>, vector<1x1x5x256xbf16>
    %36 = vector.shape_cast %35 : vector<1x1x5x256xbf16> to vector<5x256xbf16>
    %37 = vector.extract_strided_slice %36 {offsets = [0, 0], sizes = [4, 128], strides = [1, 1]} : vector<5x256xbf16> to vector<4x128xbf16>
    %c6 = arith.constant 6 : index
    %c0_30 = arith.constant 0 : index
    %c0_31 = arith.constant 0 : index
    %38 = vector.load %arg5[%c6, %c0_30, %c0_31] : memref<9x128x128xbf16, #tpu.memory_space<vmem>>, vector<1x128x128xbf16>
    %39 = vector.shape_cast %38 : vector<1x128x128xbf16> to vector<128x128xbf16>
    %cst_32 = arith.constant dense<0.000000e+00> : vector<4x128xf32>
    %40 = tpu.matmul %37, %39, %cst_32 {dimension_numbers = #tpu.dot_dimension_numbers<[1], [0], [0], [1], [0, 0, 1, 1], [], []>} : vector<4x128xbf16>, vector<128x128xbf16>, vector<4x128xf32> -> vector<4x128xf32>
    %41 = arith.addf %34, %40 : vector<4x128xf32>
    %42 = vector.extract_strided_slice %36 {offsets = [0, 128], sizes = [4, 128], strides = [1, 1]} : vector<5x256xbf16> to vector<4x128xbf16>
    %c7 = arith.constant 7 : index
    %c0_33 = arith.constant 0 : index
    %c0_34 = arith.constant 0 : index
    %43 = vector.load %arg5[%c7, %c0_33, %c0_34] : memref<9x128x128xbf16, #tpu.memory_space<vmem>>, vector<1x128x128xbf16>
    %44 = vector.shape_cast %43 : vector<1x128x128xbf16> to vector<128x128xbf16>
    %cst_35 = arith.constant dense<0.000000e+00> : vector<4x128xf32>
    %45 = tpu.matmul %42, %44, %cst_35 {dimension_numbers = #tpu.dot_dimension_numbers<[1], [0], [0], [1], [0, 0, 1, 1], [], []>} : vector<4x128xbf16>, vector<128x128xbf16>, vector<4x128xf32> -> vector<4x128xf32>
    %46 = arith.addf %41, %45 : vector<4x128xf32>
    %47 = vector.extract_strided_slice %36 {offsets = [1, 0], sizes = [4, 128], strides = [1, 1]} : vector<5x256xbf16> to vector<4x128xbf16>
    %c8 = arith.constant 8 : index
    %c0_36 = arith.constant 0 : index
    %c0_37 = arith.constant 0 : index
    %48 = vector.load %arg5[%c8, %c0_36, %c0_37] : memref<9x128x128xbf16, #tpu.memory_space<vmem>>, vector<1x128x128xbf16>
    %49 = vector.shape_cast %48 : vector<1x128x128xbf16> to vector<128x128xbf16>
    %cst_38 = arith.constant dense<0.000000e+00> : vector<4x128xf32>
    %50 = tpu.matmul %47, %49, %cst_38 {dimension_numbers = #tpu.dot_dimension_numbers<[1], [0], [0], [1], [0, 0, 1, 1], [], []>} : vector<4x128xbf16>, vector<128x128xbf16>, vector<4x128xf32> -> vector<4x128xf32>
    %51 = arith.addf %46, %50 : vector<4x128xf32>
    %c0_39 = arith.constant 0 : index
    %c0_40 = arith.constant 0 : index
    %52 = vector.load %arg6[%c0_39, %c0_40] : memref<1x128xf32, #tpu.memory_space<vmem>>, vector<1x128xf32>
    %53 = vector.broadcast %52 : vector<1x128xf32> to vector<4x128xf32>
    %54 = arith.mulf %51, %53 : vector<4x128xf32>
    %c0_41 = arith.constant 0 : index
    %c0_42 = arith.constant 0 : index
    %55 = vector.load %arg7[%c0_41, %c0_42] : memref<1x128xf32, #tpu.memory_space<vmem>>, vector<1x128xf32>
    %56 = vector.broadcast %55 : vector<1x128xf32> to vector<4x128xf32>
    %57 = arith.addf %54, %56 : vector<4x128xf32>
    %58 = arith.negf %57 : vector<4x128xf32>
    %59 = math.exp %58 : vector<4x128xf32>
    %cst_43 = arith.constant 1.000000e+00 : f32
    %60 = vector.broadcast %cst_43 : f32 to vector<4x128xf32>
    %61 = arith.addf %60, %59 : vector<4x128xf32>
    %62 = arith.divf %60, %61 : vector<4x128xf32>
    %63 = arith.mulf %57, %62 : vector<4x128xf32>
    %64 = arith.truncf %63 : vector<4x128xf32> to vector<4x128xbf16>
    %c0_44 = arith.constant 0 : index
    %c0_45 = arith.constant 0 : index
    %c0_46 = arith.constant 0 : index
    %c0_47 = arith.constant 0 : index
    %65 = vector.load %arg8[%c0_44, %c0_45, %c0_46, %c0_47] : memref<1x1x4x128xbf16, #tpu.memory_space<vmem>>, vector<1x1x4x128xbf16>
    %66 = vector.shape_cast %65 : vector<1x1x4x128xbf16> to vector<4x128xbf16>
    %67 = vector.shape_cast %64 : vector<4x128xbf16> to vector<1x1x4x128xbf16>
    tpu.vector_store %arg8[%c0_44, %c0_45, %c0_46, %c0_47], %67 {strides = array<i32>} : memref<1x1x4x128xbf16, #tpu.memory_space<vmem>>, vector<1x1x4x128xbf16>,
    return
  }
  func.func @transform_0(%arg0: i32, %arg1: i32) -> (i32, i32, i32, i32) {
    %c2_i32 = arith.constant 2 : i32
    %0 = arith.muli %c2_i32, %arg1 : i32
    %c0_i32 = arith.constant 0 : i32
    %1 = arith.addi %0, %c0_i32 : i32
    %c0_i32_0 = arith.constant 0 : i32
    %c0_i32_1 = arith.constant 0 : i32
    %c0_i32_2 = arith.constant 0 : i32
    return %arg0, %1, %c0_i32_0, %c0_i32_1 : i32, i32, i32, i32
  }
  func.func @transform_1(%arg0: i32, %arg1: i32) -> (i32, i32, i32, i32) {
    %c2_i32 = arith.constant 2 : i32
    %0 = arith.muli %c2_i32, %arg1 : i32
    %c1_i32 = arith.constant 1 : i32
    %1 = arith.addi %0, %c1_i32 : i32
    %c0_i32 = arith.constant 0 : i32
    %c0_i32_0 = arith.constant 0 : i32
    %c0_i32_1 = arith.constant 0 : i32
    return %arg0, %1, %c0_i32, %c0_i32_0 : i32, i32, i32, i32
  }
  func.func @transform_2(%arg0: i32, %arg1: i32) -> (i32, i32, i32, i32) {
    %c2_i32 = arith.constant 2 : i32
    %0 = arith.muli %c2_i32, %arg1 : i32
    %c2_i32_0 = arith.constant 2 : i32
    %1 = arith.addi %0, %c2_i32_0 : i32
    %c0_i32 = arith.constant 0 : i32
    %c0_i32_1 = arith.constant 0 : i32
    %c0_i32_2 = arith.constant 0 : i32
    return %arg0, %1, %c0_i32, %c0_i32_1 : i32, i32, i32, i32
  }
  func.func @transform_3(%arg0: i32, %arg1: i32) -> (i32, i32, i32) {
    %c0_i32 = arith.constant 0 : i32
    %c0_i32_0 = arith.constant 0 : i32
    %c0_i32_1 = arith.constant 0 : i32
    %c0_i32_2 = arith.constant 0 : i32
    return %c0_i32, %c0_i32_0, %c0_i32_1 : i32, i32, i32
  }
  func.func @transform_4(%arg0: i32, %arg1: i32) -> (i32, i32) {
    %c0_i32 = arith.constant 0 : i32
    %c0_i32_0 = arith.constant 0 : i32
    %c0_i32_1 = arith.constant 0 : i32
    return %c0_i32, %c0_i32_0 : i32, i32
  }
  func.func @transform_5(%arg0: i32, %arg1: i32) -> (i32, i32) {
    %c0_i32 = arith.constant 0 : i32
    %c0_i32_0 = arith.constant 0 : i32
    %c0_i32_1 = arith.constant 0 : i32
    return %c0_i32, %c0_i32_0 : i32, i32
  }
  func.func @transform_6(%arg0: i32, %arg1: i32) -> (i32, i32, i32, i32) {
    %c0_i32 = arith.constant 0 : i32
    %c0_i32_0 = arith.constant 0 : i32
    %c0_i32_1 = arith.constant 0 : i32
    return %arg0, %arg1, %c0_i32, %c0_i32_0 : i32, i32, i32, i32
  }
}

module attributes {stable_mosaic.version = 11 : i64} {
  func.func @_matmul_bn_kernel(%arg0: i32, %arg1: memref<16x128xbf16, #tpu.memory_space<vmem>>, %arg2: memref<128x128xbf16, #tpu.memory_space<vmem>>, %arg3: memref<1x128xf32, #tpu.memory_space<vmem>>, %arg4: memref<1x128xf32, #tpu.memory_space<vmem>>, %arg5: memref<16x128xbf16, #tpu.memory_space<vmem>>) attributes {dimension_semantics = [#tpu.dimension_semantics<parallel>], iteration_bounds = array<i64: 2>, scalar_prefetch = 0 : i64, scratch_operands = 0 : i64, tpu.core_type = #tpu.core_type<tc>, window_params = [{transform_indices = @transform_0, window_bounds = array<i64: 16, 128>}, {pipeline_mode = #tpu.pipeline_mode<synchronous>, transform_indices = @transform_1, window_bounds = array<i64: 128, 128>}, {pipeline_mode = #tpu.pipeline_mode<synchronous>, transform_indices = @transform_2, window_bounds = array<i64: 1, 128>}, {pipeline_mode = #tpu.pipeline_mode<synchronous>, transform_indices = @transform_3, window_bounds = array<i64: 1, 128>}, {transform_indices = @transform_4, window_bounds = array<i64: 16, 128>}]} {
    %c0 = arith.constant 0 : index
    %c0_0 = arith.constant 0 : index
    %0 = vector.load %arg1[%c0, %c0_0] : memref<16x128xbf16, #tpu.memory_space<vmem>>, vector<16x128xbf16>
    %c0_1 = arith.constant 0 : index
    %c0_2 = arith.constant 0 : index
    %1 = vector.load %arg2[%c0_1, %c0_2] : memref<128x128xbf16, #tpu.memory_space<vmem>>, vector<128x128xbf16>
    %cst = arith.constant dense<0.000000e+00> : vector<16x128xf32>
    %2 = tpu.matmul %0, %1, %cst {dimension_numbers = #tpu.dot_dimension_numbers<[1], [0], [0], [1], [0, 0, 1, 1], [], []>} : vector<16x128xbf16>, vector<128x128xbf16>, vector<16x128xf32> -> vector<16x128xf32>
    %c0_3 = arith.constant 0 : index
    %c0_4 = arith.constant 0 : index
    %3 = vector.load %arg3[%c0_3, %c0_4] : memref<1x128xf32, #tpu.memory_space<vmem>>, vector<1x128xf32>
    %4 = vector.broadcast %3 : vector<1x128xf32> to vector<16x128xf32>
    %5 = arith.mulf %2, %4 : vector<16x128xf32>
    %c0_5 = arith.constant 0 : index
    %c0_6 = arith.constant 0 : index
    %6 = vector.load %arg4[%c0_5, %c0_6] : memref<1x128xf32, #tpu.memory_space<vmem>>, vector<1x128xf32>
    %7 = vector.broadcast %6 : vector<1x128xf32> to vector<16x128xf32>
    %8 = arith.addf %5, %7 : vector<16x128xf32>
    %9 = arith.negf %8 : vector<16x128xf32>
    %10 = math.exp %9 : vector<16x128xf32>
    %cst_7 = arith.constant 1.000000e+00 : f32
    %11 = vector.broadcast %cst_7 : f32 to vector<16x128xf32>
    %12 = arith.addf %11, %10 : vector<16x128xf32>
    %13 = arith.divf %11, %12 : vector<16x128xf32>
    %14 = arith.mulf %8, %13 : vector<16x128xf32>
    %15 = arith.truncf %14 : vector<16x128xf32> to vector<16x128xbf16>
    %c0_8 = arith.constant 0 : index
    %c0_9 = arith.constant 0 : index
    %16 = vector.load %arg5[%c0_8, %c0_9] : memref<16x128xbf16, #tpu.memory_space<vmem>>, vector<16x128xbf16>
    tpu.vector_store %arg5[%c0_8, %c0_9], %15 {strides = array<i32>} : memref<16x128xbf16, #tpu.memory_space<vmem>>, vector<16x128xbf16>,
    return
  }
  func.func @transform_0(%arg0: i32) -> (i32, i32) {
    %c0_i32 = arith.constant 0 : i32
    %c0_i32_0 = arith.constant 0 : i32
    return %arg0, %c0_i32 : i32, i32
  }
  func.func @transform_1(%arg0: i32) -> (i32, i32) {
    %c0_i32 = arith.constant 0 : i32
    %c0_i32_0 = arith.constant 0 : i32
    %c0_i32_1 = arith.constant 0 : i32
    return %c0_i32, %c0_i32_0 : i32, i32
  }
  func.func @transform_2(%arg0: i32) -> (i32, i32) {
    %c0_i32 = arith.constant 0 : i32
    %c0_i32_0 = arith.constant 0 : i32
    %c0_i32_1 = arith.constant 0 : i32
    return %c0_i32, %c0_i32_0 : i32, i32
  }
  func.func @transform_3(%arg0: i32) -> (i32, i32) {
    %c0_i32 = arith.constant 0 : i32
    %c0_i32_0 = arith.constant 0 : i32
    %c0_i32_1 = arith.constant 0 : i32
    return %c0_i32, %c0_i32_0 : i32, i32
  }
  func.func @transform_4(%arg0: i32) -> (i32, i32) {
    %c0_i32 = arith.constant 0 : i32
    %c0_i32_0 = arith.constant 0 : i32
    return %arg0, %c0_i32 : i32, i32
  }
}

module attributes {stable_mosaic.version = 11 : i64} {
  func.func @_matmul_bn_kernel(%arg0: i32, %arg1: memref<16x128xbf16, #tpu.memory_space<vmem>>, %arg2: memref<128x128xbf16, #tpu.memory_space<vmem>>, %arg3: memref<1x128xf32, #tpu.memory_space<vmem>>, %arg4: memref<1x128xf32, #tpu.memory_space<vmem>>, %arg5: memref<16x128xbf16, #tpu.memory_space<vmem>>) attributes {dimension_semantics = [#tpu.dimension_semantics<parallel>], iteration_bounds = array<i64: 2>, scalar_prefetch = 0 : i64, scratch_operands = 0 : i64, tpu.core_type = #tpu.core_type<tc>, window_params = [{transform_indices = @transform_0, window_bounds = array<i64: 16, 128>}, {pipeline_mode = #tpu.pipeline_mode<synchronous>, transform_indices = @transform_1, window_bounds = array<i64: 128, 128>}, {pipeline_mode = #tpu.pipeline_mode<synchronous>, transform_indices = @transform_2, window_bounds = array<i64: 1, 128>}, {pipeline_mode = #tpu.pipeline_mode<synchronous>, transform_indices = @transform_3, window_bounds = array<i64: 1, 128>}, {transform_indices = @transform_4, window_bounds = array<i64: 16, 128>}]} {
    %c0 = arith.constant 0 : index
    %c0_0 = arith.constant 0 : index
    %0 = vector.load %arg1[%c0, %c0_0] : memref<16x128xbf16, #tpu.memory_space<vmem>>, vector<16x128xbf16>
    %c0_1 = arith.constant 0 : index
    %c0_2 = arith.constant 0 : index
    %1 = vector.load %arg2[%c0_1, %c0_2] : memref<128x128xbf16, #tpu.memory_space<vmem>>, vector<128x128xbf16>
    %cst = arith.constant dense<0.000000e+00> : vector<16x128xf32>
    %2 = tpu.matmul %0, %1, %cst {dimension_numbers = #tpu.dot_dimension_numbers<[1], [0], [0], [1], [0, 0, 1, 1], [], []>} : vector<16x128xbf16>, vector<128x128xbf16>, vector<16x128xf32> -> vector<16x128xf32>
    %c0_3 = arith.constant 0 : index
    %c0_4 = arith.constant 0 : index
    %3 = vector.load %arg3[%c0_3, %c0_4] : memref<1x128xf32, #tpu.memory_space<vmem>>, vector<1x128xf32>
    %4 = vector.broadcast %3 : vector<1x128xf32> to vector<16x128xf32>
    %5 = arith.mulf %2, %4 : vector<16x128xf32>
    %c0_5 = arith.constant 0 : index
    %c0_6 = arith.constant 0 : index
    %6 = vector.load %arg4[%c0_5, %c0_6] : memref<1x128xf32, #tpu.memory_space<vmem>>, vector<1x128xf32>
    %7 = vector.broadcast %6 : vector<1x128xf32> to vector<16x128xf32>
    %8 = arith.addf %5, %7 : vector<16x128xf32>
    %9 = arith.truncf %8 : vector<16x128xf32> to vector<16x128xbf16>
    %c0_7 = arith.constant 0 : index
    %c0_8 = arith.constant 0 : index
    %10 = vector.load %arg5[%c0_7, %c0_8] : memref<16x128xbf16, #tpu.memory_space<vmem>>, vector<16x128xbf16>
    tpu.vector_store %arg5[%c0_7, %c0_8], %9 {strides = array<i32>} : memref<16x128xbf16, #tpu.memory_space<vmem>>, vector<16x128xbf16>,
    return
  }
  func.func @transform_0(%arg0: i32) -> (i32, i32) {
    %c0_i32 = arith.constant 0 : i32
    %c0_i32_0 = arith.constant 0 : i32
    return %arg0, %c0_i32 : i32, i32
  }
  func.func @transform_1(%arg0: i32) -> (i32, i32) {
    %c0_i32 = arith.constant 0 : i32
    %c0_i32_0 = arith.constant 0 : i32
    %c0_i32_1 = arith.constant 0 : i32
    return %c0_i32, %c0_i32_0 : i32, i32
  }
  func.func @transform_2(%arg0: i32) -> (i32, i32) {
    %c0_i32 = arith.constant 0 : i32
    %c0_i32_0 = arith.constant 0 : i32
    %c0_i32_1 = arith.constant 0 : i32
    return %c0_i32, %c0_i32_0 : i32, i32
  }
  func.func @transform_3(%arg0: i32) -> (i32, i32) {
    %c0_i32 = arith.constant 0 : i32
    %c0_i32_0 = arith.constant 0 : i32
    %c0_i32_1 = arith.constant 0 : i32
    return %c0_i32, %c0_i32_0 : i32, i32
  }
  func.func @transform_4(%arg0: i32) -> (i32, i32) {
    %c0_i32 = arith.constant 0 : i32
    %c0_i32_0 = arith.constant 0 : i32
    return %arg0, %c0_i32 : i32, i32
  }
}

module attributes {stable_mosaic.version = 11 : i64} {
  func.func @_matmul_bn_kernel(%arg0: i32, %arg1: memref<16x128xbf16, #tpu.memory_space<vmem>>, %arg2: memref<128x128xbf16, #tpu.memory_space<vmem>>, %arg3: memref<1x128xf32, #tpu.memory_space<vmem>>, %arg4: memref<1x128xf32, #tpu.memory_space<vmem>>, %arg5: memref<16x128xbf16, #tpu.memory_space<vmem>>) attributes {dimension_semantics = [#tpu.dimension_semantics<parallel>], iteration_bounds = array<i64: 1>, scalar_prefetch = 0 : i64, scratch_operands = 0 : i64, tpu.core_type = #tpu.core_type<tc>, window_params = [{transform_indices = @transform_0, window_bounds = array<i64: 16, 128>}, {pipeline_mode = #tpu.pipeline_mode<synchronous>, transform_indices = @transform_1, window_bounds = array<i64: 128, 128>}, {pipeline_mode = #tpu.pipeline_mode<synchronous>, transform_indices = @transform_2, window_bounds = array<i64: 1, 128>}, {pipeline_mode = #tpu.pipeline_mode<synchronous>, transform_indices = @transform_3, window_bounds = array<i64: 1, 128>}, {transform_indices = @transform_4, window_bounds = array<i64: 16, 128>}]} {
    %c0 = arith.constant 0 : index
    %c0_0 = arith.constant 0 : index
    %0 = vector.load %arg1[%c0, %c0_0] : memref<16x128xbf16, #tpu.memory_space<vmem>>, vector<16x128xbf16>
    %c0_1 = arith.constant 0 : index
    %c0_2 = arith.constant 0 : index
    %1 = vector.load %arg2[%c0_1, %c0_2] : memref<128x128xbf16, #tpu.memory_space<vmem>>, vector<128x128xbf16>
    %cst = arith.constant dense<0.000000e+00> : vector<16x128xf32>
    %2 = tpu.matmul %0, %1, %cst {dimension_numbers = #tpu.dot_dimension_numbers<[1], [0], [0], [1], [0, 0, 1, 1], [], []>} : vector<16x128xbf16>, vector<128x128xbf16>, vector<16x128xf32> -> vector<16x128xf32>
    %c0_3 = arith.constant 0 : index
    %c0_4 = arith.constant 0 : index
    %3 = vector.load %arg3[%c0_3, %c0_4] : memref<1x128xf32, #tpu.memory_space<vmem>>, vector<1x128xf32>
    %4 = vector.broadcast %3 : vector<1x128xf32> to vector<16x128xf32>
    %5 = arith.mulf %2, %4 : vector<16x128xf32>
    %c0_5 = arith.constant 0 : index
    %c0_6 = arith.constant 0 : index
    %6 = vector.load %arg4[%c0_5, %c0_6] : memref<1x128xf32, #tpu.memory_space<vmem>>, vector<1x128xf32>
    %7 = vector.broadcast %6 : vector<1x128xf32> to vector<16x128xf32>
    %8 = arith.addf %5, %7 : vector<16x128xf32>
    %9 = arith.truncf %8 : vector<16x128xf32> to vector<16x128xbf16>
    %c0_7 = arith.constant 0 : index
    %c0_8 = arith.constant 0 : index
    %10 = vector.load %arg5[%c0_7, %c0_8] : memref<16x128xbf16, #tpu.memory_space<vmem>>, vector<16x128xbf16>
    tpu.vector_store %arg5[%c0_7, %c0_8], %9 {strides = array<i32>} : memref<16x128xbf16, #tpu.memory_space<vmem>>, vector<16x128xbf16>,
    return
  }
  func.func @transform_0(%arg0: i32) -> (i32, i32) {
    %c0_i32 = arith.constant 0 : i32
    %c0_i32_0 = arith.constant 0 : i32
    return %arg0, %c0_i32 : i32, i32
  }
  func.func @transform_1(%arg0: i32) -> (i32, i32) {
    %c0_i32 = arith.constant 0 : i32
    %c0_i32_0 = arith.constant 0 : i32
    %c0_i32_1 = arith.constant 0 : i32
    return %c0_i32, %c0_i32_0 : i32, i32
  }
  func.func @transform_2(%arg0: i32) -> (i32, i32) {
    %c0_i32 = arith.constant 0 : i32
    %c0_i32_0 = arith.constant 0 : i32
    %c0_i32_1 = arith.constant 0 : i32
    return %c0_i32, %c0_i32_0 : i32, i32
  }
  func.func @transform_3(%arg0: i32) -> (i32, i32) {
    %c0_i32 = arith.constant 0 : i32
    %c0_i32_0 = arith.constant 0 : i32
    %c0_i32_1 = arith.constant 0 : i32
    return %c0_i32, %c0_i32_0 : i32, i32
  }
  func.func @transform_4(%arg0: i32) -> (i32, i32) {
    %c0_i32 = arith.constant 0 : i32
    %c0_i32_0 = arith.constant 0 : i32
    return %arg0, %c0_i32 : i32, i32
  }
}

module attributes {stable_mosaic.version = 11 : i64} {
  func.func @_dw3_row_kernel(%arg0: i32, %arg1: i32, %arg2: memref<1x1x3x256xbf16, #tpu.memory_space<vmem>>, %arg3: memref<1x1x3x256xbf16, #tpu.memory_space<vmem>>, %arg4: memref<1x1x3x256xbf16, #tpu.memory_space<vmem>>, %arg5: memref<9x1x128xf32, #tpu.memory_space<vmem>>, %arg6: memref<1x128xf32, #tpu.memory_space<vmem>>, %arg7: memref<1x1x2x128xbf16, #tpu.memory_space<vmem>>) attributes {dimension_semantics = [#tpu.dimension_semantics<parallel>, #tpu.dimension_semantics<parallel>], iteration_bounds = array<i64: 2, 2>, scalar_prefetch = 0 : i64, scratch_operands = 0 : i64, tpu.core_type = #tpu.core_type<tc>, window_params = [{transform_indices = @transform_0, window_bounds = array<i64: 1, 1, 3, 256>}, {transform_indices = @transform_1, window_bounds = array<i64: 1, 1, 3, 256>}, {transform_indices = @transform_2, window_bounds = array<i64: 1, 1, 3, 256>}, {pipeline_mode = #tpu.pipeline_mode<synchronous>, transform_indices = @transform_3, window_bounds = array<i64: 9, 1, 128>}, {pipeline_mode = #tpu.pipeline_mode<synchronous>, transform_indices = @transform_4, window_bounds = array<i64: 1, 128>}, {transform_indices = @transform_5, window_bounds = array<i64: 1, 1, 2, 128>}]} {
    %cst = arith.constant 0.000000e+00 : f32
    %0 = vector.broadcast %cst : f32 to vector<2x128xf32>
    %c0 = arith.constant 0 : index
    %c0_0 = arith.constant 0 : index
    %c0_1 = arith.constant 0 : index
    %c0_2 = arith.constant 0 : index
    %1 = vector.load %arg2[%c0, %c0_0, %c0_1, %c0_2] : memref<1x1x3x256xbf16, #tpu.memory_space<vmem>>, vector<1x1x3x256xbf16>
    %2 = vector.shape_cast %1 : vector<1x1x3x256xbf16> to vector<3x256xbf16>
    %3 = arith.extf %2 : vector<3x256xbf16> to vector<3x256xf32>
    %4 = vector.extract_strided_slice %3 {offsets = [0, 0], sizes = [2, 128], strides = [1, 1]} : vector<3x256xf32> to vector<2x128xf32>
    %c0_3 = arith.constant 0 : index
    %c0_4 = arith.constant 0 : index
    %c0_5 = arith.constant 0 : index
    %5 = vector.load %arg5[%c0_3, %c0_4, %c0_5] : memref<9x1x128xf32, #tpu.memory_space<vmem>>, vector<1x1x128xf32>
    %6 = vector.shape_cast %5 : vector<1x1x128xf32> to vector<1x128xf32>
    %7 = vector.broadcast %6 : vector<1x128xf32> to vector<2x128xf32>
    %8 = arith.mulf %4, %7 : vector<2x128xf32>
    %9 = arith.addf %0, %8 : vector<2x128xf32>
    %10 = vector.extract_strided_slice %3 {offsets = [0, 128], sizes = [2, 128], strides = [1, 1]} : vector<3x256xf32> to vector<2x128xf32>
    %c1 = arith.constant 1 : index
    %c0_6 = arith.constant 0 : index
    %c0_7 = arith.constant 0 : index
    %11 = vector.load %arg5[%c1, %c0_6, %c0_7] : memref<9x1x128xf32, #tpu.memory_space<vmem>>, vector<1x1x128xf32>
    %12 = vector.shape_cast %11 : vector<1x1x128xf32> to vector<1x128xf32>
    %13 = vector.broadcast %12 : vector<1x128xf32> to vector<2x128xf32>
    %14 = arith.mulf %10, %13 : vector<2x128xf32>
    %15 = arith.addf %9, %14 : vector<2x128xf32>
    %16 = vector.extract_strided_slice %3 {offsets = [1, 0], sizes = [2, 128], strides = [1, 1]} : vector<3x256xf32> to vector<2x128xf32>
    %c2 = arith.constant 2 : index
    %c0_8 = arith.constant 0 : index
    %c0_9 = arith.constant 0 : index
    %17 = vector.load %arg5[%c2, %c0_8, %c0_9] : memref<9x1x128xf32, #tpu.memory_space<vmem>>, vector<1x1x128xf32>
    %18 = vector.shape_cast %17 : vector<1x1x128xf32> to vector<1x128xf32>
    %19 = vector.broadcast %18 : vector<1x128xf32> to vector<2x128xf32>
    %20 = arith.mulf %16, %19 : vector<2x128xf32>
    %21 = arith.addf %15, %20 : vector<2x128xf32>
    %c0_10 = arith.constant 0 : index
    %c0_11 = arith.constant 0 : index
    %c0_12 = arith.constant 0 : index
    %c0_13 = arith.constant 0 : index
    %22 = vector.load %arg3[%c0_10, %c0_11, %c0_12, %c0_13] : memref<1x1x3x256xbf16, #tpu.memory_space<vmem>>, vector<1x1x3x256xbf16>
    %23 = vector.shape_cast %22 : vector<1x1x3x256xbf16> to vector<3x256xbf16>
    %24 = arith.extf %23 : vector<3x256xbf16> to vector<3x256xf32>
    %25 = vector.extract_strided_slice %24 {offsets = [0, 0], sizes = [2, 128], strides = [1, 1]} : vector<3x256xf32> to vector<2x128xf32>
    %c3 = arith.constant 3 : index
    %c0_14 = arith.constant 0 : index
    %c0_15 = arith.constant 0 : index
    %26 = vector.load %arg5[%c3, %c0_14, %c0_15] : memref<9x1x128xf32, #tpu.memory_space<vmem>>, vector<1x1x128xf32>
    %27 = vector.shape_cast %26 : vector<1x1x128xf32> to vector<1x128xf32>
    %28 = vector.broadcast %27 : vector<1x128xf32> to vector<2x128xf32>
    %29 = arith.mulf %25, %28 : vector<2x128xf32>
    %30 = arith.addf %21, %29 : vector<2x128xf32>
    %31 = vector.extract_strided_slice %24 {offsets = [0, 128], sizes = [2, 128], strides = [1, 1]} : vector<3x256xf32> to vector<2x128xf32>
    %c4 = arith.constant 4 : index
    %c0_16 = arith.constant 0 : index
    %c0_17 = arith.constant 0 : index
    %32 = vector.load %arg5[%c4, %c0_16, %c0_17] : memref<9x1x128xf32, #tpu.memory_space<vmem>>, vector<1x1x128xf32>
    %33 = vector.shape_cast %32 : vector<1x1x128xf32> to vector<1x128xf32>
    %34 = vector.broadcast %33 : vector<1x128xf32> to vector<2x128xf32>
    %35 = arith.mulf %31, %34 : vector<2x128xf32>
    %36 = arith.addf %30, %35 : vector<2x128xf32>
    %37 = vector.extract_strided_slice %24 {offsets = [1, 0], sizes = [2, 128], strides = [1, 1]} : vector<3x256xf32> to vector<2x128xf32>
    %c5 = arith.constant 5 : index
    %c0_18 = arith.constant 0 : index
    %c0_19 = arith.constant 0 : index
    %38 = vector.load %arg5[%c5, %c0_18, %c0_19] : memref<9x1x128xf32, #tpu.memory_space<vmem>>, vector<1x1x128xf32>
    %39 = vector.shape_cast %38 : vector<1x1x128xf32> to vector<1x128xf32>
    %40 = vector.broadcast %39 : vector<1x128xf32> to vector<2x128xf32>
    %41 = arith.mulf %37, %40 : vector<2x128xf32>
    %42 = arith.addf %36, %41 : vector<2x128xf32>
    %c0_20 = arith.constant 0 : index
    %c0_21 = arith.constant 0 : index
    %c0_22 = arith.constant 0 : index
    %c0_23 = arith.constant 0 : index
    %43 = vector.load %arg4[%c0_20, %c0_21, %c0_22, %c0_23] : memref<1x1x3x256xbf16, #tpu.memory_space<vmem>>, vector<1x1x3x256xbf16>
    %44 = vector.shape_cast %43 : vector<1x1x3x256xbf16> to vector<3x256xbf16>
    %45 = arith.extf %44 : vector<3x256xbf16> to vector<3x256xf32>
    %46 = vector.extract_strided_slice %45 {offsets = [0, 0], sizes = [2, 128], strides = [1, 1]} : vector<3x256xf32> to vector<2x128xf32>
    %c6 = arith.constant 6 : index
    %c0_24 = arith.constant 0 : index
    %c0_25 = arith.constant 0 : index
    %47 = vector.load %arg5[%c6, %c0_24, %c0_25] : memref<9x1x128xf32, #tpu.memory_space<vmem>>, vector<1x1x128xf32>
    %48 = vector.shape_cast %47 : vector<1x1x128xf32> to vector<1x128xf32>
    %49 = vector.broadcast %48 : vector<1x128xf32> to vector<2x128xf32>
    %50 = arith.mulf %46, %49 : vector<2x128xf32>
    %51 = arith.addf %42, %50 : vector<2x128xf32>
    %52 = vector.extract_strided_slice %45 {offsets = [0, 128], sizes = [2, 128], strides = [1, 1]} : vector<3x256xf32> to vector<2x128xf32>
    %c7 = arith.constant 7 : index
    %c0_26 = arith.constant 0 : index
    %c0_27 = arith.constant 0 : index
    %53 = vector.load %arg5[%c7, %c0_26, %c0_27] : memref<9x1x128xf32, #tpu.memory_space<vmem>>, vector<1x1x128xf32>
    %54 = vector.shape_cast %53 : vector<1x1x128xf32> to vector<1x128xf32>
    %55 = vector.broadcast %54 : vector<1x128xf32> to vector<2x128xf32>
    %56 = arith.mulf %52, %55 : vector<2x128xf32>
    %57 = arith.addf %51, %56 : vector<2x128xf32>
    %58 = vector.extract_strided_slice %45 {offsets = [1, 0], sizes = [2, 128], strides = [1, 1]} : vector<3x256xf32> to vector<2x128xf32>
    %c8 = arith.constant 8 : index
    %c0_28 = arith.constant 0 : index
    %c0_29 = arith.constant 0 : index
    %59 = vector.load %arg5[%c8, %c0_28, %c0_29] : memref<9x1x128xf32, #tpu.memory_space<vmem>>, vector<1x1x128xf32>
    %60 = vector.shape_cast %59 : vector<1x1x128xf32> to vector<1x128xf32>
    %61 = vector.broadcast %60 : vector<1x128xf32> to vector<2x128xf32>
    %62 = arith.mulf %58, %61 : vector<2x128xf32>
    %63 = arith.addf %57, %62 : vector<2x128xf32>
    %c0_30 = arith.constant 0 : index
    %c0_31 = arith.constant 0 : index
    %64 = vector.load %arg6[%c0_30, %c0_31] : memref<1x128xf32, #tpu.memory_space<vmem>>, vector<1x128xf32>
    %65 = vector.broadcast %64 : vector<1x128xf32> to vector<2x128xf32>
    %66 = arith.addf %63, %65 : vector<2x128xf32>
    %67 = arith.negf %66 : vector<2x128xf32>
    %68 = math.exp %67 : vector<2x128xf32>
    %cst_32 = arith.constant 1.000000e+00 : f32
    %69 = vector.broadcast %cst_32 : f32 to vector<2x128xf32>
    %70 = arith.addf %69, %68 : vector<2x128xf32>
    %71 = arith.divf %69, %70 : vector<2x128xf32>
    %72 = arith.mulf %66, %71 : vector<2x128xf32>
    %73 = arith.truncf %72 : vector<2x128xf32> to vector<2x128xbf16>
    %c0_33 = arith.constant 0 : index
    %c0_34 = arith.constant 0 : index
    %c0_35 = arith.constant 0 : index
    %c0_36 = arith.constant 0 : index
    %74 = vector.load %arg7[%c0_33, %c0_34, %c0_35, %c0_36] : memref<1x1x2x128xbf16, #tpu.memory_space<vmem>>, vector<1x1x2x128xbf16>
    %75 = vector.shape_cast %74 : vector<1x1x2x128xbf16> to vector<2x128xbf16>
    %76 = vector.shape_cast %73 : vector<2x128xbf16> to vector<1x1x2x128xbf16>
    tpu.vector_store %arg7[%c0_33, %c0_34, %c0_35, %c0_36], %76 {strides = array<i32>} : memref<1x1x2x128xbf16, #tpu.memory_space<vmem>>, vector<1x1x2x128xbf16>,
    return
  }
  func.func @transform_0(%arg0: i32, %arg1: i32) -> (i32, i32, i32, i32) {
    %c2_i32 = arith.constant 2 : i32
    %0 = arith.muli %c2_i32, %arg1 : i32
    %c0_i32 = arith.constant 0 : i32
    %1 = arith.addi %0, %c0_i32 : i32
    %c0_i32_0 = arith.constant 0 : i32
    %c0_i32_1 = arith.constant 0 : i32
    %c0_i32_2 = arith.constant 0 : i32
    return %arg0, %1, %c0_i32_0, %c0_i32_1 : i32, i32, i32, i32
  }
  func.func @transform_1(%arg0: i32, %arg1: i32) -> (i32, i32, i32, i32) {
    %c2_i32 = arith.constant 2 : i32
    %0 = arith.muli %c2_i32, %arg1 : i32
    %c1_i32 = arith.constant 1 : i32
    %1 = arith.addi %0, %c1_i32 : i32
    %c0_i32 = arith.constant 0 : i32
    %c0_i32_0 = arith.constant 0 : i32
    %c0_i32_1 = arith.constant 0 : i32
    return %arg0, %1, %c0_i32, %c0_i32_0 : i32, i32, i32, i32
  }
  func.func @transform_2(%arg0: i32, %arg1: i32) -> (i32, i32, i32, i32) {
    %c2_i32 = arith.constant 2 : i32
    %0 = arith.muli %c2_i32, %arg1 : i32
    %c2_i32_0 = arith.constant 2 : i32
    %1 = arith.addi %0, %c2_i32_0 : i32
    %c0_i32 = arith.constant 0 : i32
    %c0_i32_1 = arith.constant 0 : i32
    %c0_i32_2 = arith.constant 0 : i32
    return %arg0, %1, %c0_i32, %c0_i32_1 : i32, i32, i32, i32
  }
  func.func @transform_3(%arg0: i32, %arg1: i32) -> (i32, i32, i32) {
    %c0_i32 = arith.constant 0 : i32
    %c0_i32_0 = arith.constant 0 : i32
    %c0_i32_1 = arith.constant 0 : i32
    %c0_i32_2 = arith.constant 0 : i32
    return %c0_i32, %c0_i32_0, %c0_i32_1 : i32, i32, i32
  }
  func.func @transform_4(%arg0: i32, %arg1: i32) -> (i32, i32) {
    %c0_i32 = arith.constant 0 : i32
    %c0_i32_0 = arith.constant 0 : i32
    %c0_i32_1 = arith.constant 0 : i32
    return %c0_i32, %c0_i32_0 : i32, i32
  }
  func.func @transform_5(%arg0: i32, %arg1: i32) -> (i32, i32, i32, i32) {
    %c0_i32 = arith.constant 0 : i32
    %c0_i32_0 = arith.constant 0 : i32
    %c0_i32_1 = arith.constant 0 : i32
    return %arg0, %arg1, %c0_i32, %c0_i32_0 : i32, i32, i32, i32
  }
}

module attributes {stable_mosaic.version = 11 : i64} {
  func.func @_matmul_bn_kernel(%arg0: i32, %arg1: memref<16x128xbf16, #tpu.memory_space<vmem>>, %arg2: memref<128x128xbf16, #tpu.memory_space<vmem>>, %arg3: memref<1x128xf32, #tpu.memory_space<vmem>>, %arg4: memref<1x128xf32, #tpu.memory_space<vmem>>, %arg5: memref<16x128xbf16, #tpu.memory_space<vmem>>) attributes {dimension_semantics = [#tpu.dimension_semantics<parallel>], iteration_bounds = array<i64: 1>, scalar_prefetch = 0 : i64, scratch_operands = 0 : i64, tpu.core_type = #tpu.core_type<tc>, window_params = [{transform_indices = @transform_0, window_bounds = array<i64: 16, 128>}, {pipeline_mode = #tpu.pipeline_mode<synchronous>, transform_indices = @transform_1, window_bounds = array<i64: 128, 128>}, {pipeline_mode = #tpu.pipeline_mode<synchronous>, transform_indices = @transform_2, window_bounds = array<i64: 1, 128>}, {pipeline_mode = #tpu.pipeline_mode<synchronous>, transform_indices = @transform_3, window_bounds = array<i64: 1, 128>}, {transform_indices = @transform_4, window_bounds = array<i64: 16, 128>}]} {
    %c0 = arith.constant 0 : index
    %c0_0 = arith.constant 0 : index
    %0 = vector.load %arg1[%c0, %c0_0] : memref<16x128xbf16, #tpu.memory_space<vmem>>, vector<16x128xbf16>
    %c0_1 = arith.constant 0 : index
    %c0_2 = arith.constant 0 : index
    %1 = vector.load %arg2[%c0_1, %c0_2] : memref<128x128xbf16, #tpu.memory_space<vmem>>, vector<128x128xbf16>
    %cst = arith.constant dense<0.000000e+00> : vector<16x128xf32>
    %2 = tpu.matmul %0, %1, %cst {dimension_numbers = #tpu.dot_dimension_numbers<[1], [0], [0], [1], [0, 0, 1, 1], [], []>} : vector<16x128xbf16>, vector<128x128xbf16>, vector<16x128xf32> -> vector<16x128xf32>
    %c0_3 = arith.constant 0 : index
    %c0_4 = arith.constant 0 : index
    %3 = vector.load %arg3[%c0_3, %c0_4] : memref<1x128xf32, #tpu.memory_space<vmem>>, vector<1x128xf32>
    %4 = vector.broadcast %3 : vector<1x128xf32> to vector<16x128xf32>
    %5 = arith.mulf %2, %4 : vector<16x128xf32>
    %c0_5 = arith.constant 0 : index
    %c0_6 = arith.constant 0 : index
    %6 = vector.load %arg4[%c0_5, %c0_6] : memref<1x128xf32, #tpu.memory_space<vmem>>, vector<1x128xf32>
    %7 = vector.broadcast %6 : vector<1x128xf32> to vector<16x128xf32>
    %8 = arith.addf %5, %7 : vector<16x128xf32>
    %9 = arith.negf %8 : vector<16x128xf32>
    %10 = math.exp %9 : vector<16x128xf32>
    %cst_7 = arith.constant 1.000000e+00 : f32
    %11 = vector.broadcast %cst_7 : f32 to vector<16x128xf32>
    %12 = arith.addf %11, %10 : vector<16x128xf32>
    %13 = arith.divf %11, %12 : vector<16x128xf32>
    %14 = arith.mulf %8, %13 : vector<16x128xf32>
    %15 = arith.truncf %14 : vector<16x128xf32> to vector<16x128xbf16>
    %c0_8 = arith.constant 0 : index
    %c0_9 = arith.constant 0 : index
    %16 = vector.load %arg5[%c0_8, %c0_9] : memref<16x128xbf16, #tpu.memory_space<vmem>>, vector<16x128xbf16>
    tpu.vector_store %arg5[%c0_8, %c0_9], %15 {strides = array<i32>} : memref<16x128xbf16, #tpu.memory_space<vmem>>, vector<16x128xbf16>,
    return
  }
  func.func @transform_0(%arg0: i32) -> (i32, i32) {
    %c0_i32 = arith.constant 0 : i32
    %c0_i32_0 = arith.constant 0 : i32
    return %arg0, %c0_i32 : i32, i32
  }
  func.func @transform_1(%arg0: i32) -> (i32, i32) {
    %c0_i32 = arith.constant 0 : i32
    %c0_i32_0 = arith.constant 0 : i32
    %c0_i32_1 = arith.constant 0 : i32
    return %c0_i32, %c0_i32_0 : i32, i32
  }
  func.func @transform_2(%arg0: i32) -> (i32, i32) {
    %c0_i32 = arith.constant 0 : i32
    %c0_i32_0 = arith.constant 0 : i32
    %c0_i32_1 = arith.constant 0 : i32
    return %c0_i32, %c0_i32_0 : i32, i32
  }
  func.func @transform_3(%arg0: i32) -> (i32, i32) {
    %c0_i32 = arith.constant 0 : i32
    %c0_i32_0 = arith.constant 0 : i32
    %c0_i32_1 = arith.constant 0 : i32
    return %c0_i32, %c0_i32_0 : i32, i32
  }
  func.func @transform_4(%arg0: i32) -> (i32, i32) {
    %c0_i32 = arith.constant 0 : i32
    %c0_i32_0 = arith.constant 0 : i32
    return %arg0, %c0_i32 : i32, i32
  }
}

module attributes {stable_mosaic.version = 11 : i64} {
  func.func @_dw3_row_kernel(%arg0: i32, %arg1: i32, %arg2: memref<1x1x4x128xbf16, #tpu.memory_space<vmem>>, %arg3: memref<1x1x4x128xbf16, #tpu.memory_space<vmem>>, %arg4: memref<1x1x4x128xbf16, #tpu.memory_space<vmem>>, %arg5: memref<9x1x128xf32, #tpu.memory_space<vmem>>, %arg6: memref<1x128xf32, #tpu.memory_space<vmem>>, %arg7: memref<1x1x2x128xbf16, #tpu.memory_space<vmem>>) attributes {dimension_semantics = [#tpu.dimension_semantics<parallel>, #tpu.dimension_semantics<parallel>], iteration_bounds = array<i64: 2, 2>, scalar_prefetch = 0 : i64, scratch_operands = 0 : i64, tpu.core_type = #tpu.core_type<tc>, window_params = [{transform_indices = @transform_0, window_bounds = array<i64: 1, 1, 4, 128>}, {transform_indices = @transform_1, window_bounds = array<i64: 1, 1, 4, 128>}, {transform_indices = @transform_2, window_bounds = array<i64: 1, 1, 4, 128>}, {pipeline_mode = #tpu.pipeline_mode<synchronous>, transform_indices = @transform_3, window_bounds = array<i64: 9, 1, 128>}, {pipeline_mode = #tpu.pipeline_mode<synchronous>, transform_indices = @transform_4, window_bounds = array<i64: 1, 128>}, {transform_indices = @transform_5, window_bounds = array<i64: 1, 1, 2, 128>}]} {
    %cst = arith.constant 0.000000e+00 : f32
    %0 = vector.broadcast %cst : f32 to vector<2x128xf32>
    %c0 = arith.constant 0 : index
    %c0_0 = arith.constant 0 : index
    %c0_1 = arith.constant 0 : index
    %c0_2 = arith.constant 0 : index
    %1 = vector.load %arg2[%c0, %c0_0, %c0_1, %c0_2] : memref<1x1x4x128xbf16, #tpu.memory_space<vmem>>, vector<1x1x4x128xbf16>
    %2 = vector.shape_cast %1 : vector<1x1x4x128xbf16> to vector<4x128xbf16>
    %3 = arith.extf %2 : vector<4x128xbf16> to vector<4x128xf32>
    %4 = vector.extract_strided_slice %3 {offsets = [0, 0], sizes = [2, 128], strides = [1, 1]} : vector<4x128xf32> to vector<2x128xf32>
    %c0_3 = arith.constant 0 : index
    %c0_4 = arith.constant 0 : index
    %c0_5 = arith.constant 0 : index
    %5 = vector.load %arg5[%c0_3, %c0_4, %c0_5] : memref<9x1x128xf32, #tpu.memory_space<vmem>>, vector<1x1x128xf32>
    %6 = vector.shape_cast %5 : vector<1x1x128xf32> to vector<1x128xf32>
    %7 = vector.broadcast %6 : vector<1x128xf32> to vector<2x128xf32>
    %8 = arith.mulf %4, %7 : vector<2x128xf32>
    %9 = arith.addf %0, %8 : vector<2x128xf32>
    %10 = vector.extract_strided_slice %3 {offsets = [1, 0], sizes = [2, 128], strides = [1, 1]} : vector<4x128xf32> to vector<2x128xf32>
    %c1 = arith.constant 1 : index
    %c0_6 = arith.constant 0 : index
    %c0_7 = arith.constant 0 : index
    %11 = vector.load %arg5[%c1, %c0_6, %c0_7] : memref<9x1x128xf32, #tpu.memory_space<vmem>>, vector<1x1x128xf32>
    %12 = vector.shape_cast %11 : vector<1x1x128xf32> to vector<1x128xf32>
    %13 = vector.broadcast %12 : vector<1x128xf32> to vector<2x128xf32>
    %14 = arith.mulf %10, %13 : vector<2x128xf32>
    %15 = arith.addf %9, %14 : vector<2x128xf32>
    %16 = vector.extract_strided_slice %3 {offsets = [2, 0], sizes = [2, 128], strides = [1, 1]} : vector<4x128xf32> to vector<2x128xf32>
    %c2 = arith.constant 2 : index
    %c0_8 = arith.constant 0 : index
    %c0_9 = arith.constant 0 : index
    %17 = vector.load %arg5[%c2, %c0_8, %c0_9] : memref<9x1x128xf32, #tpu.memory_space<vmem>>, vector<1x1x128xf32>
    %18 = vector.shape_cast %17 : vector<1x1x128xf32> to vector<1x128xf32>
    %19 = vector.broadcast %18 : vector<1x128xf32> to vector<2x128xf32>
    %20 = arith.mulf %16, %19 : vector<2x128xf32>
    %21 = arith.addf %15, %20 : vector<2x128xf32>
    %c0_10 = arith.constant 0 : index
    %c0_11 = arith.constant 0 : index
    %c0_12 = arith.constant 0 : index
    %c0_13 = arith.constant 0 : index
    %22 = vector.load %arg3[%c0_10, %c0_11, %c0_12, %c0_13] : memref<1x1x4x128xbf16, #tpu.memory_space<vmem>>, vector<1x1x4x128xbf16>
    %23 = vector.shape_cast %22 : vector<1x1x4x128xbf16> to vector<4x128xbf16>
    %24 = arith.extf %23 : vector<4x128xbf16> to vector<4x128xf32>
    %25 = vector.extract_strided_slice %24 {offsets = [0, 0], sizes = [2, 128], strides = [1, 1]} : vector<4x128xf32> to vector<2x128xf32>
    %c3 = arith.constant 3 : index
    %c0_14 = arith.constant 0 : index
    %c0_15 = arith.constant 0 : index
    %26 = vector.load %arg5[%c3, %c0_14, %c0_15] : memref<9x1x128xf32, #tpu.memory_space<vmem>>, vector<1x1x128xf32>
    %27 = vector.shape_cast %26 : vector<1x1x128xf32> to vector<1x128xf32>
    %28 = vector.broadcast %27 : vector<1x128xf32> to vector<2x128xf32>
    %29 = arith.mulf %25, %28 : vector<2x128xf32>
    %30 = arith.addf %21, %29 : vector<2x128xf32>
    %31 = vector.extract_strided_slice %24 {offsets = [1, 0], sizes = [2, 128], strides = [1, 1]} : vector<4x128xf32> to vector<2x128xf32>
    %c4 = arith.constant 4 : index
    %c0_16 = arith.constant 0 : index
    %c0_17 = arith.constant 0 : index
    %32 = vector.load %arg5[%c4, %c0_16, %c0_17] : memref<9x1x128xf32, #tpu.memory_space<vmem>>, vector<1x1x128xf32>
    %33 = vector.shape_cast %32 : vector<1x1x128xf32> to vector<1x128xf32>
    %34 = vector.broadcast %33 : vector<1x128xf32> to vector<2x128xf32>
    %35 = arith.mulf %31, %34 : vector<2x128xf32>
    %36 = arith.addf %30, %35 : vector<2x128xf32>
    %37 = vector.extract_strided_slice %24 {offsets = [2, 0], sizes = [2, 128], strides = [1, 1]} : vector<4x128xf32> to vector<2x128xf32>
    %c5 = arith.constant 5 : index
    %c0_18 = arith.constant 0 : index
    %c0_19 = arith.constant 0 : index
    %38 = vector.load %arg5[%c5, %c0_18, %c0_19] : memref<9x1x128xf32, #tpu.memory_space<vmem>>, vector<1x1x128xf32>
    %39 = vector.shape_cast %38 : vector<1x1x128xf32> to vector<1x128xf32>
    %40 = vector.broadcast %39 : vector<1x128xf32> to vector<2x128xf32>
    %41 = arith.mulf %37, %40 : vector<2x128xf32>
    %42 = arith.addf %36, %41 : vector<2x128xf32>
    %c0_20 = arith.constant 0 : index
    %c0_21 = arith.constant 0 : index
    %c0_22 = arith.constant 0 : index
    %c0_23 = arith.constant 0 : index
    %43 = vector.load %arg4[%c0_20, %c0_21, %c0_22, %c0_23] : memref<1x1x4x128xbf16, #tpu.memory_space<vmem>>, vector<1x1x4x128xbf16>
    %44 = vector.shape_cast %43 : vector<1x1x4x128xbf16> to vector<4x128xbf16>
    %45 = arith.extf %44 : vector<4x128xbf16> to vector<4x128xf32>
    %46 = vector.extract_strided_slice %45 {offsets = [0, 0], sizes = [2, 128], strides = [1, 1]} : vector<4x128xf32> to vector<2x128xf32>
    %c6 = arith.constant 6 : index
    %c0_24 = arith.constant 0 : index
    %c0_25 = arith.constant 0 : index
    %47 = vector.load %arg5[%c6, %c0_24, %c0_25] : memref<9x1x128xf32, #tpu.memory_space<vmem>>, vector<1x1x128xf32>
    %48 = vector.shape_cast %47 : vector<1x1x128xf32> to vector<1x128xf32>
    %49 = vector.broadcast %48 : vector<1x128xf32> to vector<2x128xf32>
    %50 = arith.mulf %46, %49 : vector<2x128xf32>
    %51 = arith.addf %42, %50 : vector<2x128xf32>
    %52 = vector.extract_strided_slice %45 {offsets = [1, 0], sizes = [2, 128], strides = [1, 1]} : vector<4x128xf32> to vector<2x128xf32>
    %c7 = arith.constant 7 : index
    %c0_26 = arith.constant 0 : index
    %c0_27 = arith.constant 0 : index
    %53 = vector.load %arg5[%c7, %c0_26, %c0_27] : memref<9x1x128xf32, #tpu.memory_space<vmem>>, vector<1x1x128xf32>
    %54 = vector.shape_cast %53 : vector<1x1x128xf32> to vector<1x128xf32>
    %55 = vector.broadcast %54 : vector<1x128xf32> to vector<2x128xf32>
    %56 = arith.mulf %52, %55 : vector<2x128xf32>
    %57 = arith.addf %51, %56 : vector<2x128xf32>
    %58 = vector.extract_strided_slice %45 {offsets = [2, 0], sizes = [2, 128], strides = [1, 1]} : vector<4x128xf32> to vector<2x128xf32>
    %c8 = arith.constant 8 : index
    %c0_28 = arith.constant 0 : index
    %c0_29 = arith.constant 0 : index
    %59 = vector.load %arg5[%c8, %c0_28, %c0_29] : memref<9x1x128xf32, #tpu.memory_space<vmem>>, vector<1x1x128xf32>
    %60 = vector.shape_cast %59 : vector<1x1x128xf32> to vector<1x128xf32>
    %61 = vector.broadcast %60 : vector<1x128xf32> to vector<2x128xf32>
    %62 = arith.mulf %58, %61 : vector<2x128xf32>
    %63 = arith.addf %57, %62 : vector<2x128xf32>
    %c0_30 = arith.constant 0 : index
    %c0_31 = arith.constant 0 : index
    %64 = vector.load %arg6[%c0_30, %c0_31] : memref<1x128xf32, #tpu.memory_space<vmem>>, vector<1x128xf32>
    %65 = vector.broadcast %64 : vector<1x128xf32> to vector<2x128xf32>
    %66 = arith.addf %63, %65 : vector<2x128xf32>
    %67 = arith.negf %66 : vector<2x128xf32>
    %68 = math.exp %67 : vector<2x128xf32>
    %cst_32 = arith.constant 1.000000e+00 : f32
    %69 = vector.broadcast %cst_32 : f32 to vector<2x128xf32>
    %70 = arith.addf %69, %68 : vector<2x128xf32>
    %71 = arith.divf %69, %70 : vector<2x128xf32>
    %72 = arith.mulf %66, %71 : vector<2x128xf32>
    %73 = arith.truncf %72 : vector<2x128xf32> to vector<2x128xbf16>
    %c0_33 = arith.constant 0 : index
    %c0_34 = arith.constant 0 : index
    %c0_35 = arith.constant 0 : index
    %c0_36 = arith.constant 0 : index
    %74 = vector.load %arg7[%c0_33, %c0_34, %c0_35, %c0_36] : memref<1x1x2x128xbf16, #tpu.memory_space<vmem>>, vector<1x1x2x128xbf16>
    %75 = vector.shape_cast %74 : vector<1x1x2x128xbf16> to vector<2x128xbf16>
    %76 = vector.shape_cast %73 : vector<2x128xbf16> to vector<1x1x2x128xbf16>
    tpu.vector_store %arg7[%c0_33, %c0_34, %c0_35, %c0_36], %76 {strides = array<i32>} : memref<1x1x2x128xbf16, #tpu.memory_space<vmem>>, vector<1x1x2x128xbf16>,
    return
  }
  func.func @transform_0(%arg0: i32, %arg1: i32) -> (i32, i32, i32, i32) {
    %c0_i32 = arith.constant 0 : i32
    %0 = arith.addi %arg1, %c0_i32 : i32
    %c0_i32_0 = arith.constant 0 : i32
    %c0_i32_1 = arith.constant 0 : i32
    %c0_i32_2 = arith.constant 0 : i32
    return %arg0, %0, %c0_i32_0, %c0_i32_1 : i32, i32, i32, i32
  }
  func.func @transform_1(%arg0: i32, %arg1: i32) -> (i32, i32, i32, i32) {
    %c1_i32 = arith.constant 1 : i32
    %0 = arith.addi %arg1, %c1_i32 : i32
    %c0_i32 = arith.constant 0 : i32
    %c0_i32_0 = arith.constant 0 : i32
    %c0_i32_1 = arith.constant 0 : i32
    return %arg0, %0, %c0_i32, %c0_i32_0 : i32, i32, i32, i32
  }
  func.func @transform_2(%arg0: i32, %arg1: i32) -> (i32, i32, i32, i32) {
    %c2_i32 = arith.constant 2 : i32
    %0 = arith.addi %arg1, %c2_i32 : i32
    %c0_i32 = arith.constant 0 : i32
    %c0_i32_0 = arith.constant 0 : i32
    %c0_i32_1 = arith.constant 0 : i32
    return %arg0, %0, %c0_i32, %c0_i32_0 : i32, i32, i32, i32
  }
  func.func @transform_3(%arg0: i32, %arg1: i32) -> (i32, i32, i32) {
    %c0_i32 = arith.constant 0 : i32
    %c0_i32_0 = arith.constant 0 : i32
    %c0_i32_1 = arith.constant 0 : i32
    %c0_i32_2 = arith.constant 0 : i32
    return %c0_i32, %c0_i32_0, %c0_i32_1 : i32, i32, i32
  }
  func.func @transform_4(%arg0: i32, %arg1: i32) -> (i32, i32) {
    %c0_i32 = arith.constant 0 : i32
    %c0_i32_0 = arith.constant 0 : i32
    %c0_i32_1 = arith.constant 0 : i32
    return %c0_i32, %c0_i32_0 : i32, i32
  }
  func.func @transform_5(%arg0: i32, %arg1: i32) -> (i32, i32, i32, i32) {
    %c0_i32 = arith.constant 0 : i32
    %c0_i32_0 = arith.constant 0 : i32
    %c0_i32_1 = arith.constant 0 : i32
    return %arg0, %arg1, %c0_i32, %c0_i32_0 : i32, i32, i32, i32
  }
}

module attributes {stable_mosaic.version = 11 : i64} {
  func.func @_matmul_bn_res_kernel(%arg0: i32, %arg1: memref<16x128xbf16, #tpu.memory_space<vmem>>, %arg2: memref<128x128xbf16, #tpu.memory_space<vmem>>, %arg3: memref<1x128xf32, #tpu.memory_space<vmem>>, %arg4: memref<1x128xf32, #tpu.memory_space<vmem>>, %arg5: memref<16x128xbf16, #tpu.memory_space<vmem>>, %arg6: memref<16x128xbf16, #tpu.memory_space<vmem>>) attributes {dimension_semantics = [#tpu.dimension_semantics<parallel>], iteration_bounds = array<i64: 1>, scalar_prefetch = 0 : i64, scratch_operands = 0 : i64, tpu.core_type = #tpu.core_type<tc>, window_params = [{transform_indices = @transform_0, window_bounds = array<i64: 16, 128>}, {pipeline_mode = #tpu.pipeline_mode<synchronous>, transform_indices = @transform_1, window_bounds = array<i64: 128, 128>}, {pipeline_mode = #tpu.pipeline_mode<synchronous>, transform_indices = @transform_2, window_bounds = array<i64: 1, 128>}, {pipeline_mode = #tpu.pipeline_mode<synchronous>, transform_indices = @transform_3, window_bounds = array<i64: 1, 128>}, {transform_indices = @transform_4, window_bounds = array<i64: 16, 128>}, {transform_indices = @transform_5, window_bounds = array<i64: 16, 128>}]} {
    %c0 = arith.constant 0 : index
    %c0_0 = arith.constant 0 : index
    %0 = vector.load %arg1[%c0, %c0_0] : memref<16x128xbf16, #tpu.memory_space<vmem>>, vector<16x128xbf16>
    %c0_1 = arith.constant 0 : index
    %c0_2 = arith.constant 0 : index
    %1 = vector.load %arg2[%c0_1, %c0_2] : memref<128x128xbf16, #tpu.memory_space<vmem>>, vector<128x128xbf16>
    %cst = arith.constant dense<0.000000e+00> : vector<16x128xf32>
    %2 = tpu.matmul %0, %1, %cst {dimension_numbers = #tpu.dot_dimension_numbers<[1], [0], [0], [1], [0, 0, 1, 1], [], []>} : vector<16x128xbf16>, vector<128x128xbf16>, vector<16x128xf32> -> vector<16x128xf32>
    %c0_3 = arith.constant 0 : index
    %c0_4 = arith.constant 0 : index
    %3 = vector.load %arg3[%c0_3, %c0_4] : memref<1x128xf32, #tpu.memory_space<vmem>>, vector<1x128xf32>
    %4 = vector.broadcast %3 : vector<1x128xf32> to vector<16x128xf32>
    %5 = arith.mulf %2, %4 : vector<16x128xf32>
    %c0_5 = arith.constant 0 : index
    %c0_6 = arith.constant 0 : index
    %6 = vector.load %arg4[%c0_5, %c0_6] : memref<1x128xf32, #tpu.memory_space<vmem>>, vector<1x128xf32>
    %7 = vector.broadcast %6 : vector<1x128xf32> to vector<16x128xf32>
    %8 = arith.addf %5, %7 : vector<16x128xf32>
    %c0_7 = arith.constant 0 : index
    %c0_8 = arith.constant 0 : index
    %9 = vector.load %arg5[%c0_7, %c0_8] : memref<16x128xbf16, #tpu.memory_space<vmem>>, vector<16x128xbf16>
    %10 = arith.extf %9 : vector<16x128xbf16> to vector<16x128xf32>
    %11 = arith.addf %8, %10 : vector<16x128xf32>
    %12 = arith.truncf %11 : vector<16x128xf32> to vector<16x128xbf16>
    %c0_9 = arith.constant 0 : index
    %c0_10 = arith.constant 0 : index
    %13 = vector.load %arg6[%c0_9, %c0_10] : memref<16x128xbf16, #tpu.memory_space<vmem>>, vector<16x128xbf16>
    tpu.vector_store %arg6[%c0_9, %c0_10], %12 {strides = array<i32>} : memref<16x128xbf16, #tpu.memory_space<vmem>>, vector<16x128xbf16>,
    return
  }
  func.func @transform_0(%arg0: i32) -> (i32, i32) {
    %c0_i32 = arith.constant 0 : i32
    %c0_i32_0 = arith.constant 0 : i32
    return %arg0, %c0_i32 : i32, i32
  }
  func.func @transform_1(%arg0: i32) -> (i32, i32) {
    %c0_i32 = arith.constant 0 : i32
    %c0_i32_0 = arith.constant 0 : i32
    %c0_i32_1 = arith.constant 0 : i32
    return %c0_i32, %c0_i32_0 : i32, i32
  }
  func.func @transform_2(%arg0: i32) -> (i32, i32) {
    %c0_i32 = arith.constant 0 : i32
    %c0_i32_0 = arith.constant 0 : i32
    %c0_i32_1 = arith.constant 0 : i32
    return %c0_i32, %c0_i32_0 : i32, i32
  }
  func.func @transform_3(%arg0: i32) -> (i32, i32) {
    %c0_i32 = arith.constant 0 : i32
    %c0_i32_0 = arith.constant 0 : i32
    %c0_i32_1 = arith.constant 0 : i32
    return %c0_i32, %c0_i32_0 : i32, i32
  }
  func.func @transform_4(%arg0: i32) -> (i32, i32) {
    %c0_i32 = arith.constant 0 : i32
    %c0_i32_0 = arith.constant 0 : i32
    return %arg0, %c0_i32 : i32, i32
  }
  func.func @transform_5(%arg0: i32) -> (i32, i32) {
    %c0_i32 = arith.constant 0 : i32
    %c0_i32_0 = arith.constant 0 : i32
    return %arg0, %c0_i32 : i32, i32
  }
}

module attributes {stable_mosaic.version = 11 : i64} {
  func.func @_gap_kernel(%arg0: i32, %arg1: memref<2x16x128xbf16, #tpu.memory_space<vmem>>, %arg2: memref<2x128xf32, #tpu.memory_space<vmem>>) attributes {dimension_semantics = [#tpu.dimension_semantics<arbitrary>], iteration_bounds = array<i64: 1>, scalar_prefetch = 0 : i64, scratch_operands = 0 : i64, tpu.core_type = #tpu.core_type<tc>, window_params = [{transform_indices = @transform_0, window_bounds = array<i64: 2, 16, 128>}, {pipeline_mode = #tpu.pipeline_mode<synchronous>, transform_indices = @transform_1, window_bounds = array<i64: 2, 128>}]} {
    %c0_i32 = arith.constant 0 : i32
    %0 = arith.cmpi eq, %arg0, %c0_i32 : i32
    %1 = arith.extui %0 : i1 to i32
    %c0_i32_0 = arith.constant 0 : i32
    %2 = arith.cmpi ne, %1, %c0_i32_0 : i32
    scf.if %2 {
      %cst_9 = arith.constant 0.000000e+00 : f32
      %12 = vector.broadcast %cst_9 : f32 to vector<2x128xf32>
      %c0_10 = arith.constant 0 : index
      %c0_11 = arith.constant 0 : index
      %13 = vector.load %arg2[%c0_10, %c0_11] : memref<2x128xf32, #tpu.memory_space<vmem>>, vector<2x128xf32>
      tpu.vector_store %arg2[%c0_10, %c0_11], %12 {strides = array<i32>} : memref<2x128xf32, #tpu.memory_space<vmem>>, vector<2x128xf32>,
    } else {
    }
    %c0 = arith.constant 0 : index
    %c0_1 = arith.constant 0 : index
    %3 = vector.load %arg2[%c0, %c0_1] : memref<2x128xf32, #tpu.memory_space<vmem>>, vector<2x128xf32>
    %c0_2 = arith.constant 0 : index
    %c0_3 = arith.constant 0 : index
    %c0_4 = arith.constant 0 : index
    %4 = vector.load %arg1[%c0_2, %c0_3, %c0_4] : memref<2x16x128xbf16, #tpu.memory_space<vmem>>, vector<2x16x128xbf16>
    %5 = arith.extf %4 : vector<2x16x128xbf16> to vector<2x16x128xf32>
    %cst = arith.constant dense<0.000000e+00> : vector<2x128xf32>
    %6 = vector.multi_reduction <add>, %5, %cst [1] : vector<2x16x128xf32> to vector<2x128xf32>
    %7 = arith.addf %3, %6 : vector<2x128xf32>
    %c0_5 = arith.constant 0 : index
    %c0_6 = arith.constant 0 : index
    %8 = vector.load %arg2[%c0_5, %c0_6] : memref<2x128xf32, #tpu.memory_space<vmem>>, vector<2x128xf32>
    tpu.vector_store %arg2[%c0_5, %c0_6], %7 {strides = array<i32>} : memref<2x128xf32, #tpu.memory_space<vmem>>, vector<2x128xf32>,
    %c0_i32_7 = arith.constant 0 : i32
    %9 = arith.cmpi eq, %arg0, %c0_i32_7 : i32
    %10 = arith.extui %9 : i1 to i32
    %c0_i32_8 = arith.constant 0 : i32
    %11 = arith.cmpi ne, %10, %c0_i32_8 : i32
    scf.if %11 {
      %c0_9 = arith.constant 0 : index
      %c0_10 = arith.constant 0 : index
      %12 = vector.load %arg2[%c0_9, %c0_10] : memref<2x128xf32, #tpu.memory_space<vmem>>, vector<2x128xf32>
      %cst_11 = arith.constant 2.500000e-01 : f32
      %13 = vector.broadcast %cst_11 : f32 to vector<2x128xf32>
      %14 = arith.mulf %12, %13 : vector<2x128xf32>
      %c0_12 = arith.constant 0 : index
      %c0_13 = arith.constant 0 : index
      %15 = vector.load %arg2[%c0_12, %c0_13] : memref<2x128xf32, #tpu.memory_space<vmem>>, vector<2x128xf32>
      tpu.vector_store %arg2[%c0_12, %c0_13], %14 {strides = array<i32>} : memref<2x128xf32, #tpu.memory_space<vmem>>, vector<2x128xf32>,
    } else {
    }
    return
  }
  func.func @transform_0(%arg0: i32) -> (i32, i32, i32) {
    %c0_i32 = arith.constant 0 : i32
    %c0_i32_0 = arith.constant 0 : i32
    %c0_i32_1 = arith.constant 0 : i32
    return %c0_i32, %arg0, %c0_i32_0 : i32, i32, i32
  }
  func.func @transform_1(%arg0: i32) -> (i32, i32) {
    %c0_i32 = arith.constant 0 : i32
    %c0_i32_0 = arith.constant 0 : i32
    %c0_i32_1 = arith.constant 0 : i32
    return %c0_i32, %c0_i32_0 : i32, i32
  }
}

</mosaic_0001>

<llo_original>
// kernel: _lambda_.15
$region0: #{_lambda_.15}
  #allocation0 [shape = 'u32[]', space=smem, size = 0x4, offset = 0x4, fixed_abs, tag = 'smem constant byte address 0x4 - core index']
  #allocation1 [shape = 'u32[72,128]{1,0:T(1,128)}', space=vmem, size = 0x9000, scoped, tag = 'internal scratch']
  %s0 = inlined_call_operand.vmem [shape: bf16[128,128], index: 0, kind: input, shape index: {}]
  %s1 = inlined_call_operand.vmem [shape: bf16[128,128], index: 1, kind: input, shape index: {}]
  %s2 = inlined_call_operand.vmem [shape: f32[1,128], index: 2, kind: input, shape index: {}]
  %s3 = inlined_call_operand.vmem [shape: f32[1,128], index: 3, kind: input, shape index: {}]
  %s4 = inlined_call_operand.vmem [shape: bf16[128,128], index: 4, kind: input, shape index: {}]
  %s5 = inlined_call_operand.vmem [shape: bf16[128,128], index: 5, kind: output, shape index: {}]
  %s6 = sld [smem:[#allocation0]]
  $region53: #{_lambda_.15} parent=0
    _
  %s8 = ssub.s32 1, %s6
  %s9 = scalar_select 0, %s8, %s6
  loop: start=0, step=1, limit=4
  $region2: #{_lambda_.15} parent=0 // loop_pre_header
    _
  $region3: #{_lambda_.15} parent=0 // loop_header
    %s11 = sphi 0, %s15
    %p12 = scmp.ge.s32.totalorder %s11, 4
    %s21 = sphi 0, %s23
    %s24 = sphi 0, %s21
    %s25 = sphi 0, %s24
    %s41 = sphi 0, %s25
    %s45 = sphi 0, %s45
    %s47 = sphi 0, %s45
    %s48 = sphi 0, %s47
    %s62 = sphi 0, %s48
    %s66 = sphi 0, %s66
    %s68 = sphi 0, %s66
    %s69 = sphi 0, %s68
    %s83 = sphi 0, %s69
    %s87 = sphi 0, %s87
    %s89 = sphi 0, %s87
    %s90 = sphi 0, %s89
    %s104 = sphi 0, %s90
    %s110 = sphi 0, %s112
    %s113 = sphi 0, %s110
    %s114 = sphi 0, %s113
    %s130 = sphi 0, %s114
    %s136 = sphi 0, %s138
    %s139 = sphi 0, %s136
    %s140 = sphi 0, %s139
    %s156 = sphi 0, %s140
  $region4: #{_lambda_.15} parent=0 // loop_header_branch
    %14 = sbr.rel (%p12) target = $region8
  $region5: #{_lambda_.15} parent=0 // loop_body
    %s16 = ssub.s32 %s11, 1
    %s17 = ssub.s32 %s11, 2
    %s18 = sadd.s32 %s11, 1
    %s19 = ssub.s32 %s11, %s18
    %p20 = scmp.eq.s32.totalorder %s19, 0
    %s22 = sadd.s32 %s21, 1
    %s23 = scalar_select %p20, %s21, %s22
    %p26 = pneg %p20
    %p27 = scmp.eq.s32.totalorder %s11, 1
    %p28 = por %p26, %p27
    %p29 = scmp.ne.s32.totalorder %s21, %s24
    %p30 = scmp.eq.s32.totalorder %s11, 0
    %p31 = por %p29, %p30
    %p32 = scmp.ne.s32.totalorder %s21, %s24
    %p33 = scmp.eq.s32.totalorder %s16, 1
    %p34 = por %p32, %p33
    %p35 = scmp.ne.s32.totalorder %s24, %s25
    %p36 = scmp.eq.s32.totalorder %s16, 0
    %p37 = por %p35, %p36
    %p38 = scmp.ne.s32.totalorder %s24, %s25
    %p39 = scmp.eq.s32.totalorder %s17, 1
    %p40 = por %p38, %p39
    %p42 = scmp.ne.s32.totalorder %s25, %s41
    %p43 = scmp.eq.s32.totalorder %s17, 0
    %p44 = por %p42, %p43
    %s46 = sadd.s32 %s45, 1
    %p49 = scmp.eq.s32.totalorder %s11, 1
    %p50 = scmp.ne.s32.totalorder %s45, %s47
    %p51 = scmp.eq.s32.totalorder %s11, 0
    %p52 = por %p50, %p51
    %p53 = scmp.ne.s32.totalorder %s45, %s47
    %p54 = scmp.eq.s32.totalorder %s16, 1
    %p55 = por %p53, %p54
    %p56 = scmp.ne.s32.totalorder %s47, %s48
    %p57 = scmp.eq.s32.totalorder %s16, 0
    %p58 = por %p56, %p57
    %p59 = scmp.ne.s32.totalorder %s47, %s48
    %p60 = scmp.eq.s32.totalorder %s17, 1
    %p61 = por %p59, %p60
    %p63 = scmp.ne.s32.totalorder %s48, %s62
    %p64 = scmp.eq.s32.totalorder %s17, 0
    %p65 = por %p63, %p64
    %s67 = sadd.s32 %s66, 1
    %p70 = scmp.eq.s32.totalorder %s11, 1
    %p71 = scmp.ne.s32.totalorder %s66, %s68
    %p72 = scmp.eq.s32.totalorder %s11, 0
    %p73 = por %p71, %p72
    %p74 = scmp.ne.s32.totalorder %s66, %s68
    %p75 = scmp.eq.s32.totalorder %s16, 1
    %p76 = por %p74, %p75
    %p77 = scmp.ne.s32.totalorder %s68, %s69
    %p78 = scmp.eq.s32.totalorder %s16, 0
    %p79 = por %p77, %p78
    %p80 = scmp.ne.s32.totalorder %s68, %s69
    %p81 = scmp.eq.s32.totalorder %s17, 1
    %p82 = por %p80, %p81
    %p84 = scmp.ne.s32.totalorder %s69, %s83
    %p85 = scmp.eq.s32.totalorder %s17, 0
    %p86 = por %p84, %p85
    %s88 = sadd.s32 %s87, 1
    %p91 = scmp.eq.s32.totalorder %s11, 1
    %p92 = scmp.ne.s32.totalorder %s87, %s89
    %p93 = scmp.eq.s32.totalorder %s11, 0
    %p94 = por %p92, %p93
    %p95 = scmp.ne.s32.totalorder %s87, %s89
    %p96 = scmp.eq.s32.totalorder %s16, 1
    %p97 = por %p95, %p96
    %p98 = scmp.ne.s32.totalorder %s89, %s90
    %p99 = scmp.eq.s32.totalorder %s16, 0
    %p100 = por %p98, %p99
    %p101 = scmp.ne.s32.totalorder %s89, %s90
    %p102 = scmp.eq.s32.totalorder %s17, 1
    %p103 = por %p101, %p102
    %p105 = scmp.ne.s32.totalorder %s90, %s104
    %p106 = scmp.eq.s32.totalorder %s17, 0
    %p107 = por %p105, %p106
    %s108 = ssub.s32 %s11, %s18
    %p109 = scmp.eq.s32.totalorder %s108, 0
    %s111 = sadd.s32 %s110, 1
    %s112 = scalar_select %p109, %s110, %s111
    %p115 = pneg %p109
    %p116 = scmp.eq.s32.totalorder %s11, 1
    %p117 = por %p115, %p116
    %p118 = scmp.ne.s32.totalorder %s110, %s113
    %p119 = scmp.eq.s32.totalorder %s11, 0
    %p120 = por %p118, %p119
    %p121 = scmp.ne.s32.totalorder %s110, %s113
    %p122 = scmp.eq.s32.totalorder %s16, 1
    %p123 = por %p121, %p122
    %p124 = scmp.ne.s32.totalorder %s113, %s114
    %p125 = scmp.eq.s32.totalorder %s16, 0
    %p126 = por %p124, %p125
    %p127 = scmp.ne.s32.totalorder %s113, %s114
    %p128 = scmp.eq.s32.totalorder %s17, 1
    %p129 = por %p127, %p128
    %p131 = scmp.ne.s32.totalorder %s114, %s130
    %p132 = scmp.eq.s32.totalorder %s17, 0
    %p133 = por %p131, %p132
    %s134 = ssub.s32 %s11, %s18
    %p135 = scmp.eq.s32.totalorder %s134, 0
    %s137 = sadd.s32 %s136, 1
    %s138 = scalar_select %p135, %s136, %s137
    %p141 = pneg %p135
    %p142 = scmp.eq.s32.totalorder %s11, 1
    %p143 = por %p141, %p142
    %p144 = scmp.ne.s32.totalorder %s136, %s139
    %p145 = scmp.eq.s32.totalorder %s11, 0
    %p146 = por %p144, %p145
    %p147 = scmp.ne.s32.totalorder %s136, %s139
    %p148 = scmp.eq.s32.totalorder %s16, 1
    %p149 = por %p147, %p148
    %p150 = scmp.ne.s32.totalorder %s139, %s140
    %p151 = scmp.eq.s32.totalorder %s16, 0
    %p152 = por %p150, %p151
    %p153 = scmp.ne.s32.totalorder %s139, %s140
    %p154 = scmp.eq.s32.totalorder %s17, 1
    %p155 = por %p153, %p154
    %p157 = scmp.ne.s32.totalorder %s140, %s156
    %p158 = scmp.eq.s32.totalorder %s17, 0
    %p159 = por %p157, %p158
    %p160 = scmp.le.s32.totalorder 1, %s11
    %p161 = scmp.lt.s32.totalorder %s11, 3
    %p162 = pnand %p160, %p161
    %p163 = pneg %p162
    // Predicated region
    $region9: #{_lambda_.15} parent=5 // pred_check
      _
    $region10: #{_lambda_.15} parent=5 // pred_check_branch
      %165 = sbr.rel (%p162) target = $region12
    $region11: #{_lambda_.15} parent=5 // pred_region
      %s166 = ssub.s32 %s11, 1
      // Predicated region
      $region13: #{_lambda_.15} parent=11 // pred_check
        %p167 = pneg %p58
      $region14: #{_lambda_.15} parent=11 // pred_check_branch
        %169 = sbr.rel (%p167) target = $region16
      $region15: #{_lambda_.15} parent=11 // pred_region
        _
      $region16: #{_lambda_.15} parent=11 // pred_fallthru
        _
      // Predicated region
      $region17: #{_lambda_.15} parent=11 // pred_check
        %p170 = pneg %p79
      $region18: #{_lambda_.15} parent=11 // pred_check_branch
        %172 = sbr.rel (%p170) target = $region20
      $region19: #{_lambda_.15} parent=11 // pred_region
        _
      $region20: #{_lambda_.15} parent=11 // pred_fallthru
        _
      // Predicated region
      $region21: #{_lambda_.15} parent=11 // pred_check
        %p173 = pneg %p100
      $region22: #{_lambda_.15} parent=11 // pred_check_branch
        %175 = sbr.rel (%p173) target = $region24
      $region23: #{_lambda_.15} parent=11 // pred_region
        _
      $region24: #{_lambda_.15} parent=11 // pred_fallthru
        _
    $region12: #{_lambda_.15} parent=5 // pred_fallthru
      _
    %p176 = scmp.lt.s32.totalorder %s11, 2
    // Predicated region
    $region25: #{_lambda_.15} parent=5 // pred_check
      %p177 = pneg %p176
    $region26: #{_lambda_.15} parent=5 // pred_check_branch
      %179 = sbr.rel (%p177) target = $region28
    $region27: #{_lambda_.15} parent=5 // pred_region
      // Predicated region
      $region29: #{_lambda_.15} parent=27 // pred_check
        %p180 = pneg %p31
      $region30: #{_lambda_.15} parent=27 // pred_check_branch
        %182 = sbr.rel (%p180) target = $region32
      $region31: #{_lambda_.15} parent=27 // pred_region
        %s183 = smul.u32 8, %s11
        %p184 = scmp.lt.s32.totalorder %s183, 15
        %s185 = scalar_select %p184, %s183, 15
        %s186 = smul.addr %s185, 4
        %s187 = scalar_lea.vmem %s0, %s186
        %s188 = smul.u32 8, %s11
      $region32: #{_lambda_.15} parent=27 // pred_fallthru
        _
      // Predicated region
      $region33: #{_lambda_.15} parent=27 // pred_check
        %p189 = pneg %p120
      $region34: #{_lambda_.15} parent=27 // pred_check_branch
        %191 = sbr.rel (%p189) target = $region36
      $region35: #{_lambda_.15} parent=27 // pred_region
        %s192 = smul.u32 8, %s11
        %p193 = scmp.lt.s32.totalorder %s192, 15
        %s194 = scalar_select %p193, %s192, 15
        %s195 = smul.addr %s194, 4
        %s196 = scalar_lea.vmem %s4, %s195
        %s197 = smul.u32 8, %s11
      $region36: #{_lambda_.15} parent=27 // pred_fallthru
        _
    $region28: #{_lambda_.15} parent=5 // pred_fallthru
      _
    %p198 = scmp.le.s32.totalorder 1, %s11
    %p199 = scmp.lt.s32.totalorder %s11, 3
    %p200 = pnand %p198, %p199
    %p201 = pneg %p200
    // Predicated region
    $region37: #{_lambda_.15} parent=5 // pred_check
      _
    $region38: #{_lambda_.15} parent=5 // pred_check_branch
      %203 = sbr.rel (%p200) target = $region40
    $region39: #{_lambda_.15} parent=5 // pred_region
      %s204 = ssub.s32 %s11, 1
      %s205 = smul.u32 8, %s16
      %p206 = scmp.lt.s32.totalorder %s205, 15
      %s207 = scalar_select %p206, %s205, 15
      %s208 = smul.addr %s207, 4
      %s209 = scalar_lea.vmem %s0, %s208
      %p210 = pneg %p37
      %p211 = pneg %p34
      %p212 = pneg %p58
      %p213 = pneg %p55
      %p214 = pneg %p79
      %p215 = pneg %p76
      %p216 = pneg %p100
      %p217 = pneg %p97
      %s218 = smul.u32 8, %s16
      %p219 = scmp.lt.s32.totalorder %s218, 15
      %s220 = scalar_select %p219, %s218, 15
      %s221 = smul.addr %s220, 4
      %s222 = scalar_lea.vmem %s4, %s221
      %p223 = pneg %p126
      %p224 = pneg %p123
      %p225 = pneg %p152
      %p226 = pneg %p149
      %s227 = smul.u32 8, %s16
      %p228 = scmp.lt.s32.totalorder %s227, 15
      %s229 = scalar_select %p228, %s227, 15
      %s230 = smul.addr %s229, 4
      %s231 = scalar_lea.vmem %s5, %s230
      %s232 = smul.u32 8, %s16
      %p233 = scmp.lt.s32.totalorder %s232, 15
      %s234 = scalar_select %p233, %s232, 15
      %s235 = smul.addr %s234, 4
      %s236 = scalar_lea.vmem %s0, %s235
      %s237 = smul.u32 8, %s16
      %s238 = smul.u32 8, %s16
      %p239 = scmp.lt.s32.totalorder %s238, 15
      %s240 = scalar_select %p239, %s238, 15
      %s241 = smul.addr %s240, 4
      %s242 = scalar_lea.vmem %s4, %s241
      %s243 = smul.u32 8, %s16
      %s244 = smul.u32 8, %s16
      %p245 = scmp.lt.s32.totalorder %s244, 15
      %s246 = scalar_select %p245, %s244, 15
      %s247 = smul.addr %s246, 4
      %s248 = scalar_lea.vmem %s5, %s247
      %s249 = smul.u32 8, %s16
      %v250 = vld [vmem:[%s236] sm:$0xf]
      %v251 = vld [vmem:[%s236 + $0x4] sm:$0xf]
      %v252 = vld [vmem:[%s236 + $0x8] sm:$0xf]
      %v253 = vld [vmem:[%s236 + $0xc] sm:$0xf]
      %v254 = vld [vmem:[%s236 + $0x10] sm:$0xf]
      %v255 = vld [vmem:[%s236 + $0x14] sm:$0xf]
      %v256 = vld [vmem:[%s236 + $0x18] sm:$0xf]
      %v257 = vld [vmem:[%s236 + $0x1c] sm:$0xf]
      %v258 = vld [vmem:[%s1] sm:$0xf]
      %v259 = vld [vmem:[%s1 + $0x4] sm:$0xf]
      %v260 = vld [vmem:[%s1 + $0x8] sm:$0xf]
      %v261 = vld [vmem:[%s1 + $0xc] sm:$0xf]
      %v262 = vld [vmem:[%s1 + $0x10] sm:$0xf]
      %v263 = vld [vmem:[%s1 + $0x14] sm:$0xf]
      %v264 = vld [vmem:[%s1 + $0x18] sm:$0xf]
      %v265 = vld [vmem:[%s1 + $0x1c] sm:$0xf]
      %v266 = vld [vmem:[%s1 + $0x20] sm:$0xf]
      %v267 = vld [vmem:[%s1 + $0x24] sm:$0xf]
      %v268 = vld [vmem:[%s1 + $0x28] sm:$0xf]
      %v269 = vld [vmem:[%s1 + $0x2c] sm:$0xf]
      %v270 = vld [vmem:[%s1 + $0x30] sm:$0xf]
      %v271 = vld [vmem:[%s1 + $0x34] sm:$0xf]
      %v272 = vld [vmem:[%s1 + $0x38] sm:$0xf]
      %v273 = vld [vmem:[%s1 + $0x3c] sm:$0xf]
      %v282 = vunpack.c.l.b16 %v250
      %v283 = vunpack.c.l.b16 %v251
      %v284 = vunpack.c.l.b16 %v252
      %v285 = vunpack.c.l.b16 %v253
      %v286 = vunpack.c.l.b16 %v254
      %v287 = vunpack.c.l.b16 %v255
      %v288 = vunpack.c.l.b16 %v256
      %v289 = vunpack.c.l.b16 %v257
      %v290 = vpack.c.b16 %v283, %v282
      %v291 = vpack.c.b16 %v285, %v284
      %v292 = vpack.c.b16 %v287, %v286
      %v293 = vpack.c.b16 %v289, %v288
      %v314 = vunpack.c.l.b16 %v258
      %v315 = vunpack.c.l.b16 %v259
      %v316 = vunpack.c.l.b16 %v260
      %v317 = vunpack.c.l.b16 %v261
      %v318 = vunpack.c.l.b16 %v262
      %v319 = vunpack.c.l.b16 %v263
      %v320 = vunpack.c.l.b16 %v264
      %v321 = vunpack.c.l.b16 %v265
      %v322 = vunpack.c.l.b16 %v266
      %v323 = vunpack.c.l.b16 %v267
      %v324 = vunpack.c.l.b16 %v268
      %v325 = vunpack.c.l.b16 %v269
      %v326 = vunpack.c.l.b16 %v270
      %v327 = vunpack.c.l.b16 %v271
      %v328 = vunpack.c.l.b16 %v272
      %v329 = vunpack.c.l.b16 %v273
      %v330 = vpack.c.b16 %v315, %v314
      %v331 = vpack.c.b16 %v317, %v316
      %v332 = vpack.c.b16 %v319, %v318
      %v333 = vpack.c.b16 %v321, %v320
      %v334 = vpack.c.b16 %v323, %v322
      %v335 = vpack.c.b16 %v325, %v324
      %v336 = vpack.c.b16 %v327, %v326
      %v337 = vpack.c.b16 %v329, %v328
      %346 = vmatpush.bf16.msra.mxu0 %v337
      %347 = vmatpush.bf16.msra.mxu0 %v336
      %348 = vmatpush.bf16.msra.mxu0 %v335
      %349 = vmatpush.bf16.msra.mxu0 %v334
      %350 = vmatpush.bf16.msra.mxu0 %v333
      %351 = vmatpush.bf16.msra.mxu0 %v332
      %352 = vmatpush.bf16.msra.mxu0 %v331
      %353 = vmatpush.bf16.msra.mxu0 %v330
      %354 = vmatmul.bf16.gmra.mxu0 %v290
      %v355 = vpop.f32.mrf.mxu0
      %v356 = vadd.f32 0.0, %v355
      %v357 = vpop.f32.mrf.mxu0
      %v358 = vadd.f32 0.0, %v357
      %359 = vmatmul.bf16.gmra.mxu0 %v291
      %v360 = vpop.f32.mrf.mxu0
      %v361 = vadd.f32 0.0, %v360
      %v362 = vpop.f32.mrf.mxu0
      %v363 = vadd.f32 0.0, %v362
      %364 = vmatmul.bf16.gmra.mxu0 %v292
      %v365 = vpop.f32.mrf.mxu0
      %v366 = vadd.f32 0.0, %v365
      %v367 = vpop.f32.mrf.mxu0
      %v368 = vadd.f32 0.0, %v367
      %369 = vmatmul.bf16.gmra.mxu0 %v293
      %v370 = vpop.f32.mrf.mxu0
      %v371 = vadd.f32 0.0, %v370
      %v372 = vpop.f32.mrf.mxu0
      %v373 = vadd.f32 0.0, %v372
      %374 = vdwg.mxu0
      %v375 = vld [vmem:[%s2] sm:$0x1]
      %v377 = vperm.slane %v375, 0
      %v379 = vmul.f32 %v356, %v377
      %v380 = vmul.f32 %v358, %v377
      %v381 = vmul.f32 %v361, %v377
      %v382 = vmul.f32 %v363, %v377
      %v383 = vmul.f32 %v366, %v377
      %v384 = vmul.f32 %v368, %v377
      %v385 = vmul.f32 %v371, %v377
      %v386 = vmul.f32 %v373, %v377
      %v387 = vld [vmem:[%s3] sm:$0x1]
      %v389 = vperm.slane %v387, 0
      %v391 = vadd.f32 %v379, %v389
      %v392 = vadd.f32 %v380, %v389
      %v393 = vadd.f32 %v381, %v389
      %v394 = vadd.f32 %v382, %v389
      %v395 = vadd.f32 %v383, %v389
      %v396 = vadd.f32 %v384, %v389
      %v397 = vadd.f32 %v385, %v389
      %v398 = vadd.f32 %v386, %v389
      %v399 = vld [vmem:[%s242] sm:$0xf]
      %v400 = vld [vmem:[%s242 + $0x4] sm:$0xf]
      %v401 = vld [vmem:[%s242 + $0x8] sm:$0xf]
      %v402 = vld [vmem:[%s242 + $0xc] sm:$0xf]
      %v403 = vld [vmem:[%s242 + $0x10] sm:$0xf]
      %v404 = vld [vmem:[%s242 + $0x14] sm:$0xf]
      %v405 = vld [vmem:[%s242 + $0x18] sm:$0xf]
      %v406 = vld [vmem:[%s242 + $0x1c] sm:$0xf]
      %v407 = vunpack.c.l.bf16 %v399
      %v408 = vunpack.c.l.bf16 %v400
      %v409 = vunpack.c.l.bf16 %v401
      %v410 = vunpack.c.l.bf16 %v402
      %v411 = vunpack.c.l.bf16 %v403
      %v412 = vunpack.c.l.bf16 %v404
      %v413 = vunpack.c.l.bf16 %v405
      %v414 = vunpack.c.l.bf16 %v406
      %v415 = vadd.f32 %v391, %v407
      %v416 = vadd.f32 %v392, %v408
      %v417 = vadd.f32 %v393, %v409
      %v418 = vadd.f32 %v394, %v410
      %v419 = vadd.f32 %v395, %v411
      %v420 = vadd.f32 %v396, %v412
      %v421 = vadd.f32 %v397, %v413
      %v422 = vadd.f32 %v398, %v414
      %v423 = vpack.c.bf16 %v415, %v415
      %v424 = vpack.c.bf16 %v416, %v416
      %v425 = vpack.c.bf16 %v417, %v417
      %v426 = vpack.c.bf16 %v418, %v418
      %v427 = vpack.c.bf16 %v419, %v419
      %v428 = vpack.c.bf16 %v420, %v420
      %v429 = vpack.c.bf16 %v421, %v421
      %v430 = vpack.c.bf16 %v422, %v422
      %431 = vst [vmem:[%s248] sm:$0xf] %v423
      %432 = vst [vmem:[%s248 + $0x4] sm:$0xf] %v424
      %433 = vst [vmem:[%s248 + $0x8] sm:$0xf] %v425
      %434 = vst [vmem:[%s248 + $0xc] sm:$0xf] %v426
      %435 = vst [vmem:[%s248 + $0x10] sm:$0xf] %v427
      %436 = vst [vmem:[%s248 + $0x14] sm:$0xf] %v428
      %437 = vst [vmem:[%s248 + $0x18] sm:$0xf] %v429
      %438 = vst [vmem:[%s248 + $0x1c] sm:$0xf] %v430
      %s439 = smul.u32 8, %s16
      %p440 = scmp.lt.s32.totalorder %s439, 15
      %s441 = scalar_select %p440, %s439, 15
      %s442 = smul.addr %s441, 4
      %s443 = scalar_lea.vmem %s5, %s442
      // Predicated region
      $region41: #{_lambda_.15} parent=39 // pred_check
        %p444 = pneg %p149
      $region42: #{_lambda_.15} parent=39 // pred_check_branch
        %446 = sbr.rel (%p444) target = $region44
      $region43: #{_lambda_.15} parent=39 // pred_region
        %s447 = smul.u32 8, %s16
      $region44: #{_lambda_.15} parent=39 // pred_fallthru
        _
    $region40: #{_lambda_.15} parent=5 // pred_fallthru
      _
    %p448 = scmp.le.s32.totalorder 2, %s11
    // Predicated region
    $region45: #{_lambda_.15} parent=5 // pred_check
      %p449 = pneg %p448
    $region46: #{_lambda_.15} parent=5 // pred_check_branch
      %451 = sbr.rel (%p449) target = $region48
    $region47: #{_lambda_.15} parent=5 // pred_region
      %s452 = ssub.s32 %s11, 2
      // Predicated region
      $region49: #{_lambda_.15} parent=47 // pred_check
        %p453 = pneg %p155
      $region50: #{_lambda_.15} parent=47 // pred_check_branch
        %455 = sbr.rel (%p453) target = $region52
      $region51: #{_lambda_.15} parent=47 // pred_region
        %s456 = smul.u32 8, %s17
        %p457 = scmp.lt.s32.totalorder %s456, 15
        %s458 = scalar_select %p457, %s456, 15
        %s459 = smul.addr %s458, 4
        %s460 = scalar_lea.vmem %s5, %s459
      $region52: #{_lambda_.15} parent=47 // pred_fallthru
        _
    $region48: #{_lambda_.15} parent=5 // pred_fallthru
      _
  $region6: #{_lambda_.15} parent=0 // loop_footer
    %s15 = sadd.s32 1, %s11
  $region7: #{_lambda_.15} parent=0 // loop_footer_branch
    %10 = sbr.rel target = $region3
  $region8: #{_lambda_.15} parent=0 // loop_exit
    _

// kernel: _lambda_.13
$region0: #{_lambda_.13}
  #allocation0 [shape = 'u32[]', space=smem, size = 0x4, offset = 0x4, fixed_abs, tag = 'smem constant byte address 0x4 - core index']
  #allocation1 [shape = 'u32[72,128]{1,0:T(1,128)}', space=vmem, size = 0x9000, scoped, tag = 'internal scratch']
  %s0 = inlined_call_operand.vmem [shape: bf16[128,128], index: 0, kind: input, shape index: {}]
  %s1 = inlined_call_operand.vmem [shape: bf16[128,128], index: 1, kind: input, shape index: {}]
  %s2 = inlined_call_operand.vmem [shape: f32[1,128], index: 2, kind: input, shape index: {}]
  %s3 = inlined_call_operand.vmem [shape: f32[1,128], index: 3, kind: input, shape index: {}]
  %s4 = inlined_call_operand.vmem [shape: bf16[128,128], index: 4, kind: output, shape index: {}]
  %s5 = sld [smem:[#allocation0]]
  $region49: #{_lambda_.13} parent=0
    _
  %s7 = ssub.s32 1, %s5
  %s8 = scalar_select 0, %s7, %s5
  loop: start=0, step=1, limit=4
  $region2: #{_lambda_.13} parent=0 // loop_pre_header
    _
  $region3: #{_lambda_.13} parent=0 // loop_header
    %s10 = sphi 0, %s14
    %p11 = scmp.ge.s32.totalorder %s10, 4
    %s20 = sphi 0, %s22
    %s23 = sphi 0, %s20
    %s24 = sphi 0, %s23
    %s40 = sphi 0, %s24
    %s44 = sphi 0, %s44
    %s46 = sphi 0, %s44
    %s47 = sphi 0, %s46
    %s61 = sphi 0, %s47
    %s65 = sphi 0, %s65
    %s67 = sphi 0, %s65
    %s68 = sphi 0, %s67
    %s82 = sphi 0, %s68
    %s86 = sphi 0, %s86
    %s88 = sphi 0, %s86
    %s89 = sphi 0, %s88
    %s103 = sphi 0, %s89
    %s109 = sphi 0, %s111
    %s112 = sphi 0, %s109
    %s113 = sphi 0, %s112
    %s129 = sphi 0, %s113
  $region4: #{_lambda_.13} parent=0 // loop_header_branch
    %13 = sbr.rel (%p11) target = $region8
  $region5: #{_lambda_.13} parent=0 // loop_body
    %s15 = ssub.s32 %s10, 1
    %s16 = ssub.s32 %s10, 2
    %s17 = sadd.s32 %s10, 1
    %s18 = ssub.s32 %s10, %s17
    %p19 = scmp.eq.s32.totalorder %s18, 0
    %s21 = sadd.s32 %s20, 1
    %s22 = scalar_select %p19, %s20, %s21
    %p25 = pneg %p19
    %p26 = scmp.eq.s32.totalorder %s10, 1
    %p27 = por %p25, %p26
    %p28 = scmp.ne.s32.totalorder %s20, %s23
    %p29 = scmp.eq.s32.totalorder %s10, 0
    %p30 = por %p28, %p29
    %p31 = scmp.ne.s32.totalorder %s20, %s23
    %p32 = scmp.eq.s32.totalorder %s15, 1
    %p33 = por %p31, %p32
    %p34 = scmp.ne.s32.totalorder %s23, %s24
    %p35 = scmp.eq.s32.totalorder %s15, 0
    %p36 = por %p34, %p35
    %p37 = scmp.ne.s32.totalorder %s23, %s24
    %p38 = scmp.eq.s32.totalorder %s16, 1
    %p39 = por %p37, %p38
    %p41 = scmp.ne.s32.totalorder %s24, %s40
    %p42 = scmp.eq.s32.totalorder %s16, 0
    %p43 = por %p41, %p42
    %s45 = sadd.s32 %s44, 1
    %p48 = scmp.eq.s32.totalorder %s10, 1
    %p49 = scmp.ne.s32.totalorder %s44, %s46
    %p50 = scmp.eq.s32.totalorder %s10, 0
    %p51 = por %p49, %p50
    %p52 = scmp.ne.s32.totalorder %s44, %s46
    %p53 = scmp.eq.s32.totalorder %s15, 1
    %p54 = por %p52, %p53
    %p55 = scmp.ne.s32.totalorder %s46, %s47
    %p56 = scmp.eq.s32.totalorder %s15, 0
    %p57 = por %p55, %p56
    %p58 = scmp.ne.s32.totalorder %s46, %s47
    %p59 = scmp.eq.s32.totalorder %s16, 1
    %p60 = por %p58, %p59
    %p62 = scmp.ne.s32.totalorder %s47, %s61
    %p63 = scmp.eq.s32.totalorder %s16, 0
    %p64 = por %p62, %p63
    %s66 = sadd.s32 %s65, 1
    %p69 = scmp.eq.s32.totalorder %s10, 1
    %p70 = scmp.ne.s32.totalorder %s65, %s67
    %p71 = scmp.eq.s32.totalorder %s10, 0
    %p72 = por %p70, %p71
    %p73 = scmp.ne.s32.totalorder %s65, %s67
    %p74 = scmp.eq.s32.totalorder %s15, 1
    %p75 = por %p73, %p74
    %p76 = scmp.ne.s32.totalorder %s67, %s68
    %p77 = scmp.eq.s32.totalorder %s15, 0
    %p78 = por %p76, %p77
    %p79 = scmp.ne.s32.totalorder %s67, %s68
    %p80 = scmp.eq.s32.totalorder %s16, 1
    %p81 = por %p79, %p80
    %p83 = scmp.ne.s32.totalorder %s68, %s82
    %p84 = scmp.eq.s32.totalorder %s16, 0
    %p85 = por %p83, %p84
    %s87 = sadd.s32 %s86, 1
    %p90 = scmp.eq.s32.totalorder %s10, 1
    %p91 = scmp.ne.s32.totalorder %s86, %s88
    %p92 = scmp.eq.s32.totalorder %s10, 0
    %p93 = por %p91, %p92
    %p94 = scmp.ne.s32.totalorder %s86, %s88
    %p95 = scmp.eq.s32.totalorder %s15, 1
    %p96 = por %p94, %p95
    %p97 = scmp.ne.s32.totalorder %s88, %s89
    %p98 = scmp.eq.s32.totalorder %s15, 0
    %p99 = por %p97, %p98
    %p100 = scmp.ne.s32.totalorder %s88, %s89
    %p101 = scmp.eq.s32.totalorder %s16, 1
    %p102 = por %p100, %p101
    %p104 = scmp.ne.s32.totalorder %s89, %s103
    %p105 = scmp.eq.s32.totalorder %s16, 0
    %p106 = por %p104, %p105
    %s107 = ssub.s32 %s10, %s17
    %p108 = scmp.eq.s32.totalorder %s107, 0
    %s110 = sadd.s32 %s109, 1
    %s111 = scalar_select %p108, %s109, %s110
    %p114 = pneg %p108
    %p115 = scmp.eq.s32.totalorder %s10, 1
    %p116 = por %p114, %p115
    %p117 = scmp.ne.s32.totalorder %s109, %s112
    %p118 = scmp.eq.s32.totalorder %s10, 0
    %p119 = por %p117, %p118
    %p120 = scmp.ne.s32.totalorder %s109, %s112
    %p121 = scmp.eq.s32.totalorder %s15, 1
    %p122 = por %p120, %p121
    %p123 = scmp.ne.s32.totalorder %s112, %s113
    %p124 = scmp.eq.s32.totalorder %s15, 0
    %p125 = por %p123, %p124
    %p126 = scmp.ne.s32.totalorder %s112, %s113
    %p127 = scmp.eq.s32.totalorder %s16, 1
    %p128 = por %p126, %p127
    %p130 = scmp.ne.s32.totalorder %s113, %s129
    %p131 = scmp.eq.s32.totalorder %s16, 0
    %p132 = por %p130, %p131
    %p133 = scmp.le.s32.totalorder 1, %s10
    %p134 = scmp.lt.s32.totalorder %s10, 3
    %p135 = pnand %p133, %p134
    %p136 = pneg %p135
    // Predicated region
    $region9: #{_lambda_.13} parent=5 // pred_check
      _
    $region10: #{_lambda_.13} parent=5 // pred_check_branch
      %138 = sbr.rel (%p135) target = $region12
    $region11: #{_lambda_.13} parent=5 // pred_region
      %s139 = ssub.s32 %s10, 1
      // Predicated region
      $region13: #{_lambda_.13} parent=11 // pred_check
        %p140 = pneg %p57
      $region14: #{_lambda_.13} parent=11 // pred_check_branch
        %142 = sbr.rel (%p140) target = $region16
      $region15: #{_lambda_.13} parent=11 // pred_region
        _
      $region16: #{_lambda_.13} parent=11 // pred_fallthru
        _
      // Predicated region
      $region17: #{_lambda_.13} parent=11 // pred_check
        %p143 = pneg %p78
      $region18: #{_lambda_.13} parent=11 // pred_check_branch
        %145 = sbr.rel (%p143) target = $region20
      $region19: #{_lambda_.13} parent=11 // pred_region
        _
      $region20: #{_lambda_.13} parent=11 // pred_fallthru
        _
      // Predicated region
      $region21: #{_lambda_.13} parent=11 // pred_check
        %p146 = pneg %p99
      $region22: #{_lambda_.13} parent=11 // pred_check_branch
        %148 = sbr.rel (%p146) target = $region24
      $region23: #{_lambda_.13} parent=11 // pred_region
        _
      $region24: #{_lambda_.13} parent=11 // pred_fallthru
        _
    $region12: #{_lambda_.13} parent=5 // pred_fallthru
      _
    %p149 = scmp.lt.s32.totalorder %s10, 2
    // Predicated region
    $region25: #{_lambda_.13} parent=5 // pred_check
      %p150 = pneg %p149
    $region26: #{_lambda_.13} parent=5 // pred_check_branch
      %152 = sbr.rel (%p150) target = $region28
    $region27: #{_lambda_.13} parent=5 // pred_region
      // Predicated region
      $region29: #{_lambda_.13} parent=27 // pred_check
        %p153 = pneg %p30
      $region30: #{_lambda_.13} parent=27 // pred_check_branch
        %155 = sbr.rel (%p153) target = $region32
      $region31: #{_lambda_.13} parent=27 // pred_region
        %s156 = smul.u32 8, %s10
        %p157 = scmp.lt.s32.totalorder %s156, 15
        %s158 = scalar_select %p157, %s156, 15
        %s159 = smul.addr %s158, 4
        %s160 = scalar_lea.vmem %s0, %s159
        %s161 = smul.u32 8, %s10
      $region32: #{_lambda_.13} parent=27 // pred_fallthru
        _
    $region28: #{_lambda_.13} parent=5 // pred_fallthru
      _
    %p162 = scmp.le.s32.totalorder 1, %s10
    %p163 = scmp.lt.s32.totalorder %s10, 3
    %p164 = pnand %p162, %p163
    %p165 = pneg %p164
    // Predicated region
    $region33: #{_lambda_.13} parent=5 // pred_check
      _
    $region34: #{_lambda_.13} parent=5 // pred_check_branch
      %167 = sbr.rel (%p164) target = $region36
    $region35: #{_lambda_.13} parent=5 // pred_region
      %s168 = ssub.s32 %s10, 1
      %s169 = smul.u32 8, %s15
      %p170 = scmp.lt.s32.totalorder %s169, 15
      %s171 = scalar_select %p170, %s169, 15
      %s172 = smul.addr %s171, 4
      %s173 = scalar_lea.vmem %s0, %s172
      %p174 = pneg %p36
      %p175 = pneg %p33
      %p176 = pneg %p57
      %p177 = pneg %p54
      %p178 = pneg %p78
      %p179 = pneg %p75
      %p180 = pneg %p99
      %p181 = pneg %p96
      %p182 = pneg %p125
      %p183 = pneg %p122
      %s184 = smul.u32 8, %s15
      %p185 = scmp.lt.s32.totalorder %s184, 15
      %s186 = scalar_select %p185, %s184, 15
      %s187 = smul.addr %s186, 4
      %s188 = scalar_lea.vmem %s4, %s187
      %s189 = smul.u32 8, %s15
      %p190 = scmp.lt.s32.totalorder %s189, 15
      %s191 = scalar_select %p190, %s189, 15
      %s192 = smul.addr %s191, 4
      %s193 = scalar_lea.vmem %s0, %s192
      %s194 = smul.u32 8, %s15
      %s195 = smul.u32 8, %s15
      %p196 = scmp.lt.s32.totalorder %s195, 15
      %s197 = scalar_select %p196, %s195, 15
      %s198 = smul.addr %s197, 4
      %s199 = scalar_lea.vmem %s4, %s198
      %s200 = smul.u32 8, %s15
      %v201 = vld [vmem:[%s193] sm:$0xf]
      %v202 = vld [vmem:[%s193 + $0x4] sm:$0xf]
      %v203 = vld [vmem:[%s193 + $0x8] sm:$0xf]
      %v204 = vld [vmem:[%s193 + $0xc] sm:$0xf]
      %v205 = vld [vmem:[%s193 + $0x10] sm:$0xf]
      %v206 = vld [vmem:[%s193 + $0x14] sm:$0xf]
      %v207 = vld [vmem:[%s193 + $0x18] sm:$0xf]
      %v208 = vld [vmem:[%s193 + $0x1c] sm:$0xf]
      %v209 = vld [vmem:[%s1] sm:$0xf]
      %v210 = vld [vmem:[%s1 + $0x4] sm:$0xf]
      %v211 = vld [vmem:[%s1 + $0x8] sm:$0xf]
      %v212 = vld [vmem:[%s1 + $0xc] sm:$0xf]
      %v213 = vld [vmem:[%s1 + $0x10] sm:$0xf]
      %v214 = vld [vmem:[%s1 + $0x14] sm:$0xf]
      %v215 = vld [vmem:[%s1 + $0x18] sm:$0xf]
      %v216 = vld [vmem:[%s1 + $0x1c] sm:$0xf]
      %v217 = vld [vmem:[%s1 + $0x20] sm:$0xf]
      %v218 = vld [vmem:[%s1 + $0x24] sm:$0xf]
      %v219 = vld [vmem:[%s1 + $0x28] sm:$0xf]
      %v220 = vld [vmem:[%s1 + $0x2c] sm:$0xf]
      %v221 = vld [vmem:[%s1 + $0x30] sm:$0xf]
      %v222 = vld [vmem:[%s1 + $0x34] sm:$0xf]
      %v223 = vld [vmem:[%s1 + $0x38] sm:$0xf]
      %v224 = vld [vmem:[%s1 + $0x3c] sm:$0xf]
      %v233 = vunpack.c.l.b16 %v201
      %v234 = vunpack.c.l.b16 %v202
      %v235 = vunpack.c.l.b16 %v203
      %v236 = vunpack.c.l.b16 %v204
      %v237 = vunpack.c.l.b16 %v205
      %v238 = vunpack.c.l.b16 %v206
      %v239 = vunpack.c.l.b16 %v207
      %v240 = vunpack.c.l.b16 %v208
      %v241 = vpack.c.b16 %v234, %v233
      %v242 = vpack.c.b16 %v236, %v235
      %v243 = vpack.c.b16 %v238, %v237
      %v244 = vpack.c.b16 %v240, %v239
      %v265 = vunpack.c.l.b16 %v209
      %v266 = vunpack.c.l.b16 %v210
      %v267 = vunpack.c.l.b16 %v211
      %v268 = vunpack.c.l.b16 %v212
      %v269 = vunpack.c.l.b16 %v213
      %v270 = vunpack.c.l.b16 %v214
      %v271 = vunpack.c.l.b16 %v215
      %v272 = vunpack.c.l.b16 %v216
      %v273 = vunpack.c.l.b16 %v217
      %v274 = vunpack.c.l.b16 %v218
      %v275 = vunpack.c.l.b16 %v219
      %v276 = vunpack.c.l.b16 %v220
      %v277 = vunpack.c.l.b16 %v221
      %v278 = vunpack.c.l.b16 %v222
      %v279 = vunpack.c.l.b16 %v223
      %v280 = vunpack.c.l.b16 %v224
      %v281 = vpack.c.b16 %v266, %v265
      %v282 = vpack.c.b16 %v268, %v267
      %v283 = vpack.c.b16 %v270, %v269
      %v284 = vpack.c.b16 %v272, %v271
      %v285 = vpack.c.b16 %v274, %v273
      %v286 = vpack.c.b16 %v276, %v275
      %v287 = vpack.c.b16 %v278, %v277
      %v288 = vpack.c.b16 %v280, %v279
      %297 = vmatpush.bf16.msra.mxu0 %v288
      %298 = vmatpush.bf16.msra.mxu0 %v287
      %299 = vmatpush.bf16.msra.mxu0 %v286
      %300 = vmatpush.bf16.msra.mxu0 %v285
      %301 = vmatpush.bf16.msra.mxu0 %v284
      %302 = vmatpush.bf16.msra.mxu0 %v283
      %303 = vmatpush.bf16.msra.mxu0 %v282
      %304 = vmatpush.bf16.msra.mxu0 %v281
      %305 = vmatmul.bf16.gmra.mxu0 %v241
      %v306 = vpop.f32.mrf.mxu0
      %v307 = vadd.f32 0.0, %v306
      %v308 = vpop.f32.mrf.mxu0
      %v309 = vadd.f32 0.0, %v308
      %310 = vmatmul.bf16.gmra.mxu0 %v242
      %v311 = vpop.f32.mrf.mxu0
      %v312 = vadd.f32 0.0, %v311
      %v313 = vpop.f32.mrf.mxu0
      %v314 = vadd.f32 0.0, %v313
      %315 = vmatmul.bf16.gmra.mxu0 %v243
      %v316 = vpop.f32.mrf.mxu0
      %v317 = vadd.f32 0.0, %v316
      %v318 = vpop.f32.mrf.mxu0
      %v319 = vadd.f32 0.0, %v318
      %320 = vmatmul.bf16.gmra.mxu0 %v244
      %v321 = vpop.f32.mrf.mxu0
      %v322 = vadd.f32 0.0, %v321
      %v323 = vpop.f32.mrf.mxu0
      %v324 = vadd.f32 0.0, %v323
      %325 = vdwg.mxu0
      %v326 = vld [vmem:[%s2] sm:$0x1]
      %v328 = vperm.slane %v326, 0
      %v330 = vmul.f32 %v307, %v328
      %v331 = vmul.f32 %v309, %v328
      %v332 = vmul.f32 %v312, %v328
      %v333 = vmul.f32 %v314, %v328
      %v334 = vmul.f32 %v317, %v328
      %v335 = vmul.f32 %v319, %v328
      %v336 = vmul.f32 %v322, %v328
      %v337 = vmul.f32 %v324, %v328
      %v338 = vld [vmem:[%s3] sm:$0x1]
      %v340 = vperm.slane %v338, 0
      %v342 = vadd.f32 %v330, %v340
      %v343 = vadd.f32 %v331, %v340
      %v344 = vadd.f32 %v332, %v340
      %v345 = vadd.f32 %v333, %v340
      %v346 = vadd.f32 %v334, %v340
      %v347 = vadd.f32 %v335, %v340
      %v348 = vadd.f32 %v336, %v340
      %v349 = vadd.f32 %v337, %v340
      %v350 = vxor.u32 %v342, 2147483648
      %v351 = vxor.u32 %v343, 2147483648
      %v352 = vxor.u32 %v344, 2147483648
      %v353 = vxor.u32 %v345, 2147483648
      %v354 = vxor.u32 %v346, 2147483648
      %v355 = vxor.u32 %v347, 2147483648
      %v356 = vxor.u32 %v348, 2147483648
      %v357 = vxor.u32 %v349, 2147483648
      %v358 = vmul.f32 %v350, 1.442695
      %v359 = vpow.pop %v358
      %v360 = vmul.f32 %v351, 1.442695
      %v361 = vpow.pop %v360
      %v362 = vmul.f32 %v352, 1.442695
      %v363 = vpow.pop %v362
      %v364 = vmul.f32 %v353, 1.442695
      %v365 = vpow.pop %v364
      %v366 = vmul.f32 %v354, 1.442695
      %v367 = vpow.pop %v366
      %v368 = vmul.f32 %v355, 1.442695
      %v369 = vpow.pop %v368
      %v370 = vmul.f32 %v356, 1.442695
      %v371 = vpow.pop %v370
      %v372 = vmul.f32 %v357, 1.442695
      %v373 = vpow.pop %v372
      %v374 = vadd.f32 %v359, 1.0
      %v375 = vadd.f32 %v361, 1.0
      %v376 = vadd.f32 %v363, 1.0
      %v377 = vadd.f32 %v365, 1.0
      %v378 = vadd.f32 %v367, 1.0
      %v379 = vadd.f32 %v369, 1.0
      %v380 = vadd.f32 %v371, 1.0
      %v381 = vadd.f32 %v373, 1.0
      %v382 = vrcp.pop %v374
      %v383 = vmul.f32 %v374, %v382
      %v384 = vsub.f32 1.0, %v383
      %v385 = vmul.f32 %v382, %v384
      %v386 = vadd.f32 %v382, %v385
      %vm387 = vweird.f32 %v374
      %vm388 = vweird.f32 %v382
      %vm389 = vmor %vm387, %vm388
      %v390 = vsel %vm389, %v382, %v386
      %v391 = vand.u32 2147483647, %v374
      %vm392 = vcmp.eq.f32.partialorder %v391, 8.507059e+37
      %v393 = vand.u32 %v374, 2147483648
      %v394 = vor.u32 1.1754944e-38, %v393
      %v395 = vsel %vm392, %v394, %v390
      %v396 = vmul.f32 1.0, %v395
      %v397 = vrcp.pop %v375
      %v398 = vmul.f32 %v375, %v397
      %v399 = vsub.f32 1.0, %v398
      %v400 = vmul.f32 %v397, %v399
      %v401 = vadd.f32 %v397, %v400
      %vm402 = vweird.f32 %v375
      %vm403 = vweird.f32 %v397
      %vm404 = vmor %vm402, %vm403
      %v405 = vsel %vm404, %v397, %v401
      %v406 = vand.u32 2147483647, %v375
      %vm407 = vcmp.eq.f32.partialorder %v406, 8.507059e+37
      %v408 = vand.u32 %v375, 2147483648
      %v409 = vor.u32 1.1754944e-38, %v408
      %v410 = vsel %vm407, %v409, %v405
      %v411 = vmul.f32 1.0, %v410
      %v412 = vrcp.pop %v376
      %v413 = vmul.f32 %v376, %v412
      %v414 = vsub.f32 1.0, %v413
      %v415 = vmul.f32 %v412, %v414
      %v416 = vadd.f32 %v412, %v415
      %vm417 = vweird.f32 %v376
      %vm418 = vweird.f32 %v412
      %vm419 = vmor %vm417, %vm418
      %v420 = vsel %vm419, %v412, %v416
      %v421 = vand.u32 2147483647, %v376
      %vm422 = vcmp.eq.f32.partialorder %v421, 8.507059e+37
      %v423 = vand.u32 %v376, 2147483648
      %v424 = vor.u32 1.1754944e-38, %v423
      %v425 = vsel %vm422, %v424, %v420
      %v426 = vmul.f32 1.0, %v425
      %v427 = vrcp.pop %v377
      %v428 = vmul.f32 %v377, %v427
      %v429 = vsub.f32 1.0, %v428
      %v430 = vmul.f32 %v427, %v429
      %v431 = vadd.f32 %v427, %v430
      %vm432 = vweird.f32 %v377
      %vm433 = vweird.f32 %v427
      %vm434 = vmor %vm432, %vm433
      %v435 = vsel %vm434, %v427, %v431
      %v436 = vand.u32 2147483647, %v377
      %vm437 = vcmp.eq.f32.partialorder %v436, 8.507059e+37
      %v438 = vand.u32 %v377, 2147483648
      %v439 = vor.u32 1.1754944e-38, %v438
      %v440 = vsel %vm437, %v439, %v435
      %v441 = vmul.f32 1.0, %v440
      %v442 = vrcp.pop %v378
      %v443 = vmul.f32 %v378, %v442
      %v444 = vsub.f32 1.0, %v443
      %v445 = vmul.f32 %v442, %v444
      %v446 = vadd.f32 %v442, %v445
      %vm447 = vweird.f32 %v378
      %vm448 = vweird.f32 %v442
      %vm449 = vmor %vm447, %vm448
      %v450 = vsel %vm449, %v442, %v446
      %v451 = vand.u32 2147483647, %v378
      %vm452 = vcmp.eq.f32.partialorder %v451, 8.507059e+37
      %v453 = vand.u32 %v378, 2147483648
      %v454 = vor.u32 1.1754944e-38, %v453
      %v455 = vsel %vm452, %v454, %v450
      %v456 = vmul.f32 1.0, %v455
      %v457 = vrcp.pop %v379
      %v458 = vmul.f32 %v379, %v457
      %v459 = vsub.f32 1.0, %v458
      %v460 = vmul.f32 %v457, %v459
      %v461 = vadd.f32 %v457, %v460
      %vm462 = vweird.f32 %v379
      %vm463 = vweird.f32 %v457
      %vm464 = vmor %vm462, %vm463
      %v465 = vsel %vm464, %v457, %v461
      %v466 = vand.u32 2147483647, %v379
      %vm467 = vcmp.eq.f32.partialorder %v466, 8.507059e+37
      %v468 = vand.u32 %v379, 2147483648
      %v469 = vor.u32 1.1754944e-38, %v468
      %v470 = vsel %vm467, %v469, %v465
      %v471 = vmul.f32 1.0, %v470
      %v472 = vrcp.pop %v380
      %v473 = vmul.f32 %v380, %v472
      %v474 = vsub.f32 1.0, %v473
      %v475 = vmul.f32 %v472, %v474
      %v476 = vadd.f32 %v472, %v475
      %vm477 = vweird.f32 %v380
      %vm478 = vweird.f32 %v472
      %vm479 = vmor %vm477, %vm478
      %v480 = vsel %vm479, %v472, %v476
      %v481 = vand.u32 2147483647, %v380
      %vm482 = vcmp.eq.f32.partialorder %v481, 8.507059e+37
      %v483 = vand.u32 %v380, 2147483648
      %v484 = vor.u32 1.1754944e-38, %v483
      %v485 = vsel %vm482, %v484, %v480
      %v486 = vmul.f32 1.0, %v485
      %v487 = vrcp.pop %v381
      %v488 = vmul.f32 %v381, %v487
      %v489 = vsub.f32 1.0, %v488
      %v490 = vmul.f32 %v487, %v489
      %v491 = vadd.f32 %v487, %v490
      %vm492 = vweird.f32 %v381
      %vm493 = vweird.f32 %v487
      %vm494 = vmor %vm492, %vm493
      %v495 = vsel %vm494, %v487, %v491
      %v496 = vand.u32 2147483647, %v381
      %vm497 = vcmp.eq.f32.partialorder %v496, 8.507059e+37
      %v498 = vand.u32 %v381, 2147483648
      %v499 = vor.u32 1.1754944e-38, %v498
      %v500 = vsel %vm497, %v499, %v495
      %v501 = vmul.f32 1.0, %v500
      %v502 = vmul.f32 %v342, %v396
      %v503 = vmul.f32 %v343, %v411
      %v504 = vmul.f32 %v344, %v426
      %v505 = vmul.f32 %v345, %v441
      %v506 = vmul.f32 %v346, %v456
      %v507 = vmul.f32 %v347, %v471
      %v508 = vmul.f32 %v348, %v486
      %v509 = vmul.f32 %v349, %v501
      %v510 = vpack.c.bf16 %v502, %v502
      %v511 = vpack.c.bf16 %v503, %v503
      %v512 = vpack.c.bf16 %v504, %v504
      %v513 = vpack.c.bf16 %v505, %v505
      %v514 = vpack.c.bf16 %v506, %v506
      %v515 = vpack.c.bf16 %v507, %v507
      %v516 = vpack.c.bf16 %v508, %v508
      %v517 = vpack.c.bf16 %v509, %v509
      %518 = vst [vmem:[%s199] sm:$0xf] %v510
      %519 = vst [vmem:[%s199 + $0x4] sm:$0xf] %v511
      %520 = vst [vmem:[%s199 + $0x8] sm:$0xf] %v512
      %521 = vst [vmem:[%s199 + $0xc] sm:$0xf] %v513
      %522 = vst [vmem:[%s199 + $0x10] sm:$0xf] %v514
      %523 = vst [vmem:[%s199 + $0x14] sm:$0xf] %v515
      %524 = vst [vmem:[%s199 + $0x18] sm:$0xf] %v516
      %525 = vst [vmem:[%s199 + $0x1c] sm:$0xf] %v517
      %s526 = smul.u32 8, %s15
      %p527 = scmp.lt.s32.totalorder %s526, 15
      %s528 = scalar_select %p527, %s526, 15
      %s529 = smul.addr %s528, 4
      %s530 = scalar_lea.vmem %s4, %s529
      // Predicated region
      $region37: #{_lambda_.13} parent=35 // pred_check
        %p531 = pneg %p122
      $region38: #{_lambda_.13} parent=35 // pred_check_branch
        %533 = sbr.rel (%p531) target = $region40
      $region39: #{_lambda_.13} parent=35 // pred_region
        %s534 = smul.u32 8, %s15
      $region40: #{_lambda_.13} parent=35 // pred_fallthru
        _
    $region36: #{_lambda_.13} parent=5 // pred_fallthru
      _
    %p535 = scmp.le.s32.totalorder 2, %s10
    // Predicated region
    $region41: #{_lambda_.13} parent=5 // pred_check
      %p536 = pneg %p535
    $region42: #{_lambda_.13} parent=5 // pred_check_branch
      %538 = sbr.rel (%p536) target = $region44
    $region43: #{_lambda_.13} parent=5 // pred_region
      %s539 = ssub.s32 %s10, 2
      // Predicated region
      $region45: #{_lambda_.13} parent=43 // pred_check
        %p540 = pneg %p128
      $region46: #{_lambda_.13} parent=43 // pred_check_branch
        %542 = sbr.rel (%p540) target = $region48
      $region47: #{_lambda_.13} parent=43 // pred_region
        %s543 = smul.u32 8, %s16
        %p544 = scmp.lt.s32.totalorder %s543, 15
        %s545 = scalar_select %p544, %s543, 15
        %s546 = smul.addr %s545, 4
        %s547 = scalar_lea.vmem %s4, %s546
      $region48: #{_lambda_.13} parent=43 // pred_fallthru
        _
    $region44: #{_lambda_.13} parent=5 // pred_fallthru
      _
  $region6: #{_lambda_.13} parent=0 // loop_footer
    %s14 = sadd.s32 1, %s10
  $region7: #{_lambda_.13} parent=0 // loop_footer_branch
    %9 = sbr.rel target = $region3
  $region8: #{_lambda_.13} parent=0 // loop_exit
    _

// kernel: _lambda_.14
$region0: #{_lambda_.14}
  #allocation0 [shape = 'u32[]', space=smem, size = 0x4, offset = 0x4, fixed_abs, tag = 'smem constant byte address 0x4 - core index']
  #allocation1 [shape = 'u32[72,128]{1,0:T(1,128)}', space=vmem, size = 0x9000, scoped, tag = 'internal scratch']
  %s0 = inlined_call_operand.vmem [shape: bf16[2,10,10,128], index: 0, kind: input, shape index: {}, may-alias: {0,1,2}]
  %s1 = inlined_call_operand.vmem [shape: bf16[2,10,10,128], index: 1, kind: input, shape index: {}, may-alias: {0,1,2}]
  %s2 = inlined_call_operand.vmem [shape: bf16[2,10,10,128], index: 2, kind: input, shape index: {}, may-alias: {0,1,2}]
  %s3 = inlined_call_operand.vmem [shape: bf16[9,128,128], index: 3, kind: input, shape index: {}]
  %s4 = inlined_call_operand.vmem [shape: f32[1,128], index: 4, kind: input, shape index: {}]
  %s5 = inlined_call_operand.vmem [shape: f32[1,128], index: 5, kind: input, shape index: {}]
  %s6 = inlined_call_operand.vmem [shape: bf16[2,8,8,128], index: 6, kind: output, shape index: {}]
  %s7 = sld [smem:[#allocation0]]
  $region57: #{_lambda_.14} parent=0
    _
  %s9 = ssub.s32 1, %s7
  %s10 = scalar_select 0, %s9, %s7
  loop: start=0, step=1, limit=18
  $region2: #{_lambda_.14} parent=0 // loop_pre_header
    _
  $region3: #{_lambda_.14} parent=0 // loop_header
    %s12 = sphi 0, %s16
    %p13 = scmp.ge.s32.totalorder %s12, 18
    %s19 = sphi 0, %s31
    %s20 = sphi 0, %s27
    %s21 = sphi 0, %s19
    %s22 = sphi 0, %s20
    %s23 = sphi 0, %s21
    %s24 = sphi 0, %s22
    %s36 = sphi 0, %s38
    %s39 = sphi 0, %s36
    %s40 = sphi 0, %s39
    %s56 = sphi 0, %s40
    %s66 = sphi 0, %s68
    %s69 = sphi 0, %s66
    %s70 = sphi 0, %s69
    %s86 = sphi 0, %s70
    %s96 = sphi 0, %s98
    %s99 = sphi 0, %s96
    %s100 = sphi 0, %s99
    %s116 = sphi 0, %s100
    %s120 = sphi 0, %s120
    %s122 = sphi 0, %s120
    %s123 = sphi 0, %s122
    %s137 = sphi 0, %s123
    %s141 = sphi 0, %s141
    %s143 = sphi 0, %s141
    %s144 = sphi 0, %s143
    %s158 = sphi 0, %s144
    %s162 = sphi 0, %s162
    %s164 = sphi 0, %s162
    %s165 = sphi 0, %s164
    %s179 = sphi 0, %s165
    %s187 = sphi 0, %s189
    %s190 = sphi 0, %s187
    %s191 = sphi 0, %s190
    %s207 = sphi 0, %s191
  $region4: #{_lambda_.14} parent=0 // loop_header_branch
    %15 = sbr.rel (%p13) target = $region8
  $region5: #{_lambda_.14} parent=0 // loop_body
    %s17 = ssub.s32 %s12, 1
    %s18 = ssub.s32 %s12, 2
    %s25 = sadd.s32 1, %s20
    %p26 = scmp.ge.s32.totalorder %s25, 8
    %s27 = scalar_select %p26, 0, %s25
    %s28 = sadd.s32 1, %s19
    %s29 = scalar_select %p26, %s28, %s19
    %p30 = scmp.ge.s32.totalorder %s29, 2
    %s31 = scalar_select %p30, 0, %s29
    %s32 = ssub.s32 %s19, %s31
    %s33 = ssub.s32 %s20, %s27
    %s34 = sor.u32 %s32, %s33
    %p35 = scmp.eq.s32.totalorder %s34, 0
    %s37 = sadd.s32 %s36, 1
    %s38 = scalar_select %p35, %s36, %s37
    %p41 = pneg %p35
    %p42 = scmp.eq.s32.totalorder %s12, 15
    %p43 = por %p41, %p42
    %p44 = scmp.ne.s32.totalorder %s36, %s39
    %p45 = scmp.eq.s32.totalorder %s12, 0
    %p46 = por %p44, %p45
    %p47 = scmp.ne.s32.totalorder %s36, %s39
    %p48 = scmp.eq.s32.totalorder %s17, 15
    %p49 = por %p47, %p48
    %p50 = scmp.ne.s32.totalorder %s39, %s40
    %p51 = scmp.eq.s32.totalorder %s17, 0
    %p52 = por %p50, %p51
    %p53 = scmp.ne.s32.totalorder %s39, %s40
    %p54 = scmp.eq.s32.totalorder %s18, 15
    %p55 = por %p53, %p54
    %p57 = scmp.ne.s32.totalorder %s40, %s56
    %p58 = scmp.eq.s32.totalorder %s18, 0
    %p59 = por %p57, %p58
    %s60 = sadd.s32 %s20, 1
    %s61 = sadd.s32 %s27, 1
    %s62 = ssub.s32 %s19, %s31
    %s63 = ssub.s32 %s60, %s61
    %s64 = sor.u32 %s62, %s63
    %p65 = scmp.eq.s32.totalorder %s64, 0
    %s67 = sadd.s32 %s66, 1
    %s68 = scalar_select %p65, %s66, %s67
    %p71 = pneg %p65
    %p72 = scmp.eq.s32.totalorder %s12, 15
    %p73 = por %p71, %p72
    %p74 = scmp.ne.s32.totalorder %s66, %s69
    %p75 = scmp.eq.s32.totalorder %s12, 0
    %p76 = por %p74, %p75
    %p77 = scmp.ne.s32.totalorder %s66, %s69
    %p78 = scmp.eq.s32.totalorder %s17, 15
    %p79 = por %p77, %p78
    %p80 = scmp.ne.s32.totalorder %s69, %s70
    %p81 = scmp.eq.s32.totalorder %s17, 0
    %p82 = por %p80, %p81
    %p83 = scmp.ne.s32.totalorder %s69, %s70
    %p84 = scmp.eq.s32.totalorder %s18, 15
    %p85 = por %p83, %p84
    %p87 = scmp.ne.s32.totalorder %s70, %s86
    %p88 = scmp.eq.s32.totalorder %s18, 0
    %p89 = por %p87, %p88
    %s90 = sadd.s32 %s20, 2
    %s91 = sadd.s32 %s27, 2
    %s92 = ssub.s32 %s19, %s31
    %s93 = ssub.s32 %s90, %s91
    %s94 = sor.u32 %s92, %s93
    %p95 = scmp.eq.s32.totalorder %s94, 0
    %s97 = sadd.s32 %s96, 1
    %s98 = scalar_select %p95, %s96, %s97
    %p101 = pneg %p95
    %p102 = scmp.eq.s32.totalorder %s12, 15
    %p103 = por %p101, %p102
    %p104 = scmp.ne.s32.totalorder %s96, %s99
    %p105 = scmp.eq.s32.totalorder %s12, 0
    %p106 = por %p104, %p105
    %p107 = scmp.ne.s32.totalorder %s96, %s99
    %p108 = scmp.eq.s32.totalorder %s17, 15
    %p109 = por %p107, %p108
    %p110 = scmp.ne.s32.totalorder %s99, %s100
    %p111 = scmp.eq.s32.totalorder %s17, 0
    %p112 = por %p110, %p111
    %p113 = scmp.ne.s32.totalorder %s99, %s100
    %p114 = scmp.eq.s32.totalorder %s18, 15
    %p115 = por %p113, %p114
    %p117 = scmp.ne.s32.totalorder %s100, %s116
    %p118 = scmp.eq.s32.totalorder %s18, 0
    %p119 = por %p117, %p118
    %s121 = sadd.s32 %s120, 1
    %p124 = scmp.eq.s32.totalorder %s12, 15
    %p125 = scmp.ne.s32.totalorder %s120, %s122
    %p126 = scmp.eq.s32.totalorder %s12, 0
    %p127 = por %p125, %p126
    %p128 = scmp.ne.s32.totalorder %s120, %s122
    %p129 = scmp.eq.s32.totalorder %s17, 15
    %p130 = por %p128, %p129
    %p131 = scmp.ne.s32.totalorder %s122, %s123
    %p132 = scmp.eq.s32.totalorder %s17, 0
    %p133 = por %p131, %p132
    %p134 = scmp.ne.s32.totalorder %s122, %s123
    %p135 = scmp.eq.s32.totalorder %s18, 15
    %p136 = por %p134, %p135
    %p138 = scmp.ne.s32.totalorder %s123, %s137
    %p139 = scmp.eq.s32.totalorder %s18, 0
    %p140 = por %p138, %p139
    %s142 = sadd.s32 %s141, 1
    %p145 = scmp.eq.s32.totalorder %s12, 15
    %p146 = scmp.ne.s32.totalorder %s141, %s143
    %p147 = scmp.eq.s32.totalorder %s12, 0
    %p148 = por %p146, %p147
    %p149 = scmp.ne.s32.totalorder %s141, %s143
    %p150 = scmp.eq.s32.totalorder %s17, 15
    %p151 = por %p149, %p150
    %p152 = scmp.ne.s32.totalorder %s143, %s144
    %p153 = scmp.eq.s32.totalorder %s17, 0
    %p154 = por %p152, %p153
    %p155 = scmp.ne.s32.totalorder %s143, %s144
    %p156 = scmp.eq.s32.totalorder %s18, 15
    %p157 = por %p155, %p156
    %p159 = scmp.ne.s32.totalorder %s144, %s158
    %p160 = scmp.eq.s32.totalorder %s18, 0
    %p161 = por %p159, %p160
    %s163 = sadd.s32 %s162, 1
    %p166 = scmp.eq.s32.totalorder %s12, 15
    %p167 = scmp.ne.s32.totalorder %s162, %s164
    %p168 = scmp.eq.s32.totalorder %s12, 0
    %p169 = por %p167, %p168
    %p170 = scmp.ne.s32.totalorder %s162, %s164
    %p171 = scmp.eq.s32.totalorder %s17, 15
    %p172 = por %p170, %p171
    %p173 = scmp.ne.s32.totalorder %s164, %s165
    %p174 = scmp.eq.s32.totalorder %s17, 0
    %p175 = por %p173, %p174
    %p176 = scmp.ne.s32.totalorder %s164, %s165
    %p177 = scmp.eq.s32.totalorder %s18, 15
    %p178 = por %p176, %p177
    %p180 = scmp.ne.s32.totalorder %s165, %s179
    %p181 = scmp.eq.s32.totalorder %s18, 0
    %p182 = por %p180, %p181
    %s183 = ssub.s32 %s19, %s31
    %s184 = ssub.s32 %s20, %s27
    %s185 = sor.u32 %s183, %s184
    %p186 = scmp.eq.s32.totalorder %s185, 0
    %s188 = sadd.s32 %s187, 1
    %s189 = scalar_select %p186, %s187, %s188
    %p192 = pneg %p186
    %p193 = scmp.eq.s32.totalorder %s12, 15
    %p194 = por %p192, %p193
    %p195 = scmp.ne.s32.totalorder %s187, %s190
    %p196 = scmp.eq.s32.totalorder %s12, 0
    %p197 = por %p195, %p196
    %p198 = scmp.ne.s32.totalorder %s187, %s190
    %p199 = scmp.eq.s32.totalorder %s17, 15
    %p200 = por %p198, %p199
    %p201 = scmp.ne.s32.totalorder %s190, %s191
    %p202 = scmp.eq.s32.totalorder %s17, 0
    %p203 = por %p201, %p202
    %p204 = scmp.ne.s32.totalorder %s190, %s191
    %p205 = scmp.eq.s32.totalorder %s18, 15
    %p206 = por %p204, %p205
    %p208 = scmp.ne.s32.totalorder %s191, %s207
    %p209 = scmp.eq.s32.totalorder %s18, 0
    %p210 = por %p208, %p209
    %p211 = scmp.le.s32.totalorder 1, %s12
    %p212 = scmp.lt.s32.totalorder %s12, 17
    %p213 = pnand %p211, %p212
    %p214 = pneg %p213
    // Predicated region
    $region9: #{_lambda_.14} parent=5 // pred_check
      _
    $region10: #{_lambda_.14} parent=5 // pred_check_branch
      %216 = sbr.rel (%p213) target = $region12
    $region11: #{_lambda_.14} parent=5 // pred_region
      %s217 = ssub.s32 %s12, 1
      // Predicated region
      $region13: #{_lambda_.14} parent=11 // pred_check
        %p218 = pneg %p133
      $region14: #{_lambda_.14} parent=11 // pred_check_branch
        %220 = sbr.rel (%p218) target = $region16
      $region15: #{_lambda_.14} parent=11 // pred_region
        _
      $region16: #{_lambda_.14} parent=11 // pred_fallthru
        _
      // Predicated region
      $region17: #{_lambda_.14} parent=11 // pred_check
        %p221 = pneg %p154
      $region18: #{_lambda_.14} parent=11 // pred_check_branch
        %223 = sbr.rel (%p221) target = $region20
      $region19: #{_lambda_.14} parent=11 // pred_region
        _
      $region20: #{_lambda_.14} parent=11 // pred_fallthru
        _
      // Predicated region
      $region21: #{_lambda_.14} parent=11 // pred_check
        %p224 = pneg %p175
      $region22: #{_lambda_.14} parent=11 // pred_check_branch
        %226 = sbr.rel (%p224) target = $region24
      $region23: #{_lambda_.14} parent=11 // pred_region
        _
      $region24: #{_lambda_.14} parent=11 // pred_fallthru
        _
    $region12: #{_lambda_.14} parent=5 // pred_fallthru
      _
    %p227 = scmp.lt.s32.totalorder %s12, 16
    // Predicated region
    $region25: #{_lambda_.14} parent=5 // pred_check
      %p228 = pneg %p227
    $region26: #{_lambda_.14} parent=5 // pred_check_branch
      %230 = sbr.rel (%p228) target = $region28
    $region27: #{_lambda_.14} parent=5 // pred_region
      // Predicated region
      $region29: #{_lambda_.14} parent=27 // pred_check
        %p231 = pneg %p46
      $region30: #{_lambda_.14} parent=27 // pred_check_branch
        %233 = sbr.rel (%p231) target = $region32
      $region31: #{_lambda_.14} parent=27 // pred_region
        %p234 = scmp.lt.s32.totalorder %s19, 1
        %s235 = scalar_select %p234, %s19, 1
        %p236 = scmp.lt.s32.totalorder %s20, 9
        %s237 = scalar_select %p236, %s20, 9
        %s238 = smul.addr %s237, 2
        %s239 = smul.addr %s235, 20
        %s240 = sadd.s32 %s238, %s239
        %s241 = smul.addr %s240, 4
        %s242 = scalar_lea.vmem %s0, %s241
      $region32: #{_lambda_.14} parent=27 // pred_fallthru
        _
      // Predicated region
      $region33: #{_lambda_.14} parent=27 // pred_check
        %p243 = pneg %p76
      $region34: #{_lambda_.14} parent=27 // pred_check_branch
        %245 = sbr.rel (%p243) target = $region36
      $region35: #{_lambda_.14} parent=27 // pred_region
        %s246 = sadd.s32 %s20, 1
        %p247 = scmp.lt.s32.totalorder %s19, 1
        %s248 = scalar_select %p247, %s19, 1
        %p249 = scmp.lt.s32.totalorder %s246, 9
        %s250 = scalar_select %p249, %s246, 9
        %s251 = smul.addr %s250, 2
        %s252 = smul.addr %s248, 20
        %s253 = sadd.s32 %s251, %s252
        %s254 = smul.addr %s253, 4
        %s255 = scalar_lea.vmem %s1, %s254
        %s256 = sadd.s32 %s20, 1
      $region36: #{_lambda_.14} parent=27 // pred_fallthru
        _
      // Predicated region
      $region37: #{_lambda_.14} parent=27 // pred_check
        %p257 = pneg %p106
      $region38: #{_lambda_.14} parent=27 // pred_check_branch
        %259 = sbr.rel (%p257) target = $region40
      $region39: #{_lambda_.14} parent=27 // pred_region
        %s260 = sadd.s32 %s20, 2
        %p261 = scmp.lt.s32.totalorder %s19, 1
        %s262 = scalar_select %p261, %s19, 1
        %p263 = scmp.lt.s32.totalorder %s260, 9
        %s264 = scalar_select %p263, %s260, 9
        %s265 = smul.addr %s264, 2
        %s266 = smul.addr %s262, 20
        %s267 = sadd.s32 %s265, %s266
        %s268 = smul.addr %s267, 4
        %s269 = scalar_lea.vmem %s2, %s268
        %s270 = sadd.s32 %s20, 2
      $region40: #{_lambda_.14} parent=27 // pred_fallthru
        _
    $region28: #{_lambda_.14} parent=5 // pred_fallthru
      _
    %p271 = scmp.le.s32.totalorder 1, %s12
    %p272 = scmp.lt.s32.totalorder %s12, 17
    %p273 = pnand %p271, %p272
    %p274 = pneg %p273
    // Predicated region
    $region41: #{_lambda_.14} parent=5 // pred_check
      _
    $region42: #{_lambda_.14} parent=5 // pred_check_branch
      %276 = sbr.rel (%p273) target = $region44
    $region43: #{_lambda_.14} parent=5 // pred_region
      %s277 = ssub.s32 %s12, 1
      %p278 = scmp.lt.s32.totalorder %s21, 1
      %s279 = scalar_select %p278, %s21, 1
      %p280 = scmp.lt.s32.totalorder %s22, 9
      %s281 = scalar_select %p280, %s22, 9
      %s282 = smul.addr %s281, 2
      %s283 = smul.addr %s279, 20
      %s284 = sadd.s32 %s282, %s283
      %s285 = smul.addr %s284, 4
      %s286 = scalar_lea.vmem %s0, %s285
      %p287 = pneg %p52
      %p288 = pneg %p49
      %s289 = sadd.s32 %s22, 1
      %p290 = scmp.lt.s32.totalorder %s21, 1
      %s291 = scalar_select %p290, %s21, 1
      %p292 = scmp.lt.s32.totalorder %s289, 9
      %s293 = scalar_select %p292, %s289, 9
      %s294 = smul.addr %s293, 2
      %s295 = smul.addr %s291, 20
      %s296 = sadd.s32 %s294, %s295
      %s297 = smul.addr %s296, 4
      %s298 = scalar_lea.vmem %s1, %s297
      %p299 = pneg %p82
      %p300 = pneg %p79
      %s301 = sadd.s32 %s22, 2
      %p302 = scmp.lt.s32.totalorder %s21, 1
      %s303 = scalar_select %p302, %s21, 1
      %p304 = scmp.lt.s32.totalorder %s301, 9
      %s305 = scalar_select %p304, %s301, 9
      %s306 = smul.addr %s305, 2
      %s307 = smul.addr %s303, 20
      %s308 = sadd.s32 %s306, %s307
      %s309 = smul.addr %s308, 4
      %s310 = scalar_lea.vmem %s2, %s309
      %p311 = pneg %p112
      %p312 = pneg %p109
      %p313 = pneg %p133
      %p314 = pneg %p130
      %p315 = pneg %p154
      %p316 = pneg %p151
      %p317 = pneg %p175
      %p318 = pneg %p172
      %p319 = pneg %p203
      %p320 = pneg %p200
      %p321 = scmp.lt.s32.totalorder %s21, 1
      %s322 = scalar_select %p321, %s21, 1
      %p323 = scmp.lt.s32.totalorder %s22, 7
      %s324 = scalar_select %p323, %s22, 7
      %s325 = smul.addr %s322, 8
      %s326 = sadd.s32 %s324, %s325
      %s327 = smul.addr %s326, 4
      %s328 = scalar_lea.vmem %s6, %s327
      %p329 = scmp.lt.s32.totalorder %s21, 1
      %s330 = scalar_select %p329, %s21, 1
      %p331 = scmp.lt.s32.totalorder %s22, 9
      %s332 = scalar_select %p331, %s22, 9
      %s333 = smul.addr %s332, 2
      %s334 = smul.addr %s330, 20
      %s335 = sadd.s32 %s333, %s334
      %s336 = smul.addr %s335, 4
      %s337 = scalar_lea.vmem %s0, %s336
      %s338 = sadd.s32 %s22, 1
      %p339 = scmp.lt.s32.totalorder %s21, 1
      %s340 = scalar_select %p339, %s21, 1
      %p341 = scmp.lt.s32.totalorder %s338, 9
      %s342 = scalar_select %p341, %s338, 9
      %s343 = smul.addr %s342, 2
      %s344 = smul.addr %s340, 20
      %s345 = sadd.s32 %s343, %s344
      %s346 = smul.addr %s345, 4
      %s347 = scalar_lea.vmem %s1, %s346
      %s348 = sadd.s32 %s22, 1
      %s349 = sadd.s32 %s22, 2
      %p350 = scmp.lt.s32.totalorder %s21, 1
      %s351 = scalar_select %p350, %s21, 1
      %p352 = scmp.lt.s32.totalorder %s349, 9
      %s353 = scalar_select %p352, %s349, 9
      %s354 = smul.addr %s353, 2
      %s355 = smul.addr %s351, 20
      %s356 = sadd.s32 %s354, %s355
      %s357 = smul.addr %s356, 4
      %s358 = scalar_lea.vmem %s2, %s357
      %s359 = sadd.s32 %s22, 2
      %p360 = scmp.lt.s32.totalorder %s21, 1
      %s361 = scalar_select %p360, %s21, 1
      %p362 = scmp.lt.s32.totalorder %s22, 7
      %s363 = scalar_select %p362, %s22, 7
      %s364 = smul.addr %s361, 8
      %s365 = sadd.s32 %s363, %s364
      %s366 = smul.addr %s365, 4
      %s367 = scalar_lea.vmem %s6, %s366
      %v368 = vld [vmem:[%s337] sm:$0xf]
      %v369 = vld [vmem:[%s337 + $0x4] sm:$0x1]
      %v370 = vld [vmem:[%s3] sm:$0xf]
      %v371 = vld [vmem:[%s3 + $0x4] sm:$0xf]
      %v372 = vld [vmem:[%s3 + $0x8] sm:$0xf]
      %v373 = vld [vmem:[%s3 + $0xc] sm:$0xf]
      %v374 = vld [vmem:[%s3 + $0x10] sm:$0xf]
      %v375 = vld [vmem:[%s3 + $0x14] sm:$0xf]
      %v376 = vld [vmem:[%s3 + $0x18] sm:$0xf]
      %v377 = vld [vmem:[%s3 + $0x1c] sm:$0xf]
      %v378 = vld [vmem:[%s3 + $0x20] sm:$0xf]
      %v379 = vld [vmem:[%s3 + $0x24] sm:$0xf]
      %v380 = vld [vmem:[%s3 + $0x28] sm:$0xf]
      %v381 = vld [vmem:[%s3 + $0x2c] sm:$0xf]
      %v382 = vld [vmem:[%s3 + $0x30] sm:$0xf]
      %v383 = vld [vmem:[%s3 + $0x34] sm:$0xf]
      %v384 = vld [vmem:[%s3 + $0x38] sm:$0xf]
      %v385 = vld [vmem:[%s3 + $0x3c] sm:$0xf]
      %s386 = scalar_lea.vmem %s3, 64
      %v387 = vld [vmem:[%s386] sm:$0xf]
      %v388 = vld [vmem:[%s386 + $0x4] sm:$0xf]
      %v389 = vld [vmem:[%s386 + $0x8] sm:$0xf]
      %v390 = vld [vmem:[%s386 + $0xc] sm:$0xf]
      %v391 = vld [vmem:[%s386 + $0x10] sm:$0xf]
      %v392 = vld [vmem:[%s386 + $0x14] sm:$0xf]
      %v393 = vld [vmem:[%s386 + $0x18] sm:$0xf]
      %v394 = vld [vmem:[%s386 + $0x1c] sm:$0xf]
      %v395 = vld [vmem:[%s386 + $0x20] sm:$0xf]
      %v396 = vld [vmem:[%s386 + $0x24] sm:$0xf]
      %v397 = vld [vmem:[%s386 + $0x28] sm:$0xf]
      %v398 = vld [vmem:[%s386 + $0x2c] sm:$0xf]
      %v399 = vld [vmem:[%s386 + $0x30] sm:$0xf]
      %v400 = vld [vmem:[%s386 + $0x34] sm:$0xf]
      %v401 = vld [vmem:[%s386 + $0x38] sm:$0xf]
      %v402 = vld [vmem:[%s386 + $0x3c] sm:$0xf]
      %v405 = vunpack.c.l.b16 %v368
      %v406 = vunpack.c.l.b16 %v369
      %v407 = vpack.c.b16 %v406, %v405
      %v409 = vshrl.u32 %v407, 16
      %v411 = vshll.u32 %v407, 16
      %v413 = vrot.slane %v411, 1
      %v414 = vor.u32 %v409, %v413
      %v432 = vunpack.c.l.b16 %v387
      %v433 = vunpack.c.l.b16 %v388
      %v434 = vunpack.c.l.b16 %v389
      %v435 = vunpack.c.l.b16 %v390
      %v436 = vunpack.c.l.b16 %v391
      %v437 = vunpack.c.l.b16 %v392
      %v438 = vunpack.c.l.b16 %v393
      %v439 = vunpack.c.l.b16 %v394
      %v440 = vunpack.c.l.b16 %v395
      %v441 = vunpack.c.l.b16 %v396
      %v442 = vunpack.c.l.b16 %v397
      %v443 = vunpack.c.l.b16 %v398
      %v444 = vunpack.c.l.b16 %v399
      %v445 = vunpack.c.l.b16 %v400
      %v446 = vunpack.c.l.b16 %v401
      %v447 = vunpack.c.l.b16 %v402
      %v448 = vpack.c.b16 %v433, %v432
      %v449 = vpack.c.b16 %v435, %v434
      %v450 = vpack.c.b16 %v437, %v436
      %v451 = vpack.c.b16 %v439, %v438
      %v452 = vpack.c.b16 %v441, %v440
      %v453 = vpack.c.b16 %v443, %v442
      %v454 = vpack.c.b16 %v445, %v444
      %v455 = vpack.c.b16 %v447, %v446
      %464 = vmatpush.bf16.msra.mxu0 %v455
      %465 = vmatpush.bf16.msra.mxu0 %v454
      %466 = vmatpush.bf16.msra.mxu0 %v453
      %467 = vmatpush.bf16.msra.mxu0 %v452
      %468 = vmatpush.bf16.msra.mxu0 %v451
      %469 = vmatpush.bf16.msra.mxu0 %v450
      %470 = vmatpush.bf16.msra.mxu0 %v449
      %471 = vmatpush.bf16.msra.mxu0 %v448
      %472 = vmatmul.bf16.gmra.mxu0 %v414
      %v473 = vpop.f32.mrf.mxu0
      %v474 = vadd.f32 0.0, %v473
      %v475 = vpop.f32.mrf.mxu0
      %476 = vdwg.mxu0
      %v493 = vunpack.c.l.b16 %v370
      %v494 = vunpack.c.l.b16 %v371
      %v495 = vunpack.c.l.b16 %v372
      %v496 = vunpack.c.l.b16 %v373
      %v497 = vunpack.c.l.b16 %v374
      %v498 = vunpack.c.l.b16 %v375
      %v499 = vunpack.c.l.b16 %v376
      %v500 = vunpack.c.l.b16 %v377
      %v501 = vunpack.c.l.b16 %v378
      %v502 = vunpack.c.l.b16 %v379
      %v503 = vunpack.c.l.b16 %v380
      %v504 = vunpack.c.l.b16 %v381
      %v505 = vunpack.c.l.b16 %v382
      %v506 = vunpack.c.l.b16 %v383
      %v507 = vunpack.c.l.b16 %v384
      %v508 = vunpack.c.l.b16 %v385
      %v509 = vpack.c.b16 %v494, %v493
      %v510 = vpack.c.b16 %v496, %v495
      %v511 = vpack.c.b16 %v498, %v497
      %v512 = vpack.c.b16 %v500, %v499
      %v513 = vpack.c.b16 %v502, %v501
      %v514 = vpack.c.b16 %v504, %v503
      %v515 = vpack.c.b16 %v506, %v505
      %v516 = vpack.c.b16 %v508, %v507
      %525 = vmatpush.bf16.msra.mxu0 %v516
      %526 = vmatpush.bf16.msra.mxu0 %v515
      %527 = vmatpush.bf16.msra.mxu0 %v514
      %528 = vmatpush.bf16.msra.mxu0 %v513
      %529 = vmatpush.bf16.msra.mxu0 %v512
      %530 = vmatpush.bf16.msra.mxu0 %v511
      %531 = vmatpush.bf16.msra.mxu0 %v510
      %532 = vmatpush.bf16.msra.mxu0 %v509
      %533 = vmatmul.bf16.gmra.mxu0 %v368
      %v534 = vpop.f32.mrf.mxu0
      %v535 = vadd.f32 %v474, %v534
      %v536 = vpop.f32.mrf.mxu0
      %537 = vdwg.mxu0
      %s538 = scalar_lea.vmem %s3, 128
      %v539 = vld [vmem:[%s538] sm:$0xf]
      %v540 = vld [vmem:[%s538 + $0x4] sm:$0xf]
      %v541 = vld [vmem:[%s538 + $0x8] sm:$0xf]
      %v542 = vld [vmem:[%s538 + $0xc] sm:$0xf]
      %v543 = vld [vmem:[%s538 + $0x10] sm:$0xf]
      %v544 = vld [vmem:[%s538 + $0x14] sm:$0xf]
      %v545 = vld [vmem:[%s538 + $0x18] sm:$0xf]
      %v546 = vld [vmem:[%s538 + $0x1c] sm:$0xf]
      %v547 = vld [vmem:[%s538 + $0x20] sm:$0xf]
      %v548 = vld [vmem:[%s538 + $0x24] sm:$0xf]
      %v549 = vld [vmem:[%s538 + $0x28] sm:$0xf]
      %v550 = vld [vmem:[%s538 + $0x2c] sm:$0xf]
      %v551 = vld [vmem:[%s538 + $0x30] sm:$0xf]
      %v552 = vld [vmem:[%s538 + $0x34] sm:$0xf]
      %v553 = vld [vmem:[%s538 + $0x38] sm:$0xf]
      %v554 = vld [vmem:[%s538 + $0x3c] sm:$0xf]
      %v555 = vrot.slane %v407, 1
      %v573 = vunpack.c.l.b16 %v539
      %v574 = vunpack.c.l.b16 %v540
      %v575 = vunpack.c.l.b16 %v541
      %v576 = vunpack.c.l.b16 %v542
      %v577 = vunpack.c.l.b16 %v543
      %v578 = vunpack.c.l.b16 %v544
      %v579 = vunpack.c.l.b16 %v545
      %v580 = vunpack.c.l.b16 %v546
      %v581 = vunpack.c.l.b16 %v547
      %v582 = vunpack.c.l.b16 %v548
      %v583 = vunpack.c.l.b16 %v549
      %v584 = vunpack.c.l.b16 %v550
      %v585 = vunpack.c.l.b16 %v551
      %v586 = vunpack.c.l.b16 %v552
      %v587 = vunpack.c.l.b16 %v553
      %v588 = vunpack.c.l.b16 %v554
      %v589 = vpack.c.b16 %v574, %v573
      %v590 = vpack.c.b16 %v576, %v575
      %v591 = vpack.c.b16 %v578, %v577
      %v592 = vpack.c.b16 %v580, %v579
      %v593 = vpack.c.b16 %v582, %v581
      %v594 = vpack.c.b16 %v584, %v583
      %v595 = vpack.c.b16 %v586, %v585
      %v596 = vpack.c.b16 %v588, %v587
      %605 = vmatpush.bf16.msra.mxu0 %v596
      %606 = vmatpush.bf16.msra.mxu0 %v595
      %607 = vmatpush.bf16.msra.mxu0 %v594
      %608 = vmatpush.bf16.msra.mxu0 %v593
      %609 = vmatpush.bf16.msra.mxu0 %v592
      %610 = vmatpush.bf16.msra.mxu0 %v591
      %611 = vmatpush.bf16.msra.mxu0 %v590
      %612 = vmatpush.bf16.msra.mxu0 %v589
      %613 = vmatmul.bf16.gmra.mxu0 %v555
      %v614 = vpop.f32.mrf.mxu0
      %v615 = vadd.f32 0.0, %v614
      %v616 = vpop.f32.mrf.mxu0
      %617 = vdwg.mxu0
      %v618 = vadd.f32 %v535, %v615
      %v619 = vld [vmem:[%s347] sm:$0xf]
      %v620 = vld [vmem:[%s347 + $0x4] sm:$0x1]
      %s621 = scalar_lea.vmem %s3, 192
      %v622 = vld [vmem:[%s621] sm:$0xf]
      %v623 = vld [vmem:[%s621 + $0x4] sm:$0xf]
      %v624 = vld [vmem:[%s621 + $0x8] sm:$0xf]
      %v625 = vld [vmem:[%s621 + $0xc] sm:$0xf]
      %v626 = vld [vmem:[%s621 + $0x10] sm:$0xf]
      %v627 = vld [vmem:[%s621 + $0x14] sm:$0xf]
      %v628 = vld [vmem:[%s621 + $0x18] sm:$0xf]
      %v629 = vld [vmem:[%s621 + $0x1c] sm:$0xf]
      %v630 = vld [vmem:[%s621 + $0x20] sm:$0xf]
      %v631 = vld [vmem:[%s621 + $0x24] sm:$0xf]
      %v632 = vld [vmem:[%s621 + $0x28] sm:$0xf]
      %v633 = vld [vmem:[%s621 + $0x2c] sm:$0xf]
      %v634 = vld [vmem:[%s621 + $0x30] sm:$0xf]
      %v635 = vld [vmem:[%s621 + $0x34] sm:$0xf]
      %v636 = vld [vmem:[%s621 + $0x38] sm:$0xf]
      %v637 = vld [vmem:[%s621 + $0x3c] sm:$0xf]
      %v654 = vunpack.c.l.b16 %v622
      %v655 = vunpack.c.l.b16 %v623
      %v656 = vunpack.c.l.b16 %v624
      %v657 = vunpack.c.l.b16 %v625
      %v658 = vunpack.c.l.b16 %v626
      %v659 = vunpack.c.l.b16 %v627
      %v660 = vunpack.c.l.b16 %v628
      %v661 = vunpack.c.l.b16 %v629
      %v662 = vunpack.c.l.b16 %v630
      %v663 = vunpack.c.l.b16 %v631
      %v664 = vunpack.c.l.b16 %v632
      %v665 = vunpack.c.l.b16 %v633
      %v666 = vunpack.c.l.b16 %v634
      %v667 = vunpack.c.l.b16 %v635
      %v668 = vunpack.c.l.b16 %v636
      %v669 = vunpack.c.l.b16 %v637
      %v670 = vpack.c.b16 %v655, %v654
      %v671 = vpack.c.b16 %v657, %v656
      %v672 = vpack.c.b16 %v659, %v658
      %v673 = vpack.c.b16 %v661, %v660
      %v674 = vpack.c.b16 %v663, %v662
      %v675 = vpack.c.b16 %v665, %v664
      %v676 = vpack.c.b16 %v667, %v666
      %v677 = vpack.c.b16 %v669, %v668
      %686 = vmatpush.bf16.msra.mxu0 %v677
      %687 = vmatpush.bf16.msra.mxu0 %v676
      %688 = vmatpush.bf16.msra.mxu0 %v675
      %689 = vmatpush.bf16.msra.mxu0 %v674
      %690 = vmatpush.bf16.msra.mxu0 %v673
      %691 = vmatpush.bf16.msra.mxu0 %v672
      %692 = vmatpush.bf16.msra.mxu0 %v671
      %693 = vmatpush.bf16.msra.mxu0 %v670
      %694 = vmatmul.bf16.gmra.mxu0 %v619
      %v695 = vpop.f32.mrf.mxu0
      %v696 = vadd.f32 0.0, %v695
      %v697 = vpop.f32.mrf.mxu0
      %698 = vdwg.mxu0
      %v699 = vadd.f32 %v618, %v696
      %s700 = scalar_lea.vmem %s3, 256
      %v701 = vld [vmem:[%s700] sm:$0xf]
      %v702 = vld [vmem:[%s700 + $0x4] sm:$0xf]
      %v703 = vld [vmem:[%s700 + $0x8] sm:$0xf]
      %v704 = vld [vmem:[%s700 + $0xc] sm:$0xf]
      %v705 = vld [vmem:[%s700 + $0x10] sm:$0xf]
      %v706 = vld [vmem:[%s700 + $0x14] sm:$0xf]
      %v707 = vld [vmem:[%s700 + $0x18] sm:$0xf]
      %v708 = vld [vmem:[%s700 + $0x1c] sm:$0xf]
      %v709 = vld [vmem:[%s700 + $0x20] sm:$0xf]
      %v710 = vld [vmem:[%s700 + $0x24] sm:$0xf]
      %v711 = vld [vmem:[%s700 + $0x28] sm:$0xf]
      %v712 = vld [vmem:[%s700 + $0x2c] sm:$0xf]
      %v713 = vld [vmem:[%s700 + $0x30] sm:$0xf]
      %v714 = vld [vmem:[%s700 + $0x34] sm:$0xf]
      %v715 = vld [vmem:[%s700 + $0x38] sm:$0xf]
      %v716 = vld [vmem:[%s700 + $0x3c] sm:$0xf]
      %v719 = vunpack.c.l.b16 %v619
      %v720 = vunpack.c.l.b16 %v620
      %v721 = vpack.c.b16 %v720, %v719
      %v723 = vshrl.u32 %v721, 16
      %v725 = vshll.u32 %v721, 16
      %v727 = vrot.slane %v725, 1
      %v728 = vor.u32 %v723, %v727
      %v746 = vunpack.c.l.b16 %v701
      %v747 = vunpack.c.l.b16 %v702
      %v748 = vunpack.c.l.b16 %v703
      %v749 = vunpack.c.l.b16 %v704
      %v750 = vunpack.c.l.b16 %v705
      %v751 = vunpack.c.l.b16 %v706
      %v752 = vunpack.c.l.b16 %v707
      %v753 = vunpack.c.l.b16 %v708
      %v754 = vunpack.c.l.b16 %v709
      %v755 = vunpack.c.l.b16 %v710
      %v756 = vunpack.c.l.b16 %v711
      %v757 = vunpack.c.l.b16 %v712
      %v758 = vunpack.c.l.b16 %v713
      %v759 = vunpack.c.l.b16 %v714
      %v760 = vunpack.c.l.b16 %v715
      %v761 = vunpack.c.l.b16 %v716
      %v762 = vpack.c.b16 %v747, %v746
      %v763 = vpack.c.b16 %v749, %v748
      %v764 = vpack.c.b16 %v751, %v750
      %v765 = vpack.c.b16 %v753, %v752
      %v766 = vpack.c.b16 %v755, %v754
      %v767 = vpack.c.b16 %v757, %v756
      %v768 = vpack.c.b16 %v759, %v758
      %v769 = vpack.c.b16 %v761, %v760
      %778 = vmatpush.bf16.msra.mxu0 %v769
      %779 = vmatpush.bf16.msra.mxu0 %v768
      %780 = vmatpush.bf16.msra.mxu0 %v767
      %781 = vmatpush.bf16.msra.mxu0 %v766
      %782 = vmatpush.bf16.msra.mxu0 %v765
      %783 = vmatpush.bf16.msra.mxu0 %v764
      %784 = vmatpush.bf16.msra.mxu0 %v763
      %785 = vmatpush.bf16.msra.mxu0 %v762
      %786 = vmatmul.bf16.gmra.mxu0 %v728
      %v787 = vpop.f32.mrf.mxu0
      %v788 = vadd.f32 0.0, %v787
      %v789 = vpop.f32.mrf.mxu0
      %790 = vdwg.mxu0
      %v791 = vadd.f32 %v699, %v788
      %s792 = scalar_lea.vmem %s3, 320
      %v793 = vld [vmem:[%s792] sm:$0xf]
      %v794 = vld [vmem:[%s792 + $0x4] sm:$0xf]
      %v795 = vld [vmem:[%s792 + $0x8] sm:$0xf]
      %v796 = vld [vmem:[%s792 + $0xc] sm:$0xf]
      %v797 = vld [vmem:[%s792 + $0x10] sm:$0xf]
      %v798 = vld [vmem:[%s792 + $0x14] sm:$0xf]
      %v799 = vld [vmem:[%s792 + $0x18] sm:$0xf]
      %v800 = vld [vmem:[%s792 + $0x1c] sm:$0xf]
      %v801 = vld [vmem:[%s792 + $0x20] sm:$0xf]
      %v802 = vld [vmem:[%s792 + $0x24] sm:$0xf]
      %v803 = vld [vmem:[%s792 + $0x28] sm:$0xf]
      %v804 = vld [vmem:[%s792 + $0x2c] sm:$0xf]
      %v805 = vld [vmem:[%s792 + $0x30] sm:$0xf]
      %v806 = vld [vmem:[%s792 + $0x34] sm:$0xf]
      %v807 = vld [vmem:[%s792 + $0x38] sm:$0xf]
      %v808 = vld [vmem:[%s792 + $0x3c] sm:$0xf]
      %v809 = vrot.slane %v721, 1
      %v827 = vunpack.c.l.b16 %v793
      %v828 = vunpack.c.l.b16 %v794
      %v829 = vunpack.c.l.b16 %v795
      %v830 = vunpack.c.l.b16 %v796
      %v831 = vunpack.c.l.b16 %v797
      %v832 = vunpack.c.l.b16 %v798
      %v833 = vunpack.c.l.b16 %v799
      %v834 = vunpack.c.l.b16 %v800
      %v835 = vunpack.c.l.b16 %v801
      %v836 = vunpack.c.l.b16 %v802
      %v837 = vunpack.c.l.b16 %v803
      %v838 = vunpack.c.l.b16 %v804
      %v839 = vunpack.c.l.b16 %v805
      %v840 = vunpack.c.l.b16 %v806
      %v841 = vunpack.c.l.b16 %v807
      %v842 = vunpack.c.l.b16 %v808
      %v843 = vpack.c.b16 %v828, %v827
      %v844 = vpack.c.b16 %v830, %v829
      %v845 = vpack.c.b16 %v832, %v831
      %v846 = vpack.c.b16 %v834, %v833
      %v847 = vpack.c.b16 %v836, %v835
      %v848 = vpack.c.b16 %v838, %v837
      %v849 = vpack.c.b16 %v840, %v839
      %v850 = vpack.c.b16 %v842, %v841
      %859 = vmatpush.bf16.msra.mxu0 %v850
      %860 = vmatpush.bf16.msra.mxu0 %v849
      %861 = vmatpush.bf16.msra.mxu0 %v848
      %862 = vmatpush.bf16.msra.mxu0 %v847
      %863 = vmatpush.bf16.msra.mxu0 %v846
      %864 = vmatpush.bf16.msra.mxu0 %v845
      %865 = vmatpush.bf16.msra.mxu0 %v844
      %866 = vmatpush.bf16.msra.mxu0 %v843
      %867 = vmatmul.bf16.gmra.mxu0 %v809
      %v868 = vpop.f32.mrf.mxu0
      %v869 = vadd.f32 0.0, %v868
      %v870 = vpop.f32.mrf.mxu0
      %871 = vdwg.mxu0
      %v872 = vadd.f32 %v791, %v869
      %v873 = vld [vmem:[%s358] sm:$0xf]
      %v874 = vld [vmem:[%s358 + $0x4] sm:$0x1]
      %s875 = scalar_lea.vmem %s3, 384
      %v876 = vld [vmem:[%s875] sm:$0xf]
      %v877 = vld [vmem:[%s875 + $0x4] sm:$0xf]
      %v878 = vld [vmem:[%s875 + $0x8] sm:$0xf]
      %v879 = vld [vmem:[%s875 + $0xc] sm:$0xf]
      %v880 = vld [vmem:[%s875 + $0x10] sm:$0xf]
      %v881 = vld [vmem:[%s875 + $0x14] sm:$0xf]
      %v882 = vld [vmem:[%s875 + $0x18] sm:$0xf]
      %v883 = vld [vmem:[%s875 + $0x1c] sm:$0xf]
      %v884 = vld [vmem:[%s875 + $0x20] sm:$0xf]
      %v885 = vld [vmem:[%s875 + $0x24] sm:$0xf]
      %v886 = vld [vmem:[%s875 + $0x28] sm:$0xf]
      %v887 = vld [vmem:[%s875 + $0x2c] sm:$0xf]
      %v888 = vld [vmem:[%s875 + $0x30] sm:$0xf]
      %v889 = vld [vmem:[%s875 + $0x34] sm:$0xf]
      %v890 = vld [vmem:[%s875 + $0x38] sm:$0xf]
      %v891 = vld [vmem:[%s875 + $0x3c] sm:$0xf]
      %v908 = vunpack.c.l.b16 %v876
      %v909 = vunpack.c.l.b16 %v877
      %v910 = vunpack.c.l.b16 %v878
      %v911 = vunpack.c.l.b16 %v879
      %v912 = vunpack.c.l.b16 %v880
      %v913 = vunpack.c.l.b16 %v881
      %v914 = vunpack.c.l.b16 %v882
      %v915 = vunpack.c.l.b16 %v883
      %v916 = vunpack.c.l.b16 %v884
      %v917 = vunpack.c.l.b16 %v885
      %v918 = vunpack.c.l.b16 %v886
      %v919 = vunpack.c.l.b16 %v887
      %v920 = vunpack.c.l.b16 %v888
      %v921 = vunpack.c.l.b16 %v889
      %v922 = vunpack.c.l.b16 %v890
      %v923 = vunpack.c.l.b16 %v891
      %v924 = vpack.c.b16 %v909, %v908
      %v925 = vpack.c.b16 %v911, %v910
      %v926 = vpack.c.b16 %v913, %v912
      %v927 = vpack.c.b16 %v915, %v914
      %v928 = vpack.c.b16 %v917, %v916
      %v929 = vpack.c.b16 %v919, %v918
      %v930 = vpack.c.b16 %v921, %v920
      %v931 = vpack.c.b16 %v923, %v922
      %940 = vmatpush.bf16.msra.mxu0 %v931
      %941 = vmatpush.bf16.msra.mxu0 %v930
      %942 = vmatpush.bf16.msra.mxu0 %v929
      %943 = vmatpush.bf16.msra.mxu0 %v928
      %944 = vmatpush.bf16.msra.mxu0 %v927
      %945 = vmatpush.bf16.msra.mxu0 %v926
      %946 = vmatpush.bf16.msra.mxu0 %v925
      %947 = vmatpush.bf16.msra.mxu0 %v924
      %948 = vmatmul.bf16.gmra.mxu0 %v873
      %v949 = vpop.f32.mrf.mxu0
      %v950 = vadd.f32 0.0, %v949
      %v951 = vpop.f32.mrf.mxu0
      %952 = vdwg.mxu0
      %v953 = vadd.f32 %v872, %v950
      %s954 = scalar_lea.vmem %s3, 448
      %v955 = vld [vmem:[%s954] sm:$0xf]
      %v956 = vld [vmem:[%s954 + $0x4] sm:$0xf]
      %v957 = vld [vmem:[%s954 + $0x8] sm:$0xf]
      %v958 = vld [vmem:[%s954 + $0xc] sm:$0xf]
      %v959 = vld [vmem:[%s954 + $0x10] sm:$0xf]
      %v960 = vld [vmem:[%s954 + $0x14] sm:$0xf]
      %v961 = vld [vmem:[%s954 + $0x18] sm:$0xf]
      %v962 = vld [vmem:[%s954 + $0x1c] sm:$0xf]
      %v963 = vld [vmem:[%s954 + $0x20] sm:$0xf]
      %v964 = vld [vmem:[%s954 + $0x24] sm:$0xf]
      %v965 = vld [vmem:[%s954 + $0x28] sm:$0xf]
      %v966 = vld [vmem:[%s954 + $0x2c] sm:$0xf]
      %v967 = vld [vmem:[%s954 + $0x30] sm:$0xf]
      %v968 = vld [vmem:[%s954 + $0x34] sm:$0xf]
      %v969 = vld [vmem:[%s954 + $0x38] sm:$0xf]
      %v970 = vld [vmem:[%s954 + $0x3c] sm:$0xf]
      %v973 = vunpack.c.l.b16 %v873
      %v974 = vunpack.c.l.b16 %v874
      %v975 = vpack.c.b16 %v974, %v973
      %v977 = vshrl.u32 %v975, 16
      %v979 = vshll.u32 %v975, 16
      %v981 = vrot.slane %v979, 1
      %v982 = vor.u32 %v977, %v981
      %v1000 = vunpack.c.l.b16 %v955
      %v1001 = vunpack.c.l.b16 %v956
      %v1002 = vunpack.c.l.b16 %v957
      %v1003 = vunpack.c.l.b16 %v958
      %v1004 = vunpack.c.l.b16 %v959
      %v1005 = vunpack.c.l.b16 %v960
      %v1006 = vunpack.c.l.b16 %v961
      %v1007 = vunpack.c.l.b16 %v962
      %v1008 = vunpack.c.l.b16 %v963
      %v1009 = vunpack.c.l.b16 %v964
      %v1010 = vunpack.c.l.b16 %v965
      %v1011 = vunpack.c.l.b16 %v966
      %v1012 = vunpack.c.l.b16 %v967
      %v1013 = vunpack.c.l.b16 %v968
      %v1014 = vunpack.c.l.b16 %v969
      %v1015 = vunpack.c.l.b16 %v970
      %v1016 = vpack.c.b16 %v1001, %v1000
      %v1017 = vpack.c.b16 %v1003, %v1002
      %v1018 = vpack.c.b16 %v1005, %v1004
      %v1019 = vpack.c.b16 %v1007, %v1006
      %v1020 = vpack.c.b16 %v1009, %v1008
      %v1021 = vpack.c.b16 %v1011, %v1010
      %v1022 = vpack.c.b16 %v1013, %v1012
      %v1023 = vpack.c.b16 %v1015, %v1014
      %1032 = vmatpush.bf16.msra.mxu0 %v1023
      %1033 = vmatpush.bf16.msra.mxu0 %v1022
      %1034 = vmatpush.bf16.msra.mxu0 %v1021
      %1035 = vmatpush.bf16.msra.mxu0 %v1020
      %1036 = vmatpush.bf16.msra.mxu0 %v1019
      %1037 = vmatpush.bf16.msra.mxu0 %v1018
      %1038 = vmatpush.bf16.msra.mxu0 %v1017
      %1039 = vmatpush.bf16.msra.mxu0 %v1016
      %1040 = vmatmul.bf16.gmra.mxu0 %v982
      %v1041 = vpop.f32.mrf.mxu0
      %v1042 = vadd.f32 0.0, %v1041
      %v1043 = vpop.f32.mrf.mxu0
      %1044 = vdwg.mxu0
      %v1045 = vadd.f32 %v953, %v1042
      %s1046 = scalar_lea.vmem %s3, 512
      %v1047 = vld [vmem:[%s1046] sm:$0xf]
      %v1048 = vld [vmem:[%s1046 + $0x4] sm:$0xf]
      %v1049 = vld [vmem:[%s1046 + $0x8] sm:$0xf]
      %v1050 = vld [vmem:[%s1046 + $0xc] sm:$0xf]
      %v1051 = vld [vmem:[%s1046 + $0x10] sm:$0xf]
      %v1052 = vld [vmem:[%s1046 + $0x14] sm:$0xf]
      %v1053 = vld [vmem:[%s1046 + $0x18] sm:$0xf]
      %v1054 = vld [vmem:[%s1046 + $0x1c] sm:$0xf]
      %v1055 = vld [vmem:[%s1046 + $0x20] sm:$0xf]
      %v1056 = vld [vmem:[%s1046 + $0x24] sm:$0xf]
      %v1057 = vld [vmem:[%s1046 + $0x28] sm:$0xf]
      %v1058 = vld [vmem:[%s1046 + $0x2c] sm:$0xf]
      %v1059 = vld [vmem:[%s1046 + $0x30] sm:$0xf]
      %v1060 = vld [vmem:[%s1046 + $0x34] sm:$0xf]
      %v1061 = vld [vmem:[%s1046 + $0x38] sm:$0xf]
      %v1062 = vld [vmem:[%s1046 + $0x3c] sm:$0xf]
      %v1063 = vrot.slane %v975, 1
      %v1081 = vunpack.c.l.b16 %v1047
      %v1082 = vunpack.c.l.b16 %v1048
      %v1083 = vunpack.c.l.b16 %v1049
      %v1084 = vunpack.c.l.b16 %v1050
      %v1085 = vunpack.c.l.b16 %v1051
      %v1086 = vunpack.c.l.b16 %v1052
      %v1087 = vunpack.c.l.b16 %v1053
      %v1088 = vunpack.c.l.b16 %v1054
      %v1089 = vunpack.c.l.b16 %v1055
      %v1090 = vunpack.c.l.b16 %v1056
      %v1091 = vunpack.c.l.b16 %v1057
      %v1092 = vunpack.c.l.b16 %v1058
      %v1093 = vunpack.c.l.b16 %v1059
      %v1094 = vunpack.c.l.b16 %v1060
      %v1095 = vunpack.c.l.b16 %v1061
      %v1096 = vunpack.c.l.b16 %v1062
      %v1097 = vpack.c.b16 %v1082, %v1081
      %v1098 = vpack.c.b16 %v1084, %v1083
      %v1099 = vpack.c.b16 %v1086, %v1085
      %v1100 = vpack.c.b16 %v1088, %v1087
      %v1101 = vpack.c.b16 %v1090, %v1089
      %v1102 = vpack.c.b16 %v1092, %v1091
      %v1103 = vpack.c.b16 %v1094, %v1093
      %v1104 = vpack.c.b16 %v1096, %v1095
      %1113 = vmatpush.bf16.msra.mxu0 %v1104
      %1114 = vmatpush.bf16.msra.mxu0 %v1103
      %1115 = vmatpush.bf16.msra.mxu0 %v1102
      %1116 = vmatpush.bf16.msra.mxu0 %v1101
      %1117 = vmatpush.bf16.msra.mxu0 %v1100
      %1118 = vmatpush.bf16.msra.mxu0 %v1099
      %1119 = vmatpush.bf16.msra.mxu0 %v1098
      %1120 = vmatpush.bf16.msra.mxu0 %v1097
      %1121 = vmatmul.bf16.gmra.mxu0 %v1063
      %v1122 = vpop.f32.mrf.mxu0
      %v1123 = vadd.f32 0.0, %v1122
      %v1124 = vpop.f32.mrf.mxu0
      %1125 = vdwg.mxu0
      %v1126 = vadd.f32 %v1045, %v1123
      %v1127 = vld [vmem:[%s4] sm:$0x1]
      %v1129 = vperm.slane %v1127, 0
      %v1131 = vmul.f32 %v1126, %v1129
      %v1132 = vld [vmem:[%s5] sm:$0x1]
      %v1134 = vperm.slane %v1132, 0
      %v1136 = vadd.f32 %v1131, %v1134
      %v1137 = vxor.u32 %v1136, 2147483648
      %v1138 = vmul.f32 %v1137, 1.442695
      %v1139 = vpow.pop %v1138
      %v1140 = vadd.f32 %v1139, 1.0
      %v1141 = vrcp.pop %v1140
      %v1142 = vmul.f32 %v1140, %v1141
      %v1143 = vsub.f32 1.0, %v1142
      %v1144 = vmul.f32 %v1141, %v1143
      %v1145 = vadd.f32 %v1141, %v1144
      %vm1146 = vweird.f32 %v1140
      %vm1147 = vweird.f32 %v1141
      %vm1148 = vmor %vm1146, %vm1147
      %v1149 = vsel %vm1148, %v1141, %v1145
      %v1150 = vand.u32 2147483647, %v1140
      %vm1151 = vcmp.eq.f32.partialorder %v1150, 8.507059e+37
      %v1152 = vand.u32 %v1140, 2147483648
      %v1153 = vor.u32 1.1754944e-38, %v1152
      %v1154 = vsel %vm1151, %v1153, %v1149
      %v1155 = vmul.f32 1.0, %v1154
      %v1156 = vmul.f32 %v1136, %v1155
      %v1157 = vpack.c.bf16 %v1156, %v1156
      %1158 = vst [vmem:[%s367] sm:$0xf] %v1157
      %p1159 = scmp.lt.s32.totalorder %s21, 1
      %s1160 = scalar_select %p1159, %s21, 1
      %p1161 = scmp.lt.s32.totalorder %s22, 7
      %s1162 = scalar_select %p1161, %s22, 7
      %s1163 = smul.addr %s1160, 8
      %s1164 = sadd.s32 %s1162, %s1163
      %s1165 = smul.addr %s1164, 4
      %s1166 = scalar_lea.vmem %s6, %s1165
      // Predicated region
      $region45: #{_lambda_.14} parent=43 // pred_check
        %p1167 = pneg %p200
      $region46: #{_lambda_.14} parent=43 // pred_check_branch
        %1169 = sbr.rel (%p1167) target = $region48
      $region47: #{_lambda_.14} parent=43 // pred_region
        _
      $region48: #{_lambda_.14} parent=43 // pred_fallthru
        _
    $region44: #{_lambda_.14} parent=5 // pred_fallthru
      _
    %p1170 = scmp.le.s32.totalorder 2, %s12
    // Predicated region
    $region49: #{_lambda_.14} parent=5 // pred_check
      %p1171 = pneg %p1170
    $region50: #{_lambda_.14} parent=5 // pred_check_branch
      %1173 = sbr.rel (%p1171) target = $region52
    $region51: #{_lambda_.14} parent=5 // pred_region
      %s1174 = ssub.s32 %s12, 2
      // Predicated region
      $region53: #{_lambda_.14} parent=51 // pred_check
        %p1175 = pneg %p206
      $region54: #{_lambda_.14} parent=51 // pred_check_branch
        %1177 = sbr.rel (%p1175) target = $region56
      $region55: #{_lambda_.14} parent=51 // pred_region
        %p1178 = scmp.lt.s32.totalorder %s23, 1
        %s1179 = scalar_select %p1178, %s23, 1
        %p1180 = scmp.lt.s32.totalorder %s24, 7
        %s1181 = scalar_select %p1180, %s24, 7
        %s1182 = smul.addr %s1179, 8
        %s1183 = sadd.s32 %s1181, %s1182
        %s1184 = smul.addr %s1183, 4
        %s1185 = scalar_lea.vmem %s6, %s1184
      $region56: #{_lambda_.14} parent=51 // pred_fallthru
        _
    $region52: #{_lambda_.14} parent=5 // pred_fallthru
      _
  $region6: #{_lambda_.14} parent=0 // loop_footer
    %s16 = sadd.s32 1, %s12
  $region7: #{_lambda_.14} parent=0 // loop_footer_branch
    %11 = sbr.rel target = $region3
  $region8: #{_lambda_.14} parent=0 // loop_exit
    _

// kernel: _lambda_.17
$region0: #{_lambda_.17}
  #allocation0 [shape = 'u32[]', space=smem, size = 0x4, offset = 0x4, fixed_abs, tag = 'smem constant byte address 0x4 - core index']
  #allocation1 [shape = 'u32[72,128]{1,0:T(1,128)}', space=vmem, size = 0x9000, scoped, tag = 'internal scratch']
  %s0 = inlined_call_operand.vmem [shape: bf16[32,128], index: 0, kind: input, shape index: {}]
  %s1 = inlined_call_operand.vmem [shape: bf16[128,128], index: 1, kind: input, shape index: {}]
  %s2 = inlined_call_operand.vmem [shape: f32[1,128], index: 2, kind: input, shape index: {}]
  %s3 = inlined_call_operand.vmem [shape: f32[1,128], index: 3, kind: input, shape index: {}]
  %s4 = inlined_call_operand.vmem [shape: bf16[32,128], index: 4, kind: output, shape index: {}]
  %s5 = sld [smem:[#allocation0]]
  $region49: #{_lambda_.17} parent=0
    _
  %s7 = ssub.s32 1, %s5
  %s8 = scalar_select 0, %s7, %s5
  loop: start=0, step=1, limit=4
  $region2: #{_lambda_.17} parent=0 // loop_pre_header
    _
  $region3: #{_lambda_.17} parent=0 // loop_header
    %s10 = sphi 0, %s14
    %p11 = scmp.ge.s32.totalorder %s10, 4
    %s20 = sphi 0, %s22
    %s23 = sphi 0, %s20
    %s24 = sphi 0, %s23
    %s40 = sphi 0, %s24
    %s44 = sphi 0, %s44
    %s46 = sphi 0, %s44
    %s47 = sphi 0, %s46
    %s61 = sphi 0, %s47
    %s65 = sphi 0, %s65
    %s67 = sphi 0, %s65
    %s68 = sphi 0, %s67
    %s82 = sphi 0, %s68
    %s86 = sphi 0, %s86
    %s88 = sphi 0, %s86
    %s89 = sphi 0, %s88
    %s103 = sphi 0, %s89
    %s109 = sphi 0, %s111
    %s112 = sphi 0, %s109
    %s113 = sphi 0, %s112
    %s129 = sphi 0, %s113
  $region4: #{_lambda_.17} parent=0 // loop_header_branch
    %13 = sbr.rel (%p11) target = $region8
  $region5: #{_lambda_.17} parent=0 // loop_body
    %s15 = ssub.s32 %s10, 1
    %s16 = ssub.s32 %s10, 2
    %s17 = sadd.s32 %s10, 1
    %s18 = ssub.s32 %s10, %s17
    %p19 = scmp.eq.s32.totalorder %s18, 0
    %s21 = sadd.s32 %s20, 1
    %s22 = scalar_select %p19, %s20, %s21
    %p25 = pneg %p19
    %p26 = scmp.eq.s32.totalorder %s10, 1
    %p27 = por %p25, %p26
    %p28 = scmp.ne.s32.totalorder %s20, %s23
    %p29 = scmp.eq.s32.totalorder %s10, 0
    %p30 = por %p28, %p29
    %p31 = scmp.ne.s32.totalorder %s20, %s23
    %p32 = scmp.eq.s32.totalorder %s15, 1
    %p33 = por %p31, %p32
    %p34 = scmp.ne.s32.totalorder %s23, %s24
    %p35 = scmp.eq.s32.totalorder %s15, 0
    %p36 = por %p34, %p35
    %p37 = scmp.ne.s32.totalorder %s23, %s24
    %p38 = scmp.eq.s32.totalorder %s16, 1
    %p39 = por %p37, %p38
    %p41 = scmp.ne.s32.totalorder %s24, %s40
    %p42 = scmp.eq.s32.totalorder %s16, 0
    %p43 = por %p41, %p42
    %s45 = sadd.s32 %s44, 1
    %p48 = scmp.eq.s32.totalorder %s10, 1
    %p49 = scmp.ne.s32.totalorder %s44, %s46
    %p50 = scmp.eq.s32.totalorder %s10, 0
    %p51 = por %p49, %p50
    %p52 = scmp.ne.s32.totalorder %s44, %s46
    %p53 = scmp.eq.s32.totalorder %s15, 1
    %p54 = por %p52, %p53
    %p55 = scmp.ne.s32.totalorder %s46, %s47
    %p56 = scmp.eq.s32.totalorder %s15, 0
    %p57 = por %p55, %p56
    %p58 = scmp.ne.s32.totalorder %s46, %s47
    %p59 = scmp.eq.s32.totalorder %s16, 1
    %p60 = por %p58, %p59
    %p62 = scmp.ne.s32.totalorder %s47, %s61
    %p63 = scmp.eq.s32.totalorder %s16, 0
    %p64 = por %p62, %p63
    %s66 = sadd.s32 %s65, 1
    %p69 = scmp.eq.s32.totalorder %s10, 1
    %p70 = scmp.ne.s32.totalorder %s65, %s67
    %p71 = scmp.eq.s32.totalorder %s10, 0
    %p72 = por %p70, %p71
    %p73 = scmp.ne.s32.totalorder %s65, %s67
    %p74 = scmp.eq.s32.totalorder %s15, 1
    %p75 = por %p73, %p74
    %p76 = scmp.ne.s32.totalorder %s67, %s68
    %p77 = scmp.eq.s32.totalorder %s15, 0
    %p78 = por %p76, %p77
    %p79 = scmp.ne.s32.totalorder %s67, %s68
    %p80 = scmp.eq.s32.totalorder %s16, 1
    %p81 = por %p79, %p80
    %p83 = scmp.ne.s32.totalorder %s68, %s82
    %p84 = scmp.eq.s32.totalorder %s16, 0
    %p85 = por %p83, %p84
    %s87 = sadd.s32 %s86, 1
    %p90 = scmp.eq.s32.totalorder %s10, 1
    %p91 = scmp.ne.s32.totalorder %s86, %s88
    %p92 = scmp.eq.s32.totalorder %s10, 0
    %p93 = por %p91, %p92
    %p94 = scmp.ne.s32.totalorder %s86, %s88
    %p95 = scmp.eq.s32.totalorder %s15, 1
    %p96 = por %p94, %p95
    %p97 = scmp.ne.s32.totalorder %s88, %s89
    %p98 = scmp.eq.s32.totalorder %s15, 0
    %p99 = por %p97, %p98
    %p100 = scmp.ne.s32.totalorder %s88, %s89
    %p101 = scmp.eq.s32.totalorder %s16, 1
    %p102 = por %p100, %p101
    %p104 = scmp.ne.s32.totalorder %s89, %s103
    %p105 = scmp.eq.s32.totalorder %s16, 0
    %p106 = por %p104, %p105
    %s107 = ssub.s32 %s10, %s17
    %p108 = scmp.eq.s32.totalorder %s107, 0
    %s110 = sadd.s32 %s109, 1
    %s111 = scalar_select %p108, %s109, %s110
    %p114 = pneg %p108
    %p115 = scmp.eq.s32.totalorder %s10, 1
    %p116 = por %p114, %p115
    %p117 = scmp.ne.s32.totalorder %s109, %s112
    %p118 = scmp.eq.s32.totalorder %s10, 0
    %p119 = por %p117, %p118
    %p120 = scmp.ne.s32.totalorder %s109, %s112
    %p121 = scmp.eq.s32.totalorder %s15, 1
    %p122 = por %p120, %p121
    %p123 = scmp.ne.s32.totalorder %s112, %s113
    %p124 = scmp.eq.s32.totalorder %s15, 0
    %p125 = por %p123, %p124
    %p126 = scmp.ne.s32.totalorder %s112, %s113
    %p127 = scmp.eq.s32.totalorder %s16, 1
    %p128 = por %p126, %p127
    %p130 = scmp.ne.s32.totalorder %s113, %s129
    %p131 = scmp.eq.s32.totalorder %s16, 0
    %p132 = por %p130, %p131
    %p133 = scmp.le.s32.totalorder 1, %s10
    %p134 = scmp.lt.s32.totalorder %s10, 3
    %p135 = pnand %p133, %p134
    %p136 = pneg %p135
    // Predicated region
    $region9: #{_lambda_.17} parent=5 // pred_check
      _
    $region10: #{_lambda_.17} parent=5 // pred_check_branch
      %138 = sbr.rel (%p135) target = $region12
    $region11: #{_lambda_.17} parent=5 // pred_region
      %s139 = ssub.s32 %s10, 1
      // Predicated region
      $region13: #{_lambda_.17} parent=11 // pred_check
        %p140 = pneg %p57
      $region14: #{_lambda_.17} parent=11 // pred_check_branch
        %142 = sbr.rel (%p140) target = $region16
      $region15: #{_lambda_.17} parent=11 // pred_region
        _
      $region16: #{_lambda_.17} parent=11 // pred_fallthru
        _
      // Predicated region
      $region17: #{_lambda_.17} parent=11 // pred_check
        %p143 = pneg %p78
      $region18: #{_lambda_.17} parent=11 // pred_check_branch
        %145 = sbr.rel (%p143) target = $region20
      $region19: #{_lambda_.17} parent=11 // pred_region
        _
      $region20: #{_lambda_.17} parent=11 // pred_fallthru
        _
      // Predicated region
      $region21: #{_lambda_.17} parent=11 // pred_check
        %p146 = pneg %p99
      $region22: #{_lambda_.17} parent=11 // pred_check_branch
        %148 = sbr.rel (%p146) target = $region24
      $region23: #{_lambda_.17} parent=11 // pred_region
        _
      $region24: #{_lambda_.17} parent=11 // pred_fallthru
        _
    $region12: #{_lambda_.17} parent=5 // pred_fallthru
      _
    %p149 = scmp.lt.s32.totalorder %s10, 2
    // Predicated region
    $region25: #{_lambda_.17} parent=5 // pred_check
      %p150 = pneg %p149
    $region26: #{_lambda_.17} parent=5 // pred_check_branch
      %152 = sbr.rel (%p150) target = $region28
    $region27: #{_lambda_.17} parent=5 // pred_region
      // Predicated region
      $region29: #{_lambda_.17} parent=27 // pred_check
        %p153 = pneg %p30
      $region30: #{_lambda_.17} parent=27 // pred_check_branch
        %155 = sbr.rel (%p153) target = $region32
      $region31: #{_lambda_.17} parent=27 // pred_region
        %s156 = smul.u32 2, %s10
        %p157 = scmp.lt.s32.totalorder %s156, 3
        %s158 = scalar_select %p157, %s156, 3
        %s159 = smul.addr %s158, 4
        %s160 = scalar_lea.vmem %s0, %s159
        %s161 = smul.u32 2, %s10
      $region32: #{_lambda_.17} parent=27 // pred_fallthru
        _
    $region28: #{_lambda_.17} parent=5 // pred_fallthru
      _
    %p162 = scmp.le.s32.totalorder 1, %s10
    %p163 = scmp.lt.s32.totalorder %s10, 3
    %p164 = pnand %p162, %p163
    %p165 = pneg %p164
    // Predicated region
    $region33: #{_lambda_.17} parent=5 // pred_check
      _
    $region34: #{_lambda_.17} parent=5 // pred_check_branch
      %167 = sbr.rel (%p164) target = $region36
    $region35: #{_lambda_.17} parent=5 // pred_region
      %s168 = ssub.s32 %s10, 1
      %s169 = smul.u32 2, %s15
      %p170 = scmp.lt.s32.totalorder %s169, 3
      %s171 = scalar_select %p170, %s169, 3
      %s172 = smul.addr %s171, 4
      %s173 = scalar_lea.vmem %s0, %s172
      %p174 = pneg %p36
      %p175 = pneg %p33
      %p176 = pneg %p57
      %p177 = pneg %p54
      %p178 = pneg %p78
      %p179 = pneg %p75
      %p180 = pneg %p99
      %p181 = pneg %p96
      %p182 = pneg %p125
      %p183 = pneg %p122
      %s184 = smul.u32 2, %s15
      %p185 = scmp.lt.s32.totalorder %s184, 3
      %s186 = scalar_select %p185, %s184, 3
      %s187 = smul.addr %s186, 4
      %s188 = scalar_lea.vmem %s4, %s187
      %s189 = smul.u32 2, %s15
      %p190 = scmp.lt.s32.totalorder %s189, 3
      %s191 = scalar_select %p190, %s189, 3
      %s192 = smul.addr %s191, 4
      %s193 = scalar_lea.vmem %s0, %s192
      %s194 = smul.u32 2, %s15
      %s195 = smul.u32 2, %s15
      %p196 = scmp.lt.s32.totalorder %s195, 3
      %s197 = scalar_select %p196, %s195, 3
      %s198 = smul.addr %s197, 4
      %s199 = scalar_lea.vmem %s4, %s198
      %s200 = smul.u32 2, %s15
      %v201 = vld [vmem:[%s193] sm:$0xf]
      %v202 = vld [vmem:[%s193 + $0x4] sm:$0xf]
      %v203 = vld [vmem:[%s1] sm:$0xf]
      %v204 = vld [vmem:[%s1 + $0x4] sm:$0xf]
      %v205 = vld [vmem:[%s1 + $0x8] sm:$0xf]
      %v206 = vld [vmem:[%s1 + $0xc] sm:$0xf]
      %v207 = vld [vmem:[%s1 + $0x10] sm:$0xf]
      %v208 = vld [vmem:[%s1 + $0x14] sm:$0xf]
      %v209 = vld [vmem:[%s1 + $0x18] sm:$0xf]
      %v210 = vld [vmem:[%s1 + $0x1c] sm:$0xf]
      %v211 = vld [vmem:[%s1 + $0x20] sm:$0xf]
      %v212 = vld [vmem:[%s1 + $0x24] sm:$0xf]
      %v213 = vld [vmem:[%s1 + $0x28] sm:$0xf]
      %v214 = vld [vmem:[%s1 + $0x2c] sm:$0xf]
      %v215 = vld [vmem:[%s1 + $0x30] sm:$0xf]
      %v216 = vld [vmem:[%s1 + $0x34] sm:$0xf]
      %v217 = vld [vmem:[%s1 + $0x38] sm:$0xf]
      %v218 = vld [vmem:[%s1 + $0x3c] sm:$0xf]
      %v221 = vunpack.c.l.b16 %v201
      %v222 = vunpack.c.l.b16 %v202
      %v223 = vpack.c.b16 %v222, %v221
      %v241 = vunpack.c.l.b16 %v203
      %v242 = vunpack.c.l.b16 %v204
      %v243 = vunpack.c.l.b16 %v205
      %v244 = vunpack.c.l.b16 %v206
      %v245 = vunpack.c.l.b16 %v207
      %v246 = vunpack.c.l.b16 %v208
      %v247 = vunpack.c.l.b16 %v209
      %v248 = vunpack.c.l.b16 %v210
      %v249 = vunpack.c.l.b16 %v211
      %v250 = vunpack.c.l.b16 %v212
      %v251 = vunpack.c.l.b16 %v213
      %v252 = vunpack.c.l.b16 %v214
      %v253 = vunpack.c.l.b16 %v215
      %v254 = vunpack.c.l.b16 %v216
      %v255 = vunpack.c.l.b16 %v217
      %v256 = vunpack.c.l.b16 %v218
      %v257 = vpack.c.b16 %v242, %v241
      %v258 = vpack.c.b16 %v244, %v243
      %v259 = vpack.c.b16 %v246, %v245
      %v260 = vpack.c.b16 %v248, %v247
      %v261 = vpack.c.b16 %v250, %v249
      %v262 = vpack.c.b16 %v252, %v251
      %v263 = vpack.c.b16 %v254, %v253
      %v264 = vpack.c.b16 %v256, %v255
      %273 = vmatpush.bf16.msra.mxu0 %v264
      %274 = vmatpush.bf16.msra.mxu0 %v263
      %275 = vmatpush.bf16.msra.mxu0 %v262
      %276 = vmatpush.bf16.msra.mxu0 %v261
      %277 = vmatpush.bf16.msra.mxu0 %v260
      %278 = vmatpush.bf16.msra.mxu0 %v259
      %279 = vmatpush.bf16.msra.mxu0 %v258
      %280 = vmatpush.bf16.msra.mxu0 %v257
      %281 = vmatmul.bf16.gmra.mxu0 %v223
      %v282 = vpop.f32.mrf.mxu0
      %v283 = vadd.f32 0.0, %v282
      %v284 = vpop.f32.mrf.mxu0
      %v285 = vadd.f32 0.0, %v284
      %286 = vdwg.mxu0
      %v287 = vld [vmem:[%s2] sm:$0x1]
      %v289 = vperm.slane %v287, 0
      %v291 = vmul.f32 %v283, %v289
      %v292 = vmul.f32 %v285, %v289
      %v293 = vld [vmem:[%s3] sm:$0x1]
      %v295 = vperm.slane %v293, 0
      %v297 = vadd.f32 %v291, %v295
      %v298 = vadd.f32 %v292, %v295
      %v299 = vpack.c.bf16 %v297, %v297
      %v300 = vpack.c.bf16 %v298, %v298
      %301 = vst [vmem:[%s199] sm:$0xf] %v299
      %302 = vst [vmem:[%s199 + $0x4] sm:$0xf] %v300
      %s303 = smul.u32 2, %s15
      %p304 = scmp.lt.s32.totalorder %s303, 3
      %s305 = scalar_select %p304, %s303, 3
      %s306 = smul.addr %s305, 4
      %s307 = scalar_lea.vmem %s4, %s306
      // Predicated region
      $region37: #{_lambda_.17} parent=35 // pred_check
        %p308 = pneg %p122
      $region38: #{_lambda_.17} parent=35 // pred_check_branch
        %310 = sbr.rel (%p308) target = $region40
      $region39: #{_lambda_.17} parent=35 // pred_region
        %s311 = smul.u32 2, %s15
      $region40: #{_lambda_.17} parent=35 // pred_fallthru
        _
    $region36: #{_lambda_.17} parent=5 // pred_fallthru
      _
    %p312 = scmp.le.s32.totalorder 2, %s10
    // Predicated region
    $region41: #{_lambda_.17} parent=5 // pred_check
      %p313 = pneg %p312
    $region42: #{_lambda_.17} parent=5 // pred_check_branch
      %315 = sbr.rel (%p313) target = $region44
    $region43: #{_lambda_.17} parent=5 // pred_region
      %s316 = ssub.s32 %s10, 2
      // Predicated region
      $region45: #{_lambda_.17} parent=43 // pred_check
        %p317 = pneg %p128
      $region46: #{_lambda_.17} parent=43 // pred_check_branch
        %319 = sbr.rel (%p317) target = $region48
      $region47: #{_lambda_.17} parent=43 // pred_region
        %s320 = smul.u32 2, %s16
        %p321 = scmp.lt.s32.totalorder %s320, 3
        %s322 = scalar_select %p321, %s320, 3
        %s323 = smul.addr %s322, 4
        %s324 = scalar_lea.vmem %s4, %s323
      $region48: #{_lambda_.17} parent=43 // pred_fallthru
        _
    $region44: #{_lambda_.17} parent=5 // pred_fallthru
      _
  $region6: #{_lambda_.17} parent=0 // loop_footer
    %s14 = sadd.s32 1, %s10
  $region7: #{_lambda_.17} parent=0 // loop_footer_branch
    %9 = sbr.rel target = $region3
  $region8: #{_lambda_.17} parent=0 // loop_exit
    _

// kernel: _lambda_.18
$region0: #{_lambda_.18}
  #allocation0 [shape = 'u32[]', space=smem, size = 0x4, offset = 0x4, fixed_abs, tag = 'smem constant byte address 0x4 - core index']
  #allocation1 [shape = 'u32[72,128]{1,0:T(1,128)}', space=vmem, size = 0x9000, scoped, tag = 'internal scratch']
  %s0 = inlined_call_operand.vmem [shape: bf16[32,128], index: 0, kind: input, shape index: {}]
  %s1 = inlined_call_operand.vmem [shape: bf16[128,128], index: 1, kind: input, shape index: {}]
  %s2 = inlined_call_operand.vmem [shape: f32[1,128], index: 2, kind: input, shape index: {}]
  %s3 = inlined_call_operand.vmem [shape: f32[1,128], index: 3, kind: input, shape index: {}]
  %s4 = inlined_call_operand.vmem [shape: bf16[32,128], index: 4, kind: output, shape index: {}]
  %s5 = sld [smem:[#allocation0]]
  $region49: #{_lambda_.18} parent=0
    _
  %s7 = ssub.s32 1, %s5
  %s8 = scalar_select 0, %s7, %s5
  loop: start=0, step=1, limit=4
  $region2: #{_lambda_.18} parent=0 // loop_pre_header
    _
  $region3: #{_lambda_.18} parent=0 // loop_header
    %s10 = sphi 0, %s14
    %p11 = scmp.ge.s32.totalorder %s10, 4
    %s20 = sphi 0, %s22
    %s23 = sphi 0, %s20
    %s24 = sphi 0, %s23
    %s40 = sphi 0, %s24
    %s44 = sphi 0, %s44
    %s46 = sphi 0, %s44
    %s47 = sphi 0, %s46
    %s61 = sphi 0, %s47
    %s65 = sphi 0, %s65
    %s67 = sphi 0, %s65
    %s68 = sphi 0, %s67
    %s82 = sphi 0, %s68
    %s86 = sphi 0, %s86
    %s88 = sphi 0, %s86
    %s89 = sphi 0, %s88
    %s103 = sphi 0, %s89
    %s109 = sphi 0, %s111
    %s112 = sphi 0, %s109
    %s113 = sphi 0, %s112
    %s129 = sphi 0, %s113
  $region4: #{_lambda_.18} parent=0 // loop_header_branch
    %13 = sbr.rel (%p11) target = $region8
  $region5: #{_lambda_.18} parent=0 // loop_body
    %s15 = ssub.s32 %s10, 1
    %s16 = ssub.s32 %s10, 2
    %s17 = sadd.s32 %s10, 1
    %s18 = ssub.s32 %s10, %s17
    %p19 = scmp.eq.s32.totalorder %s18, 0
    %s21 = sadd.s32 %s20, 1
    %s22 = scalar_select %p19, %s20, %s21
    %p25 = pneg %p19
    %p26 = scmp.eq.s32.totalorder %s10, 1
    %p27 = por %p25, %p26
    %p28 = scmp.ne.s32.totalorder %s20, %s23
    %p29 = scmp.eq.s32.totalorder %s10, 0
    %p30 = por %p28, %p29
    %p31 = scmp.ne.s32.totalorder %s20, %s23
    %p32 = scmp.eq.s32.totalorder %s15, 1
    %p33 = por %p31, %p32
    %p34 = scmp.ne.s32.totalorder %s23, %s24
    %p35 = scmp.eq.s32.totalorder %s15, 0
    %p36 = por %p34, %p35
    %p37 = scmp.ne.s32.totalorder %s23, %s24
    %p38 = scmp.eq.s32.totalorder %s16, 1
    %p39 = por %p37, %p38
    %p41 = scmp.ne.s32.totalorder %s24, %s40
    %p42 = scmp.eq.s32.totalorder %s16, 0
    %p43 = por %p41, %p42
    %s45 = sadd.s32 %s44, 1
    %p48 = scmp.eq.s32.totalorder %s10, 1
    %p49 = scmp.ne.s32.totalorder %s44, %s46
    %p50 = scmp.eq.s32.totalorder %s10, 0
    %p51 = por %p49, %p50
    %p52 = scmp.ne.s32.totalorder %s44, %s46
    %p53 = scmp.eq.s32.totalorder %s15, 1
    %p54 = por %p52, %p53
    %p55 = scmp.ne.s32.totalorder %s46, %s47
    %p56 = scmp.eq.s32.totalorder %s15, 0
    %p57 = por %p55, %p56
    %p58 = scmp.ne.s32.totalorder %s46, %s47
    %p59 = scmp.eq.s32.totalorder %s16, 1
    %p60 = por %p58, %p59
    %p62 = scmp.ne.s32.totalorder %s47, %s61
    %p63 = scmp.eq.s32.totalorder %s16, 0
    %p64 = por %p62, %p63
    %s66 = sadd.s32 %s65, 1
    %p69 = scmp.eq.s32.totalorder %s10, 1
    %p70 = scmp.ne.s32.totalorder %s65, %s67
    %p71 = scmp.eq.s32.totalorder %s10, 0
    %p72 = por %p70, %p71
    %p73 = scmp.ne.s32.totalorder %s65, %s67
    %p74 = scmp.eq.s32.totalorder %s15, 1
    %p75 = por %p73, %p74
    %p76 = scmp.ne.s32.totalorder %s67, %s68
    %p77 = scmp.eq.s32.totalorder %s15, 0
    %p78 = por %p76, %p77
    %p79 = scmp.ne.s32.totalorder %s67, %s68
    %p80 = scmp.eq.s32.totalorder %s16, 1
    %p81 = por %p79, %p80
    %p83 = scmp.ne.s32.totalorder %s68, %s82
    %p84 = scmp.eq.s32.totalorder %s16, 0
    %p85 = por %p83, %p84
    %s87 = sadd.s32 %s86, 1
    %p90 = scmp.eq.s32.totalorder %s10, 1
    %p91 = scmp.ne.s32.totalorder %s86, %s88
    %p92 = scmp.eq.s32.totalorder %s10, 0
    %p93 = por %p91, %p92
    %p94 = scmp.ne.s32.totalorder %s86, %s88
    %p95 = scmp.eq.s32.totalorder %s15, 1
    %p96 = por %p94, %p95
    %p97 = scmp.ne.s32.totalorder %s88, %s89
    %p98 = scmp.eq.s32.totalorder %s15, 0
    %p99 = por %p97, %p98
    %p100 = scmp.ne.s32.totalorder %s88, %s89
    %p101 = scmp.eq.s32.totalorder %s16, 1
    %p102 = por %p100, %p101
    %p104 = scmp.ne.s32.totalorder %s89, %s103
    %p105 = scmp.eq.s32.totalorder %s16, 0
    %p106 = por %p104, %p105
    %s107 = ssub.s32 %s10, %s17
    %p108 = scmp.eq.s32.totalorder %s107, 0
    %s110 = sadd.s32 %s109, 1
    %s111 = scalar_select %p108, %s109, %s110
    %p114 = pneg %p108
    %p115 = scmp.eq.s32.totalorder %s10, 1
    %p116 = por %p114, %p115
    %p117 = scmp.ne.s32.totalorder %s109, %s112
    %p118 = scmp.eq.s32.totalorder %s10, 0
    %p119 = por %p117, %p118
    %p120 = scmp.ne.s32.totalorder %s109, %s112
    %p121 = scmp.eq.s32.totalorder %s15, 1
    %p122 = por %p120, %p121
    %p123 = scmp.ne.s32.totalorder %s112, %s113
    %p124 = scmp.eq.s32.totalorder %s15, 0
    %p125 = por %p123, %p124
    %p126 = scmp.ne.s32.totalorder %s112, %s113
    %p127 = scmp.eq.s32.totalorder %s16, 1
    %p128 = por %p126, %p127
    %p130 = scmp.ne.s32.totalorder %s113, %s129
    %p131 = scmp.eq.s32.totalorder %s16, 0
    %p132 = por %p130, %p131
    %p133 = scmp.le.s32.totalorder 1, %s10
    %p134 = scmp.lt.s32.totalorder %s10, 3
    %p135 = pnand %p133, %p134
    %p136 = pneg %p135
    // Predicated region
    $region9: #{_lambda_.18} parent=5 // pred_check
      _
    $region10: #{_lambda_.18} parent=5 // pred_check_branch
      %138 = sbr.rel (%p135) target = $region12
    $region11: #{_lambda_.18} parent=5 // pred_region
      %s139 = ssub.s32 %s10, 1
      // Predicated region
      $region13: #{_lambda_.18} parent=11 // pred_check
        %p140 = pneg %p57
      $region14: #{_lambda_.18} parent=11 // pred_check_branch
        %142 = sbr.rel (%p140) target = $region16
      $region15: #{_lambda_.18} parent=11 // pred_region
        _
      $region16: #{_lambda_.18} parent=11 // pred_fallthru
        _
      // Predicated region
      $region17: #{_lambda_.18} parent=11 // pred_check
        %p143 = pneg %p78
      $region18: #{_lambda_.18} parent=11 // pred_check_branch
        %145 = sbr.rel (%p143) target = $region20
      $region19: #{_lambda_.18} parent=11 // pred_region
        _
      $region20: #{_lambda_.18} parent=11 // pred_fallthru
        _
      // Predicated region
      $region21: #{_lambda_.18} parent=11 // pred_check
        %p146 = pneg %p99
      $region22: #{_lambda_.18} parent=11 // pred_check_branch
        %148 = sbr.rel (%p146) target = $region24
      $region23: #{_lambda_.18} parent=11 // pred_region
        _
      $region24: #{_lambda_.18} parent=11 // pred_fallthru
        _
    $region12: #{_lambda_.18} parent=5 // pred_fallthru
      _
    %p149 = scmp.lt.s32.totalorder %s10, 2
    // Predicated region
    $region25: #{_lambda_.18} parent=5 // pred_check
      %p150 = pneg %p149
    $region26: #{_lambda_.18} parent=5 // pred_check_branch
      %152 = sbr.rel (%p150) target = $region28
    $region27: #{_lambda_.18} parent=5 // pred_region
      // Predicated region
      $region29: #{_lambda_.18} parent=27 // pred_check
        %p153 = pneg %p30
      $region30: #{_lambda_.18} parent=27 // pred_check_branch
        %155 = sbr.rel (%p153) target = $region32
      $region31: #{_lambda_.18} parent=27 // pred_region
        %s156 = smul.u32 2, %s10
        %p157 = scmp.lt.s32.totalorder %s156, 3
        %s158 = scalar_select %p157, %s156, 3
        %s159 = smul.addr %s158, 4
        %s160 = scalar_lea.vmem %s0, %s159
        %s161 = smul.u32 2, %s10
      $region32: #{_lambda_.18} parent=27 // pred_fallthru
        _
    $region28: #{_lambda_.18} parent=5 // pred_fallthru
      _
    %p162 = scmp.le.s32.totalorder 1, %s10
    %p163 = scmp.lt.s32.totalorder %s10, 3
    %p164 = pnand %p162, %p163
    %p165 = pneg %p164
    // Predicated region
    $region33: #{_lambda_.18} parent=5 // pred_check
      _
    $region34: #{_lambda_.18} parent=5 // pred_check_branch
      %167 = sbr.rel (%p164) target = $region36
    $region35: #{_lambda_.18} parent=5 // pred_region
      %s168 = ssub.s32 %s10, 1
      %s169 = smul.u32 2, %s15
      %p170 = scmp.lt.s32.totalorder %s169, 3
      %s171 = scalar_select %p170, %s169, 3
      %s172 = smul.addr %s171, 4
      %s173 = scalar_lea.vmem %s0, %s172
      %p174 = pneg %p36
      %p175 = pneg %p33
      %p176 = pneg %p57
      %p177 = pneg %p54
      %p178 = pneg %p78
      %p179 = pneg %p75
      %p180 = pneg %p99
      %p181 = pneg %p96
      %p182 = pneg %p125
      %p183 = pneg %p122
      %s184 = smul.u32 2, %s15
      %p185 = scmp.lt.s32.totalorder %s184, 3
      %s186 = scalar_select %p185, %s184, 3
      %s187 = smul.addr %s186, 4
      %s188 = scalar_lea.vmem %s4, %s187
      %s189 = smul.u32 2, %s15
      %p190 = scmp.lt.s32.totalorder %s189, 3
      %s191 = scalar_select %p190, %s189, 3
      %s192 = smul.addr %s191, 4
      %s193 = scalar_lea.vmem %s0, %s192
      %s194 = smul.u32 2, %s15
      %s195 = smul.u32 2, %s15
      %p196 = scmp.lt.s32.totalorder %s195, 3
      %s197 = scalar_select %p196, %s195, 3
      %s198 = smul.addr %s197, 4
      %s199 = scalar_lea.vmem %s4, %s198
      %s200 = smul.u32 2, %s15
      %v201 = vld [vmem:[%s193] sm:$0xf]
      %v202 = vld [vmem:[%s193 + $0x4] sm:$0xf]
      %v203 = vld [vmem:[%s1] sm:$0xf]
      %v204 = vld [vmem:[%s1 + $0x4] sm:$0xf]
      %v205 = vld [vmem:[%s1 + $0x8] sm:$0xf]
      %v206 = vld [vmem:[%s1 + $0xc] sm:$0xf]
      %v207 = vld [vmem:[%s1 + $0x10] sm:$0xf]
      %v208 = vld [vmem:[%s1 + $0x14] sm:$0xf]
      %v209 = vld [vmem:[%s1 + $0x18] sm:$0xf]
      %v210 = vld [vmem:[%s1 + $0x1c] sm:$0xf]
      %v211 = vld [vmem:[%s1 + $0x20] sm:$0xf]
      %v212 = vld [vmem:[%s1 + $0x24] sm:$0xf]
      %v213 = vld [vmem:[%s1 + $0x28] sm:$0xf]
      %v214 = vld [vmem:[%s1 + $0x2c] sm:$0xf]
      %v215 = vld [vmem:[%s1 + $0x30] sm:$0xf]
      %v216 = vld [vmem:[%s1 + $0x34] sm:$0xf]
      %v217 = vld [vmem:[%s1 + $0x38] sm:$0xf]
      %v218 = vld [vmem:[%s1 + $0x3c] sm:$0xf]
      %v221 = vunpack.c.l.b16 %v201
      %v222 = vunpack.c.l.b16 %v202
      %v223 = vpack.c.b16 %v222, %v221
      %v241 = vunpack.c.l.b16 %v203
      %v242 = vunpack.c.l.b16 %v204
      %v243 = vunpack.c.l.b16 %v205
      %v244 = vunpack.c.l.b16 %v206
      %v245 = vunpack.c.l.b16 %v207
      %v246 = vunpack.c.l.b16 %v208
      %v247 = vunpack.c.l.b16 %v209
      %v248 = vunpack.c.l.b16 %v210
      %v249 = vunpack.c.l.b16 %v211
      %v250 = vunpack.c.l.b16 %v212
      %v251 = vunpack.c.l.b16 %v213
      %v252 = vunpack.c.l.b16 %v214
      %v253 = vunpack.c.l.b16 %v215
      %v254 = vunpack.c.l.b16 %v216
      %v255 = vunpack.c.l.b16 %v217
      %v256 = vunpack.c.l.b16 %v218
      %v257 = vpack.c.b16 %v242, %v241
      %v258 = vpack.c.b16 %v244, %v243
      %v259 = vpack.c.b16 %v246, %v245
      %v260 = vpack.c.b16 %v248, %v247
      %v261 = vpack.c.b16 %v250, %v249
      %v262 = vpack.c.b16 %v252, %v251
      %v263 = vpack.c.b16 %v254, %v253
      %v264 = vpack.c.b16 %v256, %v255
      %273 = vmatpush.bf16.msra.mxu0 %v264
      %274 = vmatpush.bf16.msra.mxu0 %v263
      %275 = vmatpush.bf16.msra.mxu0 %v262
      %276 = vmatpush.bf16.msra.mxu0 %v261
      %277 = vmatpush.bf16.msra.mxu0 %v260
      %278 = vmatpush.bf16.msra.mxu0 %v259
      %279 = vmatpush.bf16.msra.mxu0 %v258
      %280 = vmatpush.bf16.msra.mxu0 %v257
      %281 = vmatmul.bf16.gmra.mxu0 %v223
      %v282 = vpop.f32.mrf.mxu0
      %v283 = vadd.f32 0.0, %v282
      %v284 = vpop.f32.mrf.mxu0
      %v285 = vadd.f32 0.0, %v284
      %286 = vdwg.mxu0
      %v287 = vld [vmem:[%s2] sm:$0x1]
      %v289 = vperm.slane %v287, 0
      %v291 = vmul.f32 %v283, %v289
      %v292 = vmul.f32 %v285, %v289
      %v293 = vld [vmem:[%s3] sm:$0x1]
      %v295 = vperm.slane %v293, 0
      %v297 = vadd.f32 %v291, %v295
      %v298 = vadd.f32 %v292, %v295
      %v299 = vxor.u32 %v297, 2147483648
      %v300 = vxor.u32 %v298, 2147483648
      %v301 = vmul.f32 %v299, 1.442695
      %v302 = vpow.pop %v301
      %v303 = vmul.f32 %v300, 1.442695
      %v304 = vpow.pop %v303
      %v305 = vadd.f32 %v302, 1.0
      %v306 = vadd.f32 %v304, 1.0
      %v307 = vrcp.pop %v305
      %v308 = vmul.f32 %v305, %v307
      %v309 = vsub.f32 1.0, %v308
      %v310 = vmul.f32 %v307, %v309
      %v311 = vadd.f32 %v307, %v310
      %vm312 = vweird.f32 %v305
      %vm313 = vweird.f32 %v307
      %vm314 = vmor %vm312, %vm313
      %v315 = vsel %vm314, %v307, %v311
      %v316 = vand.u32 2147483647, %v305
      %vm317 = vcmp.eq.f32.partialorder %v316, 8.507059e+37
      %v318 = vand.u32 %v305, 2147483648
      %v319 = vor.u32 1.1754944e-38, %v318
      %v320 = vsel %vm317, %v319, %v315
      %v321 = vmul.f32 1.0, %v320
      %v322 = vrcp.pop %v306
      %v323 = vmul.f32 %v306, %v322
      %v324 = vsub.f32 1.0, %v323
      %v325 = vmul.f32 %v322, %v324
      %v326 = vadd.f32 %v322, %v325
      %vm327 = vweird.f32 %v306
      %vm328 = vweird.f32 %v322
      %vm329 = vmor %vm327, %vm328
      %v330 = vsel %vm329, %v322, %v326
      %v331 = vand.u32 2147483647, %v306
      %vm332 = vcmp.eq.f32.partialorder %v331, 8.507059e+37
      %v333 = vand.u32 %v306, 2147483648
      %v334 = vor.u32 1.1754944e-38, %v333
      %v335 = vsel %vm332, %v334, %v330
      %v336 = vmul.f32 1.0, %v335
      %v337 = vmul.f32 %v297, %v321
      %v338 = vmul.f32 %v298, %v336
      %v339 = vpack.c.bf16 %v337, %v337
      %v340 = vpack.c.bf16 %v338, %v338
      %341 = vst [vmem:[%s199] sm:$0xf] %v339
      %342 = vst [vmem:[%s199 + $0x4] sm:$0xf] %v340
      %s343 = smul.u32 2, %s15
      %p344 = scmp.lt.s32.totalorder %s343, 3
      %s345 = scalar_select %p344, %s343, 3
      %s346 = smul.addr %s345, 4
      %s347 = scalar_lea.vmem %s4, %s346
      // Predicated region
      $region37: #{_lambda_.18} parent=35 // pred_check
        %p348 = pneg %p122
      $region38: #{_lambda_.18} parent=35 // pred_check_branch
        %350 = sbr.rel (%p348) target = $region40
      $region39: #{_lambda_.18} parent=35 // pred_region
        %s351 = smul.u32 2, %s15
      $region40: #{_lambda_.18} parent=35 // pred_fallthru
        _
    $region36: #{_lambda_.18} parent=5 // pred_fallthru
      _
    %p352 = scmp.le.s32.totalorder 2, %s10
    // Predicated region
    $region41: #{_lambda_.18} parent=5 // pred_check
      %p353 = pneg %p352
    $region42: #{_lambda_.18} parent=5 // pred_check_branch
      %355 = sbr.rel (%p353) target = $region44
    $region43: #{_lambda_.18} parent=5 // pred_region
      %s356 = ssub.s32 %s10, 2
      // Predicated region
      $region45: #{_lambda_.18} parent=43 // pred_check
        %p357 = pneg %p128
      $region46: #{_lambda_.18} parent=43 // pred_check_branch
        %359 = sbr.rel (%p357) target = $region48
      $region47: #{_lambda_.18} parent=43 // pred_region
        %s360 = smul.u32 2, %s16
        %p361 = scmp.lt.s32.totalorder %s360, 3
        %s362 = scalar_select %p361, %s360, 3
        %s363 = smul.addr %s362, 4
        %s364 = scalar_lea.vmem %s4, %s363
      $region48: #{_lambda_.18} parent=43 // pred_fallthru
        _
    $region44: #{_lambda_.18} parent=5 // pred_fallthru
      _
  $region6: #{_lambda_.18} parent=0 // loop_footer
    %s14 = sadd.s32 1, %s10
  $region7: #{_lambda_.18} parent=0 // loop_footer_branch
    %9 = sbr.rel target = $region3
  $region8: #{_lambda_.18} parent=0 // loop_exit
    _

// kernel: _lambda_.16
$region0: #{_lambda_.16}
  #allocation0 [shape = 'u32[]', space=smem, size = 0x4, offset = 0x4, fixed_abs, tag = 'smem constant byte address 0x4 - core index']
  #allocation1 [shape = 'u32[72,128]{1,0:T(1,128)}', space=vmem, size = 0x9000, scoped, tag = 'internal scratch']
  %s0 = inlined_call_operand.vmem [shape: bf16[2,10,5,256], index: 0, kind: input, shape index: {}, may-alias: {0,1,2}]
  %s1 = inlined_call_operand.vmem [shape: bf16[2,10,5,256], index: 1, kind: input, shape index: {}, may-alias: {0,1,2}]
  %s2 = inlined_call_operand.vmem [shape: bf16[2,10,5,256], index: 2, kind: input, shape index: {}, may-alias: {0,1,2}]
  %s3 = inlined_call_operand.vmem [shape: bf16[9,128,128], index: 3, kind: input, shape index: {}]
  %s4 = inlined_call_operand.vmem [shape: f32[1,128], index: 4, kind: input, shape index: {}]
  %s5 = inlined_call_operand.vmem [shape: f32[1,128], index: 5, kind: input, shape index: {}]
  %s6 = inlined_call_operand.vmem [shape: bf16[2,4,4,128], index: 6, kind: output, shape index: {}]
  %s7 = sld [smem:[#allocation0]]
  $region57: #{_lambda_.16} parent=0
    _
  %s9 = ssub.s32 1, %s7
  %s10 = scalar_select 0, %s9, %s7
  loop: start=0, step=1, limit=10
  $region2: #{_lambda_.16} parent=0 // loop_pre_header
    _
  $region3: #{_lambda_.16} parent=0 // loop_header
    %s12 = sphi 0, %s16
    %p13 = scmp.ge.s32.totalorder %s12, 10
    %s19 = sphi 0, %s31
    %s20 = sphi 0, %s27
    %s21 = sphi 0, %s19
    %s22 = sphi 0, %s20
    %s23 = sphi 0, %s21
    %s24 = sphi 0, %s22
    %s38 = sphi 0, %s40
    %s41 = sphi 0, %s38
    %s42 = sphi 0, %s41
    %s58 = sphi 0, %s42
    %s70 = sphi 0, %s72
    %s73 = sphi 0, %s70
    %s74 = sphi 0, %s73
    %s90 = sphi 0, %s74
    %s102 = sphi 0, %s104
    %s105 = sphi 0, %s102
    %s106 = sphi 0, %s105
    %s122 = sphi 0, %s106
    %s126 = sphi 0, %s126
    %s128 = sphi 0, %s126
    %s129 = sphi 0, %s128
    %s143 = sphi 0, %s129
    %s147 = sphi 0, %s147
    %s149 = sphi 0, %s147
    %s150 = sphi 0, %s149
    %s164 = sphi 0, %s150
    %s168 = sphi 0, %s168
    %s170 = sphi 0, %s168
    %s171 = sphi 0, %s170
    %s185 = sphi 0, %s171
    %s193 = sphi 0, %s195
    %s196 = sphi 0, %s193
    %s197 = sphi 0, %s196
    %s213 = sphi 0, %s197
  $region4: #{_lambda_.16} parent=0 // loop_header_branch
    %15 = sbr.rel (%p13) target = $region8
  $region5: #{_lambda_.16} parent=0 // loop_body
    %s17 = ssub.s32 %s12, 1
    %s18 = ssub.s32 %s12, 2
    %s25 = sadd.s32 1, %s20
    %p26 = scmp.ge.s32.totalorder %s25, 4
    %s27 = scalar_select %p26, 0, %s25
    %s28 = sadd.s32 1, %s19
    %s29 = scalar_select %p26, %s28, %s19
    %p30 = scmp.ge.s32.totalorder %s29, 2
    %s31 = scalar_select %p30, 0, %s29
    %s32 = smul.u32 %s20, 2
    %s33 = smul.u32 %s27, 2
    %s34 = ssub.s32 %s19, %s31
    %s35 = ssub.s32 %s32, %s33
    %s36 = sor.u32 %s34, %s35
    %p37 = scmp.eq.s32.totalorder %s36, 0
    %s39 = sadd.s32 %s38, 1
    %s40 = scalar_select %p37, %s38, %s39
    %p43 = pneg %p37
    %p44 = scmp.eq.s32.totalorder %s12, 7
    %p45 = por %p43, %p44
    %p46 = scmp.ne.s32.totalorder %s38, %s41
    %p47 = scmp.eq.s32.totalorder %s12, 0
    %p48 = por %p46, %p47
    %p49 = scmp.ne.s32.totalorder %s38, %s41
    %p50 = scmp.eq.s32.totalorder %s17, 7
    %p51 = por %p49, %p50
    %p52 = scmp.ne.s32.totalorder %s41, %s42
    %p53 = scmp.eq.s32.totalorder %s17, 0
    %p54 = por %p52, %p53
    %p55 = scmp.ne.s32.totalorder %s41, %s42
    %p56 = scmp.eq.s32.totalorder %s18, 7
    %p57 = por %p55, %p56
    %p59 = scmp.ne.s32.totalorder %s42, %s58
    %p60 = scmp.eq.s32.totalorder %s18, 0
    %p61 = por %p59, %p60
    %s62 = smul.u32 %s20, 2
    %s63 = sadd.s32 %s62, 1
    %s64 = smul.u32 %s27, 2
    %s65 = sadd.s32 %s64, 1
    %s66 = ssub.s32 %s19, %s31
    %s67 = ssub.s32 %s63, %s65
    %s68 = sor.u32 %s66, %s67
    %p69 = scmp.eq.s32.totalorder %s68, 0
    %s71 = sadd.s32 %s70, 1
    %s72 = scalar_select %p69, %s70, %s71
    %p75 = pneg %p69
    %p76 = scmp.eq.s32.totalorder %s12, 7
    %p77 = por %p75, %p76
    %p78 = scmp.ne.s32.totalorder %s70, %s73
    %p79 = scmp.eq.s32.totalorder %s12, 0
    %p80 = por %p78, %p79
    %p81 = scmp.ne.s32.totalorder %s70, %s73
    %p82 = scmp.eq.s32.totalorder %s17, 7
    %p83 = por %p81, %p82
    %p84 = scmp.ne.s32.totalorder %s73, %s74
    %p85 = scmp.eq.s32.totalorder %s17, 0
    %p86 = por %p84, %p85
    %p87 = scmp.ne.s32.totalorder %s73, %s74
    %p88 = scmp.eq.s32.totalorder %s18, 7
    %p89 = por %p87, %p88
    %p91 = scmp.ne.s32.totalorder %s74, %s90
    %p92 = scmp.eq.s32.totalorder %s18, 0
    %p93 = por %p91, %p92
    %s94 = smul.u32 %s20, 2
    %s95 = sadd.s32 %s94, 2
    %s96 = smul.u32 %s27, 2
    %s97 = sadd.s32 %s96, 2
    %s98 = ssub.s32 %s19, %s31
    %s99 = ssub.s32 %s95, %s97
    %s100 = sor.u32 %s98, %s99
    %p101 = scmp.eq.s32.totalorder %s100, 0
    %s103 = sadd.s32 %s102, 1
    %s104 = scalar_select %p101, %s102, %s103
    %p107 = pneg %p101
    %p108 = scmp.eq.s32.totalorder %s12, 7
    %p109 = por %p107, %p108
    %p110 = scmp.ne.s32.totalorder %s102, %s105
    %p111 = scmp.eq.s32.totalorder %s12, 0
    %p112 = por %p110, %p111
    %p113 = scmp.ne.s32.totalorder %s102, %s105
    %p114 = scmp.eq.s32.totalorder %s17, 7
    %p115 = por %p113, %p114
    %p116 = scmp.ne.s32.totalorder %s105, %s106
    %p117 = scmp.eq.s32.totalorder %s17, 0
    %p118 = por %p116, %p117
    %p119 = scmp.ne.s32.totalorder %s105, %s106
    %p120 = scmp.eq.s32.totalorder %s18, 7
    %p121 = por %p119, %p120
    %p123 = scmp.ne.s32.totalorder %s106, %s122
    %p124 = scmp.eq.s32.totalorder %s18, 0
    %p125 = por %p123, %p124
    %s127 = sadd.s32 %s126, 1
    %p130 = scmp.eq.s32.totalorder %s12, 7
    %p131 = scmp.ne.s32.totalorder %s126, %s128
    %p132 = scmp.eq.s32.totalorder %s12, 0
    %p133 = por %p131, %p132
    %p134 = scmp.ne.s32.totalorder %s126, %s128
    %p135 = scmp.eq.s32.totalorder %s17, 7
    %p136 = por %p134, %p135
    %p137 = scmp.ne.s32.totalorder %s128, %s129
    %p138 = scmp.eq.s32.totalorder %s17, 0
    %p139 = por %p137, %p138
    %p140 = scmp.ne.s32.totalorder %s128, %s129
    %p141 = scmp.eq.s32.totalorder %s18, 7
    %p142 = por %p140, %p141
    %p144 = scmp.ne.s32.totalorder %s129, %s143
    %p145 = scmp.eq.s32.totalorder %s18, 0
    %p146 = por %p144, %p145
    %s148 = sadd.s32 %s147, 1
    %p151 = scmp.eq.s32.totalorder %s12, 7
    %p152 = scmp.ne.s32.totalorder %s147, %s149
    %p153 = scmp.eq.s32.totalorder %s12, 0
    %p154 = por %p152, %p153
    %p155 = scmp.ne.s32.totalorder %s147, %s149
    %p156 = scmp.eq.s32.totalorder %s17, 7
    %p157 = por %p155, %p156
    %p158 = scmp.ne.s32.totalorder %s149, %s150
    %p159 = scmp.eq.s32.totalorder %s17, 0
    %p160 = por %p158, %p159
    %p161 = scmp.ne.s32.totalorder %s149, %s150
    %p162 = scmp.eq.s32.totalorder %s18, 7
    %p163 = por %p161, %p162
    %p165 = scmp.ne.s32.totalorder %s150, %s164
    %p166 = scmp.eq.s32.totalorder %s18, 0
    %p167 = por %p165, %p166
    %s169 = sadd.s32 %s168, 1
    %p172 = scmp.eq.s32.totalorder %s12, 7
    %p173 = scmp.ne.s32.totalorder %s168, %s170
    %p174 = scmp.eq.s32.totalorder %s12, 0
    %p175 = por %p173, %p174
    %p176 = scmp.ne.s32.totalorder %s168, %s170
    %p177 = scmp.eq.s32.totalorder %s17, 7
    %p178 = por %p176, %p177
    %p179 = scmp.ne.s32.totalorder %s170, %s171
    %p180 = scmp.eq.s32.totalorder %s17, 0
    %p181 = por %p179, %p180
    %p182 = scmp.ne.s32.totalorder %s170, %s171
    %p183 = scmp.eq.s32.totalorder %s18, 7
    %p184 = por %p182, %p183
    %p186 = scmp.ne.s32.totalorder %s171, %s185
    %p187 = scmp.eq.s32.totalorder %s18, 0
    %p188 = por %p186, %p187
    %s189 = ssub.s32 %s19, %s31
    %s190 = ssub.s32 %s20, %s27
    %s191 = sor.u32 %s189, %s190
    %p192 = scmp.eq.s32.totalorder %s191, 0
    %s194 = sadd.s32 %s193, 1
    %s195 = scalar_select %p192, %s193, %s194
    %p198 = pneg %p192
    %p199 = scmp.eq.s32.totalorder %s12, 7
    %p200 = por %p198, %p199
    %p201 = scmp.ne.s32.totalorder %s193, %s196
    %p202 = scmp.eq.s32.totalorder %s12, 0
    %p203 = por %p201, %p202
    %p204 = scmp.ne.s32.totalorder %s193, %s196
    %p205 = scmp.eq.s32.totalorder %s17, 7
    %p206 = por %p204, %p205
    %p207 = scmp.ne.s32.totalorder %s196, %s197
    %p208 = scmp.eq.s32.totalorder %s17, 0
    %p209 = por %p207, %p208
    %p210 = scmp.ne.s32.totalorder %s196, %s197
    %p211 = scmp.eq.s32.totalorder %s18, 7
    %p212 = por %p210, %p211
    %p214 = scmp.ne.s32.totalorder %s197, %s213
    %p215 = scmp.eq.s32.totalorder %s18, 0
    %p216 = por %p214, %p215
    %p217 = scmp.le.s32.totalorder 1, %s12
    %p218 = scmp.lt.s32.totalorder %s12, 9
    %p219 = pnand %p217, %p218
    %p220 = pneg %p219
    // Predicated region
    $region9: #{_lambda_.16} parent=5 // pred_check
      _
    $region10: #{_lambda_.16} parent=5 // pred_check_branch
      %222 = sbr.rel (%p219) target = $region12
    $region11: #{_lambda_.16} parent=5 // pred_region
      %s223 = ssub.s32 %s12, 1
      // Predicated region
      $region13: #{_lambda_.16} parent=11 // pred_check
        %p224 = pneg %p139
      $region14: #{_lambda_.16} parent=11 // pred_check_branch
        %226 = sbr.rel (%p224) target = $region16
      $region15: #{_lambda_.16} parent=11 // pred_region
        _
      $region16: #{_lambda_.16} parent=11 // pred_fallthru
        _
      // Predicated region
      $region17: #{_lambda_.16} parent=11 // pred_check
        %p227 = pneg %p160
      $region18: #{_lambda_.16} parent=11 // pred_check_branch
        %229 = sbr.rel (%p227) target = $region20
      $region19: #{_lambda_.16} parent=11 // pred_region
        _
      $region20: #{_lambda_.16} parent=11 // pred_fallthru
        _
      // Predicated region
      $region21: #{_lambda_.16} parent=11 // pred_check
        %p230 = pneg %p181
      $region22: #{_lambda_.16} parent=11 // pred_check_branch
        %232 = sbr.rel (%p230) target = $region24
      $region23: #{_lambda_.16} parent=11 // pred_region
        _
      $region24: #{_lambda_.16} parent=11 // pred_fallthru
        _
    $region12: #{_lambda_.16} parent=5 // pred_fallthru
      _
    %p233 = scmp.lt.s32.totalorder %s12, 8
    // Predicated region
    $region25: #{_lambda_.16} parent=5 // pred_check
      %p234 = pneg %p233
    $region26: #{_lambda_.16} parent=5 // pred_check_branch
      %236 = sbr.rel (%p234) target = $region28
    $region27: #{_lambda_.16} parent=5 // pred_region
      // Predicated region
      $region29: #{_lambda_.16} parent=27 // pred_check
        %p237 = pneg %p48
      $region30: #{_lambda_.16} parent=27 // pred_check_branch
        %239 = sbr.rel (%p237) target = $region32
      $region31: #{_lambda_.16} parent=27 // pred_region
        %s240 = smul.u32 %s20, 2
        %p241 = scmp.lt.s32.totalorder %s19, 1
        %s242 = scalar_select %p241, %s19, 1
        %p243 = scmp.lt.s32.totalorder %s240, 9
        %s244 = scalar_select %p243, %s240, 9
        %s245 = smul.addr %s244, 2
        %s246 = smul.addr %s242, 20
        %s247 = sadd.s32 %s245, %s246
        %s248 = smul.addr %s247, 4
        %s249 = scalar_lea.vmem %s0, %s248
        %s250 = smul.u32 %s20, 2
      $region32: #{_lambda_.16} parent=27 // pred_fallthru
        _
      // Predicated region
      $region33: #{_lambda_.16} parent=27 // pred_check
        %p251 = pneg %p80
      $region34: #{_lambda_.16} parent=27 // pred_check_branch
        %253 = sbr.rel (%p251) target = $region36
      $region35: #{_lambda_.16} parent=27 // pred_region
        %s254 = smul.u32 %s20, 2
        %s255 = sadd.s32 %s254, 1
        %p256 = scmp.lt.s32.totalorder %s19, 1
        %s257 = scalar_select %p256, %s19, 1
        %p258 = scmp.lt.s32.totalorder %s255, 9
        %s259 = scalar_select %p258, %s255, 9
        %s260 = smul.addr %s259, 2
        %s261 = smul.addr %s257, 20
        %s262 = sadd.s32 %s260, %s261
        %s263 = smul.addr %s262, 4
        %s264 = scalar_lea.vmem %s1, %s263
        %s265 = smul.u32 %s20, 2
        %s266 = sadd.s32 %s265, 1
      $region36: #{_lambda_.16} parent=27 // pred_fallthru
        _
      // Predicated region
      $region37: #{_lambda_.16} parent=27 // pred_check
        %p267 = pneg %p112
      $region38: #{_lambda_.16} parent=27 // pred_check_branch
        %269 = sbr.rel (%p267) target = $region40
      $region39: #{_lambda_.16} parent=27 // pred_region
        %s270 = smul.u32 %s20, 2
        %s271 = sadd.s32 %s270, 2
        %p272 = scmp.lt.s32.totalorder %s19, 1
        %s273 = scalar_select %p272, %s19, 1
        %p274 = scmp.lt.s32.totalorder %s271, 9
        %s275 = scalar_select %p274, %s271, 9
        %s276 = smul.addr %s275, 2
        %s277 = smul.addr %s273, 20
        %s278 = sadd.s32 %s276, %s277
        %s279 = smul.addr %s278, 4
        %s280 = scalar_lea.vmem %s2, %s279
        %s281 = smul.u32 %s20, 2
        %s282 = sadd.s32 %s281, 2
      $region40: #{_lambda_.16} parent=27 // pred_fallthru
        _
    $region28: #{_lambda_.16} parent=5 // pred_fallthru
      _
    %p283 = scmp.le.s32.totalorder 1, %s12
    %p284 = scmp.lt.s32.totalorder %s12, 9
    %p285 = pnand %p283, %p284
    %p286 = pneg %p285
    // Predicated region
    $region41: #{_lambda_.16} parent=5 // pred_check
      _
    $region42: #{_lambda_.16} parent=5 // pred_check_branch
      %288 = sbr.rel (%p285) target = $region44
    $region43: #{_lambda_.16} parent=5 // pred_region
      %s289 = ssub.s32 %s12, 1
      %s290 = smul.u32 %s22, 2
      %p291 = scmp.lt.s32.totalorder %s21, 1
      %s292 = scalar_select %p291, %s21, 1
      %p293 = scmp.lt.s32.totalorder %s290, 9
      %s294 = scalar_select %p293, %s290, 9
      %s295 = smul.addr %s294, 2
      %s296 = smul.addr %s292, 20
      %s297 = sadd.s32 %s295, %s296
      %s298 = smul.addr %s297, 4
      %s299 = scalar_lea.vmem %s0, %s298
      %p300 = pneg %p54
      %p301 = pneg %p51
      %s302 = smul.u32 %s22, 2
      %s303 = sadd.s32 %s302, 1
      %p304 = scmp.lt.s32.totalorder %s21, 1
      %s305 = scalar_select %p304, %s21, 1
      %p306 = scmp.lt.s32.totalorder %s303, 9
      %s307 = scalar_select %p306, %s303, 9
      %s308 = smul.addr %s307, 2
      %s309 = smul.addr %s305, 20
      %s310 = sadd.s32 %s308, %s309
      %s311 = smul.addr %s310, 4
      %s312 = scalar_lea.vmem %s1, %s311
      %p313 = pneg %p86
      %p314 = pneg %p83
      %s315 = smul.u32 %s22, 2
      %s316 = sadd.s32 %s315, 2
      %p317 = scmp.lt.s32.totalorder %s21, 1
      %s318 = scalar_select %p317, %s21, 1
      %p319 = scmp.lt.s32.totalorder %s316, 9
      %s320 = scalar_select %p319, %s316, 9
      %s321 = smul.addr %s320, 2
      %s322 = smul.addr %s318, 20
      %s323 = sadd.s32 %s321, %s322
      %s324 = smul.addr %s323, 4
      %s325 = scalar_lea.vmem %s2, %s324
      %p326 = pneg %p118
      %p327 = pneg %p115
      %p328 = pneg %p139
      %p329 = pneg %p136
      %p330 = pneg %p160
      %p331 = pneg %p157
      %p332 = pneg %p181
      %p333 = pneg %p178
      %p334 = pneg %p209
      %p335 = pneg %p206
      %p336 = scmp.lt.s32.totalorder %s21, 1
      %s337 = scalar_select %p336, %s21, 1
      %p338 = scmp.lt.s32.totalorder %s22, 3
      %s339 = scalar_select %p338, %s22, 3
      %s340 = smul.addr %s337, 4
      %s341 = sadd.s32 %s339, %s340
      %s342 = smul.addr %s341, 2
      %s343 = scalar_lea.vmem %s6, %s342
      %s344 = smul.u32 %s22, 2
      %p345 = scmp.lt.s32.totalorder %s21, 1
      %s346 = scalar_select %p345, %s21, 1
      %p347 = scmp.lt.s32.totalorder %s344, 9
      %s348 = scalar_select %p347, %s344, 9
      %s349 = smul.addr %s348, 2
      %s350 = smul.addr %s346, 20
      %s351 = sadd.s32 %s349, %s350
      %s352 = smul.addr %s351, 4
      %s353 = scalar_lea.vmem %s0, %s352
      %s354 = smul.u32 %s22, 2
      %s355 = smul.u32 %s22, 2
      %s356 = sadd.s32 %s355, 1
      %p357 = scmp.lt.s32.totalorder %s21, 1
      %s358 = scalar_select %p357, %s21, 1
      %p359 = scmp.lt.s32.totalorder %s356, 9
      %s360 = scalar_select %p359, %s356, 9
      %s361 = smul.addr %s360, 2
      %s362 = smul.addr %s358, 20
      %s363 = sadd.s32 %s361, %s362
      %s364 = smul.addr %s363, 4
      %s365 = scalar_lea.vmem %s1, %s364
      %s366 = smul.u32 %s22, 2
      %s367 = sadd.s32 %s366, 1
      %s368 = smul.u32 %s22, 2
      %s369 = sadd.s32 %s368, 2
      %p370 = scmp.lt.s32.totalorder %s21, 1
      %s371 = scalar_select %p370, %s21, 1
      %p372 = scmp.lt.s32.totalorder %s369, 9
      %s373 = scalar_select %p372, %s369, 9
      %s374 = smul.addr %s373, 2
      %s375 = smul.addr %s371, 20
      %s376 = sadd.s32 %s374, %s375
      %s377 = smul.addr %s376, 4
      %s378 = scalar_lea.vmem %s2, %s377
      %s379 = smul.u32 %s22, 2
      %s380 = sadd.s32 %s379, 2
      %p381 = scmp.lt.s32.totalorder %s21, 1
      %s382 = scalar_select %p381, %s21, 1
      %p383 = scmp.lt.s32.totalorder %s22, 3
      %s384 = scalar_select %p383, %s22, 3
      %s385 = smul.addr %s382, 4
      %s386 = sadd.s32 %s384, %s385
      %s387 = smul.addr %s386, 2
      %s388 = scalar_lea.vmem %s6, %s387
      %v389 = vld [vmem:[%s353] sm:$0x77]
      %v390 = vld [vmem:[%s3] sm:$0xf]
      %v391 = vld [vmem:[%s3 + $0x4] sm:$0xf]
      %v392 = vld [vmem:[%s3 + $0x8] sm:$0xf]
      %v393 = vld [vmem:[%s3 + $0xc] sm:$0xf]
      %v394 = vld [vmem:[%s3 + $0x10] sm:$0xf]
      %v395 = vld [vmem:[%s3 + $0x14] sm:$0xf]
      %v396 = vld [vmem:[%s3 + $0x18] sm:$0xf]
      %v397 = vld [vmem:[%s3 + $0x1c] sm:$0xf]
      %v398 = vld [vmem:[%s3 + $0x20] sm:$0xf]
      %v399 = vld [vmem:[%s3 + $0x24] sm:$0xf]
      %v400 = vld [vmem:[%s3 + $0x28] sm:$0xf]
      %v401 = vld [vmem:[%s3 + $0x2c] sm:$0xf]
      %v402 = vld [vmem:[%s3 + $0x30] sm:$0xf]
      %v403 = vld [vmem:[%s3 + $0x34] sm:$0xf]
      %v404 = vld [vmem:[%s3 + $0x38] sm:$0xf]
      %v405 = vld [vmem:[%s3 + $0x3c] sm:$0xf]
      %s406 = scalar_lea.vmem %s3, 64
      %v407 = vld [vmem:[%s406] sm:$0xf]
      %v408 = vld [vmem:[%s406 + $0x4] sm:$0xf]
      %v409 = vld [vmem:[%s406 + $0x8] sm:$0xf]
      %v410 = vld [vmem:[%s406 + $0xc] sm:$0xf]
      %v411 = vld [vmem:[%s406 + $0x10] sm:$0xf]
      %v412 = vld [vmem:[%s406 + $0x14] sm:$0xf]
      %v413 = vld [vmem:[%s406 + $0x18] sm:$0xf]
      %v414 = vld [vmem:[%s406 + $0x1c] sm:$0xf]
      %v415 = vld [vmem:[%s406 + $0x20] sm:$0xf]
      %v416 = vld [vmem:[%s406 + $0x24] sm:$0xf]
      %v417 = vld [vmem:[%s406 + $0x28] sm:$0xf]
      %v418 = vld [vmem:[%s406 + $0x2c] sm:$0xf]
      %v419 = vld [vmem:[%s406 + $0x30] sm:$0xf]
      %v420 = vld [vmem:[%s406 + $0x34] sm:$0xf]
      %v421 = vld [vmem:[%s406 + $0x38] sm:$0xf]
      %v422 = vld [vmem:[%s406 + $0x3c] sm:$0xf]
      %v424 = vunpack.c.h.b16 %v389
      %v425 = vpack.c.b16 %v424, %v424
      %v443 = vunpack.c.l.b16 %v407
      %v444 = vunpack.c.l.b16 %v408
      %v445 = vunpack.c.l.b16 %v409
      %v446 = vunpack.c.l.b16 %v410
      %v447 = vunpack.c.l.b16 %v411
      %v448 = vunpack.c.l.b16 %v412
      %v449 = vunpack.c.l.b16 %v413
      %v450 = vunpack.c.l.b16 %v414
      %v451 = vunpack.c.l.b16 %v415
      %v452 = vunpack.c.l.b16 %v416
      %v453 = vunpack.c.l.b16 %v417
      %v454 = vunpack.c.l.b16 %v418
      %v455 = vunpack.c.l.b16 %v419
      %v456 = vunpack.c.l.b16 %v420
      %v457 = vunpack.c.l.b16 %v421
      %v458 = vunpack.c.l.b16 %v422
      %v459 = vpack.c.b16 %v444, %v443
      %v460 = vpack.c.b16 %v446, %v445
      %v461 = vpack.c.b16 %v448, %v447
      %v462 = vpack.c.b16 %v450, %v449
      %v463 = vpack.c.b16 %v452, %v451
      %v464 = vpack.c.b16 %v454, %v453
      %v465 = vpack.c.b16 %v456, %v455
      %v466 = vpack.c.b16 %v458, %v457
      %475 = vmatpush.bf16.msra.mxu0 %v466
      %476 = vmatpush.bf16.msra.mxu0 %v465
      %477 = vmatpush.bf16.msra.mxu0 %v464
      %478 = vmatpush.bf16.msra.mxu0 %v463
      %479 = vmatpush.bf16.msra.mxu0 %v462
      %480 = vmatpush.bf16.msra.mxu0 %v461
      %481 = vmatpush.bf16.msra.mxu0 %v460
      %482 = vmatpush.bf16.msra.mxu0 %v459
      %483 = vmatmul.bf16.gmra.mxu0 %v425
      %v484 = vpop.f32.mrf.mxu0
      %v485 = vadd.f32 0.0, %v484
      %v486 = vpop.f32.mrf.mxu0
      %487 = vdwg.mxu0
      %v504 = vunpack.c.l.b16 %v390
      %v505 = vunpack.c.l.b16 %v391
      %v506 = vunpack.c.l.b16 %v392
      %v507 = vunpack.c.l.b16 %v393
      %v508 = vunpack.c.l.b16 %v394
      %v509 = vunpack.c.l.b16 %v395
      %v510 = vunpack.c.l.b16 %v396
      %v511 = vunpack.c.l.b16 %v397
      %v512 = vunpack.c.l.b16 %v398
      %v513 = vunpack.c.l.b16 %v399
      %v514 = vunpack.c.l.b16 %v400
      %v515 = vunpack.c.l.b16 %v401
      %v516 = vunpack.c.l.b16 %v402
      %v517 = vunpack.c.l.b16 %v403
      %v518 = vunpack.c.l.b16 %v404
      %v519 = vunpack.c.l.b16 %v405
      %v520 = vpack.c.b16 %v505, %v504
      %v521 = vpack.c.b16 %v507, %v506
      %v522 = vpack.c.b16 %v509, %v508
      %v523 = vpack.c.b16 %v511, %v510
      %v524 = vpack.c.b16 %v513, %v512
      %v525 = vpack.c.b16 %v515, %v514
      %v526 = vpack.c.b16 %v517, %v516
      %v527 = vpack.c.b16 %v519, %v518
      %536 = vmatpush.bf16.msra.mxu0 %v527
      %537 = vmatpush.bf16.msra.mxu0 %v526
      %538 = vmatpush.bf16.msra.mxu0 %v525
      %539 = vmatpush.bf16.msra.mxu0 %v524
      %540 = vmatpush.bf16.msra.mxu0 %v523
      %541 = vmatpush.bf16.msra.mxu0 %v522
      %542 = vmatpush.bf16.msra.mxu0 %v521
      %543 = vmatpush.bf16.msra.mxu0 %v520
      %544 = vmatmul.bf16.gmra.mxu0 %v389
      %v545 = vpop.f32.mrf.mxu0
      %v546 = vadd.f32 %v485, %v545
      %v547 = vpop.f32.mrf.mxu0
      %548 = vdwg.mxu0
      %s549 = scalar_lea.vmem %s3, 128
      %v550 = vld [vmem:[%s549] sm:$0xf]
      %v551 = vld [vmem:[%s549 + $0x4] sm:$0xf]
      %v552 = vld [vmem:[%s549 + $0x8] sm:$0xf]
      %v553 = vld [vmem:[%s549 + $0xc] sm:$0xf]
      %v554 = vld [vmem:[%s549 + $0x10] sm:$0xf]
      %v555 = vld [vmem:[%s549 + $0x14] sm:$0xf]
      %v556 = vld [vmem:[%s549 + $0x18] sm:$0xf]
      %v557 = vld [vmem:[%s549 + $0x1c] sm:$0xf]
      %v558 = vld [vmem:[%s549 + $0x20] sm:$0xf]
      %v559 = vld [vmem:[%s549 + $0x24] sm:$0xf]
      %v560 = vld [vmem:[%s549 + $0x28] sm:$0xf]
      %v561 = vld [vmem:[%s549 + $0x2c] sm:$0xf]
      %v562 = vld [vmem:[%s549 + $0x30] sm:$0xf]
      %v563 = vld [vmem:[%s549 + $0x34] sm:$0xf]
      %v564 = vld [vmem:[%s549 + $0x38] sm:$0xf]
      %v565 = vld [vmem:[%s549 + $0x3c] sm:$0xf]
      %v566 = vunpack.c.l.b16 %v389
      %v567 = vpack.c.b16 %v566, %v566
      %v569 = vshrl.u32 %v567, 16
      %v571 = vshll.u32 %v567, 16
      %v573 = vrot.slane %v571, 1
      %v574 = vor.u32 %v569, %v573
      %v592 = vunpack.c.l.b16 %v550
      %v593 = vunpack.c.l.b16 %v551
      %v594 = vunpack.c.l.b16 %v552
      %v595 = vunpack.c.l.b16 %v553
      %v596 = vunpack.c.l.b16 %v554
      %v597 = vunpack.c.l.b16 %v555
      %v598 = vunpack.c.l.b16 %v556
      %v599 = vunpack.c.l.b16 %v557
      %v600 = vunpack.c.l.b16 %v558
      %v601 = vunpack.c.l.b16 %v559
      %v602 = vunpack.c.l.b16 %v560
      %v603 = vunpack.c.l.b16 %v561
      %v604 = vunpack.c.l.b16 %v562
      %v605 = vunpack.c.l.b16 %v563
      %v606 = vunpack.c.l.b16 %v564
      %v607 = vunpack.c.l.b16 %v565
      %v608 = vpack.c.b16 %v593, %v592
      %v609 = vpack.c.b16 %v595, %v594
      %v610 = vpack.c.b16 %v597, %v596
      %v611 = vpack.c.b16 %v599, %v598
      %v612 = vpack.c.b16 %v601, %v600
      %v613 = vpack.c.b16 %v603, %v602
      %v614 = vpack.c.b16 %v605, %v604
      %v615 = vpack.c.b16 %v607, %v606
      %624 = vmatpush.bf16.msra.mxu0 %v615
      %625 = vmatpush.bf16.msra.mxu0 %v614
      %626 = vmatpush.bf16.msra.mxu0 %v613
      %627 = vmatpush.bf16.msra.mxu0 %v612
      %628 = vmatpush.bf16.msra.mxu0 %v611
      %629 = vmatpush.bf16.msra.mxu0 %v610
      %630 = vmatpush.bf16.msra.mxu0 %v609
      %631 = vmatpush.bf16.msra.mxu0 %v608
      %632 = vmatmul.bf16.gmra.mxu0 %v574
      %v633 = vpop.f32.mrf.mxu0
      %v634 = vadd.f32 0.0, %v633
      %v635 = vpop.f32.mrf.mxu0
      %636 = vdwg.mxu0
      %v637 = vadd.f32 %v546, %v634
      %v638 = vld [vmem:[%s365] sm:$0x77]
      %s639 = scalar_lea.vmem %s3, 192
      %v640 = vld [vmem:[%s639] sm:$0xf]
      %v641 = vld [vmem:[%s639 + $0x4] sm:$0xf]
      %v642 = vld [vmem:[%s639 + $0x8] sm:$0xf]
      %v643 = vld [vmem:[%s639 + $0xc] sm:$0xf]
      %v644 = vld [vmem:[%s639 + $0x10] sm:$0xf]
      %v645 = vld [vmem:[%s639 + $0x14] sm:$0xf]
      %v646 = vld [vmem:[%s639 + $0x18] sm:$0xf]
      %v647 = vld [vmem:[%s639 + $0x1c] sm:$0xf]
      %v648 = vld [vmem:[%s639 + $0x20] sm:$0xf]
      %v649 = vld [vmem:[%s639 + $0x24] sm:$0xf]
      %v650 = vld [vmem:[%s639 + $0x28] sm:$0xf]
      %v651 = vld [vmem:[%s639 + $0x2c] sm:$0xf]
      %v652 = vld [vmem:[%s639 + $0x30] sm:$0xf]
      %v653 = vld [vmem:[%s639 + $0x34] sm:$0xf]
      %v654 = vld [vmem:[%s639 + $0x38] sm:$0xf]
      %v655 = vld [vmem:[%s639 + $0x3c] sm:$0xf]
      %v672 = vunpack.c.l.b16 %v640
      %v673 = vunpack.c.l.b16 %v641
      %v674 = vunpack.c.l.b16 %v642
      %v675 = vunpack.c.l.b16 %v643
      %v676 = vunpack.c.l.b16 %v644
      %v677 = vunpack.c.l.b16 %v645
      %v678 = vunpack.c.l.b16 %v646
      %v679 = vunpack.c.l.b16 %v647
      %v680 = vunpack.c.l.b16 %v648
      %v681 = vunpack.c.l.b16 %v649
      %v682 = vunpack.c.l.b16 %v650
      %v683 = vunpack.c.l.b16 %v651
      %v684 = vunpack.c.l.b16 %v652
      %v685 = vunpack.c.l.b16 %v653
      %v686 = vunpack.c.l.b16 %v654
      %v687 = vunpack.c.l.b16 %v655
      %v688 = vpack.c.b16 %v673, %v672
      %v689 = vpack.c.b16 %v675, %v674
      %v690 = vpack.c.b16 %v677, %v676
      %v691 = vpack.c.b16 %v679, %v678
      %v692 = vpack.c.b16 %v681, %v680
      %v693 = vpack.c.b16 %v683, %v682
      %v694 = vpack.c.b16 %v685, %v684
      %v695 = vpack.c.b16 %v687, %v686
      %704 = vmatpush.bf16.msra.mxu0 %v695
      %705 = vmatpush.bf16.msra.mxu0 %v694
      %706 = vmatpush.bf16.msra.mxu0 %v693
      %707 = vmatpush.bf16.msra.mxu0 %v692
      %708 = vmatpush.bf16.msra.mxu0 %v691
      %709 = vmatpush.bf16.msra.mxu0 %v690
      %710 = vmatpush.bf16.msra.mxu0 %v689
      %711 = vmatpush.bf16.msra.mxu0 %v688
      %712 = vmatmul.bf16.gmra.mxu0 %v638
      %v713 = vpop.f32.mrf.mxu0
      %v714 = vadd.f32 0.0, %v713
      %v715 = vpop.f32.mrf.mxu0
      %716 = vdwg.mxu0
      %v717 = vadd.f32 %v637, %v714
      %s718 = scalar_lea.vmem %s3, 256
      %v719 = vld [vmem:[%s718] sm:$0xf]
      %v720 = vld [vmem:[%s718 + $0x4] sm:$0xf]
      %v721 = vld [vmem:[%s718 + $0x8] sm:$0xf]
      %v722 = vld [vmem:[%s718 + $0xc] sm:$0xf]
      %v723 = vld [vmem:[%s718 + $0x10] sm:$0xf]
      %v724 = vld [vmem:[%s718 + $0x14] sm:$0xf]
      %v725 = vld [vmem:[%s718 + $0x18] sm:$0xf]
      %v726 = vld [vmem:[%s718 + $0x1c] sm:$0xf]
      %v727 = vld [vmem:[%s718 + $0x20] sm:$0xf]
      %v728 = vld [vmem:[%s718 + $0x24] sm:$0xf]
      %v729 = vld [vmem:[%s718 + $0x28] sm:$0xf]
      %v730 = vld [vmem:[%s718 + $0x2c] sm:$0xf]
      %v731 = vld [vmem:[%s718 + $0x30] sm:$0xf]
      %v732 = vld [vmem:[%s718 + $0x34] sm:$0xf]
      %v733 = vld [vmem:[%s718 + $0x38] sm:$0xf]
      %v734 = vld [vmem:[%s718 + $0x3c] sm:$0xf]
      %v736 = vunpack.c.h.b16 %v638
      %v737 = vpack.c.b16 %v736, %v736
      %v755 = vunpack.c.l.b16 %v719
      %v756 = vunpack.c.l.b16 %v720
      %v757 = vunpack.c.l.b16 %v721
      %v758 = vunpack.c.l.b16 %v722
      %v759 = vunpack.c.l.b16 %v723
      %v760 = vunpack.c.l.b16 %v724
      %v761 = vunpack.c.l.b16 %v725
      %v762 = vunpack.c.l.b16 %v726
      %v763 = vunpack.c.l.b16 %v727
      %v764 = vunpack.c.l.b16 %v728
      %v765 = vunpack.c.l.b16 %v729
      %v766 = vunpack.c.l.b16 %v730
      %v767 = vunpack.c.l.b16 %v731
      %v768 = vunpack.c.l.b16 %v732
      %v769 = vunpack.c.l.b16 %v733
      %v770 = vunpack.c.l.b16 %v734
      %v771 = vpack.c.b16 %v756, %v755
      %v772 = vpack.c.b16 %v758, %v757
      %v773 = vpack.c.b16 %v760, %v759
      %v774 = vpack.c.b16 %v762, %v761
      %v775 = vpack.c.b16 %v764, %v763
      %v776 = vpack.c.b16 %v766, %v765
      %v777 = vpack.c.b16 %v768, %v767
      %v778 = vpack.c.b16 %v770, %v769
      %787 = vmatpush.bf16.msra.mxu0 %v778
      %788 = vmatpush.bf16.msra.mxu0 %v777
      %789 = vmatpush.bf16.msra.mxu0 %v776
      %790 = vmatpush.bf16.msra.mxu0 %v775
      %791 = vmatpush.bf16.msra.mxu0 %v774
      %792 = vmatpush.bf16.msra.mxu0 %v773
      %793 = vmatpush.bf16.msra.mxu0 %v772
      %794 = vmatpush.bf16.msra.mxu0 %v771
      %795 = vmatmul.bf16.gmra.mxu0 %v737
      %v796 = vpop.f32.mrf.mxu0
      %v797 = vadd.f32 0.0, %v796
      %v798 = vpop.f32.mrf.mxu0
      %799 = vdwg.mxu0
      %v800 = vadd.f32 %v717, %v797
      %s801 = scalar_lea.vmem %s3, 320
      %v802 = vld [vmem:[%s801] sm:$0xf]
      %v803 = vld [vmem:[%s801 + $0x4] sm:$0xf]
      %v804 = vld [vmem:[%s801 + $0x8] sm:$0xf]
      %v805 = vld [vmem:[%s801 + $0xc] sm:$0xf]
      %v806 = vld [vmem:[%s801 + $0x10] sm:$0xf]
      %v807 = vld [vmem:[%s801 + $0x14] sm:$0xf]
      %v808 = vld [vmem:[%s801 + $0x18] sm:$0xf]
      %v809 = vld [vmem:[%s801 + $0x1c] sm:$0xf]
      %v810 = vld [vmem:[%s801 + $0x20] sm:$0xf]
      %v811 = vld [vmem:[%s801 + $0x24] sm:$0xf]
      %v812 = vld [vmem:[%s801 + $0x28] sm:$0xf]
      %v813 = vld [vmem:[%s801 + $0x2c] sm:$0xf]
      %v814 = vld [vmem:[%s801 + $0x30] sm:$0xf]
      %v815 = vld [vmem:[%s801 + $0x34] sm:$0xf]
      %v816 = vld [vmem:[%s801 + $0x38] sm:$0xf]
      %v817 = vld [vmem:[%s801 + $0x3c] sm:$0xf]
      %v818 = vunpack.c.l.b16 %v638
      %v819 = vpack.c.b16 %v818, %v818
      %v821 = vshrl.u32 %v819, 16
      %v823 = vshll.u32 %v819, 16
      %v825 = vrot.slane %v823, 1
      %v826 = vor.u32 %v821, %v825
      %v844 = vunpack.c.l.b16 %v802
      %v845 = vunpack.c.l.b16 %v803
      %v846 = vunpack.c.l.b16 %v804
      %v847 = vunpack.c.l.b16 %v805
      %v848 = vunpack.c.l.b16 %v806
      %v849 = vunpack.c.l.b16 %v807
      %v850 = vunpack.c.l.b16 %v808
      %v851 = vunpack.c.l.b16 %v809
      %v852 = vunpack.c.l.b16 %v810
      %v853 = vunpack.c.l.b16 %v811
      %v854 = vunpack.c.l.b16 %v812
      %v855 = vunpack.c.l.b16 %v813
      %v856 = vunpack.c.l.b16 %v814
      %v857 = vunpack.c.l.b16 %v815
      %v858 = vunpack.c.l.b16 %v816
      %v859 = vunpack.c.l.b16 %v817
      %v860 = vpack.c.b16 %v845, %v844
      %v861 = vpack.c.b16 %v847, %v846
      %v862 = vpack.c.b16 %v849, %v848
      %v863 = vpack.c.b16 %v851, %v850
      %v864 = vpack.c.b16 %v853, %v852
      %v865 = vpack.c.b16 %v855, %v854
      %v866 = vpack.c.b16 %v857, %v856
      %v867 = vpack.c.b16 %v859, %v858
      %876 = vmatpush.bf16.msra.mxu0 %v867
      %877 = vmatpush.bf16.msra.mxu0 %v866
      %878 = vmatpush.bf16.msra.mxu0 %v865
      %879 = vmatpush.bf16.msra.mxu0 %v864
      %880 = vmatpush.bf16.msra.mxu0 %v863
      %881 = vmatpush.bf16.msra.mxu0 %v862
      %882 = vmatpush.bf16.msra.mxu0 %v861
      %883 = vmatpush.bf16.msra.mxu0 %v860
      %884 = vmatmul.bf16.gmra.mxu0 %v826
      %v885 = vpop.f32.mrf.mxu0
      %v886 = vadd.f32 0.0, %v885
      %v887 = vpop.f32.mrf.mxu0
      %888 = vdwg.mxu0
      %v889 = vadd.f32 %v800, %v886
      %v890 = vld [vmem:[%s378] sm:$0x77]
      %s891 = scalar_lea.vmem %s3, 384
      %v892 = vld [vmem:[%s891] sm:$0xf]
      %v893 = vld [vmem:[%s891 + $0x4] sm:$0xf]
      %v894 = vld [vmem:[%s891 + $0x8] sm:$0xf]
      %v895 = vld [vmem:[%s891 + $0xc] sm:$0xf]
      %v896 = vld [vmem:[%s891 + $0x10] sm:$0xf]
      %v897 = vld [vmem:[%s891 + $0x14] sm:$0xf]
      %v898 = vld [vmem:[%s891 + $0x18] sm:$0xf]
      %v899 = vld [vmem:[%s891 + $0x1c] sm:$0xf]
      %v900 = vld [vmem:[%s891 + $0x20] sm:$0xf]
      %v901 = vld [vmem:[%s891 + $0x24] sm:$0xf]
      %v902 = vld [vmem:[%s891 + $0x28] sm:$0xf]
      %v903 = vld [vmem:[%s891 + $0x2c] sm:$0xf]
      %v904 = vld [vmem:[%s891 + $0x30] sm:$0xf]
      %v905 = vld [vmem:[%s891 + $0x34] sm:$0xf]
      %v906 = vld [vmem:[%s891 + $0x38] sm:$0xf]
      %v907 = vld [vmem:[%s891 + $0x3c] sm:$0xf]
      %v924 = vunpack.c.l.b16 %v892
      %v925 = vunpack.c.l.b16 %v893
      %v926 = vunpack.c.l.b16 %v894
      %v927 = vunpack.c.l.b16 %v895
      %v928 = vunpack.c.l.b16 %v896
      %v929 = vunpack.c.l.b16 %v897
      %v930 = vunpack.c.l.b16 %v898
      %v931 = vunpack.c.l.b16 %v899
      %v932 = vunpack.c.l.b16 %v900
      %v933 = vunpack.c.l.b16 %v901
      %v934 = vunpack.c.l.b16 %v902
      %v935 = vunpack.c.l.b16 %v903
      %v936 = vunpack.c.l.b16 %v904
      %v937 = vunpack.c.l.b16 %v905
      %v938 = vunpack.c.l.b16 %v906
      %v939 = vunpack.c.l.b16 %v907
      %v940 = vpack.c.b16 %v925, %v924
      %v941 = vpack.c.b16 %v927, %v926
      %v942 = vpack.c.b16 %v929, %v928
      %v943 = vpack.c.b16 %v931, %v930
      %v944 = vpack.c.b16 %v933, %v932
      %v945 = vpack.c.b16 %v935, %v934
      %v946 = vpack.c.b16 %v937, %v936
      %v947 = vpack.c.b16 %v939, %v938
      %956 = vmatpush.bf16.msra.mxu0 %v947
      %957 = vmatpush.bf16.msra.mxu0 %v946
      %958 = vmatpush.bf16.msra.mxu0 %v945
      %959 = vmatpush.bf16.msra.mxu0 %v944
      %960 = vmatpush.bf16.msra.mxu0 %v943
      %961 = vmatpush.bf16.msra.mxu0 %v942
      %962 = vmatpush.bf16.msra.mxu0 %v941
      %963 = vmatpush.bf16.msra.mxu0 %v940
      %964 = vmatmul.bf16.gmra.mxu0 %v890
      %v965 = vpop.f32.mrf.mxu0
      %v966 = vadd.f32 0.0, %v965
      %v967 = vpop.f32.mrf.mxu0
      %968 = vdwg.mxu0
      %v969 = vadd.f32 %v889, %v966
      %s970 = scalar_lea.vmem %s3, 448
      %v971 = vld [vmem:[%s970] sm:$0xf]
      %v972 = vld [vmem:[%s970 + $0x4] sm:$0xf]
      %v973 = vld [vmem:[%s970 + $0x8] sm:$0xf]
      %v974 = vld [vmem:[%s970 + $0xc] sm:$0xf]
      %v975 = vld [vmem:[%s970 + $0x10] sm:$0xf]
      %v976 = vld [vmem:[%s970 + $0x14] sm:$0xf]
      %v977 = vld [vmem:[%s970 + $0x18] sm:$0xf]
      %v978 = vld [vmem:[%s970 + $0x1c] sm:$0xf]
      %v979 = vld [vmem:[%s970 + $0x20] sm:$0xf]
      %v980 = vld [vmem:[%s970 + $0x24] sm:$0xf]
      %v981 = vld [vmem:[%s970 + $0x28] sm:$0xf]
      %v982 = vld [vmem:[%s970 + $0x2c] sm:$0xf]
      %v983 = vld [vmem:[%s970 + $0x30] sm:$0xf]
      %v984 = vld [vmem:[%s970 + $0x34] sm:$0xf]
      %v985 = vld [vmem:[%s970 + $0x38] sm:$0xf]
      %v986 = vld [vmem:[%s970 + $0x3c] sm:$0xf]
      %v988 = vunpack.c.h.b16 %v890
      %v989 = vpack.c.b16 %v988, %v988
      %v1007 = vunpack.c.l.b16 %v971
      %v1008 = vunpack.c.l.b16 %v972
      %v1009 = vunpack.c.l.b16 %v973
      %v1010 = vunpack.c.l.b16 %v974
      %v1011 = vunpack.c.l.b16 %v975
      %v1012 = vunpack.c.l.b16 %v976
      %v1013 = vunpack.c.l.b16 %v977
      %v1014 = vunpack.c.l.b16 %v978
      %v1015 = vunpack.c.l.b16 %v979
      %v1016 = vunpack.c.l.b16 %v980
      %v1017 = vunpack.c.l.b16 %v981
      %v1018 = vunpack.c.l.b16 %v982
      %v1019 = vunpack.c.l.b16 %v983
      %v1020 = vunpack.c.l.b16 %v984
      %v1021 = vunpack.c.l.b16 %v985
      %v1022 = vunpack.c.l.b16 %v986
      %v1023 = vpack.c.b16 %v1008, %v1007
      %v1024 = vpack.c.b16 %v1010, %v1009
      %v1025 = vpack.c.b16 %v1012, %v1011
      %v1026 = vpack.c.b16 %v1014, %v1013
      %v1027 = vpack.c.b16 %v1016, %v1015
      %v1028 = vpack.c.b16 %v1018, %v1017
      %v1029 = vpack.c.b16 %v1020, %v1019
      %v1030 = vpack.c.b16 %v1022, %v1021
      %1039 = vmatpush.bf16.msra.mxu0 %v1030
      %1040 = vmatpush.bf16.msra.mxu0 %v1029
      %1041 = vmatpush.bf16.msra.mxu0 %v1028
      %1042 = vmatpush.bf16.msra.mxu0 %v1027
      %1043 = vmatpush.bf16.msra.mxu0 %v1026
      %1044 = vmatpush.bf16.msra.mxu0 %v1025
      %1045 = vmatpush.bf16.msra.mxu0 %v1024
      %1046 = vmatpush.bf16.msra.mxu0 %v1023
      %1047 = vmatmul.bf16.gmra.mxu0 %v989
      %v1048 = vpop.f32.mrf.mxu0
      %v1049 = vadd.f32 0.0, %v1048
      %v1050 = vpop.f32.mrf.mxu0
      %1051 = vdwg.mxu0
      %v1052 = vadd.f32 %v969, %v1049
      %s1053 = scalar_lea.vmem %s3, 512
      %v1054 = vld [vmem:[%s1053] sm:$0xf]
      %v1055 = vld [vmem:[%s1053 + $0x4] sm:$0xf]
      %v1056 = vld [vmem:[%s1053 + $0x8] sm:$0xf]
      %v1057 = vld [vmem:[%s1053 + $0xc] sm:$0xf]
      %v1058 = vld [vmem:[%s1053 + $0x10] sm:$0xf]
      %v1059 = vld [vmem:[%s1053 + $0x14] sm:$0xf]
      %v1060 = vld [vmem:[%s1053 + $0x18] sm:$0xf]
      %v1061 = vld [vmem:[%s1053 + $0x1c] sm:$0xf]
      %v1062 = vld [vmem:[%s1053 + $0x20] sm:$0xf]
      %v1063 = vld [vmem:[%s1053 + $0x24] sm:$0xf]
      %v1064 = vld [vmem:[%s1053 + $0x28] sm:$0xf]
      %v1065 = vld [vmem:[%s1053 + $0x2c] sm:$0xf]
      %v1066 = vld [vmem:[%s1053 + $0x30] sm:$0xf]
      %v1067 = vld [vmem:[%s1053 + $0x34] sm:$0xf]
      %v1068 = vld [vmem:[%s1053 + $0x38] sm:$0xf]
      %v1069 = vld [vmem:[%s1053 + $0x3c] sm:$0xf]
      %v1070 = vunpack.c.l.b16 %v890
      %v1071 = vpack.c.b16 %v1070, %v1070
      %v1073 = vshrl.u32 %v1071, 16
      %v1075 = vshll.u32 %v1071, 16
      %v1077 = vrot.slane %v1075, 1
      %v1078 = vor.u32 %v1073, %v1077
      %v1096 = vunpack.c.l.b16 %v1054
      %v1097 = vunpack.c.l.b16 %v1055
      %v1098 = vunpack.c.l.b16 %v1056
      %v1099 = vunpack.c.l.b16 %v1057
      %v1100 = vunpack.c.l.b16 %v1058
      %v1101 = vunpack.c.l.b16 %v1059
      %v1102 = vunpack.c.l.b16 %v1060
      %v1103 = vunpack.c.l.b16 %v1061
      %v1104 = vunpack.c.l.b16 %v1062
      %v1105 = vunpack.c.l.b16 %v1063
      %v1106 = vunpack.c.l.b16 %v1064
      %v1107 = vunpack.c.l.b16 %v1065
      %v1108 = vunpack.c.l.b16 %v1066
      %v1109 = vunpack.c.l.b16 %v1067
      %v1110 = vunpack.c.l.b16 %v1068
      %v1111 = vunpack.c.l.b16 %v1069
      %v1112 = vpack.c.b16 %v1097, %v1096
      %v1113 = vpack.c.b16 %v1099, %v1098
      %v1114 = vpack.c.b16 %v1101, %v1100
      %v1115 = vpack.c.b16 %v1103, %v1102
      %v1116 = vpack.c.b16 %v1105, %v1104
      %v1117 = vpack.c.b16 %v1107, %v1106
      %v1118 = vpack.c.b16 %v1109, %v1108
      %v1119 = vpack.c.b16 %v1111, %v1110
      %1128 = vmatpush.bf16.msra.mxu0 %v1119
      %1129 = vmatpush.bf16.msra.mxu0 %v1118
      %1130 = vmatpush.bf16.msra.mxu0 %v1117
      %1131 = vmatpush.bf16.msra.mxu0 %v1116
      %1132 = vmatpush.bf16.msra.mxu0 %v1115
      %1133 = vmatpush.bf16.msra.mxu0 %v1114
      %1134 = vmatpush.bf16.msra.mxu0 %v1113
      %1135 = vmatpush.bf16.msra.mxu0 %v1112
      %1136 = vmatmul.bf16.gmra.mxu0 %v1078
      %v1137 = vpop.f32.mrf.mxu0
      %v1138 = vadd.f32 0.0, %v1137
      %v1139 = vpop.f32.mrf.mxu0
      %1140 = vdwg.mxu0
      %v1141 = vadd.f32 %v1052, %v1138
      %v1142 = vld [vmem:[%s4] sm:$0x1]
      %v1144 = vperm.slane %v1142, 0
      %v1146 = vmul.f32 %v1141, %v1144
      %v1147 = vld [vmem:[%s5] sm:$0x1]
      %v1149 = vperm.slane %v1147, 0
      %v1151 = vadd.f32 %v1146, %v1149
      %v1152 = vxor.u32 %v1151, 2147483648
      %v1153 = vmul.f32 %v1152, 1.442695
      %v1154 = vpow.pop %v1153
      %v1155 = vadd.f32 %v1154, 1.0
      %v1156 = vrcp.pop %v1155
      %v1157 = vmul.f32 %v1155, %v1156
      %v1158 = vsub.f32 1.0, %v1157
      %v1159 = vmul.f32 %v1156, %v1158
      %v1160 = vadd.f32 %v1156, %v1159
      %vm1161 = vweird.f32 %v1155
      %vm1162 = vweird.f32 %v1156
      %vm1163 = vmor %vm1161, %vm1162
      %v1164 = vsel %vm1163, %v1156, %v1160
      %v1165 = vand.u32 2147483647, %v1155
      %vm1166 = vcmp.eq.f32.partialorder %v1165, 8.507059e+37
      %v1167 = vand.u32 %v1155, 2147483648
      %v1168 = vor.u32 1.1754944e-38, %v1167
      %v1169 = vsel %vm1166, %v1168, %v1164
      %v1170 = vmul.f32 1.0, %v1169
      %v1171 = vmul.f32 %v1151, %v1170
      %v1172 = vpack.c.bf16 %v1171, %v1171
      %1173 = vst [vmem:[%s388] sm:$0x3] %v1172
      %p1174 = scmp.lt.s32.totalorder %s21, 1
      %s1175 = scalar_select %p1174, %s21, 1
      %p1176 = scmp.lt.s32.totalorder %s22, 3
      %s1177 = scalar_select %p1176, %s22, 3
      %s1178 = smul.addr %s1175, 4
      %s1179 = sadd.s32 %s1177, %s1178
      %s1180 = smul.addr %s1179, 2
      %s1181 = scalar_lea.vmem %s6, %s1180
      // Predicated region
      $region45: #{_lambda_.16} parent=43 // pred_check
        %p1182 = pneg %p206
      $region46: #{_lambda_.16} parent=43 // pred_check_branch
        %1184 = sbr.rel (%p1182) target = $region48
      $region47: #{_lambda_.16} parent=43 // pred_region
        _
      $region48: #{_lambda_.16} parent=43 // pred_fallthru
        _
    $region44: #{_lambda_.16} parent=5 // pred_fallthru
      _
    %p1185 = scmp.le.s32.totalorder 2, %s12
    // Predicated region
    $region49: #{_lambda_.16} parent=5 // pred_check
      %p1186 = pneg %p1185
    $region50: #{_lambda_.16} parent=5 // pred_check_branch
      %1188 = sbr.rel (%p1186) target = $region52
    $region51: #{_lambda_.16} parent=5 // pred_region
      %s1189 = ssub.s32 %s12, 2
      // Predicated region
      $region53: #{_lambda_.16} parent=51 // pred_check
        %p1190 = pneg %p212
      $region54: #{_lambda_.16} parent=51 // pred_check_branch
        %1192 = sbr.rel (%p1190) target = $region56
      $region55: #{_lambda_.16} parent=51 // pred_region
        %p1193 = scmp.lt.s32.totalorder %s23, 1
        %s1194 = scalar_select %p1193, %s23, 1
        %p1195 = scmp.lt.s32.totalorder %s24, 3
        %s1196 = scalar_select %p1195, %s24, 3
        %s1197 = smul.addr %s1194, 4
        %s1198 = sadd.s32 %s1196, %s1197
        %s1199 = smul.addr %s1198, 2
        %s1200 = scalar_lea.vmem %s6, %s1199
      $region56: #{_lambda_.16} parent=51 // pred_fallthru
        _
    $region52: #{_lambda_.16} parent=5 // pred_fallthru
      _
  $region6: #{_lambda_.16} parent=0 // loop_footer
    %s16 = sadd.s32 1, %s12
  $region7: #{_lambda_.16} parent=0 // loop_footer_branch
    %11 = sbr.rel target = $region3
  $region8: #{_lambda_.16} parent=0 // loop_exit
    _

// kernel: _lambda_.20
$region0: #{_lambda_.20}
  #allocation0 [shape = 'u32[]', space=smem, size = 0x4, offset = 0x4, fixed_abs, tag = 'smem constant byte address 0x4 - core index']
  #allocation1 [shape = 'u32[72,128]{1,0:T(1,128)}', space=vmem, size = 0x9000, scoped, tag = 'internal scratch']
  %s0 = inlined_call_operand.vmem [shape: bf16[16,128], index: 0, kind: input, shape index: {}]
  %s1 = inlined_call_operand.vmem [shape: bf16[128,128], index: 1, kind: input, shape index: {}]
  %s2 = inlined_call_operand.vmem [shape: f32[1,128], index: 2, kind: input, shape index: {}]
  %s3 = inlined_call_operand.vmem [shape: f32[1,128], index: 3, kind: input, shape index: {}]
  %s4 = inlined_call_operand.vmem [shape: bf16[16,128], index: 4, kind: output, shape index: {}]
  %s5 = sld [smem:[#allocation0]]
  $region26: #{_lambda_.20} parent=0
    _
  %s7 = ssub.s32 1, %s5
  %s8 = scalar_select 0, %s7, %s5
  // Predicated region
  $region2: #{_lambda_.20} parent=0 // pred_check
    _
  $region3: #{_lambda_.20} parent=0 // pred_check_branch
    %10 = sbr.rel (0) target = $region5
  $region4: #{_lambda_.20} parent=0 // pred_region
    _
  $region5: #{_lambda_.20} parent=0 // pred_fallthru
    _
  // Predicated region
  $region6: #{_lambda_.20} parent=0 // pred_check
    _
  $region7: #{_lambda_.20} parent=0 // pred_check_branch
    %12 = sbr.rel (0) target = $region9
  $region8: #{_lambda_.20} parent=0 // pred_region
    _
  $region9: #{_lambda_.20} parent=0 // pred_fallthru
    _
  // Predicated region
  $region10: #{_lambda_.20} parent=0 // pred_check
    _
  $region11: #{_lambda_.20} parent=0 // pred_check_branch
    %14 = sbr.rel (0) target = $region13
  $region12: #{_lambda_.20} parent=0 // pred_region
    _
  $region13: #{_lambda_.20} parent=0 // pred_fallthru
    _
  // Predicated region
  $region14: #{_lambda_.20} parent=0 // pred_check
    _
  $region15: #{_lambda_.20} parent=0 // pred_check_branch
    %16 = sbr.rel (0) target = $region17
  $region16: #{_lambda_.20} parent=0 // pred_region
    _
  $region17: #{_lambda_.20} parent=0 // pred_fallthru
    _
  %v17 = vld [vmem:[%s0] sm:$0xf]
  %v18 = vld [vmem:[%s0 + $0x4] sm:$0xf]
  %v19 = vld [vmem:[%s1] sm:$0xf]
  %v20 = vld [vmem:[%s1 + $0x4] sm:$0xf]
  %v21 = vld [vmem:[%s1 + $0x8] sm:$0xf]
  %v22 = vld [vmem:[%s1 + $0xc] sm:$0xf]
  %v23 = vld [vmem:[%s1 + $0x10] sm:$0xf]
  %v24 = vld [vmem:[%s1 + $0x14] sm:$0xf]
  %v25 = vld [vmem:[%s1 + $0x18] sm:$0xf]
  %v26 = vld [vmem:[%s1 + $0x1c] sm:$0xf]
  %v27 = vld [vmem:[%s1 + $0x20] sm:$0xf]
  %v28 = vld [vmem:[%s1 + $0x24] sm:$0xf]
  %v29 = vld [vmem:[%s1 + $0x28] sm:$0xf]
  %v30 = vld [vmem:[%s1 + $0x2c] sm:$0xf]
  %v31 = vld [vmem:[%s1 + $0x30] sm:$0xf]
  %v32 = vld [vmem:[%s1 + $0x34] sm:$0xf]
  %v33 = vld [vmem:[%s1 + $0x38] sm:$0xf]
  %v34 = vld [vmem:[%s1 + $0x3c] sm:$0xf]
  %v37 = vunpack.c.l.b16 %v17
  %v38 = vunpack.c.l.b16 %v18
  %v39 = vpack.c.b16 %v38, %v37
  %v57 = vunpack.c.l.b16 %v19
  %v58 = vunpack.c.l.b16 %v20
  %v59 = vunpack.c.l.b16 %v21
  %v60 = vunpack.c.l.b16 %v22
  %v61 = vunpack.c.l.b16 %v23
  %v62 = vunpack.c.l.b16 %v24
  %v63 = vunpack.c.l.b16 %v25
  %v64 = vunpack.c.l.b16 %v26
  %v65 = vunpack.c.l.b16 %v27
  %v66 = vunpack.c.l.b16 %v28
  %v67 = vunpack.c.l.b16 %v29
  %v68 = vunpack.c.l.b16 %v30
  %v69 = vunpack.c.l.b16 %v31
  %v70 = vunpack.c.l.b16 %v32
  %v71 = vunpack.c.l.b16 %v33
  %v72 = vunpack.c.l.b16 %v34
  %v73 = vpack.c.b16 %v58, %v57
  %v74 = vpack.c.b16 %v60, %v59
  %v75 = vpack.c.b16 %v62, %v61
  %v76 = vpack.c.b16 %v64, %v63
  %v77 = vpack.c.b16 %v66, %v65
  %v78 = vpack.c.b16 %v68, %v67
  %v79 = vpack.c.b16 %v70, %v69
  %v80 = vpack.c.b16 %v72, %v71
  %89 = vmatpush.bf16.msra.mxu0 %v80
  %90 = vmatpush.bf16.msra.mxu0 %v79
  %91 = vmatpush.bf16.msra.mxu0 %v78
  %92 = vmatpush.bf16.msra.mxu0 %v77
  %93 = vmatpush.bf16.msra.mxu0 %v76
  %94 = vmatpush.bf16.msra.mxu0 %v75
  %95 = vmatpush.bf16.msra.mxu0 %v74
  %96 = vmatpush.bf16.msra.mxu0 %v73
  %97 = vmatmul.bf16.gmra.mxu0 %v39
  %v98 = vpop.f32.mrf.mxu0
  %v99 = vadd.f32 0.0, %v98
  %v100 = vpop.f32.mrf.mxu0
  %v101 = vadd.f32 0.0, %v100
  %102 = vdwg.mxu0
  %v103 = vld [vmem:[%s2] sm:$0x1]
  %v105 = vperm.slane %v103, 0
  %v107 = vmul.f32 %v99, %v105
  %v108 = vmul.f32 %v101, %v105
  %v109 = vld [vmem:[%s3] sm:$0x1]
  %v111 = vperm.slane %v109, 0
  %v113 = vadd.f32 %v107, %v111
  %v114 = vadd.f32 %v108, %v111
  %v115 = vpack.c.bf16 %v113, %v113
  %v116 = vpack.c.bf16 %v114, %v114
  %117 = vst [vmem:[%s4] sm:$0xf] %v115
  %118 = vst [vmem:[%s4 + $0x4] sm:$0xf] %v116
  // Predicated region
  $region18: #{_lambda_.20} parent=0 // pred_check
    _
  $region19: #{_lambda_.20} parent=0 // pred_check_branch
    %120 = sbr.rel (0) target = $region21
  $region20: #{_lambda_.20} parent=0 // pred_region
    _
  $region21: #{_lambda_.20} parent=0 // pred_fallthru
    _
  // Predicated region
  $region22: #{_lambda_.20} parent=0 // pred_check
    _
  $region23: #{_lambda_.20} parent=0 // pred_check_branch
    %122 = sbr.rel (0) target = $region25
  $region24: #{_lambda_.20} parent=0 // pred_region
    _
  $region25: #{_lambda_.20} parent=0 // pred_fallthru
    _

// kernel: _lambda_.21
$region0: #{_lambda_.21}
  #allocation0 [shape = 'u32[]', space=smem, size = 0x4, offset = 0x4, fixed_abs, tag = 'smem constant byte address 0x4 - core index']
  #allocation1 [shape = 'u32[72,128]{1,0:T(1,128)}', space=vmem, size = 0x9000, scoped, tag = 'internal scratch']
  %s0 = inlined_call_operand.vmem [shape: bf16[16,128], index: 0, kind: input, shape index: {}]
  %s1 = inlined_call_operand.vmem [shape: bf16[128,128], index: 1, kind: input, shape index: {}]
  %s2 = inlined_call_operand.vmem [shape: f32[1,128], index: 2, kind: input, shape index: {}]
  %s3 = inlined_call_operand.vmem [shape: f32[1,128], index: 3, kind: input, shape index: {}]
  %s4 = inlined_call_operand.vmem [shape: bf16[16,128], index: 4, kind: output, shape index: {}]
  %s5 = sld [smem:[#allocation0]]
  $region26: #{_lambda_.21} parent=0
    _
  %s7 = ssub.s32 1, %s5
  %s8 = scalar_select 0, %s7, %s5
  // Predicated region
  $region2: #{_lambda_.21} parent=0 // pred_check
    _
  $region3: #{_lambda_.21} parent=0 // pred_check_branch
    %10 = sbr.rel (0) target = $region5
  $region4: #{_lambda_.21} parent=0 // pred_region
    _
  $region5: #{_lambda_.21} parent=0 // pred_fallthru
    _
  // Predicated region
  $region6: #{_lambda_.21} parent=0 // pred_check
    _
  $region7: #{_lambda_.21} parent=0 // pred_check_branch
    %12 = sbr.rel (0) target = $region9
  $region8: #{_lambda_.21} parent=0 // pred_region
    _
  $region9: #{_lambda_.21} parent=0 // pred_fallthru
    _
  // Predicated region
  $region10: #{_lambda_.21} parent=0 // pred_check
    _
  $region11: #{_lambda_.21} parent=0 // pred_check_branch
    %14 = sbr.rel (0) target = $region13
  $region12: #{_lambda_.21} parent=0 // pred_region
    _
  $region13: #{_lambda_.21} parent=0 // pred_fallthru
    _
  // Predicated region
  $region14: #{_lambda_.21} parent=0 // pred_check
    _
  $region15: #{_lambda_.21} parent=0 // pred_check_branch
    %16 = sbr.rel (0) target = $region17
  $region16: #{_lambda_.21} parent=0 // pred_region
    _
  $region17: #{_lambda_.21} parent=0 // pred_fallthru
    _
  %v17 = vld [vmem:[%s0] sm:$0xf]
  %v18 = vld [vmem:[%s0 + $0x4] sm:$0xf]
  %v19 = vld [vmem:[%s1] sm:$0xf]
  %v20 = vld [vmem:[%s1 + $0x4] sm:$0xf]
  %v21 = vld [vmem:[%s1 + $0x8] sm:$0xf]
  %v22 = vld [vmem:[%s1 + $0xc] sm:$0xf]
  %v23 = vld [vmem:[%s1 + $0x10] sm:$0xf]
  %v24 = vld [vmem:[%s1 + $0x14] sm:$0xf]
  %v25 = vld [vmem:[%s1 + $0x18] sm:$0xf]
  %v26 = vld [vmem:[%s1 + $0x1c] sm:$0xf]
  %v27 = vld [vmem:[%s1 + $0x20] sm:$0xf]
  %v28 = vld [vmem:[%s1 + $0x24] sm:$0xf]
  %v29 = vld [vmem:[%s1 + $0x28] sm:$0xf]
  %v30 = vld [vmem:[%s1 + $0x2c] sm:$0xf]
  %v31 = vld [vmem:[%s1 + $0x30] sm:$0xf]
  %v32 = vld [vmem:[%s1 + $0x34] sm:$0xf]
  %v33 = vld [vmem:[%s1 + $0x38] sm:$0xf]
  %v34 = vld [vmem:[%s1 + $0x3c] sm:$0xf]
  %v37 = vunpack.c.l.b16 %v17
  %v38 = vunpack.c.l.b16 %v18
  %v39 = vpack.c.b16 %v38, %v37
  %v57 = vunpack.c.l.b16 %v19
  %v58 = vunpack.c.l.b16 %v20
  %v59 = vunpack.c.l.b16 %v21
  %v60 = vunpack.c.l.b16 %v22
  %v61 = vunpack.c.l.b16 %v23
  %v62 = vunpack.c.l.b16 %v24
  %v63 = vunpack.c.l.b16 %v25
  %v64 = vunpack.c.l.b16 %v26
  %v65 = vunpack.c.l.b16 %v27
  %v66 = vunpack.c.l.b16 %v28
  %v67 = vunpack.c.l.b16 %v29
  %v68 = vunpack.c.l.b16 %v30
  %v69 = vunpack.c.l.b16 %v31
  %v70 = vunpack.c.l.b16 %v32
  %v71 = vunpack.c.l.b16 %v33
  %v72 = vunpack.c.l.b16 %v34
  %v73 = vpack.c.b16 %v58, %v57
  %v74 = vpack.c.b16 %v60, %v59
  %v75 = vpack.c.b16 %v62, %v61
  %v76 = vpack.c.b16 %v64, %v63
  %v77 = vpack.c.b16 %v66, %v65
  %v78 = vpack.c.b16 %v68, %v67
  %v79 = vpack.c.b16 %v70, %v69
  %v80 = vpack.c.b16 %v72, %v71
  %89 = vmatpush.bf16.msra.mxu0 %v80
  %90 = vmatpush.bf16.msra.mxu0 %v79
  %91 = vmatpush.bf16.msra.mxu0 %v78
  %92 = vmatpush.bf16.msra.mxu0 %v77
  %93 = vmatpush.bf16.msra.mxu0 %v76
  %94 = vmatpush.bf16.msra.mxu0 %v75
  %95 = vmatpush.bf16.msra.mxu0 %v74
  %96 = vmatpush.bf16.msra.mxu0 %v73
  %97 = vmatmul.bf16.gmra.mxu0 %v39
  %v98 = vpop.f32.mrf.mxu0
  %v99 = vadd.f32 0.0, %v98
  %v100 = vpop.f32.mrf.mxu0
  %v101 = vadd.f32 0.0, %v100
  %102 = vdwg.mxu0
  %v103 = vld [vmem:[%s2] sm:$0x1]
  %v105 = vperm.slane %v103, 0
  %v107 = vmul.f32 %v99, %v105
  %v108 = vmul.f32 %v101, %v105
  %v109 = vld [vmem:[%s3] sm:$0x1]
  %v111 = vperm.slane %v109, 0
  %v113 = vadd.f32 %v107, %v111
  %v114 = vadd.f32 %v108, %v111
  %v115 = vxor.u32 %v113, 2147483648
  %v116 = vxor.u32 %v114, 2147483648
  %v117 = vmul.f32 %v115, 1.442695
  %v118 = vpow.pop %v117
  %v119 = vmul.f32 %v116, 1.442695
  %v120 = vpow.pop %v119
  %v121 = vadd.f32 %v118, 1.0
  %v122 = vadd.f32 %v120, 1.0
  %v123 = vrcp.pop %v121
  %v124 = vmul.f32 %v121, %v123
  %v125 = vsub.f32 1.0, %v124
  %v126 = vmul.f32 %v123, %v125
  %v127 = vadd.f32 %v123, %v126
  %vm128 = vweird.f32 %v121
  %vm129 = vweird.f32 %v123
  %vm130 = vmor %vm128, %vm129
  %v131 = vsel %vm130, %v123, %v127
  %v132 = vand.u32 2147483647, %v121
  %vm133 = vcmp.eq.f32.partialorder %v132, 8.507059e+37
  %v134 = vand.u32 %v121, 2147483648
  %v135 = vor.u32 1.1754944e-38, %v134
  %v136 = vsel %vm133, %v135, %v131
  %v137 = vmul.f32 1.0, %v136
  %v138 = vrcp.pop %v122
  %v139 = vmul.f32 %v122, %v138
  %v140 = vsub.f32 1.0, %v139
  %v141 = vmul.f32 %v138, %v140
  %v142 = vadd.f32 %v138, %v141
  %vm143 = vweird.f32 %v122
  %vm144 = vweird.f32 %v138
  %vm145 = vmor %vm143, %vm144
  %v146 = vsel %vm145, %v138, %v142
  %v147 = vand.u32 2147483647, %v122
  %vm148 = vcmp.eq.f32.partialorder %v147, 8.507059e+37
  %v149 = vand.u32 %v122, 2147483648
  %v150 = vor.u32 1.1754944e-38, %v149
  %v151 = vsel %vm148, %v150, %v146
  %v152 = vmul.f32 1.0, %v151
  %v153 = vmul.f32 %v113, %v137
  %v154 = vmul.f32 %v114, %v152
  %v155 = vpack.c.bf16 %v153, %v153
  %v156 = vpack.c.bf16 %v154, %v154
  %157 = vst [vmem:[%s4] sm:$0xf] %v155
  %158 = vst [vmem:[%s4 + $0x4] sm:$0xf] %v156
  // Predicated region
  $region18: #{_lambda_.21} parent=0 // pred_check
    _
  $region19: #{_lambda_.21} parent=0 // pred_check_branch
    %160 = sbr.rel (0) target = $region21
  $region20: #{_lambda_.21} parent=0 // pred_region
    _
  $region21: #{_lambda_.21} parent=0 // pred_fallthru
    _
  // Predicated region
  $region22: #{_lambda_.21} parent=0 // pred_check
    _
  $region23: #{_lambda_.21} parent=0 // pred_check_branch
    %162 = sbr.rel (0) target = $region25
  $region24: #{_lambda_.21} parent=0 // pred_region
    _
  $region25: #{_lambda_.21} parent=0 // pred_fallthru
    _

// kernel: _lambda_.19
$region0: #{_lambda_.19}
  #allocation0 [shape = 'u32[]', space=smem, size = 0x4, offset = 0x4, fixed_abs, tag = 'smem constant byte address 0x4 - core index']
  #allocation1 [shape = 'u32[72,128]{1,0:T(1,128)}', space=vmem, size = 0x9000, scoped, tag = 'internal scratch']
  %s0 = inlined_call_operand.vmem [shape: bf16[2,6,3,256], index: 0, kind: input, shape index: {}, may-alias: {0,1,2}]
  %s1 = inlined_call_operand.vmem [shape: bf16[2,6,3,256], index: 1, kind: input, shape index: {}, may-alias: {0,1,2}]
  %s2 = inlined_call_operand.vmem [shape: bf16[2,6,3,256], index: 2, kind: input, shape index: {}, may-alias: {0,1,2}]
  %s3 = inlined_call_operand.vmem [shape: f32[9,1,128], index: 3, kind: input, shape index: {}]
  %s4 = inlined_call_operand.vmem [shape: f32[1,128], index: 4, kind: input, shape index: {}]
  %s5 = inlined_call_operand.vmem [shape: bf16[2,2,2,128], index: 5, kind: output, shape index: {}]
  %s6 = sld [smem:[#allocation0]]
  $region53: #{_lambda_.19} parent=0
    _
  %s8 = ssub.s32 1, %s6
  %s9 = scalar_select 0, %s8, %s6
  loop: start=0, step=1, limit=6
  $region2: #{_lambda_.19} parent=0 // loop_pre_header
    _
  $region3: #{_lambda_.19} parent=0 // loop_header
    %s11 = sphi 0, %s15
    %p12 = scmp.ge.s32.totalorder %s11, 6
    %s18 = sphi 0, %s30
    %s19 = sphi 0, %s26
    %s20 = sphi 0, %s18
    %s21 = sphi 0, %s19
    %s22 = sphi 0, %s20
    %s23 = sphi 0, %s21
    %s37 = sphi 0, %s39
    %s40 = sphi 0, %s37
    %s41 = sphi 0, %s40
    %s57 = sphi 0, %s41
    %s69 = sphi 0, %s71
    %s72 = sphi 0, %s69
    %s73 = sphi 0, %s72
    %s89 = sphi 0, %s73
    %s101 = sphi 0, %s103
    %s104 = sphi 0, %s101
    %s105 = sphi 0, %s104
    %s121 = sphi 0, %s105
    %s125 = sphi 0, %s125
    %s127 = sphi 0, %s125
    %s128 = sphi 0, %s127
    %s142 = sphi 0, %s128
    %s146 = sphi 0, %s146
    %s148 = sphi 0, %s146
    %s149 = sphi 0, %s148
    %s163 = sphi 0, %s149
    %s171 = sphi 0, %s173
    %s174 = sphi 0, %s171
    %s175 = sphi 0, %s174
    %s191 = sphi 0, %s175
  $region4: #{_lambda_.19} parent=0 // loop_header_branch
    %14 = sbr.rel (%p12) target = $region8
  $region5: #{_lambda_.19} parent=0 // loop_body
    %s16 = ssub.s32 %s11, 1
    %s17 = ssub.s32 %s11, 2
    %s24 = sadd.s32 1, %s19
    %p25 = scmp.ge.s32.totalorder %s24, 2
    %s26 = scalar_select %p25, 0, %s24
    %s27 = sadd.s32 1, %s18
    %s28 = scalar_select %p25, %s27, %s18
    %p29 = scmp.ge.s32.totalorder %s28, 2
    %s30 = scalar_select %p29, 0, %s28
    %s31 = smul.u32 %s19, 2
    %s32 = smul.u32 %s26, 2
    %s33 = ssub.s32 %s18, %s30
    %s34 = ssub.s32 %s31, %s32
    %s35 = sor.u32 %s33, %s34
    %p36 = scmp.eq.s32.totalorder %s35, 0
    %s38 = sadd.s32 %s37, 1
    %s39 = scalar_select %p36, %s37, %s38
    %p42 = pneg %p36
    %p43 = scmp.eq.s32.totalorder %s11, 3
    %p44 = por %p42, %p43
    %p45 = scmp.ne.s32.totalorder %s37, %s40
    %p46 = scmp.eq.s32.totalorder %s11, 0
    %p47 = por %p45, %p46
    %p48 = scmp.ne.s32.totalorder %s37, %s40
    %p49 = scmp.eq.s32.totalorder %s16, 3
    %p50 = por %p48, %p49
    %p51 = scmp.ne.s32.totalorder %s40, %s41
    %p52 = scmp.eq.s32.totalorder %s16, 0
    %p53 = por %p51, %p52
    %p54 = scmp.ne.s32.totalorder %s40, %s41
    %p55 = scmp.eq.s32.totalorder %s17, 3
    %p56 = por %p54, %p55
    %p58 = scmp.ne.s32.totalorder %s41, %s57
    %p59 = scmp.eq.s32.totalorder %s17, 0
    %p60 = por %p58, %p59
    %s61 = smul.u32 %s19, 2
    %s62 = sadd.s32 %s61, 1
    %s63 = smul.u32 %s26, 2
    %s64 = sadd.s32 %s63, 1
    %s65 = ssub.s32 %s18, %s30
    %s66 = ssub.s32 %s62, %s64
    %s67 = sor.u32 %s65, %s66
    %p68 = scmp.eq.s32.totalorder %s67, 0
    %s70 = sadd.s32 %s69, 1
    %s71 = scalar_select %p68, %s69, %s70
    %p74 = pneg %p68
    %p75 = scmp.eq.s32.totalorder %s11, 3
    %p76 = por %p74, %p75
    %p77 = scmp.ne.s32.totalorder %s69, %s72
    %p78 = scmp.eq.s32.totalorder %s11, 0
    %p79 = por %p77, %p78
    %p80 = scmp.ne.s32.totalorder %s69, %s72
    %p81 = scmp.eq.s32.totalorder %s16, 3
    %p82 = por %p80, %p81
    %p83 = scmp.ne.s32.totalorder %s72, %s73
    %p84 = scmp.eq.s32.totalorder %s16, 0
    %p85 = por %p83, %p84
    %p86 = scmp.ne.s32.totalorder %s72, %s73
    %p87 = scmp.eq.s32.totalorder %s17, 3
    %p88 = por %p86, %p87
    %p90 = scmp.ne.s32.totalorder %s73, %s89
    %p91 = scmp.eq.s32.totalorder %s17, 0
    %p92 = por %p90, %p91
    %s93 = smul.u32 %s19, 2
    %s94 = sadd.s32 %s93, 2
    %s95 = smul.u32 %s26, 2
    %s96 = sadd.s32 %s95, 2
    %s97 = ssub.s32 %s18, %s30
    %s98 = ssub.s32 %s94, %s96
    %s99 = sor.u32 %s97, %s98
    %p100 = scmp.eq.s32.totalorder %s99, 0
    %s102 = sadd.s32 %s101, 1
    %s103 = scalar_select %p100, %s101, %s102
    %p106 = pneg %p100
    %p107 = scmp.eq.s32.totalorder %s11, 3
    %p108 = por %p106, %p107
    %p109 = scmp.ne.s32.totalorder %s101, %s104
    %p110 = scmp.eq.s32.totalorder %s11, 0
    %p111 = por %p109, %p110
    %p112 = scmp.ne.s32.totalorder %s101, %s104
    %p113 = scmp.eq.s32.totalorder %s16, 3
    %p114 = por %p112, %p113
    %p115 = scmp.ne.s32.totalorder %s104, %s105
    %p116 = scmp.eq.s32.totalorder %s16, 0
    %p117 = por %p115, %p116
    %p118 = scmp.ne.s32.totalorder %s104, %s105
    %p119 = scmp.eq.s32.totalorder %s17, 3
    %p120 = por %p118, %p119
    %p122 = scmp.ne.s32.totalorder %s105, %s121
    %p123 = scmp.eq.s32.totalorder %s17, 0
    %p124 = por %p122, %p123
    %s126 = sadd.s32 %s125, 1
    %p129 = scmp.eq.s32.totalorder %s11, 3
    %p130 = scmp.ne.s32.totalorder %s125, %s127
    %p131 = scmp.eq.s32.totalorder %s11, 0
    %p132 = por %p130, %p131
    %p133 = scmp.ne.s32.totalorder %s125, %s127
    %p134 = scmp.eq.s32.totalorder %s16, 3
    %p135 = por %p133, %p134
    %p136 = scmp.ne.s32.totalorder %s127, %s128
    %p137 = scmp.eq.s32.totalorder %s16, 0
    %p138 = por %p136, %p137
    %p139 = scmp.ne.s32.totalorder %s127, %s128
    %p140 = scmp.eq.s32.totalorder %s17, 3
    %p141 = por %p139, %p140
    %p143 = scmp.ne.s32.totalorder %s128, %s142
    %p144 = scmp.eq.s32.totalorder %s17, 0
    %p145 = por %p143, %p144
    %s147 = sadd.s32 %s146, 1
    %p150 = scmp.eq.s32.totalorder %s11, 3
    %p151 = scmp.ne.s32.totalorder %s146, %s148
    %p152 = scmp.eq.s32.totalorder %s11, 0
    %p153 = por %p151, %p152
    %p154 = scmp.ne.s32.totalorder %s146, %s148
    %p155 = scmp.eq.s32.totalorder %s16, 3
    %p156 = por %p154, %p155
    %p157 = scmp.ne.s32.totalorder %s148, %s149
    %p158 = scmp.eq.s32.totalorder %s16, 0
    %p159 = por %p157, %p158
    %p160 = scmp.ne.s32.totalorder %s148, %s149
    %p161 = scmp.eq.s32.totalorder %s17, 3
    %p162 = por %p160, %p161
    %p164 = scmp.ne.s32.totalorder %s149, %s163
    %p165 = scmp.eq.s32.totalorder %s17, 0
    %p166 = por %p164, %p165
    %s167 = ssub.s32 %s18, %s30
    %s168 = ssub.s32 %s19, %s26
    %s169 = sor.u32 %s167, %s168
    %p170 = scmp.eq.s32.totalorder %s169, 0
    %s172 = sadd.s32 %s171, 1
    %s173 = scalar_select %p170, %s171, %s172
    %p176 = pneg %p170
    %p177 = scmp.eq.s32.totalorder %s11, 3
    %p178 = por %p176, %p177
    %p179 = scmp.ne.s32.totalorder %s171, %s174
    %p180 = scmp.eq.s32.totalorder %s11, 0
    %p181 = por %p179, %p180
    %p182 = scmp.ne.s32.totalorder %s171, %s174
    %p183 = scmp.eq.s32.totalorder %s16, 3
    %p184 = por %p182, %p183
    %p185 = scmp.ne.s32.totalorder %s174, %s175
    %p186 = scmp.eq.s32.totalorder %s16, 0
    %p187 = por %p185, %p186
    %p188 = scmp.ne.s32.totalorder %s174, %s175
    %p189 = scmp.eq.s32.totalorder %s17, 3
    %p190 = por %p188, %p189
    %p192 = scmp.ne.s32.totalorder %s175, %s191
    %p193 = scmp.eq.s32.totalorder %s17, 0
    %p194 = por %p192, %p193
    %p195 = scmp.le.s32.totalorder 1, %s11
    %p196 = scmp.lt.s32.totalorder %s11, 5
    %p197 = pnand %p195, %p196
    %p198 = pneg %p197
    // Predicated region
    $region9: #{_lambda_.19} parent=5 // pred_check
      _
    $region10: #{_lambda_.19} parent=5 // pred_check_branch
      %200 = sbr.rel (%p197) target = $region12
    $region11: #{_lambda_.19} parent=5 // pred_region
      %s201 = ssub.s32 %s11, 1
      // Predicated region
      $region13: #{_lambda_.19} parent=11 // pred_check
        %p202 = pneg %p138
      $region14: #{_lambda_.19} parent=11 // pred_check_branch
        %204 = sbr.rel (%p202) target = $region16
      $region15: #{_lambda_.19} parent=11 // pred_region
        _
      $region16: #{_lambda_.19} parent=11 // pred_fallthru
        _
      // Predicated region
      $region17: #{_lambda_.19} parent=11 // pred_check
        %p205 = pneg %p159
      $region18: #{_lambda_.19} parent=11 // pred_check_branch
        %207 = sbr.rel (%p205) target = $region20
      $region19: #{_lambda_.19} parent=11 // pred_region
        _
      $region20: #{_lambda_.19} parent=11 // pred_fallthru
        _
    $region12: #{_lambda_.19} parent=5 // pred_fallthru
      _
    %p208 = scmp.lt.s32.totalorder %s11, 4
    // Predicated region
    $region21: #{_lambda_.19} parent=5 // pred_check
      %p209 = pneg %p208
    $region22: #{_lambda_.19} parent=5 // pred_check_branch
      %211 = sbr.rel (%p209) target = $region24
    $region23: #{_lambda_.19} parent=5 // pred_region
      // Predicated region
      $region25: #{_lambda_.19} parent=23 // pred_check
        %p212 = pneg %p47
      $region26: #{_lambda_.19} parent=23 // pred_check_branch
        %214 = sbr.rel (%p212) target = $region28
      $region27: #{_lambda_.19} parent=23 // pred_region
        %s215 = smul.u32 %s19, 2
        %p216 = scmp.lt.s32.totalorder %s18, 1
        %s217 = scalar_select %p216, %s18, 1
        %p218 = scmp.lt.s32.totalorder %s215, 5
        %s219 = scalar_select %p218, %s215, 5
        %s220 = smul.addr %s219, 2
        %s221 = smul.addr %s217, 12
        %s222 = sadd.s32 %s220, %s221
        %s223 = smul.addr %s222, 2
        %s224 = scalar_lea.vmem %s0, %s223
        %s225 = smul.u32 %s19, 2
      $region28: #{_lambda_.19} parent=23 // pred_fallthru
        _
      // Predicated region
      $region29: #{_lambda_.19} parent=23 // pred_check
        %p226 = pneg %p79
      $region30: #{_lambda_.19} parent=23 // pred_check_branch
        %228 = sbr.rel (%p226) target = $region32
      $region31: #{_lambda_.19} parent=23 // pred_region
        %s229 = smul.u32 %s19, 2
        %s230 = sadd.s32 %s229, 1
        %p231 = scmp.lt.s32.totalorder %s18, 1
        %s232 = scalar_select %p231, %s18, 1
        %p233 = scmp.lt.s32.totalorder %s230, 5
        %s234 = scalar_select %p233, %s230, 5
        %s235 = smul.addr %s234, 2
        %s236 = smul.addr %s232, 12
        %s237 = sadd.s32 %s235, %s236
        %s238 = smul.addr %s237, 2
        %s239 = scalar_lea.vmem %s1, %s238
        %s240 = smul.u32 %s19, 2
        %s241 = sadd.s32 %s240, 1
      $region32: #{_lambda_.19} parent=23 // pred_fallthru
        _
      // Predicated region
      $region33: #{_lambda_.19} parent=23 // pred_check
        %p242 = pneg %p111
      $region34: #{_lambda_.19} parent=23 // pred_check_branch
        %244 = sbr.rel (%p242) target = $region36
      $region35: #{_lambda_.19} parent=23 // pred_region
        %s245 = smul.u32 %s19, 2
        %s246 = sadd.s32 %s245, 2
        %p247 = scmp.lt.s32.totalorder %s18, 1
        %s248 = scalar_select %p247, %s18, 1
        %p249 = scmp.lt.s32.totalorder %s246, 5
        %s250 = scalar_select %p249, %s246, 5
        %s251 = smul.addr %s250, 2
        %s252 = smul.addr %s248, 12
        %s253 = sadd.s32 %s251, %s252
        %s254 = smul.addr %s253, 2
        %s255 = scalar_lea.vmem %s2, %s254
        %s256 = smul.u32 %s19, 2
        %s257 = sadd.s32 %s256, 2
      $region36: #{_lambda_.19} parent=23 // pred_fallthru
        _
    $region24: #{_lambda_.19} parent=5 // pred_fallthru
      _
    %p258 = scmp.le.s32.totalorder 1, %s11
    %p259 = scmp.lt.s32.totalorder %s11, 5
    %p260 = pnand %p258, %p259
    %p261 = pneg %p260
    // Predicated region
    $region37: #{_lambda_.19} parent=5 // pred_check
      _
    $region38: #{_lambda_.19} parent=5 // pred_check_branch
      %263 = sbr.rel (%p260) target = $region40
    $region39: #{_lambda_.19} parent=5 // pred_region
      %s264 = ssub.s32 %s11, 1
      %s265 = smul.u32 %s21, 2
      %p266 = scmp.lt.s32.totalorder %s20, 1
      %s267 = scalar_select %p266, %s20, 1
      %p268 = scmp.lt.s32.totalorder %s265, 5
      %s269 = scalar_select %p268, %s265, 5
      %s270 = smul.addr %s269, 2
      %s271 = smul.addr %s267, 12
      %s272 = sadd.s32 %s270, %s271
      %s273 = smul.addr %s272, 2
      %s274 = scalar_lea.vmem %s0, %s273
      %p275 = pneg %p53
      %p276 = pneg %p50
      %s277 = smul.u32 %s21, 2
      %s278 = sadd.s32 %s277, 1
      %p279 = scmp.lt.s32.totalorder %s20, 1
      %s280 = scalar_select %p279, %s20, 1
      %p281 = scmp.lt.s32.totalorder %s278, 5
      %s282 = scalar_select %p281, %s278, 5
      %s283 = smul.addr %s282, 2
      %s284 = smul.addr %s280, 12
      %s285 = sadd.s32 %s283, %s284
      %s286 = smul.addr %s285, 2
      %s287 = scalar_lea.vmem %s1, %s286
      %p288 = pneg %p85
      %p289 = pneg %p82
      %s290 = smul.u32 %s21, 2
      %s291 = sadd.s32 %s290, 2
      %p292 = scmp.lt.s32.totalorder %s20, 1
      %s293 = scalar_select %p292, %s20, 1
      %p294 = scmp.lt.s32.totalorder %s291, 5
      %s295 = scalar_select %p294, %s291, 5
      %s296 = smul.addr %s295, 2
      %s297 = smul.addr %s293, 12
      %s298 = sadd.s32 %s296, %s297
      %s299 = smul.addr %s298, 2
      %s300 = scalar_lea.vmem %s2, %s299
      %p301 = pneg %p117
      %p302 = pneg %p114
      %p303 = pneg %p138
      %p304 = pneg %p135
      %p305 = pneg %p159
      %p306 = pneg %p156
      %p307 = pneg %p187
      %p308 = pneg %p184
      %p309 = scmp.lt.s32.totalorder %s20, 1
      %s310 = scalar_select %p309, %s20, 1
      %p311 = scmp.lt.s32.totalorder %s21, 1
      %s312 = scalar_select %p311, %s21, 1
      %s313 = smul.addr %s310, 2
      %s314 = sadd.s32 %s312, %s313
      %s315 = scalar_lea.vmem %s5, %s314
      %s316 = smul.u32 %s21, 2
      %p317 = scmp.lt.s32.totalorder %s20, 1
      %s318 = scalar_select %p317, %s20, 1
      %p319 = scmp.lt.s32.totalorder %s316, 5
      %s320 = scalar_select %p319, %s316, 5
      %s321 = smul.addr %s320, 2
      %s322 = smul.addr %s318, 12
      %s323 = sadd.s32 %s321, %s322
      %s324 = smul.addr %s323, 2
      %s325 = scalar_lea.vmem %s0, %s324
      %s326 = smul.u32 %s21, 2
      %s327 = smul.u32 %s21, 2
      %s328 = sadd.s32 %s327, 1
      %p329 = scmp.lt.s32.totalorder %s20, 1
      %s330 = scalar_select %p329, %s20, 1
      %p331 = scmp.lt.s32.totalorder %s328, 5
      %s332 = scalar_select %p331, %s328, 5
      %s333 = smul.addr %s332, 2
      %s334 = smul.addr %s330, 12
      %s335 = sadd.s32 %s333, %s334
      %s336 = smul.addr %s335, 2
      %s337 = scalar_lea.vmem %s1, %s336
      %s338 = smul.u32 %s21, 2
      %s339 = sadd.s32 %s338, 1
      %s340 = smul.u32 %s21, 2
      %s341 = sadd.s32 %s340, 2
      %p342 = scmp.lt.s32.totalorder %s20, 1
      %s343 = scalar_select %p342, %s20, 1
      %p344 = scmp.lt.s32.totalorder %s341, 5
      %s345 = scalar_select %p344, %s341, 5
      %s346 = smul.addr %s345, 2
      %s347 = smul.addr %s343, 12
      %s348 = sadd.s32 %s346, %s347
      %s349 = smul.addr %s348, 2
      %s350 = scalar_lea.vmem %s2, %s349
      %s351 = smul.u32 %s21, 2
      %s352 = sadd.s32 %s351, 2
      %p353 = scmp.lt.s32.totalorder %s20, 1
      %s354 = scalar_select %p353, %s20, 1
      %p355 = scmp.lt.s32.totalorder %s21, 1
      %s356 = scalar_select %p355, %s21, 1
      %s357 = smul.addr %s354, 2
      %s358 = sadd.s32 %s356, %s357
      %s359 = scalar_lea.vmem %s5, %s358
      %v360 = vld [vmem:[%s325] sm:$0xf]
      %v361 = vunpack.c.l.bf16 %v360
      %v362 = vld [vmem:[%s3] sm:$0x1]
      %v364 = vperm.slane %v362, 0
      %v366 = vmul.f32 %v361, %v364
      %v367 = vadd.f32 %v366, 0.0
      %s368 = scalar_lea.vmem %s3, 1
      %v369 = vld [vmem:[%s368] sm:$0x1]
      %v371 = vperm.slane %v369, 0
      %v374 = vrot.slane %v361, 4
      %v376 = vmul.f32 %v374, %v371
      %v377 = vadd.f32 %v367, %v376
      %s378 = scalar_lea.vmem %s3, 2
      %v379 = vld [vmem:[%s378] sm:$0x1]
      %v381 = vperm.slane %v379, 0
      %v383 = vmul.f32 %v361, %v381
      %v385 = vrot.slane %v383, 5
      %v386 = vrot.slane %v385, 4
      %v388 = vadd.f32 %v377, %v386
      %v389 = vld [vmem:[%s337] sm:$0xf]
      %v390 = vunpack.c.l.bf16 %v389
      %s391 = scalar_lea.vmem %s3, 3
      %v392 = vld [vmem:[%s391] sm:$0x1]
      %v394 = vperm.slane %v392, 0
      %v396 = vmul.f32 %v390, %v394
      %v397 = vadd.f32 %v388, %v396
      %s398 = scalar_lea.vmem %s3, 4
      %v399 = vld [vmem:[%s398] sm:$0x1]
      %v401 = vperm.slane %v399, 0
      %v404 = vrot.slane %v390, 4
      %v406 = vmul.f32 %v404, %v401
      %v407 = vadd.f32 %v397, %v406
      %s408 = scalar_lea.vmem %s3, 5
      %v409 = vld [vmem:[%s408] sm:$0x1]
      %v411 = vperm.slane %v409, 0
      %v413 = vmul.f32 %v390, %v411
      %v415 = vrot.slane %v413, 5
      %v416 = vrot.slane %v415, 4
      %v418 = vadd.f32 %v407, %v416
      %v419 = vld [vmem:[%s350] sm:$0xf]
      %v420 = vunpack.c.l.bf16 %v419
      %s421 = scalar_lea.vmem %s3, 6
      %v422 = vld [vmem:[%s421] sm:$0x1]
      %v424 = vperm.slane %v422, 0
      %v426 = vmul.f32 %v420, %v424
      %v427 = vadd.f32 %v418, %v426
      %s428 = scalar_lea.vmem %s3, 7
      %v429 = vld [vmem:[%s428] sm:$0x1]
      %v431 = vperm.slane %v429, 0
      %v434 = vrot.slane %v420, 4
      %v436 = vmul.f32 %v434, %v431
      %v437 = vadd.f32 %v427, %v436
      %s438 = scalar_lea.vmem %s3, 8
      %v439 = vld [vmem:[%s438] sm:$0x1]
      %v441 = vperm.slane %v439, 0
      %v443 = vmul.f32 %v420, %v441
      %v445 = vrot.slane %v443, 5
      %v446 = vrot.slane %v445, 4
      %v448 = vadd.f32 %v437, %v446
      %v449 = vld [vmem:[%s4] sm:$0x1]
      %v451 = vperm.slane %v449, 0
      %v453 = vadd.f32 %v448, %v451
      %v454 = vxor.u32 %v453, 2147483648
      %v455 = vmul.f32 %v454, 1.442695
      %v456 = vpow.pop %v455
      %v457 = vadd.f32 %v456, 1.0
      %v458 = vrcp.pop %v457
      %v459 = vmul.f32 %v457, %v458
      %v460 = vsub.f32 1.0, %v459
      %v461 = vmul.f32 %v458, %v460
      %v462 = vadd.f32 %v458, %v461
      %vm463 = vweird.f32 %v457
      %vm464 = vweird.f32 %v458
      %vm465 = vmor %vm463, %vm464
      %v466 = vsel %vm465, %v458, %v462
      %v467 = vand.u32 2147483647, %v457
      %vm468 = vcmp.eq.f32.partialorder %v467, 8.507059e+37
      %v469 = vand.u32 %v457, 2147483648
      %v470 = vor.u32 1.1754944e-38, %v469
      %v471 = vsel %vm468, %v470, %v466
      %v472 = vmul.f32 1.0, %v471
      %v473 = vmul.f32 %v453, %v472
      %v474 = vpack.c.bf16 %v473, %v473
      %475 = vst [vmem:[%s359] sm:$0x1] %v474
      %p476 = scmp.lt.s32.totalorder %s20, 1
      %s477 = scalar_select %p476, %s20, 1
      %p478 = scmp.lt.s32.totalorder %s21, 1
      %s479 = scalar_select %p478, %s21, 1
      %s480 = smul.addr %s477, 2
      %s481 = sadd.s32 %s479, %s480
      %s482 = scalar_lea.vmem %s5, %s481
      // Predicated region
      $region41: #{_lambda_.19} parent=39 // pred_check
        %p483 = pneg %p184
      $region42: #{_lambda_.19} parent=39 // pred_check_branch
        %485 = sbr.rel (%p483) target = $region44
      $region43: #{_lambda_.19} parent=39 // pred_region
        _
      $region44: #{_lambda_.19} parent=39 // pred_fallthru
        _
    $region40: #{_lambda_.19} parent=5 // pred_fallthru
      _
    %p486 = scmp.le.s32.totalorder 2, %s11
    // Predicated region
    $region45: #{_lambda_.19} parent=5 // pred_check
      %p487 = pneg %p486
    $region46: #{_lambda_.19} parent=5 // pred_check_branch
      %489 = sbr.rel (%p487) target = $region48
    $region47: #{_lambda_.19} parent=5 // pred_region
      %s490 = ssub.s32 %s11, 2
      // Predicated region
      $region49: #{_lambda_.19} parent=47 // pred_check
        %p491 = pneg %p190
      $region50: #{_lambda_.19} parent=47 // pred_check_branch
        %493 = sbr.rel (%p491) target = $region52
      $region51: #{_lambda_.19} parent=47 // pred_region
        %p494 = scmp.lt.s32.totalorder %s22, 1
        %s495 = scalar_select %p494, %s22, 1
        %p496 = scmp.lt.s32.totalorder %s23, 1
        %s497 = scalar_select %p496, %s23, 1
        %s498 = smul.addr %s495, 2
        %s499 = sadd.s32 %s497, %s498
        %s500 = scalar_lea.vmem %s5, %s499
      $region52: #{_lambda_.19} parent=47 // pred_fallthru
        _
    $region48: #{_lambda_.19} parent=5 // pred_fallthru
      _
  $region6: #{_lambda_.19} parent=0 // loop_footer
    %s15 = sadd.s32 1, %s11
  $region7: #{_lambda_.19} parent=0 // loop_footer_branch
    %10 = sbr.rel target = $region3
  $region8: #{_lambda_.19} parent=0 // loop_exit
    _

// kernel: _lambda_.22
$region0: #{_lambda_.22}
  #allocation0 [shape = 'u32[]', space=smem, size = 0x4, offset = 0x4, fixed_abs, tag = 'smem constant byte address 0x4 - core index']
  #allocation1 [shape = 'u32[72,128]{1,0:T(1,128)}', space=vmem, size = 0x9000, scoped, tag = 'internal scratch']
  %s0 = inlined_call_operand.vmem [shape: bf16[2,4,4,128], index: 0, kind: input, shape index: {}, may-alias: {0,1,2}]
  %s1 = inlined_call_operand.vmem [shape: bf16[2,4,4,128], index: 1, kind: input, shape index: {}, may-alias: {0,1,2}]
  %s2 = inlined_call_operand.vmem [shape: bf16[2,4,4,128], index: 2, kind: input, shape index: {}, may-alias: {0,1,2}]
  %s3 = inlined_call_operand.vmem [shape: f32[9,1,128], index: 3, kind: input, shape index: {}]
  %s4 = inlined_call_operand.vmem [shape: f32[1,128], index: 4, kind: input, shape index: {}]
  %s5 = inlined_call_operand.vmem [shape: bf16[2,2,2,128], index: 5, kind: output, shape index: {}]
  %s6 = sld [smem:[#allocation0]]
  $region53: #{_lambda_.22} parent=0
    _
  %s8 = ssub.s32 1, %s6
  %s9 = scalar_select 0, %s8, %s6
  loop: start=0, step=1, limit=6
  $region2: #{_lambda_.22} parent=0 // loop_pre_header
    _
  $region3: #{_lambda_.22} parent=0 // loop_header
    %s11 = sphi 0, %s15
    %p12 = scmp.ge.s32.totalorder %s11, 6
    %s18 = sphi 0, %s30
    %s19 = sphi 0, %s26
    %s20 = sphi 0, %s18
    %s21 = sphi 0, %s19
    %s22 = sphi 0, %s20
    %s23 = sphi 0, %s21
    %s35 = sphi 0, %s37
    %s38 = sphi 0, %s35
    %s39 = sphi 0, %s38
    %s55 = sphi 0, %s39
    %s65 = sphi 0, %s67
    %s68 = sphi 0, %s65
    %s69 = sphi 0, %s68
    %s85 = sphi 0, %s69
    %s95 = sphi 0, %s97
    %s98 = sphi 0, %s95
    %s99 = sphi 0, %s98
    %s115 = sphi 0, %s99
    %s119 = sphi 0, %s119
    %s121 = sphi 0, %s119
    %s122 = sphi 0, %s121
    %s136 = sphi 0, %s122
    %s140 = sphi 0, %s140
    %s142 = sphi 0, %s140
    %s143 = sphi 0, %s142
    %s157 = sphi 0, %s143
    %s165 = sphi 0, %s167
    %s168 = sphi 0, %s165
    %s169 = sphi 0, %s168
    %s185 = sphi 0, %s169
  $region4: #{_lambda_.22} parent=0 // loop_header_branch
    %14 = sbr.rel (%p12) target = $region8
  $region5: #{_lambda_.22} parent=0 // loop_body
    %s16 = ssub.s32 %s11, 1
    %s17 = ssub.s32 %s11, 2
    %s24 = sadd.s32 1, %s19
    %p25 = scmp.ge.s32.totalorder %s24, 2
    %s26 = scalar_select %p25, 0, %s24
    %s27 = sadd.s32 1, %s18
    %s28 = scalar_select %p25, %s27, %s18
    %p29 = scmp.ge.s32.totalorder %s28, 2
    %s30 = scalar_select %p29, 0, %s28
    %s31 = ssub.s32 %s18, %s30
    %s32 = ssub.s32 %s19, %s26
    %s33 = sor.u32 %s31, %s32
    %p34 = scmp.eq.s32.totalorder %s33, 0
    %s36 = sadd.s32 %s35, 1
    %s37 = scalar_select %p34, %s35, %s36
    %p40 = pneg %p34
    %p41 = scmp.eq.s32.totalorder %s11, 3
    %p42 = por %p40, %p41
    %p43 = scmp.ne.s32.totalorder %s35, %s38
    %p44 = scmp.eq.s32.totalorder %s11, 0
    %p45 = por %p43, %p44
    %p46 = scmp.ne.s32.totalorder %s35, %s38
    %p47 = scmp.eq.s32.totalorder %s16, 3
    %p48 = por %p46, %p47
    %p49 = scmp.ne.s32.totalorder %s38, %s39
    %p50 = scmp.eq.s32.totalorder %s16, 0
    %p51 = por %p49, %p50
    %p52 = scmp.ne.s32.totalorder %s38, %s39
    %p53 = scmp.eq.s32.totalorder %s17, 3
    %p54 = por %p52, %p53
    %p56 = scmp.ne.s32.totalorder %s39, %s55
    %p57 = scmp.eq.s32.totalorder %s17, 0
    %p58 = por %p56, %p57
    %s59 = sadd.s32 %s19, 1
    %s60 = sadd.s32 %s26, 1
    %s61 = ssub.s32 %s18, %s30
    %s62 = ssub.s32 %s59, %s60
    %s63 = sor.u32 %s61, %s62
    %p64 = scmp.eq.s32.totalorder %s63, 0
    %s66 = sadd.s32 %s65, 1
    %s67 = scalar_select %p64, %s65, %s66
    %p70 = pneg %p64
    %p71 = scmp.eq.s32.totalorder %s11, 3
    %p72 = por %p70, %p71
    %p73 = scmp.ne.s32.totalorder %s65, %s68
    %p74 = scmp.eq.s32.totalorder %s11, 0
    %p75 = por %p73, %p74
    %p76 = scmp.ne.s32.totalorder %s65, %s68
    %p77 = scmp.eq.s32.totalorder %s16, 3
    %p78 = por %p76, %p77
    %p79 = scmp.ne.s32.totalorder %s68, %s69
    %p80 = scmp.eq.s32.totalorder %s16, 0
    %p81 = por %p79, %p80
    %p82 = scmp.ne.s32.totalorder %s68, %s69
    %p83 = scmp.eq.s32.totalorder %s17, 3
    %p84 = por %p82, %p83
    %p86 = scmp.ne.s32.totalorder %s69, %s85
    %p87 = scmp.eq.s32.totalorder %s17, 0
    %p88 = por %p86, %p87
    %s89 = sadd.s32 %s19, 2
    %s90 = sadd.s32 %s26, 2
    %s91 = ssub.s32 %s18, %s30
    %s92 = ssub.s32 %s89, %s90
    %s93 = sor.u32 %s91, %s92
    %p94 = scmp.eq.s32.totalorder %s93, 0
    %s96 = sadd.s32 %s95, 1
    %s97 = scalar_select %p94, %s95, %s96
    %p100 = pneg %p94
    %p101 = scmp.eq.s32.totalorder %s11, 3
    %p102 = por %p100, %p101
    %p103 = scmp.ne.s32.totalorder %s95, %s98
    %p104 = scmp.eq.s32.totalorder %s11, 0
    %p105 = por %p103, %p104
    %p106 = scmp.ne.s32.totalorder %s95, %s98
    %p107 = scmp.eq.s32.totalorder %s16, 3
    %p108 = por %p106, %p107
    %p109 = scmp.ne.s32.totalorder %s98, %s99
    %p110 = scmp.eq.s32.totalorder %s16, 0
    %p111 = por %p109, %p110
    %p112 = scmp.ne.s32.totalorder %s98, %s99
    %p113 = scmp.eq.s32.totalorder %s17, 3
    %p114 = por %p112, %p113
    %p116 = scmp.ne.s32.totalorder %s99, %s115
    %p117 = scmp.eq.s32.totalorder %s17, 0
    %p118 = por %p116, %p117
    %s120 = sadd.s32 %s119, 1
    %p123 = scmp.eq.s32.totalorder %s11, 3
    %p124 = scmp.ne.s32.totalorder %s119, %s121
    %p125 = scmp.eq.s32.totalorder %s11, 0
    %p126 = por %p124, %p125
    %p127 = scmp.ne.s32.totalorder %s119, %s121
    %p128 = scmp.eq.s32.totalorder %s16, 3
    %p129 = por %p127, %p128
    %p130 = scmp.ne.s32.totalorder %s121, %s122
    %p131 = scmp.eq.s32.totalorder %s16, 0
    %p132 = por %p130, %p131
    %p133 = scmp.ne.s32.totalorder %s121, %s122
    %p134 = scmp.eq.s32.totalorder %s17, 3
    %p135 = por %p133, %p134
    %p137 = scmp.ne.s32.totalorder %s122, %s136
    %p138 = scmp.eq.s32.totalorder %s17, 0
    %p139 = por %p137, %p138
    %s141 = sadd.s32 %s140, 1
    %p144 = scmp.eq.s32.totalorder %s11, 3
    %p145 = scmp.ne.s32.totalorder %s140, %s142
    %p146 = scmp.eq.s32.totalorder %s11, 0
    %p147 = por %p145, %p146
    %p148 = scmp.ne.s32.totalorder %s140, %s142
    %p149 = scmp.eq.s32.totalorder %s16, 3
    %p150 = por %p148, %p149
    %p151 = scmp.ne.s32.totalorder %s142, %s143
    %p152 = scmp.eq.s32.totalorder %s16, 0
    %p153 = por %p151, %p152
    %p154 = scmp.ne.s32.totalorder %s142, %s143
    %p155 = scmp.eq.s32.totalorder %s17, 3
    %p156 = por %p154, %p155
    %p158 = scmp.ne.s32.totalorder %s143, %s157
    %p159 = scmp.eq.s32.totalorder %s17, 0
    %p160 = por %p158, %p159
    %s161 = ssub.s32 %s18, %s30
    %s162 = ssub.s32 %s19, %s26
    %s163 = sor.u32 %s161, %s162
    %p164 = scmp.eq.s32.totalorder %s163, 0
    %s166 = sadd.s32 %s165, 1
    %s167 = scalar_select %p164, %s165, %s166
    %p170 = pneg %p164
    %p171 = scmp.eq.s32.totalorder %s11, 3
    %p172 = por %p170, %p171
    %p173 = scmp.ne.s32.totalorder %s165, %s168
    %p174 = scmp.eq.s32.totalorder %s11, 0
    %p175 = por %p173, %p174
    %p176 = scmp.ne.s32.totalorder %s165, %s168
    %p177 = scmp.eq.s32.totalorder %s16, 3
    %p178 = por %p176, %p177
    %p179 = scmp.ne.s32.totalorder %s168, %s169
    %p180 = scmp.eq.s32.totalorder %s16, 0
    %p181 = por %p179, %p180
    %p182 = scmp.ne.s32.totalorder %s168, %s169
    %p183 = scmp.eq.s32.totalorder %s17, 3
    %p184 = por %p182, %p183
    %p186 = scmp.ne.s32.totalorder %s169, %s185
    %p187 = scmp.eq.s32.totalorder %s17, 0
    %p188 = por %p186, %p187
    %p189 = scmp.le.s32.totalorder 1, %s11
    %p190 = scmp.lt.s32.totalorder %s11, 5
    %p191 = pnand %p189, %p190
    %p192 = pneg %p191
    // Predicated region
    $region9: #{_lambda_.22} parent=5 // pred_check
      _
    $region10: #{_lambda_.22} parent=5 // pred_check_branch
      %194 = sbr.rel (%p191) target = $region12
    $region11: #{_lambda_.22} parent=5 // pred_region
      %s195 = ssub.s32 %s11, 1
      // Predicated region
      $region13: #{_lambda_.22} parent=11 // pred_check
        %p196 = pneg %p132
      $region14: #{_lambda_.22} parent=11 // pred_check_branch
        %198 = sbr.rel (%p196) target = $region16
      $region15: #{_lambda_.22} parent=11 // pred_region
        _
      $region16: #{_lambda_.22} parent=11 // pred_fallthru
        _
      // Predicated region
      $region17: #{_lambda_.22} parent=11 // pred_check
        %p199 = pneg %p153
      $region18: #{_lambda_.22} parent=11 // pred_check_branch
        %201 = sbr.rel (%p199) target = $region20
      $region19: #{_lambda_.22} parent=11 // pred_region
        _
      $region20: #{_lambda_.22} parent=11 // pred_fallthru
        _
    $region12: #{_lambda_.22} parent=5 // pred_fallthru
      _
    %p202 = scmp.lt.s32.totalorder %s11, 4
    // Predicated region
    $region21: #{_lambda_.22} parent=5 // pred_check
      %p203 = pneg %p202
    $region22: #{_lambda_.22} parent=5 // pred_check_branch
      %205 = sbr.rel (%p203) target = $region24
    $region23: #{_lambda_.22} parent=5 // pred_region
      // Predicated region
      $region25: #{_lambda_.22} parent=23 // pred_check
        %p206 = pneg %p45
      $region26: #{_lambda_.22} parent=23 // pred_check_branch
        %208 = sbr.rel (%p206) target = $region28
      $region27: #{_lambda_.22} parent=23 // pred_region
        %p209 = scmp.lt.s32.totalorder %s18, 1
        %s210 = scalar_select %p209, %s18, 1
        %p211 = scmp.lt.s32.totalorder %s19, 3
        %s212 = scalar_select %p211, %s19, 3
        %s213 = smul.addr %s210, 4
        %s214 = sadd.s32 %s212, %s213
        %s215 = smul.addr %s214, 2
        %s216 = scalar_lea.vmem %s0, %s215
      $region28: #{_lambda_.22} parent=23 // pred_fallthru
        _
      // Predicated region
      $region29: #{_lambda_.22} parent=23 // pred_check
        %p217 = pneg %p75
      $region30: #{_lambda_.22} parent=23 // pred_check_branch
        %219 = sbr.rel (%p217) target = $region32
      $region31: #{_lambda_.22} parent=23 // pred_region
        %s220 = sadd.s32 %s19, 1
        %p221 = scmp.lt.s32.totalorder %s18, 1
        %s222 = scalar_select %p221, %s18, 1
        %p223 = scmp.lt.s32.totalorder %s220, 3
        %s224 = scalar_select %p223, %s220, 3
        %s225 = smul.addr %s222, 4
        %s226 = sadd.s32 %s224, %s225
        %s227 = smul.addr %s226, 2
        %s228 = scalar_lea.vmem %s1, %s227
        %s229 = sadd.s32 %s19, 1
      $region32: #{_lambda_.22} parent=23 // pred_fallthru
        _
      // Predicated region
      $region33: #{_lambda_.22} parent=23 // pred_check
        %p230 = pneg %p105
      $region34: #{_lambda_.22} parent=23 // pred_check_branch
        %232 = sbr.rel (%p230) target = $region36
      $region35: #{_lambda_.22} parent=23 // pred_region
        %s233 = sadd.s32 %s19, 2
        %p234 = scmp.lt.s32.totalorder %s18, 1
        %s235 = scalar_select %p234, %s18, 1
        %p236 = scmp.lt.s32.totalorder %s233, 3
        %s237 = scalar_select %p236, %s233, 3
        %s238 = smul.addr %s235, 4
        %s239 = sadd.s32 %s237, %s238
        %s240 = smul.addr %s239, 2
        %s241 = scalar_lea.vmem %s2, %s240
        %s242 = sadd.s32 %s19, 2
      $region36: #{_lambda_.22} parent=23 // pred_fallthru
        _
    $region24: #{_lambda_.22} parent=5 // pred_fallthru
      _
    %p243 = scmp.le.s32.totalorder 1, %s11
    %p244 = scmp.lt.s32.totalorder %s11, 5
    %p245 = pnand %p243, %p244
    %p246 = pneg %p245
    // Predicated region
    $region37: #{_lambda_.22} parent=5 // pred_check
      _
    $region38: #{_lambda_.22} parent=5 // pred_check_branch
      %248 = sbr.rel (%p245) target = $region40
    $region39: #{_lambda_.22} parent=5 // pred_region
      %s249 = ssub.s32 %s11, 1
      %p250 = scmp.lt.s32.totalorder %s20, 1
      %s251 = scalar_select %p250, %s20, 1
      %p252 = scmp.lt.s32.totalorder %s21, 3
      %s253 = scalar_select %p252, %s21, 3
      %s254 = smul.addr %s251, 4
      %s255 = sadd.s32 %s253, %s254
      %s256 = smul.addr %s255, 2
      %s257 = scalar_lea.vmem %s0, %s256
      %p258 = pneg %p51
      %p259 = pneg %p48
      %s260 = sadd.s32 %s21, 1
      %p261 = scmp.lt.s32.totalorder %s20, 1
      %s262 = scalar_select %p261, %s20, 1
      %p263 = scmp.lt.s32.totalorder %s260, 3
      %s264 = scalar_select %p263, %s260, 3
      %s265 = smul.addr %s262, 4
      %s266 = sadd.s32 %s264, %s265
      %s267 = smul.addr %s266, 2
      %s268 = scalar_lea.vmem %s1, %s267
      %p269 = pneg %p81
      %p270 = pneg %p78
      %s271 = sadd.s32 %s21, 2
      %p272 = scmp.lt.s32.totalorder %s20, 1
      %s273 = scalar_select %p272, %s20, 1
      %p274 = scmp.lt.s32.totalorder %s271, 3
      %s275 = scalar_select %p274, %s271, 3
      %s276 = smul.addr %s273, 4
      %s277 = sadd.s32 %s275, %s276
      %s278 = smul.addr %s277, 2
      %s279 = scalar_lea.vmem %s2, %s278
      %p280 = pneg %p111
      %p281 = pneg %p108
      %p282 = pneg %p132
      %p283 = pneg %p129
      %p284 = pneg %p153
      %p285 = pneg %p150
      %p286 = pneg %p181
      %p287 = pneg %p178
      %p288 = scmp.lt.s32.totalorder %s20, 1
      %s289 = scalar_select %p288, %s20, 1
      %p290 = scmp.lt.s32.totalorder %s21, 1
      %s291 = scalar_select %p290, %s21, 1
      %s292 = smul.addr %s289, 2
      %s293 = sadd.s32 %s291, %s292
      %s294 = scalar_lea.vmem %s5, %s293
      %p295 = scmp.lt.s32.totalorder %s20, 1
      %s296 = scalar_select %p295, %s20, 1
      %p297 = scmp.lt.s32.totalorder %s21, 3
      %s298 = scalar_select %p297, %s21, 3
      %s299 = smul.addr %s296, 4
      %s300 = sadd.s32 %s298, %s299
      %s301 = smul.addr %s300, 2
      %s302 = scalar_lea.vmem %s0, %s301
      %s303 = sadd.s32 %s21, 1
      %p304 = scmp.lt.s32.totalorder %s20, 1
      %s305 = scalar_select %p304, %s20, 1
      %p306 = scmp.lt.s32.totalorder %s303, 3
      %s307 = scalar_select %p306, %s303, 3
      %s308 = smul.addr %s305, 4
      %s309 = sadd.s32 %s307, %s308
      %s310 = smul.addr %s309, 2
      %s311 = scalar_lea.vmem %s1, %s310
      %s312 = sadd.s32 %s21, 1
      %s313 = sadd.s32 %s21, 2
      %p314 = scmp.lt.s32.totalorder %s20, 1
      %s315 = scalar_select %p314, %s20, 1
      %p316 = scmp.lt.s32.totalorder %s313, 3
      %s317 = scalar_select %p316, %s313, 3
      %s318 = smul.addr %s315, 4
      %s319 = sadd.s32 %s317, %s318
      %s320 = smul.addr %s319, 2
      %s321 = scalar_lea.vmem %s2, %s320
      %s322 = sadd.s32 %s21, 2
      %p323 = scmp.lt.s32.totalorder %s20, 1
      %s324 = scalar_select %p323, %s20, 1
      %p325 = scmp.lt.s32.totalorder %s21, 1
      %s326 = scalar_select %p325, %s21, 1
      %s327 = smul.addr %s324, 2
      %s328 = sadd.s32 %s326, %s327
      %s329 = scalar_lea.vmem %s5, %s328
      %v330 = vld [vmem:[%s302] sm:$0x3]
      %v331 = vunpack.c.l.bf16 %v330
      %v332 = vld [vmem:[%s3] sm:$0x1]
      %v334 = vperm.slane %v332, 0
      %v336 = vmul.f32 %v331, %v334
      %v337 = vadd.f32 %v336, 0.0
      %s338 = scalar_lea.vmem %s3, 1
      %v339 = vld [vmem:[%s338] sm:$0x1]
      %v341 = vperm.slane %v339, 0
      %v343 = vmul.f32 %v331, %v341
      %v345 = vrot.slane %v343, 5
      %v346 = vrot.slane %v345, 4
      %v348 = vadd.f32 %v337, %v346
      %s349 = scalar_lea.vmem %s3, 2
      %v350 = vld [vmem:[%s349] sm:$0x1]
      %v352 = vperm.slane %v350, 0
      %v354 = vmul.f32 %v331, %v352
      %v356 = vrot.slane %v354, 6
      %v357 = vrot.slane %v356, 4
      %v359 = vadd.f32 %v348, %v357
      %v360 = vld [vmem:[%s311] sm:$0x3]
      %v361 = vunpack.c.l.bf16 %v360
      %s362 = scalar_lea.vmem %s3, 3
      %v363 = vld [vmem:[%s362] sm:$0x1]
      %v365 = vperm.slane %v363, 0
      %v367 = vmul.f32 %v361, %v365
      %v368 = vadd.f32 %v359, %v367
      %s369 = scalar_lea.vmem %s3, 4
      %v370 = vld [vmem:[%s369] sm:$0x1]
      %v372 = vperm.slane %v370, 0
      %v374 = vmul.f32 %v361, %v372
      %v376 = vrot.slane %v374, 5
      %v377 = vrot.slane %v376, 4
      %v379 = vadd.f32 %v368, %v377
      %s380 = scalar_lea.vmem %s3, 5
      %v381 = vld [vmem:[%s380] sm:$0x1]
      %v383 = vperm.slane %v381, 0
      %v385 = vmul.f32 %v361, %v383
      %v387 = vrot.slane %v385, 6
      %v388 = vrot.slane %v387, 4
      %v390 = vadd.f32 %v379, %v388
      %v391 = vld [vmem:[%s321] sm:$0x3]
      %v392 = vunpack.c.l.bf16 %v391
      %s393 = scalar_lea.vmem %s3, 6
      %v394 = vld [vmem:[%s393] sm:$0x1]
      %v396 = vperm.slane %v394, 0
      %v398 = vmul.f32 %v392, %v396
      %v399 = vadd.f32 %v390, %v398
      %s400 = scalar_lea.vmem %s3, 7
      %v401 = vld [vmem:[%s400] sm:$0x1]
      %v403 = vperm.slane %v401, 0
      %v405 = vmul.f32 %v392, %v403
      %v407 = vrot.slane %v405, 5
      %v408 = vrot.slane %v407, 4
      %v410 = vadd.f32 %v399, %v408
      %s411 = scalar_lea.vmem %s3, 8
      %v412 = vld [vmem:[%s411] sm:$0x1]
      %v414 = vperm.slane %v412, 0
      %v416 = vmul.f32 %v392, %v414
      %v418 = vrot.slane %v416, 6
      %v419 = vrot.slane %v418, 4
      %v421 = vadd.f32 %v410, %v419
      %v422 = vld [vmem:[%s4] sm:$0x1]
      %v424 = vperm.slane %v422, 0
      %v426 = vadd.f32 %v421, %v424
      %v427 = vxor.u32 %v426, 2147483648
      %v428 = vmul.f32 %v427, 1.442695
      %v429 = vpow.pop %v428
      %v430 = vadd.f32 %v429, 1.0
      %v431 = vrcp.pop %v430
      %v432 = vmul.f32 %v430, %v431
      %v433 = vsub.f32 1.0, %v432
      %v434 = vmul.f32 %v431, %v433
      %v435 = vadd.f32 %v431, %v434
      %vm436 = vweird.f32 %v430
      %vm437 = vweird.f32 %v431
      %vm438 = vmor %vm436, %vm437
      %v439 = vsel %vm438, %v431, %v435
      %v440 = vand.u32 2147483647, %v430
      %vm441 = vcmp.eq.f32.partialorder %v440, 8.507059e+37
      %v442 = vand.u32 %v430, 2147483648
      %v443 = vor.u32 1.1754944e-38, %v442
      %v444 = vsel %vm441, %v443, %v439
      %v445 = vmul.f32 1.0, %v444
      %v446 = vmul.f32 %v426, %v445
      %v447 = vpack.c.bf16 %v446, %v446
      %448 = vst [vmem:[%s329] sm:$0x1] %v447
      %p449 = scmp.lt.s32.totalorder %s20, 1
      %s450 = scalar_select %p449, %s20, 1
      %p451 = scmp.lt.s32.totalorder %s21, 1
      %s452 = scalar_select %p451, %s21, 1
      %s453 = smul.addr %s450, 2
      %s454 = sadd.s32 %s452, %s453
      %s455 = scalar_lea.vmem %s5, %s454
      // Predicated region
      $region41: #{_lambda_.22} parent=39 // pred_check
        %p456 = pneg %p178
      $region42: #{_lambda_.22} parent=39 // pred_check_branch
        %458 = sbr.rel (%p456) target = $region44
      $region43: #{_lambda_.22} parent=39 // pred_region
        _
      $region44: #{_lambda_.22} parent=39 // pred_fallthru
        _
    $region40: #{_lambda_.22} parent=5 // pred_fallthru
      _
    %p459 = scmp.le.s32.totalorder 2, %s11
    // Predicated region
    $region45: #{_lambda_.22} parent=5 // pred_check
      %p460 = pneg %p459
    $region46: #{_lambda_.22} parent=5 // pred_check_branch
      %462 = sbr.rel (%p460) target = $region48
    $region47: #{_lambda_.22} parent=5 // pred_region
      %s463 = ssub.s32 %s11, 2
      // Predicated region
      $region49: #{_lambda_.22} parent=47 // pred_check
        %p464 = pneg %p184
      $region50: #{_lambda_.22} parent=47 // pred_check_branch
        %466 = sbr.rel (%p464) target = $region52
      $region51: #{_lambda_.22} parent=47 // pred_region
        %p467 = scmp.lt.s32.totalorder %s22, 1
        %s468 = scalar_select %p467, %s22, 1
        %p469 = scmp.lt.s32.totalorder %s23, 1
        %s470 = scalar_select %p469, %s23, 1
        %s471 = smul.addr %s468, 2
        %s472 = sadd.s32 %s470, %s471
        %s473 = scalar_lea.vmem %s5, %s472
      $region52: #{_lambda_.22} parent=47 // pred_fallthru
        _
    $region48: #{_lambda_.22} parent=5 // pred_fallthru
      _
  $region6: #{_lambda_.22} parent=0 // loop_footer
    %s15 = sadd.s32 1, %s11
  $region7: #{_lambda_.22} parent=0 // loop_footer_branch
    %10 = sbr.rel target = $region3
  $region8: #{_lambda_.22} parent=0 // loop_exit
    _

// kernel: _lambda_.23
$region0: #{_lambda_.23}
  #allocation0 [shape = 'u32[]', space=smem, size = 0x4, offset = 0x4, fixed_abs, tag = 'smem constant byte address 0x4 - core index']
  #allocation1 [shape = 'u32[72,128]{1,0:T(1,128)}', space=vmem, size = 0x9000, scoped, tag = 'internal scratch']
  %s0 = inlined_call_operand.vmem [shape: bf16[16,128], index: 0, kind: input, shape index: {}]
  %s1 = inlined_call_operand.vmem [shape: bf16[128,128], index: 1, kind: input, shape index: {}]
  %s2 = inlined_call_operand.vmem [shape: f32[1,128], index: 2, kind: input, shape index: {}]
  %s3 = inlined_call_operand.vmem [shape: f32[1,128], index: 3, kind: input, shape index: {}]
  %s4 = inlined_call_operand.vmem [shape: bf16[16,128], index: 4, kind: input, shape index: {}]
  %s5 = inlined_call_operand.vmem [shape: bf16[16,128], index: 5, kind: output, shape index: {}]
  %s6 = sld [smem:[#allocation0]]
  $region30: #{_lambda_.23} parent=0
    _
  %s8 = ssub.s32 1, %s6
  %s9 = scalar_select 0, %s8, %s6
  // Predicated region
  $region2: #{_lambda_.23} parent=0 // pred_check
    _
  $region3: #{_lambda_.23} parent=0 // pred_check_branch
    %11 = sbr.rel (0) target = $region5
  $region4: #{_lambda_.23} parent=0 // pred_region
    _
  $region5: #{_lambda_.23} parent=0 // pred_fallthru
    _
  // Predicated region
  $region6: #{_lambda_.23} parent=0 // pred_check
    _
  $region7: #{_lambda_.23} parent=0 // pred_check_branch
    %13 = sbr.rel (0) target = $region9
  $region8: #{_lambda_.23} parent=0 // pred_region
    _
  $region9: #{_lambda_.23} parent=0 // pred_fallthru
    _
  // Predicated region
  $region10: #{_lambda_.23} parent=0 // pred_check
    _
  $region11: #{_lambda_.23} parent=0 // pred_check_branch
    %15 = sbr.rel (0) target = $region13
  $region12: #{_lambda_.23} parent=0 // pred_region
    _
  $region13: #{_lambda_.23} parent=0 // pred_fallthru
    _
  // Predicated region
  $region14: #{_lambda_.23} parent=0 // pred_check
    _
  $region15: #{_lambda_.23} parent=0 // pred_check_branch
    %17 = sbr.rel (0) target = $region17
  $region16: #{_lambda_.23} parent=0 // pred_region
    _
  $region17: #{_lambda_.23} parent=0 // pred_fallthru
    _
  // Predicated region
  $region18: #{_lambda_.23} parent=0 // pred_check
    _
  $region19: #{_lambda_.23} parent=0 // pred_check_branch
    %19 = sbr.rel (0) target = $region21
  $region20: #{_lambda_.23} parent=0 // pred_region
    _
  $region21: #{_lambda_.23} parent=0 // pred_fallthru
    _
  %v20 = vld [vmem:[%s0] sm:$0xf]
  %v21 = vld [vmem:[%s0 + $0x4] sm:$0xf]
  %v22 = vld [vmem:[%s1] sm:$0xf]
  %v23 = vld [vmem:[%s1 + $0x4] sm:$0xf]
  %v24 = vld [vmem:[%s1 + $0x8] sm:$0xf]
  %v25 = vld [vmem:[%s1 + $0xc] sm:$0xf]
  %v26 = vld [vmem:[%s1 + $0x10] sm:$0xf]
  %v27 = vld [vmem:[%s1 + $0x14] sm:$0xf]
  %v28 = vld [vmem:[%s1 + $0x18] sm:$0xf]
  %v29 = vld [vmem:[%s1 + $0x1c] sm:$0xf]
  %v30 = vld [vmem:[%s1 + $0x20] sm:$0xf]
  %v31 = vld [vmem:[%s1 + $0x24] sm:$0xf]
  %v32 = vld [vmem:[%s1 + $0x28] sm:$0xf]
  %v33 = vld [vmem:[%s1 + $0x2c] sm:$0xf]
  %v34 = vld [vmem:[%s1 + $0x30] sm:$0xf]
  %v35 = vld [vmem:[%s1 + $0x34] sm:$0xf]
  %v36 = vld [vmem:[%s1 + $0x38] sm:$0xf]
  %v37 = vld [vmem:[%s1 + $0x3c] sm:$0xf]
  %v40 = vunpack.c.l.b16 %v20
  %v41 = vunpack.c.l.b16 %v21
  %v42 = vpack.c.b16 %v41, %v40
  %v60 = vunpack.c.l.b16 %v22
  %v61 = vunpack.c.l.b16 %v23
  %v62 = vunpack.c.l.b16 %v24
  %v63 = vunpack.c.l.b16 %v25
  %v64 = vunpack.c.l.b16 %v26
  %v65 = vunpack.c.l.b16 %v27
  %v66 = vunpack.c.l.b16 %v28
  %v67 = vunpack.c.l.b16 %v29
  %v68 = vunpack.c.l.b16 %v30
  %v69 = vunpack.c.l.b16 %v31
  %v70 = vunpack.c.l.b16 %v32
  %v71 = vunpack.c.l.b16 %v33
  %v72 = vunpack.c.l.b16 %v34
  %v73 = vunpack.c.l.b16 %v35
  %v74 = vunpack.c.l.b16 %v36
  %v75 = vunpack.c.l.b16 %v37
  %v76 = vpack.c.b16 %v61, %v60
  %v77 = vpack.c.b16 %v63, %v62
  %v78 = vpack.c.b16 %v65, %v64
  %v79 = vpack.c.b16 %v67, %v66
  %v80 = vpack.c.b16 %v69, %v68
  %v81 = vpack.c.b16 %v71, %v70
  %v82 = vpack.c.b16 %v73, %v72
  %v83 = vpack.c.b16 %v75, %v74
  %92 = vmatpush.bf16.msra.mxu0 %v83
  %93 = vmatpush.bf16.msra.mxu0 %v82
  %94 = vmatpush.bf16.msra.mxu0 %v81
  %95 = vmatpush.bf16.msra.mxu0 %v80
  %96 = vmatpush.bf16.msra.mxu0 %v79
  %97 = vmatpush.bf16.msra.mxu0 %v78
  %98 = vmatpush.bf16.msra.mxu0 %v77
  %99 = vmatpush.bf16.msra.mxu0 %v76
  %100 = vmatmul.bf16.gmra.mxu0 %v42
  %v101 = vpop.f32.mrf.mxu0
  %v102 = vadd.f32 0.0, %v101
  %v103 = vpop.f32.mrf.mxu0
  %v104 = vadd.f32 0.0, %v103
  %105 = vdwg.mxu0
  %v106 = vld [vmem:[%s2] sm:$0x1]
  %v108 = vperm.slane %v106, 0
  %v110 = vmul.f32 %v102, %v108
  %v111 = vmul.f32 %v104, %v108
  %v112 = vld [vmem:[%s3] sm:$0x1]
  %v114 = vperm.slane %v112, 0
  %v116 = vadd.f32 %v110, %v114
  %v117 = vadd.f32 %v111, %v114
  %v118 = vld [vmem:[%s4] sm:$0xf]
  %v119 = vld [vmem:[%s4 + $0x4] sm:$0xf]
  %v120 = vunpack.c.l.bf16 %v118
  %v121 = vunpack.c.l.bf16 %v119
  %v122 = vadd.f32 %v116, %v120
  %v123 = vadd.f32 %v117, %v121
  %v124 = vpack.c.bf16 %v122, %v122
  %v125 = vpack.c.bf16 %v123, %v123
  %126 = vst [vmem:[%s5] sm:$0xf] %v124
  %127 = vst [vmem:[%s5 + $0x4] sm:$0xf] %v125
  // Predicated region
  $region22: #{_lambda_.23} parent=0 // pred_check
    _
  $region23: #{_lambda_.23} parent=0 // pred_check_branch
    %129 = sbr.rel (0) target = $region25
  $region24: #{_lambda_.23} parent=0 // pred_region
    _
  $region25: #{_lambda_.23} parent=0 // pred_fallthru
    _
  // Predicated region
  $region26: #{_lambda_.23} parent=0 // pred_check
    _
  $region27: #{_lambda_.23} parent=0 // pred_check_branch
    %131 = sbr.rel (0) target = $region29
  $region28: #{_lambda_.23} parent=0 // pred_region
    _
  $region29: #{_lambda_.23} parent=0 // pred_fallthru
    _

// kernel: _lambda_.25
$region0: #{_lambda_.25}
  #allocation0 [shape = 'u32[]', space=smem, size = 0x4, offset = 0x4, fixed_abs, tag = 'smem constant byte address 0x4 - core index']
  #allocation1 [shape = 'u32[72,128]{1,0:T(1,128)}', space=vmem, size = 0x9000, scoped, tag = 'internal scratch']
  %s0 = inlined_call_operand.vmem [shape: bf16[2,16,128], index: 0, kind: input, shape index: {}]
  %s1 = inlined_call_operand.hbm [shape: f32[2,128], index: 1, kind: output, shape index: {}]
  %s2 = sld [smem:[#allocation0]]
  $region22: #{_lambda_.25} parent=0
    _
  %s4 = ssub.s32 1, %s2
  %s5 = scalar_select 0, %s4, %s2
  $region1: #{_lambda_.25} parent=0
    #allocation2 [shape = 'u8[1024]{0}', space=vmem, size = 0x400, scoped, tag = 'output window, operand 0, single buffered']
    #allocation3 [shape = 's32[1]{0}', space=sflag, size = 0x4, scoped, tag = 'scoped memory for _lambda_.25']
    %6 = vsyncpa [#allocation3], 0
    // Predicated region
    $region2: #{_lambda_.25} parent=1 // pred_check
      _
    $region3: #{_lambda_.25} parent=1 // pred_check_branch
      %8 = sbr.rel (0) target = $region5
    $region4: #{_lambda_.25} parent=1 // pred_region
      _
    $region5: #{_lambda_.25} parent=1 // pred_fallthru
      _
    %p9 = scmp.eq.s32.totalorder 0, 0
    // Predicated region
    $region6: #{_lambda_.25} parent=1 // pred_check
      %p10 = pneg %p9
    $region7: #{_lambda_.25} parent=1 // pred_check_branch
      %12 = sbr.rel (%p10) target = $region9
    $region8: #{_lambda_.25} parent=1 // pred_region
      %13 = vst [vmem:[#allocation2] sm:$0x3] 0.0
    $region9: #{_lambda_.25} parent=1 // pred_fallthru
      _
    %v14 = vld [vmem:[#allocation2] sm:$0x3]
    %v15 = vld [vmem:[%s0] sm:$0xf]
    %v16 = vld [vmem:[%s0 + $0x4] sm:$0xf]
    %v17 = vld [vmem:[%s0 + $0x8] sm:$0xf]
    %v18 = vld [vmem:[%s0 + $0xc] sm:$0xf]
    %v19 = vunpack.c.l.bf16 %v15
    %v20 = vunpack.c.l.bf16 %v16
    %v21 = vunpack.c.l.bf16 %v17
    %v22 = vunpack.c.l.bf16 %v18
    %v23 = vadd.f32 %v19, %v20
    %v24 = vrot.slane %v23, 4
    %v25 = vadd.f32 %v23, %v24
    %v26 = vrot.slane %v25, 2
    %v27 = vadd.f32 %v25, %v26
    %v28 = vrot.slane %v27, 1
    %v29 = vadd.f32 %v27, %v28
    %v30 = vadd.f32 %v21, %v22
    %v31 = vrot.slane %v30, 4
    %v32 = vadd.f32 %v30, %v31
    %v33 = vrot.slane %v32, 2
    %v34 = vadd.f32 %v32, %v33
    %v35 = vrot.slane %v34, 1
    %v36 = vadd.f32 %v34, %v35
    %vm39 = vcmask 1041409
    %v40 = vsel %vm39, %v36, %v29
    %v42 = vadd.f32 %v14, %v40
    %43 = vst [vmem:[#allocation2] sm:$0x3] %v42
    // Predicated region
    $region10: #{_lambda_.25} parent=1 // pred_check
      %p44 = pneg %p9
    $region11: #{_lambda_.25} parent=1 // pred_check_branch
      %46 = sbr.rel (%p44) target = $region13
    $region12: #{_lambda_.25} parent=1 // pred_region
      %v47 = vld [vmem:[#allocation2] sm:$0x3]
      %v48 = vmul.f32 %v47, 0.25
      %49 = vst [vmem:[#allocation2] sm:$0x3] %v48
    $region13: #{_lambda_.25} parent=1 // pred_fallthru
      _
    // Predicated region
    $region14: #{_lambda_.25} parent=1 // pred_check
      _
    $region15: #{_lambda_.25} parent=1 // pred_check_branch
      %51 = sbr.rel (0) target = $region17
    $region16: #{_lambda_.25} parent=1 // pred_region
      %53 = vsyncadd [#allocation3], 0
      %s55 = sshll.u32 [#allocation2], 4
      %s56 = int_to_ptr.vmem [resolvable:$true] %s55
      %s57 = sshll.u32 %s1, 4
      %s58 = int_to_ptr.hbm [resolvable:$true] %s57
      %60 = dma.vmem_to_hbm [thread:$0]  %s56, 32, %s58, [#allocation3]
    $region17: #{_lambda_.25} parent=1 // pred_fallthru
      _
    // Predicated region
    $region18: #{_lambda_.25} parent=1 // pred_check
      _
    $region19: #{_lambda_.25} parent=1 // pred_check_branch
      %62 = sbr.rel (0) target = $region21
    $region20: #{_lambda_.25} parent=1 // pred_region
      %64 = dma.done [#allocation3], 32
    $region21: #{_lambda_.25} parent=1 // pred_fallthru
      _
    %65 = vsyncpa [#allocation3], 1

</llo_original>
